<compile_context>
chip_gen: v7x
topology: tpu7x:2x2x1
jax: 0.10.0
libtpu: 0.0.40
codegen_flags: <defaults>
</compile_context>

<pallas_src>
import functools

import numpy as np
import jax
import jax.numpy as jnp
from jax.experimental import pallas as pl
from jax.experimental.pallas import tpu as pltpu

LRN_SIZE = 4
LRN_ALPHA = 0.001 / 9.0
LRN_BETA = 0.75          # implemented as t^-0.75 = rsqrt(t) * sqrt(rsqrt(t))
LRN_K = 1.0


# ----------------------------- in-kernel helpers ---------------------------- #

def _conv5x5_same(lhs_bf, t_ref, m_out):
    """5x5 'same' conv as sum_kh (row-shifted slab) @ (block-Toeplitz weight).

    lhs_bf : (m_out + 4, W*Cin) bf16 H-padded, batch-stacked activation slab
    t_ref  : (5, W*Cin, W*Cout) bf16 block-Toeplitz weights (the W-direction
             padding is folded into the zero structure of the bands)
    returns: (m_out, W*Cout) f32.  Rows that straddle two images ("junk" rows)
             are computed but later dropped by the 0/1 row-pool selector.
    """
    acc = None
    for kh in range(t_ref.shape[0]):
        p = jnp.dot(lhs_bf[kh:kh + m_out, :], t_ref[kh],
                    preferred_element_type=jnp.float32)
        acc = p if acc is None else acc + p
    return acc


def _relu_lrn(y, d_ref):
    """ReLU then LocalResponseNorm(4, 0.001/9, 0.75, 1) on a (rows, W*C) slab.

    d_ref holds kron(I_W, band) (bf16, entries 0 / 0.25 exact) so the channel-
    window average of squares is a single block-diagonal matmul; t^-0.75 uses
    rsqrt/sqrt (EUP) instead of exp/log + a VPU divide.
    """
    y = jnp.maximum(y, 0.0)
    sq = (y * y).astype(jnp.bfloat16)
    div = jnp.dot(sq, d_ref[...], preferred_element_type=jnp.float32)
    t = LRN_K + LRN_ALPHA * div
    r = jax.lax.rsqrt(t)
    return y * (r * jnp.sqrt(r))


def _maxpool_3x3_s2_p1(z, r_ref, s_ref):
    """MaxPool2d(3, stride=2, padding=1) on a non-negative batched (rows, W*C) slab.

    Separable: max over 3 row-selection matmuls (R[d] @ z; R also drops the
    junk rows between stacked images and, for stage 1, re-emits the zero
    H-padding rows for the next conv) then max over 3 column-selection matmuls
    (picking lane groups w = 2*wo + d - 1).  Exact because the selectors are
    0/1, accumulation is f32, and the activations are >= 0.
    """
    zb = z.astype(jnp.bfloat16)
    hp = None
    for d in range(r_ref.shape[0]):
        m = jnp.dot(r_ref[d], zb, preferred_element_type=jnp.float32)
        hp = m if hp is None else jnp.maximum(hp, m)
    hpb = hp.astype(jnp.bfloat16)
    out = None
    for d in range(s_ref.shape[0]):
        m = jnp.dot(hpb, s_ref[d], preferred_element_type=jnp.float32)
        out = m if out is None else jnp.maximum(out, m)
    return out


# --------------------------------- kernel ----------------------------------- #

def learner_kernel(x_ref, t1_ref, d1_ref, r1_ref, s1_ref,
                   t2_ref, d2_ref, r2_ref, s2_ref,
                   wfc1_ref, wfc2_ref, wfc3_ref, o_ref):
    m1 = x_ref.shape[0] - 4            # BT*(H+4) - 4      conv-1 output rows
    m2 = r1_ref.shape[1] - 4           # BT*(H/2+4) - 4    conv-2 output rows
    smid = wfc1_ref.shape[0]           # 8
    bt = r2_ref.shape[1] // smid       # batch tile

    # ---- stage 1: conv1 + ReLU + LRN + MaxPool(3,2,1), all in VMEM ----
    xp = x_ref[...]                               # (BT*(H+4), W*Cin) bf16, pre-padded
    y1 = _conv5x5_same(xp, t1_ref, m1)            # (m1, W*C1) f32, lane-dense
    z1 = _relu_lrn(y1, d1_ref)
    # r1 drops junk rows AND emits the zero H-pad rows for conv2's input layout.
    p1 = _maxpool_3x3_s2_p1(z1, r1_ref, s1_ref)   # (BT*(H/2+4), (W/2)*C1) f32

    # ---- stage 2: conv2 + ReLU + LRN + MaxPool(3,2,1) ----
    p1b = p1.astype(jnp.bfloat16)
    y2 = _conv5x5_same(p1b, t2_ref, m2)           # (m2, (W/2)*C2)
    z2 = _relu_lrn(y2, d2_ref)
    # r2 emits a spatial-major layout: row i*BT + b = pooled spatial row i of image b.
    p2 = _maxpool_3x3_s2_p1(z2, r2_ref, s2_ref)   # (smid*BT, smid*C2)

    # ---- fused fc1 -> ReLU -> fc2 -> ReLU -> fc3 (Dropout(p=0) is identity) ----
    p2b = p2.astype(jnp.bfloat16)
    acc = None
    for i in range(smid):                         # accumulate over pooled spatial row
        p = jnp.dot(p2b[i * bt:(i + 1) * bt, :], wfc1_ref[i],
                    preferred_element_type=jnp.float32)   # (BT, C3), aligned slabs
        acc = p if acc is None else acc + p
    a1 = jnp.maximum(acc, 0.0).astype(jnp.bfloat16)
    a2 = jnp.maximum(
        jnp.dot(a1, wfc2_ref[...], preferred_element_type=jnp.float32), 0.0)
    # fc3 weight is zero-padded to 128 output lanes -> lane-dense store.
    o_ref[...] = jnp.dot(a2.astype(jnp.bfloat16), wfc3_ref[...],
                         preferred_element_type=jnp.float32)


# --------------------- host-side weight preprocessing ----------------------- #

def _banded_conv_weight(w, width):
    """(5,5,Cin,Cout) conv kernel -> (5, width*Cin, width*Cout) block-Toeplitz
    matrices implementing the W direction of a 5x5 'same' (pad=2) conv."""
    kh_n, kw_n, cin, cout = w.shape
    t = np.zeros((kh_n, width * cin, width * cout), np.float32)
    for kh in range(kh_n):
        for kw in range(kw_n):
            for wo in range(width):
                wi = wo + kw - 2
                if 0 <= wi < width:
                    t[kh, wi * cin:(wi + 1) * cin, wo * cout:(wo + 1) * cout] = w[kh, kw]
    return t


def _lrn_blockdiag(width, c):
    """kron(I_width, band) for torch.nn.LocalResponseNorm(4, ...): output
    channel k averages input channels [k-2, k+1] with weight 1/4 (zero padding
    counted, matching count_include_pad)."""
    j = np.arange(c)[:, None]
    k = np.arange(c)[None, :]
    band = ((j >= k - LRN_SIZE // 2) & (j <= k + (LRN_SIZE - 1) // 2))
    band = band.astype(np.float32) / float(LRN_SIZE)
    return np.kron(np.eye(width, dtype=np.float32), band)


def _pool_row_select_padded(bt, h_in, sp_in, sp_out):
    """(3, bt*sp_out, bt*sp_in - 4) 0/1 matrices.

    Output row b*sp_out + 2 + i (i in [0, h_in//2)) selects conv-output row
    b*sp_in + (2*i + d - 1) of image b; all other output rows stay zero and
    become the zero H-padding of the next conv's batched input slab."""
    h_out = h_in // 2
    m_in = bt * sp_in - 4
    r = np.zeros((3, bt * sp_out, m_in), np.float32)
    for d in range(3):
        for b in range(bt):
            for i in range(h_out):
                src = 2 * i + d - 1
                if 0 <= src < h_in:
                    r[d, b * sp_out + 2 + i, b * sp_in + src] = 1.0
    return r


def _pool_row_select_flat(bt, h_in, sp_in):
    """(3, (h_in//2)*bt, bt*sp_in - 4) 0/1 matrices, spatial-major output:
    output row i*bt + b selects conv-output row b*sp_in + (2*i + d - 1)."""
    h_out = h_in // 2
    r = np.zeros((3, h_out * bt, bt * sp_in - 4), np.float32)
    for d in range(3):
        for b in range(bt):
            for i in range(h_out):
                src = 2 * i + d - 1
                if 0 <= src < h_in:
                    r[d, i * bt + b, b * sp_in + src] = 1.0
    return r


def _pool_col_select(n_in, c):
    """(3, n_in*c, (n_in//2)*c) 0/1 matrices: y @ S[d] picks channel groups
    w = 2*wo + d - 1 out of the lane-folded (W*C) axis."""
    n_out = n_in // 2
    s = np.zeros((3, n_in * c, n_out * c), np.float32)
    eye_c = np.eye(c, dtype=np.float32)
    for d in range(3):
        for wo in range(n_out):
            src = 2 * wo + d - 1
            if 0 <= src < n_in:
                s[d, src * c:(src + 1) * c, wo * c:(wo + 1) * c] = eye_c
    return s


def init_params(key, channels=(8, 16, 64, 32), n_outputs=10, bt=8):
    """Weights pre-processed for the batched kernel (selector matrices depend
    on the batch tile `bt`)."""
    c1, c2, c3, c4 = channels
    hw = 32       # the module hard-codes 32x32 inputs
    h2 = 16       # after first MaxPool(3,2,1)
    smid = 8      # after second MaxPool(3,2,1)
    sp1, sp2 = hw + 4, h2 + 4
    k1, k2, k3, k4, k5 = jax.random.split(key, 5)
    s = 0.05
    w1 = np.asarray(jax.random.normal(k1, (5, 5, 3, c1), jnp.float32)) * s
    w2 = np.asarray(jax.random.normal(k2, (5, 5, c1, c2), jnp.float32)) * s
    # fc1 weight stored pre-permuted to the (h, w, c) lane-flatten order and
    # pre-split into `smid` row blocks of (smid*c2, c3) so the kernel consumes
    # the pooled slab without any in-kernel flatten.  (Porting trap: a real
    # torch checkpoint is flattened in (c, h, w) order and must be permuted.)
    wfc1 = jax.random.normal(k3, (smid, smid * c2, c3), jnp.float32) * s
    wfc2 = jax.random.normal(k4, (c3, c4), jnp.float32) * s
    wfc3 = jax.random.normal(k5, (c4, n_outputs), jnp.float32) * s
    return {
        "t1": jnp.asarray(_banded_conv_weight(w1, hw), jnp.bfloat16),
        "d1": jnp.asarray(_lrn_blockdiag(hw, c1), jnp.bfloat16),
        "r1": jnp.asarray(_pool_row_select_padded(bt, hw, sp1, sp2), jnp.bfloat16),
        "s1": jnp.asarray(_pool_col_select(hw, c1), jnp.bfloat16),
        "t2": jnp.asarray(_banded_conv_weight(w2, h2), jnp.bfloat16),
        "d2": jnp.asarray(_lrn_blockdiag(h2, c2), jnp.bfloat16),
        "r2": jnp.asarray(_pool_row_select_flat(bt, h2, sp2), jnp.bfloat16),
        "s2": jnp.asarray(_pool_col_select(h2, c2), jnp.bfloat16),
        "wfc1": wfc1.astype(jnp.bfloat16),
        "wfc2": wfc2.astype(jnp.bfloat16),
        "wfc3": wfc3.astype(jnp.bfloat16),
    }


# --------------------------------- wrapper ---------------------------------- #

@functools.partial(jax.jit, static_argnames=("bt",))
def learner_forward(x_nchw, params, *, bt=8):
    """t == 0 path of Learner.forward: the expand-concats append 0 channels and
    Dropout(p=0) is identity, so only the conv/LRN/pool/fc pipeline remains."""
    B, cin, H, W = x_nchw.shape
    assert (H, W) == (32, 32), "Learner hard-codes 32x32 inputs"
    assert B % bt == 0, "batch must be a multiple of the batch tile"
    sp1 = H + 4

    # NHWC, lane-fold (W, C), H-pad by 2 each side, stack images along sublanes.
    # (Layout plumbing done once on the HBM side; the kernel sees a ready-padded
    #  lane-dense slab and issues no padding stores.)
    x = jnp.transpose(x_nchw, (0, 2, 3, 1)).astype(jnp.bfloat16)   # (B, H, W, C)
    x = x.reshape(B, H, W * cin)
    xp = jnp.pad(x, ((0, 0), (2, 2), (0, 0))).reshape(B * sp1, W * cin)

    n_outputs = params["wfc3"].shape[1]
    assert n_outputs <= 128
    wfc3p = jnp.pad(params["wfc3"], ((0, 0), (0, 128 - n_outputs)))  # lane-dense out

    out = pl.pallas_call(
        learner_kernel,
        out_shape=jax.ShapeDtypeStruct((B, 128), jnp.float32),
        grid=(B // bt,),
        in_specs=[
            pl.BlockSpec((bt * sp1, W * cin), lambda g: (g, 0)),
            pl.BlockSpec(params["t1"].shape, lambda g: (0, 0, 0)),
            pl.BlockSpec(params["d1"].shape, lambda g: (0, 0)),
            pl.BlockSpec(params["r1"].shape, lambda g: (0, 0, 0)),
            pl.BlockSpec(params["s1"].shape, lambda g: (0, 0, 0)),
            pl.BlockSpec(params["t2"].shape, lambda g: (0, 0, 0)),
            pl.BlockSpec(params["d2"].shape, lambda g: (0, 0)),
            pl.BlockSpec(params["r2"].shape, lambda g: (0, 0, 0)),
            pl.BlockSpec(params["s2"].shape, lambda g: (0, 0, 0)),
            pl.BlockSpec(params["wfc1"].shape, lambda g: (0, 0, 0)),
            pl.BlockSpec(params["wfc2"].shape, lambda g: (0, 0)),
            pl.BlockSpec(wfc3p.shape, lambda g: (0, 0)),
        ],
        out_specs=pl.BlockSpec((bt, 128), lambda g: (g, 0)),
        compiler_params=pltpu.CompilerParams(
            dimension_semantics=("parallel",)),
    )(xp, params["t1"], params["d1"], params["r1"], params["s1"],
      params["t2"], params["d2"], params["r2"], params["s2"],
      params["wfc1"], params["wfc2"], wfc3p)
    return out[:, :n_outputs]


if __name__ == "__main__":
    key = jax.random.PRNGKey(0)
    kx, kp = jax.random.split(key)
    B, BT, n_outputs = 16, 8, 10            # grid = B//BT = 2 (even, feeds both v7x TCs)
    x = jax.random.normal(kx, (B, 3, 32, 32), jnp.float32)   # NCHW, like torch
    params = init_params(kp, channels=(8, 16, 64, 32), n_outputs=n_outputs, bt=BT)

    y = learner_forward(x, params, bt=BT)
    y = jax.block_until_ready(y)
    assert y.shape == (B, n_outputs)
    assert bool(jnp.all(jnp.isfinite(y)))
    print("KERNEL_OK")
</pallas_src>

<mosaic_0001>
module attributes {stable_mosaic.version = 11 : i64} {
  func.func @learner_kernel(%arg0: i32, %arg1: memref<288x96xbf16, #tpu.memory_space<vmem>>, %arg2: memref<5x96x256xbf16, #tpu.memory_space<vmem>>, %arg3: memref<256x256xbf16, #tpu.memory_space<vmem>>, %arg4: memref<3x160x284xbf16, #tpu.memory_space<vmem>>, %arg5: memref<3x256x128xbf16, #tpu.memory_space<vmem>>, %arg6: memref<5x128x256xbf16, #tpu.memory_space<vmem>>, %arg7: memref<256x256xbf16, #tpu.memory_space<vmem>>, %arg8: memref<3x64x156xbf16, #tpu.memory_space<vmem>>, %arg9: memref<3x256x128xbf16, #tpu.memory_space<vmem>>, %arg10: memref<8x128x64xbf16, #tpu.memory_space<vmem>>, %arg11: memref<64x32xbf16, #tpu.memory_space<vmem>>, %arg12: memref<32x128xbf16, #tpu.memory_space<vmem>>, %arg13: memref<8x128xf32, #tpu.memory_space<vmem>>) attributes {dimension_semantics = [#tpu.dimension_semantics<parallel>], iteration_bounds = array<i64: 2>, scalar_prefetch = 0 : i64, scratch_operands = 0 : i64, tpu.core_type = #tpu.core_type<tc>, window_params = [{transform_indices = @transform_0, window_bounds = array<i64: 288, 96>}, {pipeline_mode = #tpu.pipeline_mode<synchronous>, transform_indices = @transform_1, window_bounds = array<i64: 5, 96, 256>}, {pipeline_mode = #tpu.pipeline_mode<synchronous>, transform_indices = @transform_2, window_bounds = array<i64: 256, 256>}, {pipeline_mode = #tpu.pipeline_mode<synchronous>, transform_indices = @transform_3, window_bounds = array<i64: 3, 160, 284>}, {pipeline_mode = #tpu.pipeline_mode<synchronous>, transform_indices = @transform_4, window_bounds = array<i64: 3, 256, 128>}, {pipeline_mode = #tpu.pipeline_mode<synchronous>, transform_indices = @transform_5, window_bounds = array<i64: 5, 128, 256>}, {pipeline_mode = #tpu.pipeline_mode<synchronous>, transform_indices = @transform_6, window_bounds = array<i64: 256, 256>}, {pipeline_mode = #tpu.pipeline_mode<synchronous>, transform_indices = @transform_7, window_bounds = array<i64: 3, 64, 156>}, {pipeline_mode = #tpu.pipeline_mode<synchronous>, transform_indices = @transform_8, window_bounds = array<i64: 3, 256, 128>}, {pipeline_mode = #tpu.pipeline_mode<synchronous>, transform_indices = @transform_9, window_bounds = array<i64: 8, 128, 64>}, {pipeline_mode = #tpu.pipeline_mode<synchronous>, transform_indices = @transform_10, window_bounds = array<i64: 64, 32>}, {pipeline_mode = #tpu.pipeline_mode<synchronous>, transform_indices = @transform_11, window_bounds = array<i64: 32, 128>}, {transform_indices = @transform_12, window_bounds = array<i64: 8, 128>}]} {
    %c0 = arith.constant 0 : index
    %c0_0 = arith.constant 0 : index
    %0 = vector.load %arg1[%c0, %c0_0] : memref<288x96xbf16, #tpu.memory_space<vmem>>, vector<288x96xbf16>
    %1 = vector.extract_strided_slice %0 {offsets = [0, 0], sizes = [284, 96], strides = [1, 1]} : vector<288x96xbf16> to vector<284x96xbf16>
    %c0_1 = arith.constant 0 : index
    %c0_2 = arith.constant 0 : index
    %c0_3 = arith.constant 0 : index
    %2 = vector.load %arg2[%c0_1, %c0_2, %c0_3] : memref<5x96x256xbf16, #tpu.memory_space<vmem>>, vector<1x96x256xbf16>
    %3 = vector.shape_cast %2 : vector<1x96x256xbf16> to vector<96x256xbf16>
    %cst = arith.constant dense<0.000000e+00> : vector<284x256xf32>
    %4 = tpu.matmul %1, %3, %cst {dimension_numbers = #tpu.dot_dimension_numbers<[1], [0], [0], [1], [0, 0, 1, 1], [], []>} : vector<284x96xbf16>, vector<96x256xbf16>, vector<284x256xf32> -> vector<284x256xf32>
    %5 = vector.extract_strided_slice %0 {offsets = [1, 0], sizes = [284, 96], strides = [1, 1]} : vector<288x96xbf16> to vector<284x96xbf16>
    %c1 = arith.constant 1 : index
    %c0_4 = arith.constant 0 : index
    %c0_5 = arith.constant 0 : index
    %6 = vector.load %arg2[%c1, %c0_4, %c0_5] : memref<5x96x256xbf16, #tpu.memory_space<vmem>>, vector<1x96x256xbf16>
    %7 = vector.shape_cast %6 : vector<1x96x256xbf16> to vector<96x256xbf16>
    %cst_6 = arith.constant dense<0.000000e+00> : vector<284x256xf32>
    %8 = tpu.matmul %5, %7, %cst_6 {dimension_numbers = #tpu.dot_dimension_numbers<[1], [0], [0], [1], [0, 0, 1, 1], [], []>} : vector<284x96xbf16>, vector<96x256xbf16>, vector<284x256xf32> -> vector<284x256xf32>
    %9 = arith.addf %4, %8 : vector<284x256xf32>
    %10 = vector.extract_strided_slice %0 {offsets = [2, 0], sizes = [284, 96], strides = [1, 1]} : vector<288x96xbf16> to vector<284x96xbf16>
    %c2 = arith.constant 2 : index
    %c0_7 = arith.constant 0 : index
    %c0_8 = arith.constant 0 : index
    %11 = vector.load %arg2[%c2, %c0_7, %c0_8] : memref<5x96x256xbf16, #tpu.memory_space<vmem>>, vector<1x96x256xbf16>
    %12 = vector.shape_cast %11 : vector<1x96x256xbf16> to vector<96x256xbf16>
    %cst_9 = arith.constant dense<0.000000e+00> : vector<284x256xf32>
    %13 = tpu.matmul %10, %12, %cst_9 {dimension_numbers = #tpu.dot_dimension_numbers<[1], [0], [0], [1], [0, 0, 1, 1], [], []>} : vector<284x96xbf16>, vector<96x256xbf16>, vector<284x256xf32> -> vector<284x256xf32>
    %14 = arith.addf %9, %13 : vector<284x256xf32>
    %15 = vector.extract_strided_slice %0 {offsets = [3, 0], sizes = [284, 96], strides = [1, 1]} : vector<288x96xbf16> to vector<284x96xbf16>
    %c3 = arith.constant 3 : index
    %c0_10 = arith.constant 0 : index
    %c0_11 = arith.constant 0 : index
    %16 = vector.load %arg2[%c3, %c0_10, %c0_11] : memref<5x96x256xbf16, #tpu.memory_space<vmem>>, vector<1x96x256xbf16>
    %17 = vector.shape_cast %16 : vector<1x96x256xbf16> to vector<96x256xbf16>
    %cst_12 = arith.constant dense<0.000000e+00> : vector<284x256xf32>
    %18 = tpu.matmul %15, %17, %cst_12 {dimension_numbers = #tpu.dot_dimension_numbers<[1], [0], [0], [1], [0, 0, 1, 1], [], []>} : vector<284x96xbf16>, vector<96x256xbf16>, vector<284x256xf32> -> vector<284x256xf32>
    %19 = arith.addf %14, %18 : vector<284x256xf32>
    %20 = vector.extract_strided_slice %0 {offsets = [4, 0], sizes = [284, 96], strides = [1, 1]} : vector<288x96xbf16> to vector<284x96xbf16>
    %c4 = arith.constant 4 : index
    %c0_13 = arith.constant 0 : index
    %c0_14 = arith.constant 0 : index
    %21 = vector.load %arg2[%c4, %c0_13, %c0_14] : memref<5x96x256xbf16, #tpu.memory_space<vmem>>, vector<1x96x256xbf16>
    %22 = vector.shape_cast %21 : vector<1x96x256xbf16> to vector<96x256xbf16>
    %cst_15 = arith.constant dense<0.000000e+00> : vector<284x256xf32>
    %23 = tpu.matmul %20, %22, %cst_15 {dimension_numbers = #tpu.dot_dimension_numbers<[1], [0], [0], [1], [0, 0, 1, 1], [], []>} : vector<284x96xbf16>, vector<96x256xbf16>, vector<284x256xf32> -> vector<284x256xf32>
    %24 = arith.addf %19, %23 : vector<284x256xf32>
    %cst_16 = arith.constant 0.000000e+00 : f32
    %25 = vector.broadcast %cst_16 : f32 to vector<284x256xf32>
    %26 = arith.maximumf %24, %25 : vector<284x256xf32>
    %27 = arith.mulf %26, %26 : vector<284x256xf32>
    %28 = arith.truncf %27 : vector<284x256xf32> to vector<284x256xbf16>
    %c0_17 = arith.constant 0 : index
    %c0_18 = arith.constant 0 : index
    %29 = vector.load %arg3[%c0_17, %c0_18] : memref<256x256xbf16, #tpu.memory_space<vmem>>, vector<256x256xbf16>
    %cst_19 = arith.constant dense<0.000000e+00> : vector<284x256xf32>
    %30 = tpu.matmul %28, %29, %cst_19 {dimension_numbers = #tpu.dot_dimension_numbers<[1], [0], [0], [1], [0, 0, 1, 1], [], []>} : vector<284x256xbf16>, vector<256x256xbf16>, vector<284x256xf32> -> vector<284x256xf32>
    %cst_20 = arith.constant 1.11111112E-4 : f32
    %31 = vector.broadcast %cst_20 : f32 to vector<284x256xf32>
    %32 = arith.mulf %31, %30 : vector<284x256xf32>
    %cst_21 = arith.constant 1.000000e+00 : f32
    %33 = vector.broadcast %cst_21 : f32 to vector<284x256xf32>
    %34 = arith.addf %33, %32 : vector<284x256xf32>
    %35 = math.rsqrt %34 : vector<284x256xf32>
    %36 = math.sqrt %35 : vector<284x256xf32>
    %37 = arith.mulf %35, %36 : vector<284x256xf32>
    %38 = arith.mulf %26, %37 : vector<284x256xf32>
    %39 = arith.truncf %38 : vector<284x256xf32> to vector<284x256xbf16>
    %c0_22 = arith.constant 0 : index
    %c0_23 = arith.constant 0 : index
    %c0_24 = arith.constant 0 : index
    %40 = vector.load %arg4[%c0_22, %c0_23, %c0_24] : memref<3x160x284xbf16, #tpu.memory_space<vmem>>, vector<1x160x284xbf16>
    %41 = vector.shape_cast %40 : vector<1x160x284xbf16> to vector<160x284xbf16>
    %cst_25 = arith.constant dense<0.000000e+00> : vector<160x256xf32>
    %42 = tpu.matmul %41, %39, %cst_25 {dimension_numbers = #tpu.dot_dimension_numbers<[1], [0], [0], [1], [0, 0, 1, 1], [], []>} : vector<160x284xbf16>, vector<284x256xbf16>, vector<160x256xf32> -> vector<160x256xf32>
    %c1_26 = arith.constant 1 : index
    %c0_27 = arith.constant 0 : index
    %c0_28 = arith.constant 0 : index
    %43 = vector.load %arg4[%c1_26, %c0_27, %c0_28] : memref<3x160x284xbf16, #tpu.memory_space<vmem>>, vector<1x160x284xbf16>
    %44 = vector.shape_cast %43 : vector<1x160x284xbf16> to vector<160x284xbf16>
    %cst_29 = arith.constant dense<0.000000e+00> : vector<160x256xf32>
    %45 = tpu.matmul %44, %39, %cst_29 {dimension_numbers = #tpu.dot_dimension_numbers<[1], [0], [0], [1], [0, 0, 1, 1], [], []>} : vector<160x284xbf16>, vector<284x256xbf16>, vector<160x256xf32> -> vector<160x256xf32>
    %46 = arith.maximumf %42, %45 : vector<160x256xf32>
    %c2_30 = arith.constant 2 : index
    %c0_31 = arith.constant 0 : index
    %c0_32 = arith.constant 0 : index
    %47 = vector.load %arg4[%c2_30, %c0_31, %c0_32] : memref<3x160x284xbf16, #tpu.memory_space<vmem>>, vector<1x160x284xbf16>
    %48 = vector.shape_cast %47 : vector<1x160x284xbf16> to vector<160x284xbf16>
    %cst_33 = arith.constant dense<0.000000e+00> : vector<160x256xf32>
    %49 = tpu.matmul %48, %39, %cst_33 {dimension_numbers = #tpu.dot_dimension_numbers<[1], [0], [0], [1], [0, 0, 1, 1], [], []>} : vector<160x284xbf16>, vector<284x256xbf16>, vector<160x256xf32> -> vector<160x256xf32>
    %50 = arith.maximumf %46, %49 : vector<160x256xf32>
    %51 = arith.truncf %50 : vector<160x256xf32> to vector<160x256xbf16>
    %c0_34 = arith.constant 0 : index
    %c0_35 = arith.constant 0 : index
    %c0_36 = arith.constant 0 : index
    %52 = vector.load %arg5[%c0_34, %c0_35, %c0_36] : memref<3x256x128xbf16, #tpu.memory_space<vmem>>, vector<1x256x128xbf16>
    %53 = vector.shape_cast %52 : vector<1x256x128xbf16> to vector<256x128xbf16>
    %cst_37 = arith.constant dense<0.000000e+00> : vector<160x128xf32>
    %54 = tpu.matmul %51, %53, %cst_37 {dimension_numbers = #tpu.dot_dimension_numbers<[1], [0], [0], [1], [0, 0, 1, 1], [], []>} : vector<160x256xbf16>, vector<256x128xbf16>, vector<160x128xf32> -> vector<160x128xf32>
    %c1_38 = arith.constant 1 : index
    %c0_39 = arith.constant 0 : index
    %c0_40 = arith.constant 0 : index
    %55 = vector.load %arg5[%c1_38, %c0_39, %c0_40] : memref<3x256x128xbf16, #tpu.memory_space<vmem>>, vector<1x256x128xbf16>
    %56 = vector.shape_cast %55 : vector<1x256x128xbf16> to vector<256x128xbf16>
    %cst_41 = arith.constant dense<0.000000e+00> : vector<160x128xf32>
    %57 = tpu.matmul %51, %56, %cst_41 {dimension_numbers = #tpu.dot_dimension_numbers<[1], [0], [0], [1], [0, 0, 1, 1], [], []>} : vector<160x256xbf16>, vector<256x128xbf16>, vector<160x128xf32> -> vector<160x128xf32>
    %58 = arith.maximumf %54, %57 : vector<160x128xf32>
    %c2_42 = arith.constant 2 : index
    %c0_43 = arith.constant 0 : index
    %c0_44 = arith.constant 0 : index
    %59 = vector.load %arg5[%c2_42, %c0_43, %c0_44] : memref<3x256x128xbf16, #tpu.memory_space<vmem>>, vector<1x256x128xbf16>
    %60 = vector.shape_cast %59 : vector<1x256x128xbf16> to vector<256x128xbf16>
    %cst_45 = arith.constant dense<0.000000e+00> : vector<160x128xf32>
    %61 = tpu.matmul %51, %60, %cst_45 {dimension_numbers = #tpu.dot_dimension_numbers<[1], [0], [0], [1], [0, 0, 1, 1], [], []>} : vector<160x256xbf16>, vector<256x128xbf16>, vector<160x128xf32> -> vector<160x128xf32>
    %62 = arith.maximumf %58, %61 : vector<160x128xf32>
    %63 = arith.truncf %62 : vector<160x128xf32> to vector<160x128xbf16>
    %64 = vector.extract_strided_slice %63 {offsets = [0, 0], sizes = [156, 128], strides = [1, 1]} : vector<160x128xbf16> to vector<156x128xbf16>
    %c0_46 = arith.constant 0 : index
    %c0_47 = arith.constant 0 : index
    %c0_48 = arith.constant 0 : index
    %65 = vector.load %arg6[%c0_46, %c0_47, %c0_48] : memref<5x128x256xbf16, #tpu.memory_space<vmem>>, vector<1x128x256xbf16>
    %66 = vector.shape_cast %65 : vector<1x128x256xbf16> to vector<128x256xbf16>
    %cst_49 = arith.constant dense<0.000000e+00> : vector<156x256xf32>
    %67 = tpu.matmul %64, %66, %cst_49 {dimension_numbers = #tpu.dot_dimension_numbers<[1], [0], [0], [1], [0, 0, 1, 1], [], []>} : vector<156x128xbf16>, vector<128x256xbf16>, vector<156x256xf32> -> vector<156x256xf32>
    %68 = vector.extract_strided_slice %63 {offsets = [1, 0], sizes = [156, 128], strides = [1, 1]} : vector<160x128xbf16> to vector<156x128xbf16>
    %c1_50 = arith.constant 1 : index
    %c0_51 = arith.constant 0 : index
    %c0_52 = arith.constant 0 : index
    %69 = vector.load %arg6[%c1_50, %c0_51, %c0_52] : memref<5x128x256xbf16, #tpu.memory_space<vmem>>, vector<1x128x256xbf16>
    %70 = vector.shape_cast %69 : vector<1x128x256xbf16> to vector<128x256xbf16>
    %cst_53 = arith.constant dense<0.000000e+00> : vector<156x256xf32>
    %71 = tpu.matmul %68, %70, %cst_53 {dimension_numbers = #tpu.dot_dimension_numbers<[1], [0], [0], [1], [0, 0, 1, 1], [], []>} : vector<156x128xbf16>, vector<128x256xbf16>, vector<156x256xf32> -> vector<156x256xf32>
    %72 = arith.addf %67, %71 : vector<156x256xf32>
    %73 = vector.extract_strided_slice %63 {offsets = [2, 0], sizes = [156, 128], strides = [1, 1]} : vector<160x128xbf16> to vector<156x128xbf16>
    %c2_54 = arith.constant 2 : index
    %c0_55 = arith.constant 0 : index
    %c0_56 = arith.constant 0 : index
    %74 = vector.load %arg6[%c2_54, %c0_55, %c0_56] : memref<5x128x256xbf16, #tpu.memory_space<vmem>>, vector<1x128x256xbf16>
    %75 = vector.shape_cast %74 : vector<1x128x256xbf16> to vector<128x256xbf16>
    %cst_57 = arith.constant dense<0.000000e+00> : vector<156x256xf32>
    %76 = tpu.matmul %73, %75, %cst_57 {dimension_numbers = #tpu.dot_dimension_numbers<[1], [0], [0], [1], [0, 0, 1, 1], [], []>} : vector<156x128xbf16>, vector<128x256xbf16>, vector<156x256xf32> -> vector<156x256xf32>
    %77 = arith.addf %72, %76 : vector<156x256xf32>
    %78 = vector.extract_strided_slice %63 {offsets = [3, 0], sizes = [156, 128], strides = [1, 1]} : vector<160x128xbf16> to vector<156x128xbf16>
    %c3_58 = arith.constant 3 : index
    %c0_59 = arith.constant 0 : index
    %c0_60 = arith.constant 0 : index
    %79 = vector.load %arg6[%c3_58, %c0_59, %c0_60] : memref<5x128x256xbf16, #tpu.memory_space<vmem>>, vector<1x128x256xbf16>
    %80 = vector.shape_cast %79 : vector<1x128x256xbf16> to vector<128x256xbf16>
    %cst_61 = arith.constant dense<0.000000e+00> : vector<156x256xf32>
    %81 = tpu.matmul %78, %80, %cst_61 {dimension_numbers = #tpu.dot_dimension_numbers<[1], [0], [0], [1], [0, 0, 1, 1], [], []>} : vector<156x128xbf16>, vector<128x256xbf16>, vector<156x256xf32> -> vector<156x256xf32>
    %82 = arith.addf %77, %81 : vector<156x256xf32>
    %83 = vector.extract_strided_slice %63 {offsets = [4, 0], sizes = [156, 128], strides = [1, 1]} : vector<160x128xbf16> to vector<156x128xbf16>
    %c4_62 = arith.constant 4 : index
    %c0_63 = arith.constant 0 : index
    %c0_64 = arith.constant 0 : index
    %84 = vector.load %arg6[%c4_62, %c0_63, %c0_64] : memref<5x128x256xbf16, #tpu.memory_space<vmem>>, vector<1x128x256xbf16>
    %85 = vector.shape_cast %84 : vector<1x128x256xbf16> to vector<128x256xbf16>
    %cst_65 = arith.constant dense<0.000000e+00> : vector<156x256xf32>
    %86 = tpu.matmul %83, %85, %cst_65 {dimension_numbers = #tpu.dot_dimension_numbers<[1], [0], [0], [1], [0, 0, 1, 1], [], []>} : vector<156x128xbf16>, vector<128x256xbf16>, vector<156x256xf32> -> vector<156x256xf32>
    %87 = arith.addf %82, %86 : vector<156x256xf32>
    %cst_66 = arith.constant 0.000000e+00 : f32
    %88 = vector.broadcast %cst_66 : f32 to vector<156x256xf32>
    %89 = arith.maximumf %87, %88 : vector<156x256xf32>
    %90 = arith.mulf %89, %89 : vector<156x256xf32>
    %91 = arith.truncf %90 : vector<156x256xf32> to vector<156x256xbf16>
    %c0_67 = arith.constant 0 : index
    %c0_68 = arith.constant 0 : index
    %92 = vector.load %arg7[%c0_67, %c0_68] : memref<256x256xbf16, #tpu.memory_space<vmem>>, vector<256x256xbf16>
    %cst_69 = arith.constant dense<0.000000e+00> : vector<156x256xf32>
    %93 = tpu.matmul %91, %92, %cst_69 {dimension_numbers = #tpu.dot_dimension_numbers<[1], [0], [0], [1], [0, 0, 1, 1], [], []>} : vector<156x256xbf16>, vector<256x256xbf16>, vector<156x256xf32> -> vector<156x256xf32>
    %cst_70 = arith.constant 1.11111112E-4 : f32
    %94 = vector.broadcast %cst_70 : f32 to vector<156x256xf32>
    %95 = arith.mulf %94, %93 : vector<156x256xf32>
    %cst_71 = arith.constant 1.000000e+00 : f32
    %96 = vector.broadcast %cst_71 : f32 to vector<156x256xf32>
    %97 = arith.addf %96, %95 : vector<156x256xf32>
    %98 = math.rsqrt %97 : vector<156x256xf32>
    %99 = math.sqrt %98 : vector<156x256xf32>
    %100 = arith.mulf %98, %99 : vector<156x256xf32>
    %101 = arith.mulf %89, %100 : vector<156x256xf32>
    %102 = arith.truncf %101 : vector<156x256xf32> to vector<156x256xbf16>
    %c0_72 = arith.constant 0 : index
    %c0_73 = arith.constant 0 : index
    %c0_74 = arith.constant 0 : index
    %103 = vector.load %arg8[%c0_72, %c0_73, %c0_74] : memref<3x64x156xbf16, #tpu.memory_space<vmem>>, vector<1x64x156xbf16>
    %104 = vector.shape_cast %103 : vector<1x64x156xbf16> to vector<64x156xbf16>
    %cst_75 = arith.constant dense<0.000000e+00> : vector<64x256xf32>
    %105 = tpu.matmul %104, %102, %cst_75 {dimension_numbers = #tpu.dot_dimension_numbers<[1], [0], [0], [1], [0, 0, 1, 1], [], []>} : vector<64x156xbf16>, vector<156x256xbf16>, vector<64x256xf32> -> vector<64x256xf32>
    %c1_76 = arith.constant 1 : index
    %c0_77 = arith.constant 0 : index
    %c0_78 = arith.constant 0 : index
    %106 = vector.load %arg8[%c1_76, %c0_77, %c0_78] : memref<3x64x156xbf16, #tpu.memory_space<vmem>>, vector<1x64x156xbf16>
    %107 = vector.shape_cast %106 : vector<1x64x156xbf16> to vector<64x156xbf16>
    %cst_79 = arith.constant dense<0.000000e+00> : vector<64x256xf32>
    %108 = tpu.matmul %107, %102, %cst_79 {dimension_numbers = #tpu.dot_dimension_numbers<[1], [0], [0], [1], [0, 0, 1, 1], [], []>} : vector<64x156xbf16>, vector<156x256xbf16>, vector<64x256xf32> -> vector<64x256xf32>
    %109 = arith.maximumf %105, %108 : vector<64x256xf32>
    %c2_80 = arith.constant 2 : index
    %c0_81 = arith.constant 0 : index
    %c0_82 = arith.constant 0 : index
    %110 = vector.load %arg8[%c2_80, %c0_81, %c0_82] : memref<3x64x156xbf16, #tpu.memory_space<vmem>>, vector<1x64x156xbf16>
    %111 = vector.shape_cast %110 : vector<1x64x156xbf16> to vector<64x156xbf16>
    %cst_83 = arith.constant dense<0.000000e+00> : vector<64x256xf32>
    %112 = tpu.matmul %111, %102, %cst_83 {dimension_numbers = #tpu.dot_dimension_numbers<[1], [0], [0], [1], [0, 0, 1, 1], [], []>} : vector<64x156xbf16>, vector<156x256xbf16>, vector<64x256xf32> -> vector<64x256xf32>
    %113 = arith.maximumf %109, %112 : vector<64x256xf32>
    %114 = arith.truncf %113 : vector<64x256xf32> to vector<64x256xbf16>
    %c0_84 = arith.constant 0 : index
    %c0_85 = arith.constant 0 : index
    %c0_86 = arith.constant 0 : index
    %115 = vector.load %arg9[%c0_84, %c0_85, %c0_86] : memref<3x256x128xbf16, #tpu.memory_space<vmem>>, vector<1x256x128xbf16>
    %116 = vector.shape_cast %115 : vector<1x256x128xbf16> to vector<256x128xbf16>
    %cst_87 = arith.constant dense<0.000000e+00> : vector<64x128xf32>
    %117 = tpu.matmul %114, %116, %cst_87 {dimension_numbers = #tpu.dot_dimension_numbers<[1], [0], [0], [1], [0, 0, 1, 1], [], []>} : vector<64x256xbf16>, vector<256x128xbf16>, vector<64x128xf32> -> vector<64x128xf32>
    %c1_88 = arith.constant 1 : index
    %c0_89 = arith.constant 0 : index
    %c0_90 = arith.constant 0 : index
    %118 = vector.load %arg9[%c1_88, %c0_89, %c0_90] : memref<3x256x128xbf16, #tpu.memory_space<vmem>>, vector<1x256x128xbf16>
    %119 = vector.shape_cast %118 : vector<1x256x128xbf16> to vector<256x128xbf16>
    %cst_91 = arith.constant dense<0.000000e+00> : vector<64x128xf32>
    %120 = tpu.matmul %114, %119, %cst_91 {dimension_numbers = #tpu.dot_dimension_numbers<[1], [0], [0], [1], [0, 0, 1, 1], [], []>} : vector<64x256xbf16>, vector<256x128xbf16>, vector<64x128xf32> -> vector<64x128xf32>
    %121 = arith.maximumf %117, %120 : vector<64x128xf32>
    %c2_92 = arith.constant 2 : index
    %c0_93 = arith.constant 0 : index
    %c0_94 = arith.constant 0 : index
    %122 = vector.load %arg9[%c2_92, %c0_93, %c0_94] : memref<3x256x128xbf16, #tpu.memory_space<vmem>>, vector<1x256x128xbf16>
    %123 = vector.shape_cast %122 : vector<1x256x128xbf16> to vector<256x128xbf16>
    %cst_95 = arith.constant dense<0.000000e+00> : vector<64x128xf32>
    %124 = tpu.matmul %114, %123, %cst_95 {dimension_numbers = #tpu.dot_dimension_numbers<[1], [0], [0], [1], [0, 0, 1, 1], [], []>} : vector<64x256xbf16>, vector<256x128xbf16>, vector<64x128xf32> -> vector<64x128xf32>
    %125 = arith.maximumf %121, %124 : vector<64x128xf32>
    %126 = arith.truncf %125 : vector<64x128xf32> to vector<64x128xbf16>
    %127 = vector.extract_strided_slice %126 {offsets = [0, 0], sizes = [8, 128], strides = [1, 1]} : vector<64x128xbf16> to vector<8x128xbf16>
    %c0_96 = arith.constant 0 : index
    %c0_97 = arith.constant 0 : index
    %c0_98 = arith.constant 0 : index
    %128 = vector.load %arg10[%c0_96, %c0_97, %c0_98] : memref<8x128x64xbf16, #tpu.memory_space<vmem>>, vector<1x128x64xbf16>
    %129 = vector.shape_cast %128 : vector<1x128x64xbf16> to vector<128x64xbf16>
    %cst_99 = arith.constant dense<0.000000e+00> : vector<8x64xf32>
    %130 = tpu.matmul %127, %129, %cst_99 {dimension_numbers = #tpu.dot_dimension_numbers<[1], [0], [0], [1], [0, 0, 1, 1], [], []>} : vector<8x128xbf16>, vector<128x64xbf16>, vector<8x64xf32> -> vector<8x64xf32>
    %131 = vector.extract_strided_slice %126 {offsets = [8, 0], sizes = [8, 128], strides = [1, 1]} : vector<64x128xbf16> to vector<8x128xbf16>
    %c1_100 = arith.constant 1 : index
    %c0_101 = arith.constant 0 : index
    %c0_102 = arith.constant 0 : index
    %132 = vector.load %arg10[%c1_100, %c0_101, %c0_102] : memref<8x128x64xbf16, #tpu.memory_space<vmem>>, vector<1x128x64xbf16>
    %133 = vector.shape_cast %132 : vector<1x128x64xbf16> to vector<128x64xbf16>
    %cst_103 = arith.constant dense<0.000000e+00> : vector<8x64xf32>
    %134 = tpu.matmul %131, %133, %cst_103 {dimension_numbers = #tpu.dot_dimension_numbers<[1], [0], [0], [1], [0, 0, 1, 1], [], []>} : vector<8x128xbf16>, vector<128x64xbf16>, vector<8x64xf32> -> vector<8x64xf32>
    %135 = arith.addf %130, %134 : vector<8x64xf32>
    %136 = vector.extract_strided_slice %126 {offsets = [16, 0], sizes = [8, 128], strides = [1, 1]} : vector<64x128xbf16> to vector<8x128xbf16>
    %c2_104 = arith.constant 2 : index
    %c0_105 = arith.constant 0 : index
    %c0_106 = arith.constant 0 : index
    %137 = vector.load %arg10[%c2_104, %c0_105, %c0_106] : memref<8x128x64xbf16, #tpu.memory_space<vmem>>, vector<1x128x64xbf16>
    %138 = vector.shape_cast %137 : vector<1x128x64xbf16> to vector<128x64xbf16>
    %cst_107 = arith.constant dense<0.000000e+00> : vector<8x64xf32>
    %139 = tpu.matmul %136, %138, %cst_107 {dimension_numbers = #tpu.dot_dimension_numbers<[1], [0], [0], [1], [0, 0, 1, 1], [], []>} : vector<8x128xbf16>, vector<128x64xbf16>, vector<8x64xf32> -> vector<8x64xf32>
    %140 = arith.addf %135, %139 : vector<8x64xf32>
    %141 = vector.extract_strided_slice %126 {offsets = [24, 0], sizes = [8, 128], strides = [1, 1]} : vector<64x128xbf16> to vector<8x128xbf16>
    %c3_108 = arith.constant 3 : index
    %c0_109 = arith.constant 0 : index
    %c0_110 = arith.constant 0 : index
    %142 = vector.load %arg10[%c3_108, %c0_109, %c0_110] : memref<8x128x64xbf16, #tpu.memory_space<vmem>>, vector<1x128x64xbf16>
    %143 = vector.shape_cast %142 : vector<1x128x64xbf16> to vector<128x64xbf16>
    %cst_111 = arith.constant dense<0.000000e+00> : vector<8x64xf32>
    %144 = tpu.matmul %141, %143, %cst_111 {dimension_numbers = #tpu.dot_dimension_numbers<[1], [0], [0], [1], [0, 0, 1, 1], [], []>} : vector<8x128xbf16>, vector<128x64xbf16>, vector<8x64xf32> -> vector<8x64xf32>
    %145 = arith.addf %140, %144 : vector<8x64xf32>
    %146 = vector.extract_strided_slice %126 {offsets = [32, 0], sizes = [8, 128], strides = [1, 1]} : vector<64x128xbf16> to vector<8x128xbf16>
    %c4_112 = arith.constant 4 : index
    %c0_113 = arith.constant 0 : index
    %c0_114 = arith.constant 0 : index
    %147 = vector.load %arg10[%c4_112, %c0_113, %c0_114] : memref<8x128x64xbf16, #tpu.memory_space<vmem>>, vector<1x128x64xbf16>
    %148 = vector.shape_cast %147 : vector<1x128x64xbf16> to vector<128x64xbf16>
    %cst_115 = arith.constant dense<0.000000e+00> : vector<8x64xf32>
    %149 = tpu.matmul %146, %148, %cst_115 {dimension_numbers = #tpu.dot_dimension_numbers<[1], [0], [0], [1], [0, 0, 1, 1], [], []>} : vector<8x128xbf16>, vector<128x64xbf16>, vector<8x64xf32> -> vector<8x64xf32>
    %150 = arith.addf %145, %149 : vector<8x64xf32>
    %151 = vector.extract_strided_slice %126 {offsets = [40, 0], sizes = [8, 128], strides = [1, 1]} : vector<64x128xbf16> to vector<8x128xbf16>
    %c5 = arith.constant 5 : index
    %c0_116 = arith.constant 0 : index
    %c0_117 = arith.constant 0 : index
    %152 = vector.load %arg10[%c5, %c0_116, %c0_117] : memref<8x128x64xbf16, #tpu.memory_space<vmem>>, vector<1x128x64xbf16>
    %153 = vector.shape_cast %152 : vector<1x128x64xbf16> to vector<128x64xbf16>
    %cst_118 = arith.constant dense<0.000000e+00> : vector<8x64xf32>
    %154 = tpu.matmul %151, %153, %cst_118 {dimension_numbers = #tpu.dot_dimension_numbers<[1], [0], [0], [1], [0, 0, 1, 1], [], []>} : vector<8x128xbf16>, vector<128x64xbf16>, vector<8x64xf32> -> vector<8x64xf32>
    %155 = arith.addf %150, %154 : vector<8x64xf32>
    %156 = vector.extract_strided_slice %126 {offsets = [48, 0], sizes = [8, 128], strides = [1, 1]} : vector<64x128xbf16> to vector<8x128xbf16>
    %c6 = arith.constant 6 : index
    %c0_119 = arith.constant 0 : index
    %c0_120 = arith.constant 0 : index
    %157 = vector.load %arg10[%c6, %c0_119, %c0_120] : memref<8x128x64xbf16, #tpu.memory_space<vmem>>, vector<1x128x64xbf16>
    %158 = vector.shape_cast %157 : vector<1x128x64xbf16> to vector<128x64xbf16>
    %cst_121 = arith.constant dense<0.000000e+00> : vector<8x64xf32>
    %159 = tpu.matmul %156, %158, %cst_121 {dimension_numbers = #tpu.dot_dimension_numbers<[1], [0], [0], [1], [0, 0, 1, 1], [], []>} : vector<8x128xbf16>, vector<128x64xbf16>, vector<8x64xf32> -> vector<8x64xf32>
    %160 = arith.addf %155, %159 : vector<8x64xf32>
    %161 = vector.extract_strided_slice %126 {offsets = [56, 0], sizes = [8, 128], strides = [1, 1]} : vector<64x128xbf16> to vector<8x128xbf16>
    %c7 = arith.constant 7 : index
    %c0_122 = arith.constant 0 : index
    %c0_123 = arith.constant 0 : index
    %162 = vector.load %arg10[%c7, %c0_122, %c0_123] : memref<8x128x64xbf16, #tpu.memory_space<vmem>>, vector<1x128x64xbf16>
    %163 = vector.shape_cast %162 : vector<1x128x64xbf16> to vector<128x64xbf16>
    %cst_124 = arith.constant dense<0.000000e+00> : vector<8x64xf32>
    %164 = tpu.matmul %161, %163, %cst_124 {dimension_numbers = #tpu.dot_dimension_numbers<[1], [0], [0], [1], [0, 0, 1, 1], [], []>} : vector<8x128xbf16>, vector<128x64xbf16>, vector<8x64xf32> -> vector<8x64xf32>
    %165 = arith.addf %160, %164 : vector<8x64xf32>
    %cst_125 = arith.constant 0.000000e+00 : f32
    %166 = vector.broadcast %cst_125 : f32 to vector<8x64xf32>
    %167 = arith.maximumf %165, %166 : vector<8x64xf32>
    %168 = arith.truncf %167 : vector<8x64xf32> to vector<8x64xbf16>
    %c0_126 = arith.constant 0 : index
    %c0_127 = arith.constant 0 : index
    %169 = vector.load %arg11[%c0_126, %c0_127] : memref<64x32xbf16, #tpu.memory_space<vmem>>, vector<64x32xbf16>
    %cst_128 = arith.constant dense<0.000000e+00> : vector<8x32xf32>
    %170 = tpu.matmul %168, %169, %cst_128 {dimension_numbers = #tpu.dot_dimension_numbers<[1], [0], [0], [1], [0, 0, 1, 1], [], []>} : vector<8x64xbf16>, vector<64x32xbf16>, vector<8x32xf32> -> vector<8x32xf32>
    %cst_129 = arith.constant 0.000000e+00 : f32
    %171 = vector.broadcast %cst_129 : f32 to vector<8x32xf32>
    %172 = arith.maximumf %170, %171 : vector<8x32xf32>
    %173 = arith.truncf %172 : vector<8x32xf32> to vector<8x32xbf16>
    %c0_130 = arith.constant 0 : index
    %c0_131 = arith.constant 0 : index
    %174 = vector.load %arg12[%c0_130, %c0_131] : memref<32x128xbf16, #tpu.memory_space<vmem>>, vector<32x128xbf16>
    %cst_132 = arith.constant dense<0.000000e+00> : vector<8x128xf32>
    %175 = tpu.matmul %173, %174, %cst_132 {dimension_numbers = #tpu.dot_dimension_numbers<[1], [0], [0], [1], [0, 0, 1, 1], [], []>} : vector<8x32xbf16>, vector<32x128xbf16>, vector<8x128xf32> -> vector<8x128xf32>
    %c0_133 = arith.constant 0 : index
    %c0_134 = arith.constant 0 : index
    %176 = vector.load %arg13[%c0_133, %c0_134] : memref<8x128xf32, #tpu.memory_space<vmem>>, vector<8x128xf32>
    tpu.vector_store %arg13[%c0_133, %c0_134], %175 {strides = array<i32>} : memref<8x128xf32, #tpu.memory_space<vmem>>, vector<8x128xf32>,
    return
  }
  func.func @transform_0(%arg0: i32) -> (i32, i32) {
    %c0_i32 = arith.constant 0 : i32
    %c0_i32_0 = arith.constant 0 : i32
    return %arg0, %c0_i32 : i32, i32
  }
  func.func @transform_1(%arg0: i32) -> (i32, i32, i32) {
    %c0_i32 = arith.constant 0 : i32
    %c0_i32_0 = arith.constant 0 : i32
    %c0_i32_1 = arith.constant 0 : i32
    %c0_i32_2 = arith.constant 0 : i32
    return %c0_i32, %c0_i32_0, %c0_i32_1 : i32, i32, i32
  }
  func.func @transform_2(%arg0: i32) -> (i32, i32) {
    %c0_i32 = arith.constant 0 : i32
    %c0_i32_0 = arith.constant 0 : i32
    %c0_i32_1 = arith.constant 0 : i32
    return %c0_i32, %c0_i32_0 : i32, i32
  }
  func.func @transform_3(%arg0: i32) -> (i32, i32, i32) {
    %c0_i32 = arith.constant 0 : i32
    %c0_i32_0 = arith.constant 0 : i32
    %c0_i32_1 = arith.constant 0 : i32
    %c0_i32_2 = arith.constant 0 : i32
    return %c0_i32, %c0_i32_0, %c0_i32_1 : i32, i32, i32
  }
  func.func @transform_4(%arg0: i32) -> (i32, i32, i32) {
    %c0_i32 = arith.constant 0 : i32
    %c0_i32_0 = arith.constant 0 : i32
    %c0_i32_1 = arith.constant 0 : i32
    %c0_i32_2 = arith.constant 0 : i32
    return %c0_i32, %c0_i32_0, %c0_i32_1 : i32, i32, i32
  }
  func.func @transform_5(%arg0: i32) -> (i32, i32, i32) {
    %c0_i32 = arith.constant 0 : i32
    %c0_i32_0 = arith.constant 0 : i32
    %c0_i32_1 = arith.constant 0 : i32
    %c0_i32_2 = arith.constant 0 : i32
    return %c0_i32, %c0_i32_0, %c0_i32_1 : i32, i32, i32
  }
  func.func @transform_6(%arg0: i32) -> (i32, i32) {
    %c0_i32 = arith.constant 0 : i32
    %c0_i32_0 = arith.constant 0 : i32
    %c0_i32_1 = arith.constant 0 : i32
    return %c0_i32, %c0_i32_0 : i32, i32
  }
  func.func @transform_7(%arg0: i32) -> (i32, i32, i32) {
    %c0_i32 = arith.constant 0 : i32
    %c0_i32_0 = arith.constant 0 : i32
    %c0_i32_1 = arith.constant 0 : i32
    %c0_i32_2 = arith.constant 0 : i32
    return %c0_i32, %c0_i32_0, %c0_i32_1 : i32, i32, i32
  }
  func.func @transform_8(%arg0: i32) -> (i32, i32, i32) {
    %c0_i32 = arith.constant 0 : i32
    %c0_i32_0 = arith.constant 0 : i32
    %c0_i32_1 = arith.constant 0 : i32
    %c0_i32_2 = arith.constant 0 : i32
    return %c0_i32, %c0_i32_0, %c0_i32_1 : i32, i32, i32
  }
  func.func @transform_9(%arg0: i32) -> (i32, i32, i32) {
    %c0_i32 = arith.constant 0 : i32
    %c0_i32_0 = arith.constant 0 : i32
    %c0_i32_1 = arith.constant 0 : i32
    %c0_i32_2 = arith.constant 0 : i32
    return %c0_i32, %c0_i32_0, %c0_i32_1 : i32, i32, i32
  }
  func.func @transform_10(%arg0: i32) -> (i32, i32) {
    %c0_i32 = arith.constant 0 : i32
    %c0_i32_0 = arith.constant 0 : i32
    %c0_i32_1 = arith.constant 0 : i32
    return %c0_i32, %c0_i32_0 : i32, i32
  }
  func.func @transform_11(%arg0: i32) -> (i32, i32) {
    %c0_i32 = arith.constant 0 : i32
    %c0_i32_0 = arith.constant 0 : i32
    %c0_i32_1 = arith.constant 0 : i32
    return %c0_i32, %c0_i32_0 : i32, i32
  }
  func.func @transform_12(%arg0: i32) -> (i32, i32) {
    %c0_i32 = arith.constant 0 : i32
    %c0_i32_0 = arith.constant 0 : i32
    return %arg0, %c0_i32 : i32, i32
  }
}

</mosaic_0001>

<llo_original>
// kernel: learner_forward.1
$region0: #{learner_forward.1}
  #allocation0 [shape = 'u32[]', space=smem, size = 0x4, offset = 0x4, fixed_abs, tag = 'smem constant byte address 0x4 - core index']
  #allocation1 [shape = 'u32[144,128]{1,0:T(1,128)}', space=vmem, size = 0x12000, scoped, tag = 'internal scratch']
  %s0 = inlined_call_operand.vmem [shape: bf16[576,96], index: 0, kind: input, shape index: {}]
  %s1 = inlined_call_operand.vmem [shape: bf16[5,96,256], index: 1, kind: input, shape index: {}]
  %s2 = inlined_call_operand.vmem [shape: bf16[256,256], index: 2, kind: input, shape index: {}]
  %s3 = inlined_call_operand.vmem [shape: bf16[3,160,284], index: 3, kind: input, shape index: {}]
  %s4 = inlined_call_operand.vmem [shape: bf16[3,256,128], index: 4, kind: input, shape index: {}]
  %s5 = inlined_call_operand.vmem [shape: bf16[5,128,256], index: 5, kind: input, shape index: {}]
  %s6 = inlined_call_operand.vmem [shape: bf16[256,256], index: 6, kind: input, shape index: {}]
  %s7 = inlined_call_operand.vmem [shape: bf16[3,64,156], index: 7, kind: input, shape index: {}]
  %s8 = inlined_call_operand.vmem [shape: bf16[3,256,128], index: 8, kind: input, shape index: {}]
  %s9 = inlined_call_operand.vmem [shape: bf16[8,128,64], index: 9, kind: input, shape index: {}]
  %s10 = inlined_call_operand.vmem [shape: bf16[64,32], index: 10, kind: input, shape index: {}]
  %s11 = inlined_call_operand.vmem [shape: bf16[32,128], index: 11, kind: input, shape index: {}]
  %s12 = inlined_call_operand.hbm [shape: f32[16,128], index: 12, kind: output, shape index: {}]
  %s13 = sld [smem:[#allocation0]]
  $region81: #{learner_forward.1} parent=0
    _
  %s15 = ssub.s32 1, %s13
  %s16 = scalar_select 0, %s15, %s13
  $region1: #{learner_forward.1} parent=0
    #allocation2 [shape = 'u8[8192]{0}', space=vmem, size = 0x2000, scoped, tag = 'output window, operand 0']
    #allocation3 [shape = 's32[2]{0}', space=sflag, size = 0x8, scoped, tag = 'scoped memory for learner_forward.1']
    %17 = vsyncpa [#allocation3], 0
    %s18 = scalar_lea.sflag [#allocation3], 1
    %19 = vsyncpa %s18, 0
    loop: start=0, step=1, limit=4
    $region2: #{learner_forward.1} parent=1 // loop_pre_header
      _
    $region3: #{learner_forward.1} parent=1 // loop_header
      %s21 = sphi 0, %s25
      %p22 = scmp.ge.s32.totalorder %s21, 4
      %s31 = sphi 0, %s33
      %s34 = sphi 0, %s31
      %s35 = sphi 0, %s34
      %s51 = sphi 0, %s35
      %s55 = sphi 0, %s55
      %s57 = sphi 0, %s55
      %s58 = sphi 0, %s57
      %s72 = sphi 0, %s58
      %s76 = sphi 0, %s76
      %s78 = sphi 0, %s76
      %s79 = sphi 0, %s78
      %s93 = sphi 0, %s79
      %s97 = sphi 0, %s97
      %s99 = sphi 0, %s97
      %s100 = sphi 0, %s99
      %s114 = sphi 0, %s100
      %s118 = sphi 0, %s118
      %s120 = sphi 0, %s118
      %s121 = sphi 0, %s120
      %s135 = sphi 0, %s121
      %s139 = sphi 0, %s139
      %s141 = sphi 0, %s139
      %s142 = sphi 0, %s141
      %s156 = sphi 0, %s142
      %s160 = sphi 0, %s160
      %s162 = sphi 0, %s160
      %s163 = sphi 0, %s162
      %s177 = sphi 0, %s163
      %s181 = sphi 0, %s181
      %s183 = sphi 0, %s181
      %s184 = sphi 0, %s183
      %s198 = sphi 0, %s184
      %s202 = sphi 0, %s202
      %s204 = sphi 0, %s202
      %s205 = sphi 0, %s204
      %s219 = sphi 0, %s205
      %s223 = sphi 0, %s223
      %s225 = sphi 0, %s223
      %s226 = sphi 0, %s225
      %s240 = sphi 0, %s226
      %s244 = sphi 0, %s244
      %s246 = sphi 0, %s244
      %s247 = sphi 0, %s246
      %s261 = sphi 0, %s247
      %s265 = sphi 0, %s265
      %s267 = sphi 0, %s265
      %s268 = sphi 0, %s267
      %s282 = sphi 0, %s268
      %s288 = sphi 0, %s290
      %s291 = sphi 0, %s288
      %s292 = sphi 0, %s291
      %s308 = sphi 0, %s292
    $region4: #{learner_forward.1} parent=1 // loop_header_branch
      %24 = sbr.rel (%p22) target = $region8
    $region5: #{learner_forward.1} parent=1 // loop_body
      %s26 = ssub.s32 %s21, 1
      %s27 = ssub.s32 %s21, 2
      %s28 = sadd.s32 %s21, 1
      %s29 = ssub.s32 %s21, %s28
      %p30 = scmp.eq.s32.totalorder %s29, 0
      %s32 = sadd.s32 %s31, 1
      %s33 = scalar_select %p30, %s31, %s32
      %p36 = pneg %p30
      %p37 = scmp.eq.s32.totalorder %s21, 1
      %p38 = por %p36, %p37
      %p39 = scmp.ne.s32.totalorder %s31, %s34
      %p40 = scmp.eq.s32.totalorder %s21, 0
      %p41 = por %p39, %p40
      %p42 = scmp.ne.s32.totalorder %s31, %s34
      %p43 = scmp.eq.s32.totalorder %s26, 1
      %p44 = por %p42, %p43
      %p45 = scmp.ne.s32.totalorder %s34, %s35
      %p46 = scmp.eq.s32.totalorder %s26, 0
      %p47 = por %p45, %p46
      %p48 = scmp.ne.s32.totalorder %s34, %s35
      %p49 = scmp.eq.s32.totalorder %s27, 1
      %p50 = por %p48, %p49
      %p52 = scmp.ne.s32.totalorder %s35, %s51
      %p53 = scmp.eq.s32.totalorder %s27, 0
      %p54 = por %p52, %p53
      %s56 = sadd.s32 %s55, 1
      %p59 = scmp.eq.s32.totalorder %s21, 1
      %p60 = scmp.ne.s32.totalorder %s55, %s57
      %p61 = scmp.eq.s32.totalorder %s21, 0
      %p62 = por %p60, %p61
      %p63 = scmp.ne.s32.totalorder %s55, %s57
      %p64 = scmp.eq.s32.totalorder %s26, 1
      %p65 = por %p63, %p64
      %p66 = scmp.ne.s32.totalorder %s57, %s58
      %p67 = scmp.eq.s32.totalorder %s26, 0
      %p68 = por %p66, %p67
      %p69 = scmp.ne.s32.totalorder %s57, %s58
      %p70 = scmp.eq.s32.totalorder %s27, 1
      %p71 = por %p69, %p70
      %p73 = scmp.ne.s32.totalorder %s58, %s72
      %p74 = scmp.eq.s32.totalorder %s27, 0
      %p75 = por %p73, %p74
      %s77 = sadd.s32 %s76, 1
      %p80 = scmp.eq.s32.totalorder %s21, 1
      %p81 = scmp.ne.s32.totalorder %s76, %s78
      %p82 = scmp.eq.s32.totalorder %s21, 0
      %p83 = por %p81, %p82
      %p84 = scmp.ne.s32.totalorder %s76, %s78
      %p85 = scmp.eq.s32.totalorder %s26, 1
      %p86 = por %p84, %p85
      %p87 = scmp.ne.s32.totalorder %s78, %s79
      %p88 = scmp.eq.s32.totalorder %s26, 0
      %p89 = por %p87, %p88
      %p90 = scmp.ne.s32.totalorder %s78, %s79
      %p91 = scmp.eq.s32.totalorder %s27, 1
      %p92 = por %p90, %p91
      %p94 = scmp.ne.s32.totalorder %s79, %s93
      %p95 = scmp.eq.s32.totalorder %s27, 0
      %p96 = por %p94, %p95
      %s98 = sadd.s32 %s97, 1
      %p101 = scmp.eq.s32.totalorder %s21, 1
      %p102 = scmp.ne.s32.totalorder %s97, %s99
      %p103 = scmp.eq.s32.totalorder %s21, 0
      %p104 = por %p102, %p103
      %p105 = scmp.ne.s32.totalorder %s97, %s99
      %p106 = scmp.eq.s32.totalorder %s26, 1
      %p107 = por %p105, %p106
      %p108 = scmp.ne.s32.totalorder %s99, %s100
      %p109 = scmp.eq.s32.totalorder %s26, 0
      %p110 = por %p108, %p109
      %p111 = scmp.ne.s32.totalorder %s99, %s100
      %p112 = scmp.eq.s32.totalorder %s27, 1
      %p113 = por %p111, %p112
      %p115 = scmp.ne.s32.totalorder %s100, %s114
      %p116 = scmp.eq.s32.totalorder %s27, 0
      %p117 = por %p115, %p116
      %s119 = sadd.s32 %s118, 1
      %p122 = scmp.eq.s32.totalorder %s21, 1
      %p123 = scmp.ne.s32.totalorder %s118, %s120
      %p124 = scmp.eq.s32.totalorder %s21, 0
      %p125 = por %p123, %p124
      %p126 = scmp.ne.s32.totalorder %s118, %s120
      %p127 = scmp.eq.s32.totalorder %s26, 1
      %p128 = por %p126, %p127
      %p129 = scmp.ne.s32.totalorder %s120, %s121
      %p130 = scmp.eq.s32.totalorder %s26, 0
      %p131 = por %p129, %p130
      %p132 = scmp.ne.s32.totalorder %s120, %s121
      %p133 = scmp.eq.s32.totalorder %s27, 1
      %p134 = por %p132, %p133
      %p136 = scmp.ne.s32.totalorder %s121, %s135
      %p137 = scmp.eq.s32.totalorder %s27, 0
      %p138 = por %p136, %p137
      %s140 = sadd.s32 %s139, 1
      %p143 = scmp.eq.s32.totalorder %s21, 1
      %p144 = scmp.ne.s32.totalorder %s139, %s141
      %p145 = scmp.eq.s32.totalorder %s21, 0
      %p146 = por %p144, %p145
      %p147 = scmp.ne.s32.totalorder %s139, %s141
      %p148 = scmp.eq.s32.totalorder %s26, 1
      %p149 = por %p147, %p148
      %p150 = scmp.ne.s32.totalorder %s141, %s142
      %p151 = scmp.eq.s32.totalorder %s26, 0
      %p152 = por %p150, %p151
      %p153 = scmp.ne.s32.totalorder %s141, %s142
      %p154 = scmp.eq.s32.totalorder %s27, 1
      %p155 = por %p153, %p154
      %p157 = scmp.ne.s32.totalorder %s142, %s156
      %p158 = scmp.eq.s32.totalorder %s27, 0
      %p159 = por %p157, %p158
      %s161 = sadd.s32 %s160, 1
      %p164 = scmp.eq.s32.totalorder %s21, 1
      %p165 = scmp.ne.s32.totalorder %s160, %s162
      %p166 = scmp.eq.s32.totalorder %s21, 0
      %p167 = por %p165, %p166
      %p168 = scmp.ne.s32.totalorder %s160, %s162
      %p169 = scmp.eq.s32.totalorder %s26, 1
      %p170 = por %p168, %p169
      %p171 = scmp.ne.s32.totalorder %s162, %s163
      %p172 = scmp.eq.s32.totalorder %s26, 0
      %p173 = por %p171, %p172
      %p174 = scmp.ne.s32.totalorder %s162, %s163
      %p175 = scmp.eq.s32.totalorder %s27, 1
      %p176 = por %p174, %p175
      %p178 = scmp.ne.s32.totalorder %s163, %s177
      %p179 = scmp.eq.s32.totalorder %s27, 0
      %p180 = por %p178, %p179
      %s182 = sadd.s32 %s181, 1
      %p185 = scmp.eq.s32.totalorder %s21, 1
      %p186 = scmp.ne.s32.totalorder %s181, %s183
      %p187 = scmp.eq.s32.totalorder %s21, 0
      %p188 = por %p186, %p187
      %p189 = scmp.ne.s32.totalorder %s181, %s183
      %p190 = scmp.eq.s32.totalorder %s26, 1
      %p191 = por %p189, %p190
      %p192 = scmp.ne.s32.totalorder %s183, %s184
      %p193 = scmp.eq.s32.totalorder %s26, 0
      %p194 = por %p192, %p193
      %p195 = scmp.ne.s32.totalorder %s183, %s184
      %p196 = scmp.eq.s32.totalorder %s27, 1
      %p197 = por %p195, %p196
      %p199 = scmp.ne.s32.totalorder %s184, %s198
      %p200 = scmp.eq.s32.totalorder %s27, 0
      %p201 = por %p199, %p200
      %s203 = sadd.s32 %s202, 1
      %p206 = scmp.eq.s32.totalorder %s21, 1
      %p207 = scmp.ne.s32.totalorder %s202, %s204
      %p208 = scmp.eq.s32.totalorder %s21, 0
      %p209 = por %p207, %p208
      %p210 = scmp.ne.s32.totalorder %s202, %s204
      %p211 = scmp.eq.s32.totalorder %s26, 1
      %p212 = por %p210, %p211
      %p213 = scmp.ne.s32.totalorder %s204, %s205
      %p214 = scmp.eq.s32.totalorder %s26, 0
      %p215 = por %p213, %p214
      %p216 = scmp.ne.s32.totalorder %s204, %s205
      %p217 = scmp.eq.s32.totalorder %s27, 1
      %p218 = por %p216, %p217
      %p220 = scmp.ne.s32.totalorder %s205, %s219
      %p221 = scmp.eq.s32.totalorder %s27, 0
      %p222 = por %p220, %p221
      %s224 = sadd.s32 %s223, 1
      %p227 = scmp.eq.s32.totalorder %s21, 1
      %p228 = scmp.ne.s32.totalorder %s223, %s225
      %p229 = scmp.eq.s32.totalorder %s21, 0
      %p230 = por %p228, %p229
      %p231 = scmp.ne.s32.totalorder %s223, %s225
      %p232 = scmp.eq.s32.totalorder %s26, 1
      %p233 = por %p231, %p232
      %p234 = scmp.ne.s32.totalorder %s225, %s226
      %p235 = scmp.eq.s32.totalorder %s26, 0
      %p236 = por %p234, %p235
      %p237 = scmp.ne.s32.totalorder %s225, %s226
      %p238 = scmp.eq.s32.totalorder %s27, 1
      %p239 = por %p237, %p238
      %p241 = scmp.ne.s32.totalorder %s226, %s240
      %p242 = scmp.eq.s32.totalorder %s27, 0
      %p243 = por %p241, %p242
      %s245 = sadd.s32 %s244, 1
      %p248 = scmp.eq.s32.totalorder %s21, 1
      %p249 = scmp.ne.s32.totalorder %s244, %s246
      %p250 = scmp.eq.s32.totalorder %s21, 0
      %p251 = por %p249, %p250
      %p252 = scmp.ne.s32.totalorder %s244, %s246
      %p253 = scmp.eq.s32.totalorder %s26, 1
      %p254 = por %p252, %p253
      %p255 = scmp.ne.s32.totalorder %s246, %s247
      %p256 = scmp.eq.s32.totalorder %s26, 0
      %p257 = por %p255, %p256
      %p258 = scmp.ne.s32.totalorder %s246, %s247
      %p259 = scmp.eq.s32.totalorder %s27, 1
      %p260 = por %p258, %p259
      %p262 = scmp.ne.s32.totalorder %s247, %s261
      %p263 = scmp.eq.s32.totalorder %s27, 0
      %p264 = por %p262, %p263
      %s266 = sadd.s32 %s265, 1
      %p269 = scmp.eq.s32.totalorder %s21, 1
      %p270 = scmp.ne.s32.totalorder %s265, %s267
      %p271 = scmp.eq.s32.totalorder %s21, 0
      %p272 = por %p270, %p271
      %p273 = scmp.ne.s32.totalorder %s265, %s267
      %p274 = scmp.eq.s32.totalorder %s26, 1
      %p275 = por %p273, %p274
      %p276 = scmp.ne.s32.totalorder %s267, %s268
      %p277 = scmp.eq.s32.totalorder %s26, 0
      %p278 = por %p276, %p277
      %p279 = scmp.ne.s32.totalorder %s267, %s268
      %p280 = scmp.eq.s32.totalorder %s27, 1
      %p281 = por %p279, %p280
      %p283 = scmp.ne.s32.totalorder %s268, %s282
      %p284 = scmp.eq.s32.totalorder %s27, 0
      %p285 = por %p283, %p284
      %s286 = ssub.s32 %s21, %s28
      %p287 = scmp.eq.s32.totalorder %s286, 0
      %s289 = sadd.s32 %s288, 1
      %s290 = scalar_select %p287, %s288, %s289
      %p293 = pneg %p287
      %p294 = scmp.eq.s32.totalorder %s21, 1
      %p295 = por %p293, %p294
      %p296 = scmp.ne.s32.totalorder %s288, %s291
      %p297 = scmp.eq.s32.totalorder %s21, 0
      %p298 = por %p296, %p297
      %p299 = scmp.ne.s32.totalorder %s288, %s291
      %p300 = scmp.eq.s32.totalorder %s26, 1
      %p301 = por %p299, %p300
      %p302 = scmp.ne.s32.totalorder %s291, %s292
      %p303 = scmp.eq.s32.totalorder %s26, 0
      %p304 = por %p302, %p303
      %p305 = scmp.ne.s32.totalorder %s291, %s292
      %p306 = scmp.eq.s32.totalorder %s27, 1
      %p307 = por %p305, %p306
      %p309 = scmp.ne.s32.totalorder %s292, %s308
      %p310 = scmp.eq.s32.totalorder %s27, 0
      %p311 = por %p309, %p310
      %p312 = scmp.le.s32.totalorder 1, %s21
      %p313 = scmp.lt.s32.totalorder %s21, 3
      %p314 = pnand %p312, %p313
      %p315 = pneg %p314
      // Predicated region
      $region9: #{learner_forward.1} parent=5 // pred_check
        _
      $region10: #{learner_forward.1} parent=5 // pred_check_branch
        %317 = sbr.rel (%p314) target = $region12
      $region11: #{learner_forward.1} parent=5 // pred_region
        %s318 = ssub.s32 %s21, 1
        // Predicated region
        $region13: #{learner_forward.1} parent=11 // pred_check
          %p319 = pneg %p68
        $region14: #{learner_forward.1} parent=11 // pred_check_branch
          %321 = sbr.rel (%p319) target = $region16
        $region15: #{learner_forward.1} parent=11 // pred_region
          _
        $region16: #{learner_forward.1} parent=11 // pred_fallthru
          _
        // Predicated region
        $region17: #{learner_forward.1} parent=11 // pred_check
          %p322 = pneg %p89
        $region18: #{learner_forward.1} parent=11 // pred_check_branch
          %324 = sbr.rel (%p322) target = $region20
        $region19: #{learner_forward.1} parent=11 // pred_region
          _
        $region20: #{learner_forward.1} parent=11 // pred_fallthru
          _
        // Predicated region
        $region21: #{learner_forward.1} parent=11 // pred_check
          %p325 = pneg %p110
        $region22: #{learner_forward.1} parent=11 // pred_check_branch
          %327 = sbr.rel (%p325) target = $region24
        $region23: #{learner_forward.1} parent=11 // pred_region
          _
        $region24: #{learner_forward.1} parent=11 // pred_fallthru
          _
        // Predicated region
        $region25: #{learner_forward.1} parent=11 // pred_check
          %p328 = pneg %p131
        $region26: #{learner_forward.1} parent=11 // pred_check_branch
          %330 = sbr.rel (%p328) target = $region28
        $region27: #{learner_forward.1} parent=11 // pred_region
          _
        $region28: #{learner_forward.1} parent=11 // pred_fallthru
          _
        // Predicated region
        $region29: #{learner_forward.1} parent=11 // pred_check
          %p331 = pneg %p152
        $region30: #{learner_forward.1} parent=11 // pred_check_branch
          %333 = sbr.rel (%p331) target = $region32
        $region31: #{learner_forward.1} parent=11 // pred_region
          _
        $region32: #{learner_forward.1} parent=11 // pred_fallthru
          _
        // Predicated region
        $region33: #{learner_forward.1} parent=11 // pred_check
          %p334 = pneg %p173
        $region34: #{learner_forward.1} parent=11 // pred_check_branch
          %336 = sbr.rel (%p334) target = $region36
        $region35: #{learner_forward.1} parent=11 // pred_region
          _
        $region36: #{learner_forward.1} parent=11 // pred_fallthru
          _
        // Predicated region
        $region37: #{learner_forward.1} parent=11 // pred_check
          %p337 = pneg %p194
        $region38: #{learner_forward.1} parent=11 // pred_check_branch
          %339 = sbr.rel (%p337) target = $region40
        $region39: #{learner_forward.1} parent=11 // pred_region
          _
        $region40: #{learner_forward.1} parent=11 // pred_fallthru
          _
        // Predicated region
        $region41: #{learner_forward.1} parent=11 // pred_check
          %p340 = pneg %p215
        $region42: #{learner_forward.1} parent=11 // pred_check_branch
          %342 = sbr.rel (%p340) target = $region44
        $region43: #{learner_forward.1} parent=11 // pred_region
          _
        $region44: #{learner_forward.1} parent=11 // pred_fallthru
          _
        // Predicated region
        $region45: #{learner_forward.1} parent=11 // pred_check
          %p343 = pneg %p236
        $region46: #{learner_forward.1} parent=11 // pred_check_branch
          %345 = sbr.rel (%p343) target = $region48
        $region47: #{learner_forward.1} parent=11 // pred_region
          _
        $region48: #{learner_forward.1} parent=11 // pred_fallthru
          _
        // Predicated region
        $region49: #{learner_forward.1} parent=11 // pred_check
          %p346 = pneg %p257
        $region50: #{learner_forward.1} parent=11 // pred_check_branch
          %348 = sbr.rel (%p346) target = $region52
        $region51: #{learner_forward.1} parent=11 // pred_region
          _
        $region52: #{learner_forward.1} parent=11 // pred_fallthru
          _
        // Predicated region
        $region53: #{learner_forward.1} parent=11 // pred_check
          %p349 = pneg %p278
        $region54: #{learner_forward.1} parent=11 // pred_check_branch
          %351 = sbr.rel (%p349) target = $region56
        $region55: #{learner_forward.1} parent=11 // pred_region
          _
        $region56: #{learner_forward.1} parent=11 // pred_fallthru
          _
      $region12: #{learner_forward.1} parent=5 // pred_fallthru
        _
      %p352 = scmp.lt.s32.totalorder %s21, 2
      // Predicated region
      $region57: #{learner_forward.1} parent=5 // pred_check
        %p353 = pneg %p352
      $region58: #{learner_forward.1} parent=5 // pred_check_branch
        %355 = sbr.rel (%p353) target = $region60
      $region59: #{learner_forward.1} parent=5 // pred_region
        // Predicated region
        $region61: #{learner_forward.1} parent=59 // pred_check
          %p356 = pneg %p41
        $region62: #{learner_forward.1} parent=59 // pred_check_branch
          %358 = sbr.rel (%p356) target = $region64
        $region63: #{learner_forward.1} parent=59 // pred_region
          %s359 = smul.u32 36, %s21
          %p360 = scmp.lt.s32.totalorder %s359, 71
          %s361 = scalar_select %p360, %s359, 71
          %s362 = smul.addr %s361, 4
          %s363 = scalar_lea.vmem %s0, %s362
          %s364 = smul.u32 36, %s21
        $region64: #{learner_forward.1} parent=59 // pred_fallthru
          _
      $region60: #{learner_forward.1} parent=5 // pred_fallthru
        _
      %p365 = scmp.le.s32.totalorder 1, %s21
      %p366 = scmp.lt.s32.totalorder %s21, 3
      %p367 = pnand %p365, %p366
      %p368 = pneg %p367
      // Predicated region
      $region65: #{learner_forward.1} parent=5 // pred_check
        _
      $region66: #{learner_forward.1} parent=5 // pred_check_branch
        %370 = sbr.rel (%p367) target = $region68
      $region67: #{learner_forward.1} parent=5 // pred_region
        %s371 = ssub.s32 %s21, 1
        %s372 = smul.u32 36, %s26
        %p373 = scmp.lt.s32.totalorder %s372, 71
        %s374 = scalar_select %p373, %s372, 71
        %s375 = smul.addr %s374, 4
        %s376 = scalar_lea.vmem %s0, %s375
        %p377 = pneg %p47
        %p378 = pneg %p44
        %p379 = pneg %p68
        %p380 = pneg %p65
        %p381 = pneg %p89
        %p382 = pneg %p86
        %p383 = pneg %p110
        %p384 = pneg %p107
        %p385 = pneg %p131
        %p386 = pneg %p128
        %p387 = pneg %p152
        %p388 = pneg %p149
        %p389 = pneg %p173
        %p390 = pneg %p170
        %p391 = pneg %p194
        %p392 = pneg %p191
        %p393 = pneg %p215
        %p394 = pneg %p212
        %p395 = pneg %p236
        %p396 = pneg %p233
        %p397 = pneg %p257
        %p398 = pneg %p254
        %p399 = pneg %p278
        %p400 = pneg %p275
        %p401 = pneg %p304
        %p402 = pneg %p301
        %s403 = sand.u32 %s291, 1
        %s404 = scalar_lea.sflag [#allocation3], %s403
        %s405 = sand.u32 %s291, 1
        %s406 = smul.addr %s405, 8
        %s407 = scalar_lea.vmem [#allocation2], %s406
        %s408 = smul.u32 36, %s26
        %p409 = scmp.lt.s32.totalorder %s408, 71
        %s410 = scalar_select %p409, %s408, 71
        %s411 = smul.addr %s410, 4
        %s412 = scalar_lea.vmem %s0, %s411
        %s413 = smul.u32 36, %s26
        %v415 = vld [vmem:[%s412] sm:$0xf]
        %v416 = vld [vmem:[%s412 + $0x4] sm:$0xf]
        %v417 = vld [vmem:[%s412 + $0x8] sm:$0xf]
        %v418 = vld [vmem:[%s412 + $0xc] sm:$0xf]
        %v419 = vld [vmem:[%s412 + $0x10] sm:$0xf]
        %v420 = vld [vmem:[%s412 + $0x14] sm:$0xf]
        %v421 = vld [vmem:[%s412 + $0x18] sm:$0xf]
        %v422 = vld [vmem:[%s412 + $0x1c] sm:$0xf]
        %v423 = vld [vmem:[%s412 + $0x20] sm:$0xf]
        %v424 = vld [vmem:[%s412 + $0x24] sm:$0xf]
        %v425 = vld [vmem:[%s412 + $0x28] sm:$0xf]
        %v426 = vld [vmem:[%s412 + $0x2c] sm:$0xf]
        %v427 = vld [vmem:[%s412 + $0x30] sm:$0xf]
        %v428 = vld [vmem:[%s412 + $0x34] sm:$0xf]
        %v429 = vld [vmem:[%s412 + $0x38] sm:$0xf]
        %v430 = vld [vmem:[%s412 + $0x3c] sm:$0xf]
        %v431 = vld [vmem:[%s412 + $0x40] sm:$0xf]
        %v432 = vld [vmem:[%s412 + $0x44] sm:$0xf]
        %v433 = vld [vmem:[%s412 + $0x48] sm:$0xf]
        %v434 = vld [vmem:[%s412 + $0x4c] sm:$0xf]
        %v435 = vld [vmem:[%s412 + $0x50] sm:$0xf]
        %v436 = vld [vmem:[%s412 + $0x54] sm:$0xf]
        %v437 = vld [vmem:[%s412 + $0x58] sm:$0xf]
        %v438 = vld [vmem:[%s412 + $0x5c] sm:$0xf]
        %v439 = vld [vmem:[%s412 + $0x60] sm:$0xf]
        %v440 = vld [vmem:[%s412 + $0x64] sm:$0xf]
        %v441 = vld [vmem:[%s412 + $0x68] sm:$0xf]
        %v442 = vld [vmem:[%s412 + $0x6c] sm:$0xf]
        %v443 = vld [vmem:[%s412 + $0x70] sm:$0xf]
        %v444 = vld [vmem:[%s412 + $0x74] sm:$0xf]
        %v445 = vld [vmem:[%s412 + $0x78] sm:$0xf]
        %v446 = vld [vmem:[%s412 + $0x7c] sm:$0xf]
        %v447 = vld [vmem:[%s412 + $0x80] sm:$0xf]
        %v448 = vld [vmem:[%s412 + $0x84] sm:$0xf]
        %v449 = vld [vmem:[%s412 + $0x88] sm:$0xf]
        %v450 = vld [vmem:[%s412 + $0x8c] sm:$0xf]
        %v451 = vld [vmem:[%s1] sm:$0xff]
        %v452 = vld [vmem:[%s1 + $0x8] sm:$0xff]
        %v453 = vld [vmem:[%s1 + $0x10] sm:$0xff]
        %v454 = vld [vmem:[%s1 + $0x18] sm:$0xff]
        %v455 = vld [vmem:[%s1 + $0x20] sm:$0xff]
        %v456 = vld [vmem:[%s1 + $0x28] sm:$0xff]
        %v457 = vld [vmem:[%s1 + $0x30] sm:$0xff]
        %v458 = vld [vmem:[%s1 + $0x38] sm:$0xff]
        %v459 = vld [vmem:[%s1 + $0x40] sm:$0xff]
        %v460 = vld [vmem:[%s1 + $0x48] sm:$0xff]
        %v461 = vld [vmem:[%s1 + $0x50] sm:$0xff]
        %v462 = vld [vmem:[%s1 + $0x58] sm:$0xff]
        %s463 = scalar_lea.vmem %s1, 96
        %v464 = vld [vmem:[%s463] sm:$0xff]
        %v465 = vld [vmem:[%s463 + $0x8] sm:$0xff]
        %v466 = vld [vmem:[%s463 + $0x10] sm:$0xff]
        %v467 = vld [vmem:[%s463 + $0x18] sm:$0xff]
        %v468 = vld [vmem:[%s463 + $0x20] sm:$0xff]
        %v469 = vld [vmem:[%s463 + $0x28] sm:$0xff]
        %v470 = vld [vmem:[%s463 + $0x30] sm:$0xff]
        %v471 = vld [vmem:[%s463 + $0x38] sm:$0xff]
        %v472 = vld [vmem:[%s463 + $0x40] sm:$0xff]
        %v473 = vld [vmem:[%s463 + $0x48] sm:$0xff]
        %v474 = vld [vmem:[%s463 + $0x50] sm:$0xff]
        %v475 = vld [vmem:[%s463 + $0x58] sm:$0xff]
        %v512 = vunpack.c.l.b16 %v415
        %v513 = vunpack.c.l.b16 %v416
        %v514 = vunpack.c.l.b16 %v417
        %v515 = vunpack.c.l.b16 %v418
        %v516 = vunpack.c.l.b16 %v419
        %v517 = vunpack.c.l.b16 %v420
        %v518 = vunpack.c.l.b16 %v421
        %v519 = vunpack.c.l.b16 %v422
        %v520 = vunpack.c.l.b16 %v423
        %v521 = vunpack.c.l.b16 %v424
        %v522 = vunpack.c.l.b16 %v425
        %v523 = vunpack.c.l.b16 %v426
        %v524 = vunpack.c.l.b16 %v427
        %v525 = vunpack.c.l.b16 %v428
        %v526 = vunpack.c.l.b16 %v429
        %v527 = vunpack.c.l.b16 %v430
        %v528 = vunpack.c.l.b16 %v431
        %v529 = vunpack.c.l.b16 %v432
        %v530 = vunpack.c.l.b16 %v433
        %v531 = vunpack.c.l.b16 %v434
        %v532 = vunpack.c.l.b16 %v435
        %v533 = vunpack.c.l.b16 %v436
        %v534 = vunpack.c.l.b16 %v437
        %v535 = vunpack.c.l.b16 %v438
        %v536 = vunpack.c.l.b16 %v439
        %v537 = vunpack.c.l.b16 %v440
        %v538 = vunpack.c.l.b16 %v441
        %v539 = vunpack.c.l.b16 %v442
        %v540 = vunpack.c.l.b16 %v443
        %v541 = vunpack.c.l.b16 %v444
        %v542 = vunpack.c.l.b16 %v445
        %v543 = vunpack.c.l.b16 %v446
        %v544 = vunpack.c.l.b16 %v447
        %v545 = vunpack.c.l.b16 %v448
        %v546 = vunpack.c.l.b16 %v449
        %v547 = vunpack.c.l.b16 %v450
        %v548 = vpack.c.b16 %v513, %v512
        %v549 = vpack.c.b16 %v515, %v514
        %v550 = vpack.c.b16 %v517, %v516
        %v551 = vpack.c.b16 %v519, %v518
        %v552 = vpack.c.b16 %v521, %v520
        %v553 = vpack.c.b16 %v523, %v522
        %v554 = vpack.c.b16 %v525, %v524
        %v555 = vpack.c.b16 %v527, %v526
        %v556 = vpack.c.b16 %v529, %v528
        %v557 = vpack.c.b16 %v531, %v530
        %v558 = vpack.c.b16 %v533, %v532
        %v559 = vpack.c.b16 %v535, %v534
        %v560 = vpack.c.b16 %v537, %v536
        %v561 = vpack.c.b16 %v539, %v538
        %v562 = vpack.c.b16 %v541, %v540
        %v563 = vpack.c.b16 %v543, %v542
        %v564 = vpack.c.b16 %v545, %v544
        %v565 = vpack.c.b16 %v547, %v546
        %vm566 = vsmask.f32 7424
        %v568 = vshrl.u32 %v548, 16
        %v570 = vshll.u32 %v548, 16
        %v572 = vrot.slane %v570, 1
        %v573 = vor.u32 %v568, %v572
        %v575 = vshll.u32 %v549, 16
        %v577 = vrot.slane %v575, 1
        %v578 = vsel %vm566, %v573, %v577
        %v579 = vshrl.u32 %v549, 16
        %v581 = vor.u32 %v579, %v577
        %v583 = vshll.u32 %v550, 16
        %v585 = vrot.slane %v583, 1
        %v586 = vsel %vm566, %v581, %v585
        %v587 = vshrl.u32 %v550, 16
        %v589 = vor.u32 %v587, %v585
        %v591 = vshll.u32 %v551, 16
        %v593 = vrot.slane %v591, 1
        %v594 = vsel %vm566, %v589, %v593
        %v595 = vshrl.u32 %v551, 16
        %v597 = vor.u32 %v595, %v593
        %v599 = vshll.u32 %v552, 16
        %v601 = vrot.slane %v599, 1
        %v602 = vsel %vm566, %v597, %v601
        %v603 = vshrl.u32 %v552, 16
        %v605 = vor.u32 %v603, %v601
        %v607 = vshll.u32 %v553, 16
        %v609 = vrot.slane %v607, 1
        %v610 = vsel %vm566, %v605, %v609
        %v611 = vshrl.u32 %v553, 16
        %v613 = vor.u32 %v611, %v609
        %v615 = vshll.u32 %v554, 16
        %v617 = vrot.slane %v615, 1
        %v618 = vsel %vm566, %v613, %v617
        %v619 = vshrl.u32 %v554, 16
        %v621 = vor.u32 %v619, %v617
        %v623 = vshll.u32 %v555, 16
        %v625 = vrot.slane %v623, 1
        %v626 = vsel %vm566, %v621, %v625
        %v627 = vshrl.u32 %v555, 16
        %v629 = vor.u32 %v627, %v625
        %v631 = vshll.u32 %v556, 16
        %v633 = vrot.slane %v631, 1
        %v634 = vsel %vm566, %v629, %v633
        %v635 = vshrl.u32 %v556, 16
        %v637 = vor.u32 %v635, %v633
        %v639 = vshll.u32 %v557, 16
        %v641 = vrot.slane %v639, 1
        %v642 = vsel %vm566, %v637, %v641
        %v643 = vshrl.u32 %v557, 16
        %v645 = vor.u32 %v643, %v641
        %v647 = vshll.u32 %v558, 16
        %v649 = vrot.slane %v647, 1
        %v650 = vsel %vm566, %v645, %v649
        %v651 = vshrl.u32 %v558, 16
        %v653 = vor.u32 %v651, %v649
        %v655 = vshll.u32 %v559, 16
        %v657 = vrot.slane %v655, 1
        %v658 = vsel %vm566, %v653, %v657
        %v659 = vshrl.u32 %v559, 16
        %v661 = vor.u32 %v659, %v657
        %v663 = vshll.u32 %v560, 16
        %v665 = vrot.slane %v663, 1
        %v666 = vsel %vm566, %v661, %v665
        %v667 = vshrl.u32 %v560, 16
        %v669 = vor.u32 %v667, %v665
        %v671 = vshll.u32 %v561, 16
        %v673 = vrot.slane %v671, 1
        %v674 = vsel %vm566, %v669, %v673
        %v675 = vshrl.u32 %v561, 16
        %v677 = vor.u32 %v675, %v673
        %v679 = vshll.u32 %v562, 16
        %v681 = vrot.slane %v679, 1
        %v682 = vsel %vm566, %v677, %v681
        %v683 = vshrl.u32 %v562, 16
        %v685 = vor.u32 %v683, %v681
        %v687 = vshll.u32 %v563, 16
        %v689 = vrot.slane %v687, 1
        %v690 = vsel %vm566, %v685, %v689
        %v691 = vshrl.u32 %v563, 16
        %v693 = vor.u32 %v691, %v689
        %v695 = vshll.u32 %v564, 16
        %v697 = vrot.slane %v695, 1
        %v698 = vsel %vm566, %v693, %v697
        %v699 = vshrl.u32 %v564, 16
        %v701 = vor.u32 %v699, %v697
        %v703 = vshll.u32 %v565, 16
        %v705 = vrot.slane %v703, 1
        %v706 = vsel %vm566, %v701, %v705
        %v707 = vshrl.u32 %v565, 16
        %v709 = vor.u32 %v707, %v705
        %v722 = vunpack.c.l.b16 %v464
        %v723 = vunpack.c.h.b16 %v464
        %v724 = vunpack.c.l.b16 %v465
        %v725 = vunpack.c.h.b16 %v465
        %v726 = vunpack.c.l.b16 %v466
        %v727 = vunpack.c.h.b16 %v466
        %v728 = vunpack.c.l.b16 %v467
        %v729 = vunpack.c.h.b16 %v467
        %v730 = vunpack.c.l.b16 %v468
        %v731 = vunpack.c.h.b16 %v468
        %v732 = vunpack.c.l.b16 %v469
        %v733 = vunpack.c.h.b16 %v469
        %v734 = vunpack.c.l.b16 %v470
        %v735 = vunpack.c.h.b16 %v470
        %v736 = vunpack.c.l.b16 %v471
        %v737 = vunpack.c.h.b16 %v471
        %v738 = vunpack.c.l.b16 %v472
        %v739 = vunpack.c.h.b16 %v472
        %v740 = vunpack.c.l.b16 %v473
        %v741 = vunpack.c.h.b16 %v473
        %v742 = vunpack.c.l.b16 %v474
        %v743 = vunpack.c.h.b16 %v474
        %v744 = vunpack.c.l.b16 %v475
        %v745 = vunpack.c.h.b16 %v475
        %v746 = vpack.c.b16 %v724, %v722
        %v747 = vpack.c.b16 %v725, %v723
        %v748 = vpack.c.b16 %v728, %v726
        %v749 = vpack.c.b16 %v729, %v727
        %v750 = vpack.c.b16 %v732, %v730
        %v751 = vpack.c.b16 %v733, %v731
        %v752 = vpack.c.b16 %v736, %v734
        %v753 = vpack.c.b16 %v737, %v735
        %v754 = vpack.c.b16 %v740, %v738
        %v755 = vpack.c.b16 %v741, %v739
        %v756 = vpack.c.b16 %v744, %v742
        %v757 = vpack.c.b16 %v745, %v743
        %vm770 = vcmask 785408
        %v772 = vsel %vm770, %v578, 0
        %v775 = vsel %vm770, %v586, 0
        %v778 = vsel %vm770, %v594, 0
        %v781 = vsel %vm770, %v602, 0
        %v784 = vsel %vm770, %v610, 0
        %v787 = vsel %vm770, %v618, 0
        %v790 = vsel %vm770, %v626, 0
        %v793 = vsel %vm770, %v634, 0
        %v796 = vsel %vm770, %v642, 0
        %v799 = vsel %vm770, %v650, 0
        %v802 = vsel %vm770, %v658, 0
        %v805 = vsel %vm770, %v666, 0
        %v808 = vsel %vm770, %v674, 0
        %v811 = vsel %vm770, %v682, 0
        %v814 = vsel %vm770, %v690, 0
        %v817 = vsel %vm770, %v698, 0
        %v820 = vsel %vm770, %v706, 0
        %v823 = vsel %vm770, %v709, 0
        %825 = vmatprep.subr.bf16.mxu0 %v747
        %826 = vmatpush1.bf16.msra.mxu0 %v746
        %827 = vmatprep.subr.bf16.mxu0 %v749
        %828 = vmatpush1.bf16.msra.mxu0 %v748
        %829 = vmatprep.subr.bf16.mxu0 %v751
        %830 = vmatpush1.bf16.msra.mxu0 %v750
        %831 = vmatprep.subr.bf16.mxu0 %v753
        %832 = vmatpush1.bf16.msra.mxu0 %v752
        %833 = vmatprep.subr.bf16.mxu0 %v755
        %834 = vmatpush1.bf16.msra.mxu0 %v754
        %835 = vmatprep.subr.bf16.mxu0 %v757
        %836 = vmatpush1.bf16.msra.mxu0 %v756
        %837 = vmatprep.subr.bf16.mxu0 0
        %838 = vmatpush1.bf16.msra.mxu0 0
        %839 = vmatprep.subr.bf16.mxu0 0
        %840 = vmatpush1.bf16.msra.mxu0 0
        %841 = vmatprep.subr.bf16.mxu0 0
        %842 = vmatpush1.bf16.msra.mxu0 0
        %843 = vmatprep.subr.bf16.mxu0 0
        %844 = vmatpush1.bf16.msra.mxu0 0
        %845 = vmatprep.subr.bf16.mxu0 0
        %846 = vmatpush1.bf16.msra.mxu0 0
        %847 = vmatprep.subr.bf16.mxu0 0
        %848 = vmatpush1.bf16.msra.mxu0 0
        %849 = vmatprep.subr.bf16.mxu0 0
        %850 = vmatpush1.bf16.msra.mxu0 0
        %851 = vmatprep.subr.bf16.mxu0 0
        %852 = vmatpush1.bf16.msra.mxu0 0
        %853 = vmatprep.subr.bf16.mxu0 0
        %854 = vmatpush1.bf16.msra.mxu0 0
        %855 = vmatprep.subr.bf16.mxu0 0
        %856 = vmatpush1.bf16.msra.mxu0 0
        %857 = vmatprep.mubr.bf16.mxu0 0
        %858 = vmatmul.mubr.bf16.gmra.mrb[0].mxu0 %v772
        %v859 = vpop.f32.mrb[0].mxu0
        %v860 = vadd.f32 0.0, %v859
        %v861 = vpop.f32.mrb[0].mxu0
        %v862 = vadd.f32 0.0, %v861
        %v863 = vpop.f32.mrb[0].mxu0
        %v864 = vadd.f32 0.0, %v863
        %v865 = vpop.f32.mrb[0].mxu0
        %v866 = vadd.f32 0.0, %v865
        %867 = vmatprep.mubr.bf16.mxu0 0
        %868 = vmatmul.mubr.bf16.gmra.mrb[0].mxu0 %v775
        %v869 = vpop.f32.mrb[0].mxu0
        %v870 = vadd.f32 0.0, %v869
        %v871 = vpop.f32.mrb[0].mxu0
        %v872 = vadd.f32 0.0, %v871
        %v873 = vpop.f32.mrb[0].mxu0
        %v874 = vadd.f32 0.0, %v873
        %v875 = vpop.f32.mrb[0].mxu0
        %v876 = vadd.f32 0.0, %v875
        %877 = vmatprep.mubr.bf16.mxu0 0
        %878 = vmatmul.mubr.bf16.gmra.mrb[0].mxu0 %v778
        %v879 = vpop.f32.mrb[0].mxu0
        %v880 = vadd.f32 0.0, %v879
        %v881 = vpop.f32.mrb[0].mxu0
        %v882 = vadd.f32 0.0, %v881
        %v883 = vpop.f32.mrb[0].mxu0
        %v884 = vadd.f32 0.0, %v883
        %v885 = vpop.f32.mrb[0].mxu0
        %v886 = vadd.f32 0.0, %v885
        %887 = vmatprep.mubr.bf16.mxu0 0
        %888 = vmatmul.mubr.bf16.gmra.mrb[0].mxu0 %v781
        %v889 = vpop.f32.mrb[0].mxu0
        %v890 = vadd.f32 0.0, %v889
        %v891 = vpop.f32.mrb[0].mxu0
        %v892 = vadd.f32 0.0, %v891
        %v893 = vpop.f32.mrb[0].mxu0
        %v894 = vadd.f32 0.0, %v893
        %v895 = vpop.f32.mrb[0].mxu0
        %v896 = vadd.f32 0.0, %v895
        %897 = vmatprep.mubr.bf16.mxu0 0
        %898 = vmatmul.mubr.bf16.gmra.mrb[0].mxu0 %v784
        %v899 = vpop.f32.mrb[0].mxu0
        %v900 = vadd.f32 0.0, %v899
        %v901 = vpop.f32.mrb[0].mxu0
        %v902 = vadd.f32 0.0, %v901
        %v903 = vpop.f32.mrb[0].mxu0
        %v904 = vadd.f32 0.0, %v903
        %v905 = vpop.f32.mrb[0].mxu0
        %v906 = vadd.f32 0.0, %v905
        %907 = vmatprep.mubr.bf16.mxu0 0
        %908 = vmatmul.mubr.bf16.gmra.mrb[0].mxu0 %v787
        %v909 = vpop.f32.mrb[0].mxu0
        %v910 = vadd.f32 0.0, %v909
        %v911 = vpop.f32.mrb[0].mxu0
        %v912 = vadd.f32 0.0, %v911
        %v913 = vpop.f32.mrb[0].mxu0
        %v914 = vadd.f32 0.0, %v913
        %v915 = vpop.f32.mrb[0].mxu0
        %v916 = vadd.f32 0.0, %v915
        %917 = vmatprep.mubr.bf16.mxu0 0
        %918 = vmatmul.mubr.bf16.gmra.mrb[0].mxu0 %v790
        %v919 = vpop.f32.mrb[0].mxu0
        %v920 = vadd.f32 0.0, %v919
        %v921 = vpop.f32.mrb[0].mxu0
        %v922 = vadd.f32 0.0, %v921
        %v923 = vpop.f32.mrb[0].mxu0
        %v924 = vadd.f32 0.0, %v923
        %v925 = vpop.f32.mrb[0].mxu0
        %v926 = vadd.f32 0.0, %v925
        %927 = vmatprep.mubr.bf16.mxu0 0
        %928 = vmatmul.mubr.bf16.gmra.mrb[0].mxu0 %v793
        %v929 = vpop.f32.mrb[0].mxu0
        %v930 = vadd.f32 0.0, %v929
        %v931 = vpop.f32.mrb[0].mxu0
        %v932 = vadd.f32 0.0, %v931
        %v933 = vpop.f32.mrb[0].mxu0
        %v934 = vadd.f32 0.0, %v933
        %v935 = vpop.f32.mrb[0].mxu0
        %v936 = vadd.f32 0.0, %v935
        %937 = vmatprep.mubr.bf16.mxu0 0
        %938 = vmatmul.mubr.bf16.gmra.mrb[0].mxu0 %v796
        %v939 = vpop.f32.mrb[0].mxu0
        %v940 = vadd.f32 0.0, %v939
        %v941 = vpop.f32.mrb[0].mxu0
        %v942 = vadd.f32 0.0, %v941
        %v943 = vpop.f32.mrb[0].mxu0
        %v944 = vadd.f32 0.0, %v943
        %v945 = vpop.f32.mrb[0].mxu0
        %v946 = vadd.f32 0.0, %v945
        %947 = vmatprep.mubr.bf16.mxu0 0
        %948 = vmatmul.mubr.bf16.gmra.mrb[0].mxu0 %v799
        %v949 = vpop.f32.mrb[0].mxu0
        %v950 = vadd.f32 0.0, %v949
        %v951 = vpop.f32.mrb[0].mxu0
        %v952 = vadd.f32 0.0, %v951
        %v953 = vpop.f32.mrb[0].mxu0
        %v954 = vadd.f32 0.0, %v953
        %v955 = vpop.f32.mrb[0].mxu0
        %v956 = vadd.f32 0.0, %v955
        %957 = vmatprep.mubr.bf16.mxu0 0
        %958 = vmatmul.mubr.bf16.gmra.mrb[0].mxu0 %v802
        %v959 = vpop.f32.mrb[0].mxu0
        %v960 = vadd.f32 0.0, %v959
        %v961 = vpop.f32.mrb[0].mxu0
        %v962 = vadd.f32 0.0, %v961
        %v963 = vpop.f32.mrb[0].mxu0
        %v964 = vadd.f32 0.0, %v963
        %v965 = vpop.f32.mrb[0].mxu0
        %v966 = vadd.f32 0.0, %v965
        %967 = vmatprep.mubr.bf16.mxu0 0
        %968 = vmatmul.mubr.bf16.gmra.mrb[0].mxu0 %v805
        %v969 = vpop.f32.mrb[0].mxu0
        %v970 = vadd.f32 0.0, %v969
        %v971 = vpop.f32.mrb[0].mxu0
        %v972 = vadd.f32 0.0, %v971
        %v973 = vpop.f32.mrb[0].mxu0
        %v974 = vadd.f32 0.0, %v973
        %v975 = vpop.f32.mrb[0].mxu0
        %v976 = vadd.f32 0.0, %v975
        %977 = vmatprep.mubr.bf16.mxu0 0
        %978 = vmatmul.mubr.bf16.gmra.mrb[0].mxu0 %v808
        %v979 = vpop.f32.mrb[0].mxu0
        %v980 = vadd.f32 0.0, %v979
        %v981 = vpop.f32.mrb[0].mxu0
        %v982 = vadd.f32 0.0, %v981
        %v983 = vpop.f32.mrb[0].mxu0
        %v984 = vadd.f32 0.0, %v983
        %v985 = vpop.f32.mrb[0].mxu0
        %v986 = vadd.f32 0.0, %v985
        %987 = vmatprep.mubr.bf16.mxu0 0
        %988 = vmatmul.mubr.bf16.gmra.mrb[0].mxu0 %v811
        %v989 = vpop.f32.mrb[0].mxu0
        %v990 = vadd.f32 0.0, %v989
        %v991 = vpop.f32.mrb[0].mxu0
        %v992 = vadd.f32 0.0, %v991
        %v993 = vpop.f32.mrb[0].mxu0
        %v994 = vadd.f32 0.0, %v993
        %v995 = vpop.f32.mrb[0].mxu0
        %v996 = vadd.f32 0.0, %v995
        %997 = vmatprep.mubr.bf16.mxu0 0
        %998 = vmatmul.mubr.bf16.gmra.mrb[0].mxu0 %v814
        %v999 = vpop.f32.mrb[0].mxu0
        %v1000 = vadd.f32 0.0, %v999
        %v1001 = vpop.f32.mrb[0].mxu0
        %v1002 = vadd.f32 0.0, %v1001
        %v1003 = vpop.f32.mrb[0].mxu0
        %v1004 = vadd.f32 0.0, %v1003
        %v1005 = vpop.f32.mrb[0].mxu0
        %v1006 = vadd.f32 0.0, %v1005
        %1007 = vmatprep.mubr.bf16.mxu0 0
        %1008 = vmatmul.mubr.bf16.gmra.mrb[0].mxu0 %v817
        %v1009 = vpop.f32.mrb[0].mxu0
        %v1010 = vadd.f32 0.0, %v1009
        %v1011 = vpop.f32.mrb[0].mxu0
        %v1012 = vadd.f32 0.0, %v1011
        %v1013 = vpop.f32.mrb[0].mxu0
        %v1014 = vadd.f32 0.0, %v1013
        %v1015 = vpop.f32.mrb[0].mxu0
        %v1016 = vadd.f32 0.0, %v1015
        %1017 = vmatprep.mubr.bf16.mxu0 0
        %1018 = vmatmul.mubr.bf16.gmra.mrb[0].mxu0 %v820
        %v1019 = vpop.f32.mrb[0].mxu0
        %v1020 = vadd.f32 0.0, %v1019
        %v1021 = vpop.f32.mrb[0].mxu0
        %v1022 = vadd.f32 0.0, %v1021
        %v1023 = vpop.f32.mrb[0].mxu0
        %v1024 = vadd.f32 0.0, %v1023
        %v1025 = vpop.f32.mrb[0].mxu0
        %v1026 = vadd.f32 0.0, %v1025
        %1027 = vmatprep.mubr.bf16.mxu0 0
        %1028 = vmatmul.mubr.bf16.gmra.mrb[0].mxu0 %v823
        %v1029 = vpop.f32.mrb[0].mxu0
        %v1030 = vadd.f32 0.0, %v1029
        %v1031 = vpop.f32.mrb[0].mxu0
        %v1032 = vadd.f32 0.0, %v1031
        %v1033 = vpop.f32.mrb[0].mxu0
        %v1034 = vadd.f32 0.0, %v1033
        %v1035 = vpop.f32.mrb[0].mxu0
        %v1036 = vadd.f32 0.0, %v1035
        %1037 = vdwg.mxu0
        %v1050 = vunpack.c.l.b16 %v451
        %v1051 = vunpack.c.h.b16 %v451
        %v1052 = vunpack.c.l.b16 %v452
        %v1053 = vunpack.c.h.b16 %v452
        %v1054 = vunpack.c.l.b16 %v453
        %v1055 = vunpack.c.h.b16 %v453
        %v1056 = vunpack.c.l.b16 %v454
        %v1057 = vunpack.c.h.b16 %v454
        %v1058 = vunpack.c.l.b16 %v455
        %v1059 = vunpack.c.h.b16 %v455
        %v1060 = vunpack.c.l.b16 %v456
        %v1061 = vunpack.c.h.b16 %v456
        %v1062 = vunpack.c.l.b16 %v457
        %v1063 = vunpack.c.h.b16 %v457
        %v1064 = vunpack.c.l.b16 %v458
        %v1065 = vunpack.c.h.b16 %v458
        %v1066 = vunpack.c.l.b16 %v459
        %v1067 = vunpack.c.h.b16 %v459
        %v1068 = vunpack.c.l.b16 %v460
        %v1069 = vunpack.c.h.b16 %v460
        %v1070 = vunpack.c.l.b16 %v461
        %v1071 = vunpack.c.h.b16 %v461
        %v1072 = vunpack.c.l.b16 %v462
        %v1073 = vunpack.c.h.b16 %v462
        %v1074 = vpack.c.b16 %v1052, %v1050
        %v1075 = vpack.c.b16 %v1053, %v1051
        %v1076 = vpack.c.b16 %v1056, %v1054
        %v1077 = vpack.c.b16 %v1057, %v1055
        %v1078 = vpack.c.b16 %v1060, %v1058
        %v1079 = vpack.c.b16 %v1061, %v1059
        %v1080 = vpack.c.b16 %v1064, %v1062
        %v1081 = vpack.c.b16 %v1065, %v1063
        %v1082 = vpack.c.b16 %v1068, %v1066
        %v1083 = vpack.c.b16 %v1069, %v1067
        %v1084 = vpack.c.b16 %v1072, %v1070
        %v1085 = vpack.c.b16 %v1073, %v1071
        %v1098 = vsel %vm770, %v548, 0
        %v1100 = vsel %vm770, %v549, 0
        %v1102 = vsel %vm770, %v550, 0
        %v1104 = vsel %vm770, %v551, 0
        %v1106 = vsel %vm770, %v552, 0
        %v1108 = vsel %vm770, %v553, 0
        %v1110 = vsel %vm770, %v554, 0
        %v1112 = vsel %vm770, %v555, 0
        %v1114 = vsel %vm770, %v556, 0
        %v1116 = vsel %vm770, %v557, 0
        %v1118 = vsel %vm770, %v558, 0
        %v1120 = vsel %vm770, %v559, 0
        %v1122 = vsel %vm770, %v560, 0
        %v1124 = vsel %vm770, %v561, 0
        %v1126 = vsel %vm770, %v562, 0
        %v1128 = vsel %vm770, %v563, 0
        %v1130 = vsel %vm770, %v564, 0
        %v1132 = vsel %vm770, %v565, 0
        %1134 = vmatprep.subr.bf16.mxu0 %v1075
        %1135 = vmatpush1.bf16.msra.mxu0 %v1074
        %1136 = vmatprep.subr.bf16.mxu0 %v1077
        %1137 = vmatpush1.bf16.msra.mxu0 %v1076
        %1138 = vmatprep.subr.bf16.mxu0 %v1079
        %1139 = vmatpush1.bf16.msra.mxu0 %v1078
        %1140 = vmatprep.subr.bf16.mxu0 %v1081
        %1141 = vmatpush1.bf16.msra.mxu0 %v1080
        %1142 = vmatprep.subr.bf16.mxu0 %v1083
        %1143 = vmatpush1.bf16.msra.mxu0 %v1082
        %1144 = vmatprep.subr.bf16.mxu0 %v1085
        %1145 = vmatpush1.bf16.msra.mxu0 %v1084
        %1146 = vmatprep.subr.bf16.mxu0 0
        %1147 = vmatpush1.bf16.msra.mxu0 0
        %1148 = vmatprep.subr.bf16.mxu0 0
        %1149 = vmatpush1.bf16.msra.mxu0 0
        %1150 = vmatprep.subr.bf16.mxu0 0
        %1151 = vmatpush1.bf16.msra.mxu0 0
        %1152 = vmatprep.subr.bf16.mxu0 0
        %1153 = vmatpush1.bf16.msra.mxu0 0
        %1154 = vmatprep.subr.bf16.mxu0 0
        %1155 = vmatpush1.bf16.msra.mxu0 0
        %1156 = vmatprep.subr.bf16.mxu0 0
        %1157 = vmatpush1.bf16.msra.mxu0 0
        %1158 = vmatprep.subr.bf16.mxu0 0
        %1159 = vmatpush1.bf16.msra.mxu0 0
        %1160 = vmatprep.subr.bf16.mxu0 0
        %1161 = vmatpush1.bf16.msra.mxu0 0
        %1162 = vmatprep.subr.bf16.mxu0 0
        %1163 = vmatpush1.bf16.msra.mxu0 0
        %1164 = vmatprep.subr.bf16.mxu0 0
        %1165 = vmatpush1.bf16.msra.mxu0 0
        %1166 = vmatprep.mubr.bf16.mxu0 0
        %1167 = vmatmul.mubr.bf16.gmra.mrb[0].mxu0 %v1098
        %v1168 = vpop.f32.mrb[0].mxu0
        %v1169 = vadd.f32 %v860, %v1168
        %v1170 = vpop.f32.mrb[0].mxu0
        %v1171 = vadd.f32 %v862, %v1170
        %v1172 = vpop.f32.mrb[0].mxu0
        %v1173 = vadd.f32 %v864, %v1172
        %v1174 = vpop.f32.mrb[0].mxu0
        %v1175 = vadd.f32 %v866, %v1174
        %1176 = vmatprep.mubr.bf16.mxu0 0
        %1177 = vmatmul.mubr.bf16.gmra.mrb[0].mxu0 %v1100
        %v1178 = vpop.f32.mrb[0].mxu0
        %v1179 = vadd.f32 %v870, %v1178
        %v1180 = vpop.f32.mrb[0].mxu0
        %v1181 = vadd.f32 %v872, %v1180
        %v1182 = vpop.f32.mrb[0].mxu0
        %v1183 = vadd.f32 %v874, %v1182
        %v1184 = vpop.f32.mrb[0].mxu0
        %v1185 = vadd.f32 %v876, %v1184
        %1186 = vmatprep.mubr.bf16.mxu0 0
        %1187 = vmatmul.mubr.bf16.gmra.mrb[0].mxu0 %v1102
        %v1188 = vpop.f32.mrb[0].mxu0
        %v1189 = vadd.f32 %v880, %v1188
        %v1190 = vpop.f32.mrb[0].mxu0
        %v1191 = vadd.f32 %v882, %v1190
        %v1192 = vpop.f32.mrb[0].mxu0
        %v1193 = vadd.f32 %v884, %v1192
        %v1194 = vpop.f32.mrb[0].mxu0
        %v1195 = vadd.f32 %v886, %v1194
        %1196 = vmatprep.mubr.bf16.mxu0 0
        %1197 = vmatmul.mubr.bf16.gmra.mrb[0].mxu0 %v1104
        %v1198 = vpop.f32.mrb[0].mxu0
        %v1199 = vadd.f32 %v890, %v1198
        %v1200 = vpop.f32.mrb[0].mxu0
        %v1201 = vadd.f32 %v892, %v1200
        %v1202 = vpop.f32.mrb[0].mxu0
        %v1203 = vadd.f32 %v894, %v1202
        %v1204 = vpop.f32.mrb[0].mxu0
        %v1205 = vadd.f32 %v896, %v1204
        %1206 = vmatprep.mubr.bf16.mxu0 0
        %1207 = vmatmul.mubr.bf16.gmra.mrb[0].mxu0 %v1106
        %v1208 = vpop.f32.mrb[0].mxu0
        %v1209 = vadd.f32 %v900, %v1208
        %v1210 = vpop.f32.mrb[0].mxu0
        %v1211 = vadd.f32 %v902, %v1210
        %v1212 = vpop.f32.mrb[0].mxu0
        %v1213 = vadd.f32 %v904, %v1212
        %v1214 = vpop.f32.mrb[0].mxu0
        %v1215 = vadd.f32 %v906, %v1214
        %1216 = vmatprep.mubr.bf16.mxu0 0
        %1217 = vmatmul.mubr.bf16.gmra.mrb[0].mxu0 %v1108
        %v1218 = vpop.f32.mrb[0].mxu0
        %v1219 = vadd.f32 %v910, %v1218
        %v1220 = vpop.f32.mrb[0].mxu0
        %v1221 = vadd.f32 %v912, %v1220
        %v1222 = vpop.f32.mrb[0].mxu0
        %v1223 = vadd.f32 %v914, %v1222
        %v1224 = vpop.f32.mrb[0].mxu0
        %v1225 = vadd.f32 %v916, %v1224
        %1226 = vmatprep.mubr.bf16.mxu0 0
        %1227 = vmatmul.mubr.bf16.gmra.mrb[0].mxu0 %v1110
        %v1228 = vpop.f32.mrb[0].mxu0
        %v1229 = vadd.f32 %v920, %v1228
        %v1230 = vpop.f32.mrb[0].mxu0
        %v1231 = vadd.f32 %v922, %v1230
        %v1232 = vpop.f32.mrb[0].mxu0
        %v1233 = vadd.f32 %v924, %v1232
        %v1234 = vpop.f32.mrb[0].mxu0
        %v1235 = vadd.f32 %v926, %v1234
        %1236 = vmatprep.mubr.bf16.mxu0 0
        %1237 = vmatmul.mubr.bf16.gmra.mrb[0].mxu0 %v1112
        %v1238 = vpop.f32.mrb[0].mxu0
        %v1239 = vadd.f32 %v930, %v1238
        %v1240 = vpop.f32.mrb[0].mxu0
        %v1241 = vadd.f32 %v932, %v1240
        %v1242 = vpop.f32.mrb[0].mxu0
        %v1243 = vadd.f32 %v934, %v1242
        %v1244 = vpop.f32.mrb[0].mxu0
        %v1245 = vadd.f32 %v936, %v1244
        %1246 = vmatprep.mubr.bf16.mxu0 0
        %1247 = vmatmul.mubr.bf16.gmra.mrb[0].mxu0 %v1114
        %v1248 = vpop.f32.mrb[0].mxu0
        %v1249 = vadd.f32 %v940, %v1248
        %v1250 = vpop.f32.mrb[0].mxu0
        %v1251 = vadd.f32 %v942, %v1250
        %v1252 = vpop.f32.mrb[0].mxu0
        %v1253 = vadd.f32 %v944, %v1252
        %v1254 = vpop.f32.mrb[0].mxu0
        %v1255 = vadd.f32 %v946, %v1254
        %1256 = vmatprep.mubr.bf16.mxu0 0
        %1257 = vmatmul.mubr.bf16.gmra.mrb[0].mxu0 %v1116
        %v1258 = vpop.f32.mrb[0].mxu0
        %v1259 = vadd.f32 %v950, %v1258
        %v1260 = vpop.f32.mrb[0].mxu0
        %v1261 = vadd.f32 %v952, %v1260
        %v1262 = vpop.f32.mrb[0].mxu0
        %v1263 = vadd.f32 %v954, %v1262
        %v1264 = vpop.f32.mrb[0].mxu0
        %v1265 = vadd.f32 %v956, %v1264
        %1266 = vmatprep.mubr.bf16.mxu0 0
        %1267 = vmatmul.mubr.bf16.gmra.mrb[0].mxu0 %v1118
        %v1268 = vpop.f32.mrb[0].mxu0
        %v1269 = vadd.f32 %v960, %v1268
        %v1270 = vpop.f32.mrb[0].mxu0
        %v1271 = vadd.f32 %v962, %v1270
        %v1272 = vpop.f32.mrb[0].mxu0
        %v1273 = vadd.f32 %v964, %v1272
        %v1274 = vpop.f32.mrb[0].mxu0
        %v1275 = vadd.f32 %v966, %v1274
        %1276 = vmatprep.mubr.bf16.mxu0 0
        %1277 = vmatmul.mubr.bf16.gmra.mrb[0].mxu0 %v1120
        %v1278 = vpop.f32.mrb[0].mxu0
        %v1279 = vadd.f32 %v970, %v1278
        %v1280 = vpop.f32.mrb[0].mxu0
        %v1281 = vadd.f32 %v972, %v1280
        %v1282 = vpop.f32.mrb[0].mxu0
        %v1283 = vadd.f32 %v974, %v1282
        %v1284 = vpop.f32.mrb[0].mxu0
        %v1285 = vadd.f32 %v976, %v1284
        %1286 = vmatprep.mubr.bf16.mxu0 0
        %1287 = vmatmul.mubr.bf16.gmra.mrb[0].mxu0 %v1122
        %v1288 = vpop.f32.mrb[0].mxu0
        %v1289 = vadd.f32 %v980, %v1288
        %v1290 = vpop.f32.mrb[0].mxu0
        %v1291 = vadd.f32 %v982, %v1290
        %v1292 = vpop.f32.mrb[0].mxu0
        %v1293 = vadd.f32 %v984, %v1292
        %v1294 = vpop.f32.mrb[0].mxu0
        %v1295 = vadd.f32 %v986, %v1294
        %1296 = vmatprep.mubr.bf16.mxu0 0
        %1297 = vmatmul.mubr.bf16.gmra.mrb[0].mxu0 %v1124
        %v1298 = vpop.f32.mrb[0].mxu0
        %v1299 = vadd.f32 %v990, %v1298
        %v1300 = vpop.f32.mrb[0].mxu0
        %v1301 = vadd.f32 %v992, %v1300
        %v1302 = vpop.f32.mrb[0].mxu0
        %v1303 = vadd.f32 %v994, %v1302
        %v1304 = vpop.f32.mrb[0].mxu0
        %v1305 = vadd.f32 %v996, %v1304
        %1306 = vmatprep.mubr.bf16.mxu0 0
        %1307 = vmatmul.mubr.bf16.gmra.mrb[0].mxu0 %v1126
        %v1308 = vpop.f32.mrb[0].mxu0
        %v1309 = vadd.f32 %v1000, %v1308
        %v1310 = vpop.f32.mrb[0].mxu0
        %v1311 = vadd.f32 %v1002, %v1310
        %v1312 = vpop.f32.mrb[0].mxu0
        %v1313 = vadd.f32 %v1004, %v1312
        %v1314 = vpop.f32.mrb[0].mxu0
        %v1315 = vadd.f32 %v1006, %v1314
        %1316 = vmatprep.mubr.bf16.mxu0 0
        %1317 = vmatmul.mubr.bf16.gmra.mrb[0].mxu0 %v1128
        %v1318 = vpop.f32.mrb[0].mxu0
        %v1319 = vadd.f32 %v1010, %v1318
        %v1320 = vpop.f32.mrb[0].mxu0
        %v1321 = vadd.f32 %v1012, %v1320
        %v1322 = vpop.f32.mrb[0].mxu0
        %v1323 = vadd.f32 %v1014, %v1322
        %v1324 = vpop.f32.mrb[0].mxu0
        %v1325 = vadd.f32 %v1016, %v1324
        %1326 = vmatprep.mubr.bf16.mxu0 0
        %1327 = vmatmul.mubr.bf16.gmra.mrb[0].mxu0 %v1130
        %v1328 = vpop.f32.mrb[0].mxu0
        %v1329 = vadd.f32 %v1020, %v1328
        %v1330 = vpop.f32.mrb[0].mxu0
        %v1331 = vadd.f32 %v1022, %v1330
        %v1332 = vpop.f32.mrb[0].mxu0
        %v1333 = vadd.f32 %v1024, %v1332
        %v1334 = vpop.f32.mrb[0].mxu0
        %v1335 = vadd.f32 %v1026, %v1334
        %1336 = vmatprep.mubr.bf16.mxu0 0
        %1337 = vmatmul.mubr.bf16.gmra.mrb[0].mxu0 %v1132
        %v1338 = vpop.f32.mrb[0].mxu0
        %v1339 = vadd.f32 %v1030, %v1338
        %v1340 = vpop.f32.mrb[0].mxu0
        %v1341 = vadd.f32 %v1032, %v1340
        %v1342 = vpop.f32.mrb[0].mxu0
        %v1343 = vadd.f32 %v1034, %v1342
        %v1344 = vpop.f32.mrb[0].mxu0
        %v1345 = vadd.f32 %v1036, %v1344
        %1346 = vdwg.mxu0
        %s1347 = scalar_lea.vmem %s1, 192
        %v1348 = vld [vmem:[%s1347] sm:$0xff]
        %v1349 = vld [vmem:[%s1347 + $0x8] sm:$0xff]
        %v1350 = vld [vmem:[%s1347 + $0x10] sm:$0xff]
        %v1351 = vld [vmem:[%s1347 + $0x18] sm:$0xff]
        %v1352 = vld [vmem:[%s1347 + $0x20] sm:$0xff]
        %v1353 = vld [vmem:[%s1347 + $0x28] sm:$0xff]
        %v1354 = vld [vmem:[%s1347 + $0x30] sm:$0xff]
        %v1355 = vld [vmem:[%s1347 + $0x38] sm:$0xff]
        %v1356 = vld [vmem:[%s1347 + $0x40] sm:$0xff]
        %v1357 = vld [vmem:[%s1347 + $0x48] sm:$0xff]
        %v1358 = vld [vmem:[%s1347 + $0x50] sm:$0xff]
        %v1359 = vld [vmem:[%s1347 + $0x58] sm:$0xff]
        %vm1360 = vcmask 1046528
        %v1361 = vrot.slane %v548, 1
        %v1362 = vrot.slane %v549, 1
        %v1363 = vsel %vm1360, %v1361, %v1362
        %v1364 = vrot.slane %v550, 1
        %v1365 = vsel %vm1360, %v1362, %v1364
        %v1366 = vrot.slane %v551, 1
        %v1367 = vsel %vm1360, %v1364, %v1366
        %v1368 = vrot.slane %v552, 1
        %v1369 = vsel %vm1360, %v1366, %v1368
        %v1370 = vrot.slane %v553, 1
        %v1371 = vsel %vm1360, %v1368, %v1370
        %v1372 = vrot.slane %v554, 1
        %v1373 = vsel %vm1360, %v1370, %v1372
        %v1374 = vrot.slane %v555, 1
        %v1375 = vsel %vm1360, %v1372, %v1374
        %v1376 = vrot.slane %v556, 1
        %v1377 = vsel %vm1360, %v1374, %v1376
        %v1378 = vrot.slane %v557, 1
        %v1379 = vsel %vm1360, %v1376, %v1378
        %v1380 = vrot.slane %v558, 1
        %v1381 = vsel %vm1360, %v1378, %v1380
        %v1382 = vrot.slane %v559, 1
        %v1383 = vsel %vm1360, %v1380, %v1382
        %v1384 = vrot.slane %v560, 1
        %v1385 = vsel %vm1360, %v1382, %v1384
        %v1386 = vrot.slane %v561, 1
        %v1387 = vsel %vm1360, %v1384, %v1386
        %v1388 = vrot.slane %v562, 1
        %v1389 = vsel %vm1360, %v1386, %v1388
        %v1390 = vrot.slane %v563, 1
        %v1391 = vsel %vm1360, %v1388, %v1390
        %v1392 = vrot.slane %v564, 1
        %v1393 = vsel %vm1360, %v1390, %v1392
        %v1394 = vrot.slane %v565, 1
        %v1395 = vsel %vm1360, %v1392, %v1394
        %v1408 = vunpack.c.l.b16 %v1348
        %v1409 = vunpack.c.h.b16 %v1348
        %v1410 = vunpack.c.l.b16 %v1349
        %v1411 = vunpack.c.h.b16 %v1349
        %v1412 = vunpack.c.l.b16 %v1350
        %v1413 = vunpack.c.h.b16 %v1350
        %v1414 = vunpack.c.l.b16 %v1351
        %v1415 = vunpack.c.h.b16 %v1351
        %v1416 = vunpack.c.l.b16 %v1352
        %v1417 = vunpack.c.h.b16 %v1352
        %v1418 = vunpack.c.l.b16 %v1353
        %v1419 = vunpack.c.h.b16 %v1353
        %v1420 = vunpack.c.l.b16 %v1354
        %v1421 = vunpack.c.h.b16 %v1354
        %v1422 = vunpack.c.l.b16 %v1355
        %v1423 = vunpack.c.h.b16 %v1355
        %v1424 = vunpack.c.l.b16 %v1356
        %v1425 = vunpack.c.h.b16 %v1356
        %v1426 = vunpack.c.l.b16 %v1357
        %v1427 = vunpack.c.h.b16 %v1357
        %v1428 = vunpack.c.l.b16 %v1358
        %v1429 = vunpack.c.h.b16 %v1358
        %v1430 = vunpack.c.l.b16 %v1359
        %v1431 = vunpack.c.h.b16 %v1359
        %v1432 = vpack.c.b16 %v1410, %v1408
        %v1433 = vpack.c.b16 %v1411, %v1409
        %v1434 = vpack.c.b16 %v1414, %v1412
        %v1435 = vpack.c.b16 %v1415, %v1413
        %v1436 = vpack.c.b16 %v1418, %v1416
        %v1437 = vpack.c.b16 %v1419, %v1417
        %v1438 = vpack.c.b16 %v1422, %v1420
        %v1439 = vpack.c.b16 %v1423, %v1421
        %v1440 = vpack.c.b16 %v1426, %v1424
        %v1441 = vpack.c.b16 %v1427, %v1425
        %v1442 = vpack.c.b16 %v1430, %v1428
        %v1443 = vpack.c.b16 %v1431, %v1429
        %v1457 = vsel %vm770, %v1363, 0
        %v1460 = vsel %vm770, %v1365, 0
        %v1463 = vsel %vm770, %v1367, 0
        %v1466 = vsel %vm770, %v1369, 0
        %v1469 = vsel %vm770, %v1371, 0
        %v1472 = vsel %vm770, %v1373, 0
        %v1475 = vsel %vm770, %v1375, 0
        %v1478 = vsel %vm770, %v1377, 0
        %v1481 = vsel %vm770, %v1379, 0
        %v1484 = vsel %vm770, %v1381, 0
        %v1487 = vsel %vm770, %v1383, 0
        %v1490 = vsel %vm770, %v1385, 0
        %v1493 = vsel %vm770, %v1387, 0
        %v1496 = vsel %vm770, %v1389, 0
        %v1499 = vsel %vm770, %v1391, 0
        %v1502 = vsel %vm770, %v1393, 0
        %v1505 = vsel %vm770, %v1395, 0
        %v1508 = vsel %vm770, %v1394, 0
        %1510 = vmatprep.subr.bf16.mxu0 %v1433
        %1511 = vmatpush1.bf16.msra.mxu0 %v1432
        %1512 = vmatprep.subr.bf16.mxu0 %v1435
        %1513 = vmatpush1.bf16.msra.mxu0 %v1434
        %1514 = vmatprep.subr.bf16.mxu0 %v1437
        %1515 = vmatpush1.bf16.msra.mxu0 %v1436
        %1516 = vmatprep.subr.bf16.mxu0 %v1439
        %1517 = vmatpush1.bf16.msra.mxu0 %v1438
        %1518 = vmatprep.subr.bf16.mxu0 %v1441
        %1519 = vmatpush1.bf16.msra.mxu0 %v1440
        %1520 = vmatprep.subr.bf16.mxu0 %v1443
        %1521 = vmatpush1.bf16.msra.mxu0 %v1442
        %1522 = vmatprep.subr.bf16.mxu0 0
        %1523 = vmatpush1.bf16.msra.mxu0 0
        %1524 = vmatprep.subr.bf16.mxu0 0
        %1525 = vmatpush1.bf16.msra.mxu0 0
        %1526 = vmatprep.subr.bf16.mxu0 0
        %1527 = vmatpush1.bf16.msra.mxu0 0
        %1528 = vmatprep.subr.bf16.mxu0 0
        %1529 = vmatpush1.bf16.msra.mxu0 0
        %1530 = vmatprep.subr.bf16.mxu0 0
        %1531 = vmatpush1.bf16.msra.mxu0 0
        %1532 = vmatprep.subr.bf16.mxu0 0
        %1533 = vmatpush1.bf16.msra.mxu0 0
        %1534 = vmatprep.subr.bf16.mxu0 0
        %1535 = vmatpush1.bf16.msra.mxu0 0
        %1536 = vmatprep.subr.bf16.mxu0 0
        %1537 = vmatpush1.bf16.msra.mxu0 0
        %1538 = vmatprep.subr.bf16.mxu0 0
        %1539 = vmatpush1.bf16.msra.mxu0 0
        %1540 = vmatprep.subr.bf16.mxu0 0
        %1541 = vmatpush1.bf16.msra.mxu0 0
        %1542 = vmatprep.mubr.bf16.mxu0 0
        %1543 = vmatmul.mubr.bf16.gmra.mrb[0].mxu0 %v1457
        %v1544 = vpop.f32.mrb[0].mxu0
        %v1545 = vadd.f32 0.0, %v1544
        %v1546 = vpop.f32.mrb[0].mxu0
        %v1547 = vadd.f32 0.0, %v1546
        %v1548 = vpop.f32.mrb[0].mxu0
        %v1549 = vadd.f32 0.0, %v1548
        %v1550 = vpop.f32.mrb[0].mxu0
        %v1551 = vadd.f32 0.0, %v1550
        %1552 = vmatprep.mubr.bf16.mxu0 0
        %1553 = vmatmul.mubr.bf16.gmra.mrb[0].mxu0 %v1460
        %v1554 = vpop.f32.mrb[0].mxu0
        %v1555 = vadd.f32 0.0, %v1554
        %v1556 = vpop.f32.mrb[0].mxu0
        %v1557 = vadd.f32 0.0, %v1556
        %v1558 = vpop.f32.mrb[0].mxu0
        %v1559 = vadd.f32 0.0, %v1558
        %v1560 = vpop.f32.mrb[0].mxu0
        %v1561 = vadd.f32 0.0, %v1560
        %1562 = vmatprep.mubr.bf16.mxu0 0
        %1563 = vmatmul.mubr.bf16.gmra.mrb[0].mxu0 %v1463
        %v1564 = vpop.f32.mrb[0].mxu0
        %v1565 = vadd.f32 0.0, %v1564
        %v1566 = vpop.f32.mrb[0].mxu0
        %v1567 = vadd.f32 0.0, %v1566
        %v1568 = vpop.f32.mrb[0].mxu0
        %v1569 = vadd.f32 0.0, %v1568
        %v1570 = vpop.f32.mrb[0].mxu0
        %v1571 = vadd.f32 0.0, %v1570
        %1572 = vmatprep.mubr.bf16.mxu0 0
        %1573 = vmatmul.mubr.bf16.gmra.mrb[0].mxu0 %v1466
        %v1574 = vpop.f32.mrb[0].mxu0
        %v1575 = vadd.f32 0.0, %v1574
        %v1576 = vpop.f32.mrb[0].mxu0
        %v1577 = vadd.f32 0.0, %v1576
        %v1578 = vpop.f32.mrb[0].mxu0
        %v1579 = vadd.f32 0.0, %v1578
        %v1580 = vpop.f32.mrb[0].mxu0
        %v1581 = vadd.f32 0.0, %v1580
        %1582 = vmatprep.mubr.bf16.mxu0 0
        %1583 = vmatmul.mubr.bf16.gmra.mrb[0].mxu0 %v1469
        %v1584 = vpop.f32.mrb[0].mxu0
        %v1585 = vadd.f32 0.0, %v1584
        %v1586 = vpop.f32.mrb[0].mxu0
        %v1587 = vadd.f32 0.0, %v1586
        %v1588 = vpop.f32.mrb[0].mxu0
        %v1589 = vadd.f32 0.0, %v1588
        %v1590 = vpop.f32.mrb[0].mxu0
        %v1591 = vadd.f32 0.0, %v1590
        %1592 = vmatprep.mubr.bf16.mxu0 0
        %1593 = vmatmul.mubr.bf16.gmra.mrb[0].mxu0 %v1472
        %v1594 = vpop.f32.mrb[0].mxu0
        %v1595 = vadd.f32 0.0, %v1594
        %v1596 = vpop.f32.mrb[0].mxu0
        %v1597 = vadd.f32 0.0, %v1596
        %v1598 = vpop.f32.mrb[0].mxu0
        %v1599 = vadd.f32 0.0, %v1598
        %v1600 = vpop.f32.mrb[0].mxu0
        %v1601 = vadd.f32 0.0, %v1600
        %1602 = vmatprep.mubr.bf16.mxu0 0
        %1603 = vmatmul.mubr.bf16.gmra.mrb[0].mxu0 %v1475
        %v1604 = vpop.f32.mrb[0].mxu0
        %v1605 = vadd.f32 0.0, %v1604
        %v1606 = vpop.f32.mrb[0].mxu0
        %v1607 = vadd.f32 0.0, %v1606
        %v1608 = vpop.f32.mrb[0].mxu0
        %v1609 = vadd.f32 0.0, %v1608
        %v1610 = vpop.f32.mrb[0].mxu0
        %v1611 = vadd.f32 0.0, %v1610
        %1612 = vmatprep.mubr.bf16.mxu0 0
        %1613 = vmatmul.mubr.bf16.gmra.mrb[0].mxu0 %v1478
        %v1614 = vpop.f32.mrb[0].mxu0
        %v1615 = vadd.f32 0.0, %v1614
        %v1616 = vpop.f32.mrb[0].mxu0
        %v1617 = vadd.f32 0.0, %v1616
        %v1618 = vpop.f32.mrb[0].mxu0
        %v1619 = vadd.f32 0.0, %v1618
        %v1620 = vpop.f32.mrb[0].mxu0
        %v1621 = vadd.f32 0.0, %v1620
        %1622 = vmatprep.mubr.bf16.mxu0 0
        %1623 = vmatmul.mubr.bf16.gmra.mrb[0].mxu0 %v1481
        %v1624 = vpop.f32.mrb[0].mxu0
        %v1625 = vadd.f32 0.0, %v1624
        %v1626 = vpop.f32.mrb[0].mxu0
        %v1627 = vadd.f32 0.0, %v1626
        %v1628 = vpop.f32.mrb[0].mxu0
        %v1629 = vadd.f32 0.0, %v1628
        %v1630 = vpop.f32.mrb[0].mxu0
        %v1631 = vadd.f32 0.0, %v1630
        %1632 = vmatprep.mubr.bf16.mxu0 0
        %1633 = vmatmul.mubr.bf16.gmra.mrb[0].mxu0 %v1484
        %v1634 = vpop.f32.mrb[0].mxu0
        %v1635 = vadd.f32 0.0, %v1634
        %v1636 = vpop.f32.mrb[0].mxu0
        %v1637 = vadd.f32 0.0, %v1636
        %v1638 = vpop.f32.mrb[0].mxu0
        %v1639 = vadd.f32 0.0, %v1638
        %v1640 = vpop.f32.mrb[0].mxu0
        %v1641 = vadd.f32 0.0, %v1640
        %1642 = vmatprep.mubr.bf16.mxu0 0
        %1643 = vmatmul.mubr.bf16.gmra.mrb[0].mxu0 %v1487
        %v1644 = vpop.f32.mrb[0].mxu0
        %v1645 = vadd.f32 0.0, %v1644
        %v1646 = vpop.f32.mrb[0].mxu0
        %v1647 = vadd.f32 0.0, %v1646
        %v1648 = vpop.f32.mrb[0].mxu0
        %v1649 = vadd.f32 0.0, %v1648
        %v1650 = vpop.f32.mrb[0].mxu0
        %v1651 = vadd.f32 0.0, %v1650
        %1652 = vmatprep.mubr.bf16.mxu0 0
        %1653 = vmatmul.mubr.bf16.gmra.mrb[0].mxu0 %v1490
        %v1654 = vpop.f32.mrb[0].mxu0
        %v1655 = vadd.f32 0.0, %v1654
        %v1656 = vpop.f32.mrb[0].mxu0
        %v1657 = vadd.f32 0.0, %v1656
        %v1658 = vpop.f32.mrb[0].mxu0
        %v1659 = vadd.f32 0.0, %v1658
        %v1660 = vpop.f32.mrb[0].mxu0
        %v1661 = vadd.f32 0.0, %v1660
        %1662 = vmatprep.mubr.bf16.mxu0 0
        %1663 = vmatmul.mubr.bf16.gmra.mrb[0].mxu0 %v1493
        %v1664 = vpop.f32.mrb[0].mxu0
        %v1665 = vadd.f32 0.0, %v1664
        %v1666 = vpop.f32.mrb[0].mxu0
        %v1667 = vadd.f32 0.0, %v1666
        %v1668 = vpop.f32.mrb[0].mxu0
        %v1669 = vadd.f32 0.0, %v1668
        %v1670 = vpop.f32.mrb[0].mxu0
        %v1671 = vadd.f32 0.0, %v1670
        %1672 = vmatprep.mubr.bf16.mxu0 0
        %1673 = vmatmul.mubr.bf16.gmra.mrb[0].mxu0 %v1496
        %v1674 = vpop.f32.mrb[0].mxu0
        %v1675 = vadd.f32 0.0, %v1674
        %v1676 = vpop.f32.mrb[0].mxu0
        %v1677 = vadd.f32 0.0, %v1676
        %v1678 = vpop.f32.mrb[0].mxu0
        %v1679 = vadd.f32 0.0, %v1678
        %v1680 = vpop.f32.mrb[0].mxu0
        %v1681 = vadd.f32 0.0, %v1680
        %1682 = vmatprep.mubr.bf16.mxu0 0
        %1683 = vmatmul.mubr.bf16.gmra.mrb[0].mxu0 %v1499
        %v1684 = vpop.f32.mrb[0].mxu0
        %v1685 = vadd.f32 0.0, %v1684
        %v1686 = vpop.f32.mrb[0].mxu0
        %v1687 = vadd.f32 0.0, %v1686
        %v1688 = vpop.f32.mrb[0].mxu0
        %v1689 = vadd.f32 0.0, %v1688
        %v1690 = vpop.f32.mrb[0].mxu0
        %v1691 = vadd.f32 0.0, %v1690
        %1692 = vmatprep.mubr.bf16.mxu0 0
        %1693 = vmatmul.mubr.bf16.gmra.mrb[0].mxu0 %v1502
        %v1694 = vpop.f32.mrb[0].mxu0
        %v1695 = vadd.f32 0.0, %v1694
        %v1696 = vpop.f32.mrb[0].mxu0
        %v1697 = vadd.f32 0.0, %v1696
        %v1698 = vpop.f32.mrb[0].mxu0
        %v1699 = vadd.f32 0.0, %v1698
        %v1700 = vpop.f32.mrb[0].mxu0
        %v1701 = vadd.f32 0.0, %v1700
        %1702 = vmatprep.mubr.bf16.mxu0 0
        %1703 = vmatmul.mubr.bf16.gmra.mrb[0].mxu0 %v1505
        %v1704 = vpop.f32.mrb[0].mxu0
        %v1705 = vadd.f32 0.0, %v1704
        %v1706 = vpop.f32.mrb[0].mxu0
        %v1707 = vadd.f32 0.0, %v1706
        %v1708 = vpop.f32.mrb[0].mxu0
        %v1709 = vadd.f32 0.0, %v1708
        %v1710 = vpop.f32.mrb[0].mxu0
        %v1711 = vadd.f32 0.0, %v1710
        %1712 = vmatprep.mubr.bf16.mxu0 0
        %1713 = vmatmul.mubr.bf16.gmra.mrb[0].mxu0 %v1508
        %v1714 = vpop.f32.mrb[0].mxu0
        %v1715 = vadd.f32 0.0, %v1714
        %v1716 = vpop.f32.mrb[0].mxu0
        %v1717 = vadd.f32 0.0, %v1716
        %v1718 = vpop.f32.mrb[0].mxu0
        %v1719 = vadd.f32 0.0, %v1718
        %v1720 = vpop.f32.mrb[0].mxu0
        %v1721 = vadd.f32 0.0, %v1720
        %1722 = vdwg.mxu0
        %v1723 = vadd.f32 %v1169, %v1545
        %v1724 = vadd.f32 %v1171, %v1547
        %v1725 = vadd.f32 %v1173, %v1549
        %v1726 = vadd.f32 %v1175, %v1551
        %v1727 = vadd.f32 %v1179, %v1555
        %v1728 = vadd.f32 %v1181, %v1557
        %v1729 = vadd.f32 %v1183, %v1559
        %v1730 = vadd.f32 %v1185, %v1561
        %v1731 = vadd.f32 %v1189, %v1565
        %v1732 = vadd.f32 %v1191, %v1567
        %v1733 = vadd.f32 %v1193, %v1569
        %v1734 = vadd.f32 %v1195, %v1571
        %v1735 = vadd.f32 %v1199, %v1575
        %v1736 = vadd.f32 %v1201, %v1577
        %v1737 = vadd.f32 %v1203, %v1579
        %v1738 = vadd.f32 %v1205, %v1581
        %v1739 = vadd.f32 %v1209, %v1585
        %v1740 = vadd.f32 %v1211, %v1587
        %v1741 = vadd.f32 %v1213, %v1589
        %v1742 = vadd.f32 %v1215, %v1591
        %v1743 = vadd.f32 %v1219, %v1595
        %v1744 = vadd.f32 %v1221, %v1597
        %v1745 = vadd.f32 %v1223, %v1599
        %v1746 = vadd.f32 %v1225, %v1601
        %v1747 = vadd.f32 %v1229, %v1605
        %v1748 = vadd.f32 %v1231, %v1607
        %v1749 = vadd.f32 %v1233, %v1609
        %v1750 = vadd.f32 %v1235, %v1611
        %v1751 = vadd.f32 %v1239, %v1615
        %v1752 = vadd.f32 %v1241, %v1617
        %v1753 = vadd.f32 %v1243, %v1619
        %v1754 = vadd.f32 %v1245, %v1621
        %v1755 = vadd.f32 %v1249, %v1625
        %v1756 = vadd.f32 %v1251, %v1627
        %v1757 = vadd.f32 %v1253, %v1629
        %v1758 = vadd.f32 %v1255, %v1631
        %v1759 = vadd.f32 %v1259, %v1635
        %v1760 = vadd.f32 %v1261, %v1637
        %v1761 = vadd.f32 %v1263, %v1639
        %v1762 = vadd.f32 %v1265, %v1641
        %v1763 = vadd.f32 %v1269, %v1645
        %v1764 = vadd.f32 %v1271, %v1647
        %v1765 = vadd.f32 %v1273, %v1649
        %v1766 = vadd.f32 %v1275, %v1651
        %v1767 = vadd.f32 %v1279, %v1655
        %v1768 = vadd.f32 %v1281, %v1657
        %v1769 = vadd.f32 %v1283, %v1659
        %v1770 = vadd.f32 %v1285, %v1661
        %v1771 = vadd.f32 %v1289, %v1665
        %v1772 = vadd.f32 %v1291, %v1667
        %v1773 = vadd.f32 %v1293, %v1669
        %v1774 = vadd.f32 %v1295, %v1671
        %v1775 = vadd.f32 %v1299, %v1675
        %v1776 = vadd.f32 %v1301, %v1677
        %v1777 = vadd.f32 %v1303, %v1679
        %v1778 = vadd.f32 %v1305, %v1681
        %v1779 = vadd.f32 %v1309, %v1685
        %v1780 = vadd.f32 %v1311, %v1687
        %v1781 = vadd.f32 %v1313, %v1689
        %v1782 = vadd.f32 %v1315, %v1691
        %v1783 = vadd.f32 %v1319, %v1695
        %v1784 = vadd.f32 %v1321, %v1697
        %v1785 = vadd.f32 %v1323, %v1699
        %v1786 = vadd.f32 %v1325, %v1701
        %v1787 = vadd.f32 %v1329, %v1705
        %v1788 = vadd.f32 %v1331, %v1707
        %v1789 = vadd.f32 %v1333, %v1709
        %v1790 = vadd.f32 %v1335, %v1711
        %v1791 = vadd.f32 %v1339, %v1715
        %v1792 = vadd.f32 %v1341, %v1717
        %v1793 = vadd.f32 %v1343, %v1719
        %v1794 = vadd.f32 %v1345, %v1721
        %s1795 = scalar_lea.vmem %s1, 288
        %v1796 = vld [vmem:[%s1795] sm:$0xff]
        %v1797 = vld [vmem:[%s1795 + $0x8] sm:$0xff]
        %v1798 = vld [vmem:[%s1795 + $0x10] sm:$0xff]
        %v1799 = vld [vmem:[%s1795 + $0x18] sm:$0xff]
        %v1800 = vld [vmem:[%s1795 + $0x20] sm:$0xff]
        %v1801 = vld [vmem:[%s1795 + $0x28] sm:$0xff]
        %v1802 = vld [vmem:[%s1795 + $0x30] sm:$0xff]
        %v1803 = vld [vmem:[%s1795 + $0x38] sm:$0xff]
        %v1804 = vld [vmem:[%s1795 + $0x40] sm:$0xff]
        %v1805 = vld [vmem:[%s1795 + $0x48] sm:$0xff]
        %v1806 = vld [vmem:[%s1795 + $0x50] sm:$0xff]
        %v1807 = vld [vmem:[%s1795 + $0x58] sm:$0xff]
        %vm1808 = vsmask.f32 6400
        %v1809 = vrot.slane %v568, 1
        %v1810 = vrot.slane %v570, 2
        %v1811 = vor.u32 %v1809, %v1810
        %v1812 = vrot.slane %v579, 1
        %v1813 = vrot.slane %v575, 2
        %v1814 = vor.u32 %v1812, %v1813
        %v1815 = vsel %vm1808, %v1811, %v1814
        %v1816 = vrot.slane %v587, 1
        %v1817 = vrot.slane %v583, 2
        %v1818 = vor.u32 %v1816, %v1817
        %v1819 = vsel %vm1808, %v1814, %v1818
        %v1820 = vrot.slane %v595, 1
        %v1821 = vrot.slane %v591, 2
        %v1822 = vor.u32 %v1820, %v1821
        %v1823 = vsel %vm1808, %v1818, %v1822
        %v1824 = vrot.slane %v603, 1
        %v1825 = vrot.slane %v599, 2
        %v1826 = vor.u32 %v1824, %v1825
        %v1827 = vsel %vm1808, %v1822, %v1826
        %v1828 = vrot.slane %v611, 1
        %v1829 = vrot.slane %v607, 2
        %v1830 = vor.u32 %v1828, %v1829
        %v1831 = vsel %vm1808, %v1826, %v1830
        %v1832 = vrot.slane %v619, 1
        %v1833 = vrot.slane %v615, 2
        %v1834 = vor.u32 %v1832, %v1833
        %v1835 = vsel %vm1808, %v1830, %v1834
        %v1836 = vrot.slane %v627, 1
        %v1837 = vrot.slane %v623, 2
        %v1838 = vor.u32 %v1836, %v1837
        %v1839 = vsel %vm1808, %v1834, %v1838
        %v1840 = vrot.slane %v635, 1
        %v1841 = vrot.slane %v631, 2
        %v1842 = vor.u32 %v1840, %v1841
        %v1843 = vsel %vm1808, %v1838, %v1842
        %v1844 = vrot.slane %v643, 1
        %v1845 = vrot.slane %v639, 2
        %v1846 = vor.u32 %v1844, %v1845
        %v1847 = vsel %vm1808, %v1842, %v1846
        %v1848 = vrot.slane %v651, 1
        %v1849 = vrot.slane %v647, 2
        %v1850 = vor.u32 %v1848, %v1849
        %v1851 = vsel %vm1808, %v1846, %v1850
        %v1852 = vrot.slane %v659, 1
        %v1853 = vrot.slane %v655, 2
        %v1854 = vor.u32 %v1852, %v1853
        %v1855 = vsel %vm1808, %v1850, %v1854
        %v1856 = vrot.slane %v667, 1
        %v1857 = vrot.slane %v663, 2
        %v1858 = vor.u32 %v1856, %v1857
        %v1859 = vsel %vm1808, %v1854, %v1858
        %v1860 = vrot.slane %v675, 1
        %v1861 = vrot.slane %v671, 2
        %v1862 = vor.u32 %v1860, %v1861
        %v1863 = vsel %vm1808, %v1858, %v1862
        %v1864 = vrot.slane %v683, 1
        %v1865 = vrot.slane %v679, 2
        %v1866 = vor.u32 %v1864, %v1865
        %v1867 = vsel %vm1808, %v1862, %v1866
        %v1868 = vrot.slane %v691, 1
        %v1869 = vrot.slane %v687, 2
        %v1870 = vor.u32 %v1868, %v1869
        %v1871 = vsel %vm1808, %v1866, %v1870
        %v1872 = vrot.slane %v699, 1
        %v1873 = vrot.slane %v695, 2
        %v1874 = vor.u32 %v1872, %v1873
        %v1875 = vsel %vm1808, %v1870, %v1874
        %v1876 = vrot.slane %v707, 1
        %v1877 = vrot.slane %v703, 2
        %v1878 = vor.u32 %v1876, %v1877
        %v1879 = vsel %vm1808, %v1874, %v1878
        %v1892 = vunpack.c.l.b16 %v1796
        %v1893 = vunpack.c.h.b16 %v1796
        %v1894 = vunpack.c.l.b16 %v1797
        %v1895 = vunpack.c.h.b16 %v1797
        %v1896 = vunpack.c.l.b16 %v1798
        %v1897 = vunpack.c.h.b16 %v1798
        %v1898 = vunpack.c.l.b16 %v1799
        %v1899 = vunpack.c.h.b16 %v1799
        %v1900 = vunpack.c.l.b16 %v1800
        %v1901 = vunpack.c.h.b16 %v1800
        %v1902 = vunpack.c.l.b16 %v1801
        %v1903 = vunpack.c.h.b16 %v1801
        %v1904 = vunpack.c.l.b16 %v1802
        %v1905 = vunpack.c.h.b16 %v1802
        %v1906 = vunpack.c.l.b16 %v1803
        %v1907 = vunpack.c.h.b16 %v1803
        %v1908 = vunpack.c.l.b16 %v1804
        %v1909 = vunpack.c.h.b16 %v1804
        %v1910 = vunpack.c.l.b16 %v1805
        %v1911 = vunpack.c.h.b16 %v1805
        %v1912 = vunpack.c.l.b16 %v1806
        %v1913 = vunpack.c.h.b16 %v1806
        %v1914 = vunpack.c.l.b16 %v1807
        %v1915 = vunpack.c.h.b16 %v1807
        %v1916 = vpack.c.b16 %v1894, %v1892
        %v1917 = vpack.c.b16 %v1895, %v1893
        %v1918 = vpack.c.b16 %v1898, %v1896
        %v1919 = vpack.c.b16 %v1899, %v1897
        %v1920 = vpack.c.b16 %v1902, %v1900
        %v1921 = vpack.c.b16 %v1903, %v1901
        %v1922 = vpack.c.b16 %v1906, %v1904
        %v1923 = vpack.c.b16 %v1907, %v1905
        %v1924 = vpack.c.b16 %v1910, %v1908
        %v1925 = vpack.c.b16 %v1911, %v1909
        %v1926 = vpack.c.b16 %v1914, %v1912
        %v1927 = vpack.c.b16 %v1915, %v1913
        %v1941 = vsel %vm770, %v1815, 0
        %v1944 = vsel %vm770, %v1819, 0
        %v1947 = vsel %vm770, %v1823, 0
        %v1950 = vsel %vm770, %v1827, 0
        %v1953 = vsel %vm770, %v1831, 0
        %v1956 = vsel %vm770, %v1835, 0
        %v1959 = vsel %vm770, %v1839, 0
        %v1962 = vsel %vm770, %v1843, 0
        %v1965 = vsel %vm770, %v1847, 0
        %v1968 = vsel %vm770, %v1851, 0
        %v1971 = vsel %vm770, %v1855, 0
        %v1974 = vsel %vm770, %v1859, 0
        %v1977 = vsel %vm770, %v1863, 0
        %v1980 = vsel %vm770, %v1867, 0
        %v1983 = vsel %vm770, %v1871, 0
        %v1986 = vsel %vm770, %v1875, 0
        %v1989 = vsel %vm770, %v1879, 0
        %v1992 = vsel %vm770, %v1878, 0
        %1994 = vmatprep.subr.bf16.mxu0 %v1917
        %1995 = vmatpush1.bf16.msra.mxu0 %v1916
        %1996 = vmatprep.subr.bf16.mxu0 %v1919
        %1997 = vmatpush1.bf16.msra.mxu0 %v1918
        %1998 = vmatprep.subr.bf16.mxu0 %v1921
        %1999 = vmatpush1.bf16.msra.mxu0 %v1920
        %2000 = vmatprep.subr.bf16.mxu0 %v1923
        %2001 = vmatpush1.bf16.msra.mxu0 %v1922
        %2002 = vmatprep.subr.bf16.mxu0 %v1925
        %2003 = vmatpush1.bf16.msra.mxu0 %v1924
        %2004 = vmatprep.subr.bf16.mxu0 %v1927
        %2005 = vmatpush1.bf16.msra.mxu0 %v1926
        %2006 = vmatprep.subr.bf16.mxu0 0
        %2007 = vmatpush1.bf16.msra.mxu0 0
        %2008 = vmatprep.subr.bf16.mxu0 0
        %2009 = vmatpush1.bf16.msra.mxu0 0
        %2010 = vmatprep.subr.bf16.mxu0 0
        %2011 = vmatpush1.bf16.msra.mxu0 0
        %2012 = vmatprep.subr.bf16.mxu0 0
        %2013 = vmatpush1.bf16.msra.mxu0 0
        %2014 = vmatprep.subr.bf16.mxu0 0
        %2015 = vmatpush1.bf16.msra.mxu0 0
        %2016 = vmatprep.subr.bf16.mxu0 0
        %2017 = vmatpush1.bf16.msra.mxu0 0
        %2018 = vmatprep.subr.bf16.mxu0 0
        %2019 = vmatpush1.bf16.msra.mxu0 0
        %2020 = vmatprep.subr.bf16.mxu0 0
        %2021 = vmatpush1.bf16.msra.mxu0 0
        %2022 = vmatprep.subr.bf16.mxu0 0
        %2023 = vmatpush1.bf16.msra.mxu0 0
        %2024 = vmatprep.subr.bf16.mxu0 0
        %2025 = vmatpush1.bf16.msra.mxu0 0
        %2026 = vmatprep.mubr.bf16.mxu0 0
        %2027 = vmatmul.mubr.bf16.gmra.mrb[0].mxu0 %v1941
        %v2028 = vpop.f32.mrb[0].mxu0
        %v2029 = vadd.f32 0.0, %v2028
        %v2030 = vpop.f32.mrb[0].mxu0
        %v2031 = vadd.f32 0.0, %v2030
        %v2032 = vpop.f32.mrb[0].mxu0
        %v2033 = vadd.f32 0.0, %v2032
        %v2034 = vpop.f32.mrb[0].mxu0
        %v2035 = vadd.f32 0.0, %v2034
        %2036 = vmatprep.mubr.bf16.mxu0 0
        %2037 = vmatmul.mubr.bf16.gmra.mrb[0].mxu0 %v1944
        %v2038 = vpop.f32.mrb[0].mxu0
        %v2039 = vadd.f32 0.0, %v2038
        %v2040 = vpop.f32.mrb[0].mxu0
        %v2041 = vadd.f32 0.0, %v2040
        %v2042 = vpop.f32.mrb[0].mxu0
        %v2043 = vadd.f32 0.0, %v2042
        %v2044 = vpop.f32.mrb[0].mxu0
        %v2045 = vadd.f32 0.0, %v2044
        %2046 = vmatprep.mubr.bf16.mxu0 0
        %2047 = vmatmul.mubr.bf16.gmra.mrb[0].mxu0 %v1947
        %v2048 = vpop.f32.mrb[0].mxu0
        %v2049 = vadd.f32 0.0, %v2048
        %v2050 = vpop.f32.mrb[0].mxu0
        %v2051 = vadd.f32 0.0, %v2050
        %v2052 = vpop.f32.mrb[0].mxu0
        %v2053 = vadd.f32 0.0, %v2052
        %v2054 = vpop.f32.mrb[0].mxu0
        %v2055 = vadd.f32 0.0, %v2054
        %2056 = vmatprep.mubr.bf16.mxu0 0
        %2057 = vmatmul.mubr.bf16.gmra.mrb[0].mxu0 %v1950
        %v2058 = vpop.f32.mrb[0].mxu0
        %v2059 = vadd.f32 0.0, %v2058
        %v2060 = vpop.f32.mrb[0].mxu0
        %v2061 = vadd.f32 0.0, %v2060
        %v2062 = vpop.f32.mrb[0].mxu0
        %v2063 = vadd.f32 0.0, %v2062
        %v2064 = vpop.f32.mrb[0].mxu0
        %v2065 = vadd.f32 0.0, %v2064
        %2066 = vmatprep.mubr.bf16.mxu0 0
        %2067 = vmatmul.mubr.bf16.gmra.mrb[0].mxu0 %v1953
        %v2068 = vpop.f32.mrb[0].mxu0
        %v2069 = vadd.f32 0.0, %v2068
        %v2070 = vpop.f32.mrb[0].mxu0
        %v2071 = vadd.f32 0.0, %v2070
        %v2072 = vpop.f32.mrb[0].mxu0
        %v2073 = vadd.f32 0.0, %v2072
        %v2074 = vpop.f32.mrb[0].mxu0
        %v2075 = vadd.f32 0.0, %v2074
        %2076 = vmatprep.mubr.bf16.mxu0 0
        %2077 = vmatmul.mubr.bf16.gmra.mrb[0].mxu0 %v1956
        %v2078 = vpop.f32.mrb[0].mxu0
        %v2079 = vadd.f32 0.0, %v2078
        %v2080 = vpop.f32.mrb[0].mxu0
        %v2081 = vadd.f32 0.0, %v2080
        %v2082 = vpop.f32.mrb[0].mxu0
        %v2083 = vadd.f32 0.0, %v2082
        %v2084 = vpop.f32.mrb[0].mxu0
        %v2085 = vadd.f32 0.0, %v2084
        %2086 = vmatprep.mubr.bf16.mxu0 0
        %2087 = vmatmul.mubr.bf16.gmra.mrb[0].mxu0 %v1959
        %v2088 = vpop.f32.mrb[0].mxu0
        %v2089 = vadd.f32 0.0, %v2088
        %v2090 = vpop.f32.mrb[0].mxu0
        %v2091 = vadd.f32 0.0, %v2090
        %v2092 = vpop.f32.mrb[0].mxu0
        %v2093 = vadd.f32 0.0, %v2092
        %v2094 = vpop.f32.mrb[0].mxu0
        %v2095 = vadd.f32 0.0, %v2094
        %2096 = vmatprep.mubr.bf16.mxu0 0
        %2097 = vmatmul.mubr.bf16.gmra.mrb[0].mxu0 %v1962
        %v2098 = vpop.f32.mrb[0].mxu0
        %v2099 = vadd.f32 0.0, %v2098
        %v2100 = vpop.f32.mrb[0].mxu0
        %v2101 = vadd.f32 0.0, %v2100
        %v2102 = vpop.f32.mrb[0].mxu0
        %v2103 = vadd.f32 0.0, %v2102
        %v2104 = vpop.f32.mrb[0].mxu0
        %v2105 = vadd.f32 0.0, %v2104
        %2106 = vmatprep.mubr.bf16.mxu0 0
        %2107 = vmatmul.mubr.bf16.gmra.mrb[0].mxu0 %v1965
        %v2108 = vpop.f32.mrb[0].mxu0
        %v2109 = vadd.f32 0.0, %v2108
        %v2110 = vpop.f32.mrb[0].mxu0
        %v2111 = vadd.f32 0.0, %v2110
        %v2112 = vpop.f32.mrb[0].mxu0
        %v2113 = vadd.f32 0.0, %v2112
        %v2114 = vpop.f32.mrb[0].mxu0
        %v2115 = vadd.f32 0.0, %v2114
        %2116 = vmatprep.mubr.bf16.mxu0 0
        %2117 = vmatmul.mubr.bf16.gmra.mrb[0].mxu0 %v1968
        %v2118 = vpop.f32.mrb[0].mxu0
        %v2119 = vadd.f32 0.0, %v2118
        %v2120 = vpop.f32.mrb[0].mxu0
        %v2121 = vadd.f32 0.0, %v2120
        %v2122 = vpop.f32.mrb[0].mxu0
        %v2123 = vadd.f32 0.0, %v2122
        %v2124 = vpop.f32.mrb[0].mxu0
        %v2125 = vadd.f32 0.0, %v2124
        %2126 = vmatprep.mubr.bf16.mxu0 0
        %2127 = vmatmul.mubr.bf16.gmra.mrb[0].mxu0 %v1971
        %v2128 = vpop.f32.mrb[0].mxu0
        %v2129 = vadd.f32 0.0, %v2128
        %v2130 = vpop.f32.mrb[0].mxu0
        %v2131 = vadd.f32 0.0, %v2130
        %v2132 = vpop.f32.mrb[0].mxu0
        %v2133 = vadd.f32 0.0, %v2132
        %v2134 = vpop.f32.mrb[0].mxu0
        %v2135 = vadd.f32 0.0, %v2134
        %2136 = vmatprep.mubr.bf16.mxu0 0
        %2137 = vmatmul.mubr.bf16.gmra.mrb[0].mxu0 %v1974
        %v2138 = vpop.f32.mrb[0].mxu0
        %v2139 = vadd.f32 0.0, %v2138
        %v2140 = vpop.f32.mrb[0].mxu0
        %v2141 = vadd.f32 0.0, %v2140
        %v2142 = vpop.f32.mrb[0].mxu0
        %v2143 = vadd.f32 0.0, %v2142
        %v2144 = vpop.f32.mrb[0].mxu0
        %v2145 = vadd.f32 0.0, %v2144
        %2146 = vmatprep.mubr.bf16.mxu0 0
        %2147 = vmatmul.mubr.bf16.gmra.mrb[0].mxu0 %v1977
        %v2148 = vpop.f32.mrb[0].mxu0
        %v2149 = vadd.f32 0.0, %v2148
        %v2150 = vpop.f32.mrb[0].mxu0
        %v2151 = vadd.f32 0.0, %v2150
        %v2152 = vpop.f32.mrb[0].mxu0
        %v2153 = vadd.f32 0.0, %v2152
        %v2154 = vpop.f32.mrb[0].mxu0
        %v2155 = vadd.f32 0.0, %v2154
        %2156 = vmatprep.mubr.bf16.mxu0 0
        %2157 = vmatmul.mubr.bf16.gmra.mrb[0].mxu0 %v1980
        %v2158 = vpop.f32.mrb[0].mxu0
        %v2159 = vadd.f32 0.0, %v2158
        %v2160 = vpop.f32.mrb[0].mxu0
        %v2161 = vadd.f32 0.0, %v2160
        %v2162 = vpop.f32.mrb[0].mxu0
        %v2163 = vadd.f32 0.0, %v2162
        %v2164 = vpop.f32.mrb[0].mxu0
        %v2165 = vadd.f32 0.0, %v2164
        %2166 = vmatprep.mubr.bf16.mxu0 0
        %2167 = vmatmul.mubr.bf16.gmra.mrb[0].mxu0 %v1983
        %v2168 = vpop.f32.mrb[0].mxu0
        %v2169 = vadd.f32 0.0, %v2168
        %v2170 = vpop.f32.mrb[0].mxu0
        %v2171 = vadd.f32 0.0, %v2170
        %v2172 = vpop.f32.mrb[0].mxu0
        %v2173 = vadd.f32 0.0, %v2172
        %v2174 = vpop.f32.mrb[0].mxu0
        %v2175 = vadd.f32 0.0, %v2174
        %2176 = vmatprep.mubr.bf16.mxu0 0
        %2177 = vmatmul.mubr.bf16.gmra.mrb[0].mxu0 %v1986
        %v2178 = vpop.f32.mrb[0].mxu0
        %v2179 = vadd.f32 0.0, %v2178
        %v2180 = vpop.f32.mrb[0].mxu0
        %v2181 = vadd.f32 0.0, %v2180
        %v2182 = vpop.f32.mrb[0].mxu0
        %v2183 = vadd.f32 0.0, %v2182
        %v2184 = vpop.f32.mrb[0].mxu0
        %v2185 = vadd.f32 0.0, %v2184
        %2186 = vmatprep.mubr.bf16.mxu0 0
        %2187 = vmatmul.mubr.bf16.gmra.mrb[0].mxu0 %v1989
        %v2188 = vpop.f32.mrb[0].mxu0
        %v2189 = vadd.f32 0.0, %v2188
        %v2190 = vpop.f32.mrb[0].mxu0
        %v2191 = vadd.f32 0.0, %v2190
        %v2192 = vpop.f32.mrb[0].mxu0
        %v2193 = vadd.f32 0.0, %v2192
        %v2194 = vpop.f32.mrb[0].mxu0
        %v2195 = vadd.f32 0.0, %v2194
        %2196 = vmatprep.mubr.bf16.mxu0 0
        %2197 = vmatmul.mubr.bf16.gmra.mrb[0].mxu0 %v1992
        %v2198 = vpop.f32.mrb[0].mxu0
        %v2199 = vadd.f32 0.0, %v2198
        %v2200 = vpop.f32.mrb[0].mxu0
        %v2201 = vadd.f32 0.0, %v2200
        %v2202 = vpop.f32.mrb[0].mxu0
        %v2203 = vadd.f32 0.0, %v2202
        %v2204 = vpop.f32.mrb[0].mxu0
        %v2205 = vadd.f32 0.0, %v2204
        %2206 = vdwg.mxu0
        %v2207 = vadd.f32 %v1723, %v2029
        %v2208 = vadd.f32 %v1724, %v2031
        %v2209 = vadd.f32 %v1725, %v2033
        %v2210 = vadd.f32 %v1726, %v2035
        %v2211 = vadd.f32 %v1727, %v2039
        %v2212 = vadd.f32 %v1728, %v2041
        %v2213 = vadd.f32 %v1729, %v2043
        %v2214 = vadd.f32 %v1730, %v2045
        %v2215 = vadd.f32 %v1731, %v2049
        %v2216 = vadd.f32 %v1732, %v2051
        %v2217 = vadd.f32 %v1733, %v2053
        %v2218 = vadd.f32 %v1734, %v2055
        %v2219 = vadd.f32 %v1735, %v2059
        %v2220 = vadd.f32 %v1736, %v2061
        %v2221 = vadd.f32 %v1737, %v2063
        %v2222 = vadd.f32 %v1738, %v2065
        %v2223 = vadd.f32 %v1739, %v2069
        %v2224 = vadd.f32 %v1740, %v2071
        %v2225 = vadd.f32 %v1741, %v2073
        %v2226 = vadd.f32 %v1742, %v2075
        %v2227 = vadd.f32 %v1743, %v2079
        %v2228 = vadd.f32 %v1744, %v2081
        %v2229 = vadd.f32 %v1745, %v2083
        %v2230 = vadd.f32 %v1746, %v2085
        %v2231 = vadd.f32 %v1747, %v2089
        %v2232 = vadd.f32 %v1748, %v2091
        %v2233 = vadd.f32 %v1749, %v2093
        %v2234 = vadd.f32 %v1750, %v2095
        %v2235 = vadd.f32 %v1751, %v2099
        %v2236 = vadd.f32 %v1752, %v2101
        %v2237 = vadd.f32 %v1753, %v2103
        %v2238 = vadd.f32 %v1754, %v2105
        %v2239 = vadd.f32 %v1755, %v2109
        %v2240 = vadd.f32 %v1756, %v2111
        %v2241 = vadd.f32 %v1757, %v2113
        %v2242 = vadd.f32 %v1758, %v2115
        %v2243 = vadd.f32 %v1759, %v2119
        %v2244 = vadd.f32 %v1760, %v2121
        %v2245 = vadd.f32 %v1761, %v2123
        %v2246 = vadd.f32 %v1762, %v2125
        %v2247 = vadd.f32 %v1763, %v2129
        %v2248 = vadd.f32 %v1764, %v2131
        %v2249 = vadd.f32 %v1765, %v2133
        %v2250 = vadd.f32 %v1766, %v2135
        %v2251 = vadd.f32 %v1767, %v2139
        %v2252 = vadd.f32 %v1768, %v2141
        %v2253 = vadd.f32 %v1769, %v2143
        %v2254 = vadd.f32 %v1770, %v2145
        %v2255 = vadd.f32 %v1771, %v2149
        %v2256 = vadd.f32 %v1772, %v2151
        %v2257 = vadd.f32 %v1773, %v2153
        %v2258 = vadd.f32 %v1774, %v2155
        %v2259 = vadd.f32 %v1775, %v2159
        %v2260 = vadd.f32 %v1776, %v2161
        %v2261 = vadd.f32 %v1777, %v2163
        %v2262 = vadd.f32 %v1778, %v2165
        %v2263 = vadd.f32 %v1779, %v2169
        %v2264 = vadd.f32 %v1780, %v2171
        %v2265 = vadd.f32 %v1781, %v2173
        %v2266 = vadd.f32 %v1782, %v2175
        %v2267 = vadd.f32 %v1783, %v2179
        %v2268 = vadd.f32 %v1784, %v2181
        %v2269 = vadd.f32 %v1785, %v2183
        %v2270 = vadd.f32 %v1786, %v2185
        %v2271 = vadd.f32 %v1787, %v2189
        %v2272 = vadd.f32 %v1788, %v2191
        %v2273 = vadd.f32 %v1789, %v2193
        %v2274 = vadd.f32 %v1790, %v2195
        %v2275 = vadd.f32 %v1791, %v2199
        %v2276 = vadd.f32 %v1792, %v2201
        %v2277 = vadd.f32 %v1793, %v2203
        %v2278 = vadd.f32 %v1794, %v2205
        %s2279 = scalar_lea.vmem %s1, 384
        %v2280 = vld [vmem:[%s2279] sm:$0xff]
        %v2281 = vld [vmem:[%s2279 + $0x8] sm:$0xff]
        %v2282 = vld [vmem:[%s2279 + $0x10] sm:$0xff]
        %v2283 = vld [vmem:[%s2279 + $0x18] sm:$0xff]
        %v2284 = vld [vmem:[%s2279 + $0x20] sm:$0xff]
        %v2285 = vld [vmem:[%s2279 + $0x28] sm:$0xff]
        %v2286 = vld [vmem:[%s2279 + $0x30] sm:$0xff]
        %v2287 = vld [vmem:[%s2279 + $0x38] sm:$0xff]
        %v2288 = vld [vmem:[%s2279 + $0x40] sm:$0xff]
        %v2289 = vld [vmem:[%s2279 + $0x48] sm:$0xff]
        %v2290 = vld [vmem:[%s2279 + $0x50] sm:$0xff]
        %v2291 = vld [vmem:[%s2279 + $0x58] sm:$0xff]
        %vm2292 = vcmask 1045504
        %v2293 = vrot.slane %v548, 2
        %v2294 = vrot.slane %v549, 2
        %v2295 = vsel %vm2292, %v2293, %v2294
        %v2296 = vrot.slane %v550, 2
        %v2297 = vsel %vm2292, %v2294, %v2296
        %v2298 = vrot.slane %v551, 2
        %v2299 = vsel %vm2292, %v2296, %v2298
        %v2300 = vrot.slane %v552, 2
        %v2301 = vsel %vm2292, %v2298, %v2300
        %v2302 = vrot.slane %v553, 2
        %v2303 = vsel %vm2292, %v2300, %v2302
        %v2304 = vrot.slane %v554, 2
        %v2305 = vsel %vm2292, %v2302, %v2304
        %v2306 = vrot.slane %v555, 2
        %v2307 = vsel %vm2292, %v2304, %v2306
        %v2308 = vrot.slane %v556, 2
        %v2309 = vsel %vm2292, %v2306, %v2308
        %v2310 = vrot.slane %v557, 2
        %v2311 = vsel %vm2292, %v2308, %v2310
        %v2312 = vrot.slane %v558, 2
        %v2313 = vsel %vm2292, %v2310, %v2312
        %v2314 = vrot.slane %v559, 2
        %v2315 = vsel %vm2292, %v2312, %v2314
        %v2316 = vrot.slane %v560, 2
        %v2317 = vsel %vm2292, %v2314, %v2316
        %v2318 = vrot.slane %v561, 2
        %v2319 = vsel %vm2292, %v2316, %v2318
        %v2320 = vrot.slane %v562, 2
        %v2321 = vsel %vm2292, %v2318, %v2320
        %v2322 = vrot.slane %v563, 2
        %v2323 = vsel %vm2292, %v2320, %v2322
        %v2324 = vrot.slane %v564, 2
        %v2325 = vsel %vm2292, %v2322, %v2324
        %v2326 = vrot.slane %v565, 2
        %v2327 = vsel %vm2292, %v2324, %v2326
        %v2340 = vunpack.c.l.b16 %v2280
        %v2341 = vunpack.c.h.b16 %v2280
        %v2342 = vunpack.c.l.b16 %v2281
        %v2343 = vunpack.c.h.b16 %v2281
        %v2344 = vunpack.c.l.b16 %v2282
        %v2345 = vunpack.c.h.b16 %v2282
        %v2346 = vunpack.c.l.b16 %v2283
        %v2347 = vunpack.c.h.b16 %v2283
        %v2348 = vunpack.c.l.b16 %v2284
        %v2349 = vunpack.c.h.b16 %v2284
        %v2350 = vunpack.c.l.b16 %v2285
        %v2351 = vunpack.c.h.b16 %v2285
        %v2352 = vunpack.c.l.b16 %v2286
        %v2353 = vunpack.c.h.b16 %v2286
        %v2354 = vunpack.c.l.b16 %v2287
        %v2355 = vunpack.c.h.b16 %v2287
        %v2356 = vunpack.c.l.b16 %v2288
        %v2357 = vunpack.c.h.b16 %v2288
        %v2358 = vunpack.c.l.b16 %v2289
        %v2359 = vunpack.c.h.b16 %v2289
        %v2360 = vunpack.c.l.b16 %v2290
        %v2361 = vunpack.c.h.b16 %v2290
        %v2362 = vunpack.c.l.b16 %v2291
        %v2363 = vunpack.c.h.b16 %v2291
        %v2364 = vpack.c.b16 %v2342, %v2340
        %v2365 = vpack.c.b16 %v2343, %v2341
        %v2366 = vpack.c.b16 %v2346, %v2344
        %v2367 = vpack.c.b16 %v2347, %v2345
        %v2368 = vpack.c.b16 %v2350, %v2348
        %v2369 = vpack.c.b16 %v2351, %v2349
        %v2370 = vpack.c.b16 %v2354, %v2352
        %v2371 = vpack.c.b16 %v2355, %v2353
        %v2372 = vpack.c.b16 %v2358, %v2356
        %v2373 = vpack.c.b16 %v2359, %v2357
        %v2374 = vpack.c.b16 %v2362, %v2360
        %v2375 = vpack.c.b16 %v2363, %v2361
        %v2389 = vsel %vm770, %v2295, 0
        %v2392 = vsel %vm770, %v2297, 0
        %v2395 = vsel %vm770, %v2299, 0
        %v2398 = vsel %vm770, %v2301, 0
        %v2401 = vsel %vm770, %v2303, 0
        %v2404 = vsel %vm770, %v2305, 0
        %v2407 = vsel %vm770, %v2307, 0
        %v2410 = vsel %vm770, %v2309, 0
        %v2413 = vsel %vm770, %v2311, 0
        %v2416 = vsel %vm770, %v2313, 0
        %v2419 = vsel %vm770, %v2315, 0
        %v2422 = vsel %vm770, %v2317, 0
        %v2425 = vsel %vm770, %v2319, 0
        %v2428 = vsel %vm770, %v2321, 0
        %v2431 = vsel %vm770, %v2323, 0
        %v2434 = vsel %vm770, %v2325, 0
        %v2437 = vsel %vm770, %v2327, 0
        %v2440 = vsel %vm770, %v2326, 0
        %2442 = vmatprep.subr.bf16.mxu0 %v2365
        %2443 = vmatpush1.bf16.msra.mxu0 %v2364
        %2444 = vmatprep.subr.bf16.mxu0 %v2367
        %2445 = vmatpush1.bf16.msra.mxu0 %v2366
        %2446 = vmatprep.subr.bf16.mxu0 %v2369
        %2447 = vmatpush1.bf16.msra.mxu0 %v2368
        %2448 = vmatprep.subr.bf16.mxu0 %v2371
        %2449 = vmatpush1.bf16.msra.mxu0 %v2370
        %2450 = vmatprep.subr.bf16.mxu0 %v2373
        %2451 = vmatpush1.bf16.msra.mxu0 %v2372
        %2452 = vmatprep.subr.bf16.mxu0 %v2375
        %2453 = vmatpush1.bf16.msra.mxu0 %v2374
        %2454 = vmatprep.subr.bf16.mxu0 0
        %2455 = vmatpush1.bf16.msra.mxu0 0
        %2456 = vmatprep.subr.bf16.mxu0 0
        %2457 = vmatpush1.bf16.msra.mxu0 0
        %2458 = vmatprep.subr.bf16.mxu0 0
        %2459 = vmatpush1.bf16.msra.mxu0 0
        %2460 = vmatprep.subr.bf16.mxu0 0
        %2461 = vmatpush1.bf16.msra.mxu0 0
        %2462 = vmatprep.subr.bf16.mxu0 0
        %2463 = vmatpush1.bf16.msra.mxu0 0
        %2464 = vmatprep.subr.bf16.mxu0 0
        %2465 = vmatpush1.bf16.msra.mxu0 0
        %2466 = vmatprep.subr.bf16.mxu0 0
        %2467 = vmatpush1.bf16.msra.mxu0 0
        %2468 = vmatprep.subr.bf16.mxu0 0
        %2469 = vmatpush1.bf16.msra.mxu0 0
        %2470 = vmatprep.subr.bf16.mxu0 0
        %2471 = vmatpush1.bf16.msra.mxu0 0
        %2472 = vmatprep.subr.bf16.mxu0 0
        %2473 = vmatpush1.bf16.msra.mxu0 0
        %2474 = vmatprep.mubr.bf16.mxu0 0
        %2475 = vmatmul.mubr.bf16.gmra.mrb[0].mxu0 %v2389
        %v2476 = vpop.f32.mrb[0].mxu0
        %v2477 = vadd.f32 0.0, %v2476
        %v2478 = vpop.f32.mrb[0].mxu0
        %v2479 = vadd.f32 0.0, %v2478
        %v2480 = vpop.f32.mrb[0].mxu0
        %v2481 = vadd.f32 0.0, %v2480
        %v2482 = vpop.f32.mrb[0].mxu0
        %v2483 = vadd.f32 0.0, %v2482
        %2484 = vmatprep.mubr.bf16.mxu0 0
        %2485 = vmatmul.mubr.bf16.gmra.mrb[0].mxu0 %v2392
        %v2486 = vpop.f32.mrb[0].mxu0
        %v2487 = vadd.f32 0.0, %v2486
        %v2488 = vpop.f32.mrb[0].mxu0
        %v2489 = vadd.f32 0.0, %v2488
        %v2490 = vpop.f32.mrb[0].mxu0
        %v2491 = vadd.f32 0.0, %v2490
        %v2492 = vpop.f32.mrb[0].mxu0
        %v2493 = vadd.f32 0.0, %v2492
        %2494 = vmatprep.mubr.bf16.mxu0 0
        %2495 = vmatmul.mubr.bf16.gmra.mrb[0].mxu0 %v2395
        %v2496 = vpop.f32.mrb[0].mxu0
        %v2497 = vadd.f32 0.0, %v2496
        %v2498 = vpop.f32.mrb[0].mxu0
        %v2499 = vadd.f32 0.0, %v2498
        %v2500 = vpop.f32.mrb[0].mxu0
        %v2501 = vadd.f32 0.0, %v2500
        %v2502 = vpop.f32.mrb[0].mxu0
        %v2503 = vadd.f32 0.0, %v2502
        %2504 = vmatprep.mubr.bf16.mxu0 0
        %2505 = vmatmul.mubr.bf16.gmra.mrb[0].mxu0 %v2398
        %v2506 = vpop.f32.mrb[0].mxu0
        %v2507 = vadd.f32 0.0, %v2506
        %v2508 = vpop.f32.mrb[0].mxu0
        %v2509 = vadd.f32 0.0, %v2508
        %v2510 = vpop.f32.mrb[0].mxu0
        %v2511 = vadd.f32 0.0, %v2510
        %v2512 = vpop.f32.mrb[0].mxu0
        %v2513 = vadd.f32 0.0, %v2512
        %2514 = vmatprep.mubr.bf16.mxu0 0
        %2515 = vmatmul.mubr.bf16.gmra.mrb[0].mxu0 %v2401
        %v2516 = vpop.f32.mrb[0].mxu0
        %v2517 = vadd.f32 0.0, %v2516
        %v2518 = vpop.f32.mrb[0].mxu0
        %v2519 = vadd.f32 0.0, %v2518
        %v2520 = vpop.f32.mrb[0].mxu0
        %v2521 = vadd.f32 0.0, %v2520
        %v2522 = vpop.f32.mrb[0].mxu0
        %v2523 = vadd.f32 0.0, %v2522
        %2524 = vmatprep.mubr.bf16.mxu0 0
        %2525 = vmatmul.mubr.bf16.gmra.mrb[0].mxu0 %v2404
        %v2526 = vpop.f32.mrb[0].mxu0
        %v2527 = vadd.f32 0.0, %v2526
        %v2528 = vpop.f32.mrb[0].mxu0
        %v2529 = vadd.f32 0.0, %v2528
        %v2530 = vpop.f32.mrb[0].mxu0
        %v2531 = vadd.f32 0.0, %v2530
        %v2532 = vpop.f32.mrb[0].mxu0
        %v2533 = vadd.f32 0.0, %v2532
        %2534 = vmatprep.mubr.bf16.mxu0 0
        %2535 = vmatmul.mubr.bf16.gmra.mrb[0].mxu0 %v2407
        %v2536 = vpop.f32.mrb[0].mxu0
        %v2537 = vadd.f32 0.0, %v2536
        %v2538 = vpop.f32.mrb[0].mxu0
        %v2539 = vadd.f32 0.0, %v2538
        %v2540 = vpop.f32.mrb[0].mxu0
        %v2541 = vadd.f32 0.0, %v2540
        %v2542 = vpop.f32.mrb[0].mxu0
        %v2543 = vadd.f32 0.0, %v2542
        %2544 = vmatprep.mubr.bf16.mxu0 0
        %2545 = vmatmul.mubr.bf16.gmra.mrb[0].mxu0 %v2410
        %v2546 = vpop.f32.mrb[0].mxu0
        %v2547 = vadd.f32 0.0, %v2546
        %v2548 = vpop.f32.mrb[0].mxu0
        %v2549 = vadd.f32 0.0, %v2548
        %v2550 = vpop.f32.mrb[0].mxu0
        %v2551 = vadd.f32 0.0, %v2550
        %v2552 = vpop.f32.mrb[0].mxu0
        %v2553 = vadd.f32 0.0, %v2552
        %2554 = vmatprep.mubr.bf16.mxu0 0
        %2555 = vmatmul.mubr.bf16.gmra.mrb[0].mxu0 %v2413
        %v2556 = vpop.f32.mrb[0].mxu0
        %v2557 = vadd.f32 0.0, %v2556
        %v2558 = vpop.f32.mrb[0].mxu0
        %v2559 = vadd.f32 0.0, %v2558
        %v2560 = vpop.f32.mrb[0].mxu0
        %v2561 = vadd.f32 0.0, %v2560
        %v2562 = vpop.f32.mrb[0].mxu0
        %v2563 = vadd.f32 0.0, %v2562
        %2564 = vmatprep.mubr.bf16.mxu0 0
        %2565 = vmatmul.mubr.bf16.gmra.mrb[0].mxu0 %v2416
        %v2566 = vpop.f32.mrb[0].mxu0
        %v2567 = vadd.f32 0.0, %v2566
        %v2568 = vpop.f32.mrb[0].mxu0
        %v2569 = vadd.f32 0.0, %v2568
        %v2570 = vpop.f32.mrb[0].mxu0
        %v2571 = vadd.f32 0.0, %v2570
        %v2572 = vpop.f32.mrb[0].mxu0
        %v2573 = vadd.f32 0.0, %v2572
        %2574 = vmatprep.mubr.bf16.mxu0 0
        %2575 = vmatmul.mubr.bf16.gmra.mrb[0].mxu0 %v2419
        %v2576 = vpop.f32.mrb[0].mxu0
        %v2577 = vadd.f32 0.0, %v2576
        %v2578 = vpop.f32.mrb[0].mxu0
        %v2579 = vadd.f32 0.0, %v2578
        %v2580 = vpop.f32.mrb[0].mxu0
        %v2581 = vadd.f32 0.0, %v2580
        %v2582 = vpop.f32.mrb[0].mxu0
        %v2583 = vadd.f32 0.0, %v2582
        %2584 = vmatprep.mubr.bf16.mxu0 0
        %2585 = vmatmul.mubr.bf16.gmra.mrb[0].mxu0 %v2422
        %v2586 = vpop.f32.mrb[0].mxu0
        %v2587 = vadd.f32 0.0, %v2586
        %v2588 = vpop.f32.mrb[0].mxu0
        %v2589 = vadd.f32 0.0, %v2588
        %v2590 = vpop.f32.mrb[0].mxu0
        %v2591 = vadd.f32 0.0, %v2590
        %v2592 = vpop.f32.mrb[0].mxu0
        %v2593 = vadd.f32 0.0, %v2592
        %2594 = vmatprep.mubr.bf16.mxu0 0
        %2595 = vmatmul.mubr.bf16.gmra.mrb[0].mxu0 %v2425
        %v2596 = vpop.f32.mrb[0].mxu0
        %v2597 = vadd.f32 0.0, %v2596
        %v2598 = vpop.f32.mrb[0].mxu0
        %v2599 = vadd.f32 0.0, %v2598
        %v2600 = vpop.f32.mrb[0].mxu0
        %v2601 = vadd.f32 0.0, %v2600
        %v2602 = vpop.f32.mrb[0].mxu0
        %v2603 = vadd.f32 0.0, %v2602
        %2604 = vmatprep.mubr.bf16.mxu0 0
        %2605 = vmatmul.mubr.bf16.gmra.mrb[0].mxu0 %v2428
        %v2606 = vpop.f32.mrb[0].mxu0
        %v2607 = vadd.f32 0.0, %v2606
        %v2608 = vpop.f32.mrb[0].mxu0
        %v2609 = vadd.f32 0.0, %v2608
        %v2610 = vpop.f32.mrb[0].mxu0
        %v2611 = vadd.f32 0.0, %v2610
        %v2612 = vpop.f32.mrb[0].mxu0
        %v2613 = vadd.f32 0.0, %v2612
        %2614 = vmatprep.mubr.bf16.mxu0 0
        %2615 = vmatmul.mubr.bf16.gmra.mrb[0].mxu0 %v2431
        %v2616 = vpop.f32.mrb[0].mxu0
        %v2617 = vadd.f32 0.0, %v2616
        %v2618 = vpop.f32.mrb[0].mxu0
        %v2619 = vadd.f32 0.0, %v2618
        %v2620 = vpop.f32.mrb[0].mxu0
        %v2621 = vadd.f32 0.0, %v2620
        %v2622 = vpop.f32.mrb[0].mxu0
        %v2623 = vadd.f32 0.0, %v2622
        %2624 = vmatprep.mubr.bf16.mxu0 0
        %2625 = vmatmul.mubr.bf16.gmra.mrb[0].mxu0 %v2434
        %v2626 = vpop.f32.mrb[0].mxu0
        %v2627 = vadd.f32 0.0, %v2626
        %v2628 = vpop.f32.mrb[0].mxu0
        %v2629 = vadd.f32 0.0, %v2628
        %v2630 = vpop.f32.mrb[0].mxu0
        %v2631 = vadd.f32 0.0, %v2630
        %v2632 = vpop.f32.mrb[0].mxu0
        %v2633 = vadd.f32 0.0, %v2632
        %2634 = vmatprep.mubr.bf16.mxu0 0
        %2635 = vmatmul.mubr.bf16.gmra.mrb[0].mxu0 %v2437
        %v2636 = vpop.f32.mrb[0].mxu0
        %v2637 = vadd.f32 0.0, %v2636
        %v2638 = vpop.f32.mrb[0].mxu0
        %v2639 = vadd.f32 0.0, %v2638
        %v2640 = vpop.f32.mrb[0].mxu0
        %v2641 = vadd.f32 0.0, %v2640
        %v2642 = vpop.f32.mrb[0].mxu0
        %v2643 = vadd.f32 0.0, %v2642
        %2644 = vmatprep.mubr.bf16.mxu0 0
        %2645 = vmatmul.mubr.bf16.gmra.mrb[0].mxu0 %v2440
        %v2646 = vpop.f32.mrb[0].mxu0
        %v2647 = vadd.f32 0.0, %v2646
        %v2648 = vpop.f32.mrb[0].mxu0
        %v2649 = vadd.f32 0.0, %v2648
        %v2650 = vpop.f32.mrb[0].mxu0
        %v2651 = vadd.f32 0.0, %v2650
        %v2652 = vpop.f32.mrb[0].mxu0
        %v2653 = vadd.f32 0.0, %v2652
        %2654 = vdwg.mxu0
        %v2655 = vadd.f32 %v2207, %v2477
        %v2656 = vadd.f32 %v2208, %v2479
        %v2657 = vadd.f32 %v2209, %v2481
        %v2658 = vadd.f32 %v2210, %v2483
        %v2659 = vadd.f32 %v2211, %v2487
        %v2660 = vadd.f32 %v2212, %v2489
        %v2661 = vadd.f32 %v2213, %v2491
        %v2662 = vadd.f32 %v2214, %v2493
        %v2663 = vadd.f32 %v2215, %v2497
        %v2664 = vadd.f32 %v2216, %v2499
        %v2665 = vadd.f32 %v2217, %v2501
        %v2666 = vadd.f32 %v2218, %v2503
        %v2667 = vadd.f32 %v2219, %v2507
        %v2668 = vadd.f32 %v2220, %v2509
        %v2669 = vadd.f32 %v2221, %v2511
        %v2670 = vadd.f32 %v2222, %v2513
        %v2671 = vadd.f32 %v2223, %v2517
        %v2672 = vadd.f32 %v2224, %v2519
        %v2673 = vadd.f32 %v2225, %v2521
        %v2674 = vadd.f32 %v2226, %v2523
        %v2675 = vadd.f32 %v2227, %v2527
        %v2676 = vadd.f32 %v2228, %v2529
        %v2677 = vadd.f32 %v2229, %v2531
        %v2678 = vadd.f32 %v2230, %v2533
        %v2679 = vadd.f32 %v2231, %v2537
        %v2680 = vadd.f32 %v2232, %v2539
        %v2681 = vadd.f32 %v2233, %v2541
        %v2682 = vadd.f32 %v2234, %v2543
        %v2683 = vadd.f32 %v2235, %v2547
        %v2684 = vadd.f32 %v2236, %v2549
        %v2685 = vadd.f32 %v2237, %v2551
        %v2686 = vadd.f32 %v2238, %v2553
        %v2687 = vadd.f32 %v2239, %v2557
        %v2688 = vadd.f32 %v2240, %v2559
        %v2689 = vadd.f32 %v2241, %v2561
        %v2690 = vadd.f32 %v2242, %v2563
        %v2691 = vadd.f32 %v2243, %v2567
        %v2692 = vadd.f32 %v2244, %v2569
        %v2693 = vadd.f32 %v2245, %v2571
        %v2694 = vadd.f32 %v2246, %v2573
        %v2695 = vadd.f32 %v2247, %v2577
        %v2696 = vadd.f32 %v2248, %v2579
        %v2697 = vadd.f32 %v2249, %v2581
        %v2698 = vadd.f32 %v2250, %v2583
        %v2699 = vadd.f32 %v2251, %v2587
        %v2700 = vadd.f32 %v2252, %v2589
        %v2701 = vadd.f32 %v2253, %v2591
        %v2702 = vadd.f32 %v2254, %v2593
        %v2703 = vadd.f32 %v2255, %v2597
        %v2704 = vadd.f32 %v2256, %v2599
        %v2705 = vadd.f32 %v2257, %v2601
        %v2706 = vadd.f32 %v2258, %v2603
        %v2707 = vadd.f32 %v2259, %v2607
        %v2708 = vadd.f32 %v2260, %v2609
        %v2709 = vadd.f32 %v2261, %v2611
        %v2710 = vadd.f32 %v2262, %v2613
        %v2711 = vadd.f32 %v2263, %v2617
        %v2712 = vadd.f32 %v2264, %v2619
        %v2713 = vadd.f32 %v2265, %v2621
        %v2714 = vadd.f32 %v2266, %v2623
        %v2715 = vadd.f32 %v2267, %v2627
        %v2716 = vadd.f32 %v2268, %v2629
        %v2717 = vadd.f32 %v2269, %v2631
        %v2718 = vadd.f32 %v2270, %v2633
        %v2719 = vadd.f32 %v2271, %v2637
        %v2720 = vadd.f32 %v2272, %v2639
        %v2721 = vadd.f32 %v2273, %v2641
        %v2722 = vadd.f32 %v2274, %v2643
        %v2723 = vadd.f32 %v2275, %v2647
        %v2724 = vadd.f32 %v2276, %v2649
        %v2725 = vadd.f32 %v2277, %v2651
        %v2726 = vadd.f32 %v2278, %v2653
        %v2727 = vmax.f32 %v2655, 0.0
        %v2728 = vmax.f32 %v2656, 0.0
        %v2729 = vmax.f32 %v2657, 0.0
        %v2730 = vmax.f32 %v2658, 0.0
        %v2731 = vmax.f32 %v2659, 0.0
        %v2732 = vmax.f32 %v2660, 0.0
        %v2733 = vmax.f32 %v2661, 0.0
        %v2734 = vmax.f32 %v2662, 0.0
        %v2735 = vmax.f32 %v2663, 0.0
        %v2736 = vmax.f32 %v2664, 0.0
        %v2737 = vmax.f32 %v2665, 0.0
        %v2738 = vmax.f32 %v2666, 0.0
        %v2739 = vmax.f32 %v2667, 0.0
        %v2740 = vmax.f32 %v2668, 0.0
        %v2741 = vmax.f32 %v2669, 0.0
        %v2742 = vmax.f32 %v2670, 0.0
        %v2743 = vmax.f32 %v2671, 0.0
        %v2744 = vmax.f32 %v2672, 0.0
        %v2745 = vmax.f32 %v2673, 0.0
        %v2746 = vmax.f32 %v2674, 0.0
        %v2747 = vmax.f32 %v2675, 0.0
        %v2748 = vmax.f32 %v2676, 0.0
        %v2749 = vmax.f32 %v2677, 0.0
        %v2750 = vmax.f32 %v2678, 0.0
        %v2751 = vmax.f32 %v2679, 0.0
        %v2752 = vmax.f32 %v2680, 0.0
        %v2753 = vmax.f32 %v2681, 0.0
        %v2754 = vmax.f32 %v2682, 0.0
        %v2755 = vmax.f32 %v2683, 0.0
        %v2756 = vmax.f32 %v2684, 0.0
        %v2757 = vmax.f32 %v2685, 0.0
        %v2758 = vmax.f32 %v2686, 0.0
        %v2759 = vmax.f32 %v2687, 0.0
        %v2760 = vmax.f32 %v2688, 0.0
        %v2761 = vmax.f32 %v2689, 0.0
        %v2762 = vmax.f32 %v2690, 0.0
        %v2763 = vmax.f32 %v2691, 0.0
        %v2764 = vmax.f32 %v2692, 0.0
        %v2765 = vmax.f32 %v2693, 0.0
        %v2766 = vmax.f32 %v2694, 0.0
        %v2767 = vmax.f32 %v2695, 0.0
        %v2768 = vmax.f32 %v2696, 0.0
        %v2769 = vmax.f32 %v2697, 0.0
        %v2770 = vmax.f32 %v2698, 0.0
        %v2771 = vmax.f32 %v2699, 0.0
        %v2772 = vmax.f32 %v2700, 0.0
        %v2773 = vmax.f32 %v2701, 0.0
        %v2774 = vmax.f32 %v2702, 0.0
        %v2775 = vmax.f32 %v2703, 0.0
        %v2776 = vmax.f32 %v2704, 0.0
        %v2777 = vmax.f32 %v2705, 0.0
        %v2778 = vmax.f32 %v2706, 0.0
        %v2779 = vmax.f32 %v2707, 0.0
        %v2780 = vmax.f32 %v2708, 0.0
        %v2781 = vmax.f32 %v2709, 0.0
        %v2782 = vmax.f32 %v2710, 0.0
        %v2783 = vmax.f32 %v2711, 0.0
        %v2784 = vmax.f32 %v2712, 0.0
        %v2785 = vmax.f32 %v2713, 0.0
        %v2786 = vmax.f32 %v2714, 0.0
        %v2787 = vmax.f32 %v2715, 0.0
        %v2788 = vmax.f32 %v2716, 0.0
        %v2789 = vmax.f32 %v2717, 0.0
        %v2790 = vmax.f32 %v2718, 0.0
        %v2791 = vmax.f32 %v2719, 0.0
        %v2792 = vmax.f32 %v2720, 0.0
        %v2793 = vmax.f32 %v2721, 0.0
        %v2794 = vmax.f32 %v2722, 0.0
        %v2795 = vmax.f32 %v2723, 0.0
        %v2796 = vmax.f32 %v2724, 0.0
        %v2797 = vmax.f32 %v2725, 0.0
        %v2798 = vmax.f32 %v2726, 0.0
        %v2799 = vmul.f32 %v2727, %v2727
        %v2800 = vmul.f32 %v2728, %v2728
        %v2801 = vmul.f32 %v2729, %v2729
        %v2802 = vmul.f32 %v2730, %v2730
        %v2803 = vmul.f32 %v2731, %v2731
        %v2804 = vmul.f32 %v2732, %v2732
        %v2805 = vmul.f32 %v2733, %v2733
        %v2806 = vmul.f32 %v2734, %v2734
        %v2807 = vmul.f32 %v2735, %v2735
        %v2808 = vmul.f32 %v2736, %v2736
        %v2809 = vmul.f32 %v2737, %v2737
        %v2810 = vmul.f32 %v2738, %v2738
        %v2811 = vmul.f32 %v2739, %v2739
        %v2812 = vmul.f32 %v2740, %v2740
        %v2813 = vmul.f32 %v2741, %v2741
        %v2814 = vmul.f32 %v2742, %v2742
        %v2815 = vmul.f32 %v2743, %v2743
        %v2816 = vmul.f32 %v2744, %v2744
        %v2817 = vmul.f32 %v2745, %v2745
        %v2818 = vmul.f32 %v2746, %v2746
        %v2819 = vmul.f32 %v2747, %v2747
        %v2820 = vmul.f32 %v2748, %v2748
        %v2821 = vmul.f32 %v2749, %v2749
        %v2822 = vmul.f32 %v2750, %v2750
        %v2823 = vmul.f32 %v2751, %v2751
        %v2824 = vmul.f32 %v2752, %v2752
        %v2825 = vmul.f32 %v2753, %v2753
        %v2826 = vmul.f32 %v2754, %v2754
        %v2827 = vmul.f32 %v2755, %v2755
        %v2828 = vmul.f32 %v2756, %v2756
        %v2829 = vmul.f32 %v2757, %v2757
        %v2830 = vmul.f32 %v2758, %v2758
        %v2831 = vmul.f32 %v2759, %v2759
        %v2832 = vmul.f32 %v2760, %v2760
        %v2833 = vmul.f32 %v2761, %v2761
        %v2834 = vmul.f32 %v2762, %v2762
        %v2835 = vmul.f32 %v2763, %v2763
        %v2836 = vmul.f32 %v2764, %v2764
        %v2837 = vmul.f32 %v2765, %v2765
        %v2838 = vmul.f32 %v2766, %v2766
        %v2839 = vmul.f32 %v2767, %v2767
        %v2840 = vmul.f32 %v2768, %v2768
        %v2841 = vmul.f32 %v2769, %v2769
        %v2842 = vmul.f32 %v2770, %v2770
        %v2843 = vmul.f32 %v2771, %v2771
        %v2844 = vmul.f32 %v2772, %v2772
        %v2845 = vmul.f32 %v2773, %v2773
        %v2846 = vmul.f32 %v2774, %v2774
        %v2847 = vmul.f32 %v2775, %v2775
        %v2848 = vmul.f32 %v2776, %v2776
        %v2849 = vmul.f32 %v2777, %v2777
        %v2850 = vmul.f32 %v2778, %v2778
        %v2851 = vmul.f32 %v2779, %v2779
        %v2852 = vmul.f32 %v2780, %v2780
        %v2853 = vmul.f32 %v2781, %v2781
        %v2854 = vmul.f32 %v2782, %v2782
        %v2855 = vmul.f32 %v2783, %v2783
        %v2856 = vmul.f32 %v2784, %v2784
        %v2857 = vmul.f32 %v2785, %v2785
        %v2858 = vmul.f32 %v2786, %v2786
        %v2859 = vmul.f32 %v2787, %v2787
        %v2860 = vmul.f32 %v2788, %v2788
        %v2861 = vmul.f32 %v2789, %v2789
        %v2862 = vmul.f32 %v2790, %v2790
        %v2863 = vmul.f32 %v2791, %v2791
        %v2864 = vmul.f32 %v2792, %v2792
        %v2865 = vmul.f32 %v2793, %v2793
        %v2866 = vmul.f32 %v2794, %v2794
        %v2867 = vmul.f32 %v2795, %v2795
        %v2868 = vmul.f32 %v2796, %v2796
        %v2869 = vmul.f32 %v2797, %v2797
        %v2870 = vmul.f32 %v2798, %v2798
        %v2871 = vpack.c.bf16 %v2801, %v2799
        %v2872 = vpack.c.bf16 %v2802, %v2800
        %v2873 = vpack.c.bf16 %v2805, %v2803
        %v2874 = vpack.c.bf16 %v2806, %v2804
        %v2875 = vpack.c.bf16 %v2809, %v2807
        %v2876 = vpack.c.bf16 %v2810, %v2808
        %v2877 = vpack.c.bf16 %v2813, %v2811
        %v2878 = vpack.c.bf16 %v2814, %v2812
        %v2879 = vpack.c.bf16 %v2817, %v2815
        %v2880 = vpack.c.bf16 %v2818, %v2816
        %v2881 = vpack.c.bf16 %v2821, %v2819
        %v2882 = vpack.c.bf16 %v2822, %v2820
        %v2883 = vpack.c.bf16 %v2825, %v2823
        %v2884 = vpack.c.bf16 %v2826, %v2824
        %v2885 = vpack.c.bf16 %v2829, %v2827
        %v2886 = vpack.c.bf16 %v2830, %v2828
        %v2887 = vpack.c.bf16 %v2833, %v2831
        %v2888 = vpack.c.bf16 %v2834, %v2832
        %v2889 = vpack.c.bf16 %v2837, %v2835
        %v2890 = vpack.c.bf16 %v2838, %v2836
        %v2891 = vpack.c.bf16 %v2841, %v2839
        %v2892 = vpack.c.bf16 %v2842, %v2840
        %v2893 = vpack.c.bf16 %v2845, %v2843
        %v2894 = vpack.c.bf16 %v2846, %v2844
        %v2895 = vpack.c.bf16 %v2849, %v2847
        %v2896 = vpack.c.bf16 %v2850, %v2848
        %v2897 = vpack.c.bf16 %v2853, %v2851
        %v2898 = vpack.c.bf16 %v2854, %v2852
        %v2899 = vpack.c.bf16 %v2857, %v2855
        %v2900 = vpack.c.bf16 %v2858, %v2856
        %v2901 = vpack.c.bf16 %v2861, %v2859
        %v2902 = vpack.c.bf16 %v2862, %v2860
        %v2903 = vpack.c.bf16 %v2865, %v2863
        %v2904 = vpack.c.bf16 %v2866, %v2864
        %v2905 = vpack.c.bf16 %v2869, %v2867
        %v2906 = vpack.c.bf16 %v2870, %v2868
        %v2907 = vld [vmem:[%s2] sm:$0xff]
        %v2908 = vld [vmem:[%s2 + $0x8] sm:$0xff]
        %v2909 = vld [vmem:[%s2 + $0x10] sm:$0xff]
        %v2910 = vld [vmem:[%s2 + $0x18] sm:$0xff]
        %v2911 = vld [vmem:[%s2 + $0x20] sm:$0xff]
        %v2912 = vld [vmem:[%s2 + $0x28] sm:$0xff]
        %v2913 = vld [vmem:[%s2 + $0x30] sm:$0xff]
        %v2914 = vld [vmem:[%s2 + $0x38] sm:$0xff]
        %v2915 = vld [vmem:[%s2 + $0x40] sm:$0xff]
        %v2916 = vld [vmem:[%s2 + $0x48] sm:$0xff]
        %v2917 = vld [vmem:[%s2 + $0x50] sm:$0xff]
        %v2918 = vld [vmem:[%s2 + $0x58] sm:$0xff]
        %v2919 = vld [vmem:[%s2 + $0x60] sm:$0xff]
        %v2920 = vld [vmem:[%s2 + $0x68] sm:$0xff]
        %v2921 = vld [vmem:[%s2 + $0x70] sm:$0xff]
        %v2922 = vld [vmem:[%s2 + $0x78] sm:$0xff]
        %v2923 = vld [vmem:[%s2 + $0x80] sm:$0xff]
        %v2924 = vld [vmem:[%s2 + $0x88] sm:$0xff]
        %v2925 = vld [vmem:[%s2 + $0x90] sm:$0xff]
        %v2926 = vld [vmem:[%s2 + $0x98] sm:$0xff]
        %v2927 = vld [vmem:[%s2 + $0xa0] sm:$0xff]
        %v2928 = vld [vmem:[%s2 + $0xa8] sm:$0xff]
        %v2929 = vld [vmem:[%s2 + $0xb0] sm:$0xff]
        %v2930 = vld [vmem:[%s2 + $0xb8] sm:$0xff]
        %v2931 = vld [vmem:[%s2 + $0xc0] sm:$0xff]
        %v2932 = vld [vmem:[%s2 + $0xc8] sm:$0xff]
        %v2933 = vld [vmem:[%s2 + $0xd0] sm:$0xff]
        %v2934 = vld [vmem:[%s2 + $0xd8] sm:$0xff]
        %v2935 = vld [vmem:[%s2 + $0xe0] sm:$0xff]
        %v2936 = vld [vmem:[%s2 + $0xe8] sm:$0xff]
        %v2937 = vld [vmem:[%s2 + $0xf0] sm:$0xff]
        %v2938 = vld [vmem:[%s2 + $0xf8] sm:$0xff]
        %v2971 = vunpack.c.l.b16 %v2907
        %v2972 = vunpack.c.h.b16 %v2907
        %v2973 = vunpack.c.l.b16 %v2908
        %v2974 = vunpack.c.h.b16 %v2908
        %v2975 = vunpack.c.l.b16 %v2909
        %v2976 = vunpack.c.h.b16 %v2909
        %v2977 = vunpack.c.l.b16 %v2910
        %v2978 = vunpack.c.h.b16 %v2910
        %v2979 = vunpack.c.l.b16 %v2911
        %v2980 = vunpack.c.h.b16 %v2911
        %v2981 = vunpack.c.l.b16 %v2912
        %v2982 = vunpack.c.h.b16 %v2912
        %v2983 = vunpack.c.l.b16 %v2913
        %v2984 = vunpack.c.h.b16 %v2913
        %v2985 = vunpack.c.l.b16 %v2914
        %v2986 = vunpack.c.h.b16 %v2914
        %v2987 = vunpack.c.l.b16 %v2915
        %v2988 = vunpack.c.h.b16 %v2915
        %v2989 = vunpack.c.l.b16 %v2916
        %v2990 = vunpack.c.h.b16 %v2916
        %v2991 = vunpack.c.l.b16 %v2917
        %v2992 = vunpack.c.h.b16 %v2917
        %v2993 = vunpack.c.l.b16 %v2918
        %v2994 = vunpack.c.h.b16 %v2918
        %v2995 = vunpack.c.l.b16 %v2919
        %v2996 = vunpack.c.h.b16 %v2919
        %v2997 = vunpack.c.l.b16 %v2920
        %v2998 = vunpack.c.h.b16 %v2920
        %v2999 = vunpack.c.l.b16 %v2921
        %v3000 = vunpack.c.h.b16 %v2921
        %v3001 = vunpack.c.l.b16 %v2922
        %v3002 = vunpack.c.h.b16 %v2922
        %v3003 = vunpack.c.l.b16 %v2923
        %v3004 = vunpack.c.h.b16 %v2923
        %v3005 = vunpack.c.l.b16 %v2924
        %v3006 = vunpack.c.h.b16 %v2924
        %v3007 = vunpack.c.l.b16 %v2925
        %v3008 = vunpack.c.h.b16 %v2925
        %v3009 = vunpack.c.l.b16 %v2926
        %v3010 = vunpack.c.h.b16 %v2926
        %v3011 = vunpack.c.l.b16 %v2927
        %v3012 = vunpack.c.h.b16 %v2927
        %v3013 = vunpack.c.l.b16 %v2928
        %v3014 = vunpack.c.h.b16 %v2928
        %v3015 = vunpack.c.l.b16 %v2929
        %v3016 = vunpack.c.h.b16 %v2929
        %v3017 = vunpack.c.l.b16 %v2930
        %v3018 = vunpack.c.h.b16 %v2930
        %v3019 = vunpack.c.l.b16 %v2931
        %v3020 = vunpack.c.h.b16 %v2931
        %v3021 = vunpack.c.l.b16 %v2932
        %v3022 = vunpack.c.h.b16 %v2932
        %v3023 = vunpack.c.l.b16 %v2933
        %v3024 = vunpack.c.h.b16 %v2933
        %v3025 = vunpack.c.l.b16 %v2934
        %v3026 = vunpack.c.h.b16 %v2934
        %v3027 = vunpack.c.l.b16 %v2935
        %v3028 = vunpack.c.h.b16 %v2935
        %v3029 = vunpack.c.l.b16 %v2936
        %v3030 = vunpack.c.h.b16 %v2936
        %v3031 = vunpack.c.l.b16 %v2937
        %v3032 = vunpack.c.h.b16 %v2937
        %v3033 = vunpack.c.l.b16 %v2938
        %v3034 = vunpack.c.h.b16 %v2938
        %v3035 = vpack.c.b16 %v2973, %v2971
        %v3036 = vpack.c.b16 %v2974, %v2972
        %v3037 = vpack.c.b16 %v2977, %v2975
        %v3038 = vpack.c.b16 %v2978, %v2976
        %v3039 = vpack.c.b16 %v2981, %v2979
        %v3040 = vpack.c.b16 %v2982, %v2980
        %v3041 = vpack.c.b16 %v2985, %v2983
        %v3042 = vpack.c.b16 %v2986, %v2984
        %v3043 = vpack.c.b16 %v2989, %v2987
        %v3044 = vpack.c.b16 %v2990, %v2988
        %v3045 = vpack.c.b16 %v2993, %v2991
        %v3046 = vpack.c.b16 %v2994, %v2992
        %v3047 = vpack.c.b16 %v2997, %v2995
        %v3048 = vpack.c.b16 %v2998, %v2996
        %v3049 = vpack.c.b16 %v3001, %v2999
        %v3050 = vpack.c.b16 %v3002, %v3000
        %v3051 = vpack.c.b16 %v3005, %v3003
        %v3052 = vpack.c.b16 %v3006, %v3004
        %v3053 = vpack.c.b16 %v3009, %v3007
        %v3054 = vpack.c.b16 %v3010, %v3008
        %v3055 = vpack.c.b16 %v3013, %v3011
        %v3056 = vpack.c.b16 %v3014, %v3012
        %v3057 = vpack.c.b16 %v3017, %v3015
        %v3058 = vpack.c.b16 %v3018, %v3016
        %v3059 = vpack.c.b16 %v3021, %v3019
        %v3060 = vpack.c.b16 %v3022, %v3020
        %v3061 = vpack.c.b16 %v3025, %v3023
        %v3062 = vpack.c.b16 %v3026, %v3024
        %v3063 = vpack.c.b16 %v3029, %v3027
        %v3064 = vpack.c.b16 %v3030, %v3028
        %v3065 = vpack.c.b16 %v3033, %v3031
        %v3066 = vpack.c.b16 %v3034, %v3032
        %3099 = vmatprep.subr.bf16.mxu0 %v3036
        %3100 = vmatpush1.bf16.msra.mxu0 %v3035
        %3101 = vmatprep.subr.bf16.mxu0 %v3038
        %3102 = vmatpush1.bf16.msra.mxu0 %v3037
        %3103 = vmatprep.subr.bf16.mxu0 %v3040
        %3104 = vmatpush1.bf16.msra.mxu0 %v3039
        %3105 = vmatprep.subr.bf16.mxu0 %v3042
        %3106 = vmatpush1.bf16.msra.mxu0 %v3041
        %3107 = vmatprep.subr.bf16.mxu0 %v3044
        %3108 = vmatpush1.bf16.msra.mxu0 %v3043
        %3109 = vmatprep.subr.bf16.mxu0 %v3046
        %3110 = vmatpush1.bf16.msra.mxu0 %v3045
        %3111 = vmatprep.subr.bf16.mxu0 %v3048
        %3112 = vmatpush1.bf16.msra.mxu0 %v3047
        %3113 = vmatprep.subr.bf16.mxu0 %v3050
        %3114 = vmatpush1.bf16.msra.mxu0 %v3049
        %3115 = vmatprep.subr.bf16.mxu0 %v3052
        %3116 = vmatpush1.bf16.msra.mxu0 %v3051
        %3117 = vmatprep.subr.bf16.mxu0 %v3054
        %3118 = vmatpush1.bf16.msra.mxu0 %v3053
        %3119 = vmatprep.subr.bf16.mxu0 %v3056
        %3120 = vmatpush1.bf16.msra.mxu0 %v3055
        %3121 = vmatprep.subr.bf16.mxu0 %v3058
        %3122 = vmatpush1.bf16.msra.mxu0 %v3057
        %3123 = vmatprep.subr.bf16.mxu0 %v3060
        %3124 = vmatpush1.bf16.msra.mxu0 %v3059
        %3125 = vmatprep.subr.bf16.mxu0 %v3062
        %3126 = vmatpush1.bf16.msra.mxu0 %v3061
        %3127 = vmatprep.subr.bf16.mxu0 %v3064
        %3128 = vmatpush1.bf16.msra.mxu0 %v3063
        %3129 = vmatprep.subr.bf16.mxu0 %v3066
        %3130 = vmatpush1.bf16.msra.mxu0 %v3065
        %3131 = vmatprep.mubr.bf16.mxu0 %v2872
        %3132 = vmatmul.mubr.bf16.gmra.mrb[0].mxu0 %v2871
        %v3133 = vpop.f32.mrb[0].mxu0
        %v3134 = vadd.f32 0.0, %v3133
        %v3135 = vpop.f32.mrb[0].mxu0
        %v3136 = vadd.f32 0.0, %v3135
        %v3137 = vpop.f32.mrb[0].mxu0
        %v3138 = vadd.f32 0.0, %v3137
        %v3139 = vpop.f32.mrb[0].mxu0
        %v3140 = vadd.f32 0.0, %v3139
        %3141 = vmatprep.mubr.bf16.mxu0 %v2874
        %3142 = vmatmul.mubr.bf16.gmra.mrb[0].mxu0 %v2873
        %v3143 = vpop.f32.mrb[0].mxu0
        %v3144 = vadd.f32 0.0, %v3143
        %v3145 = vpop.f32.mrb[0].mxu0
        %v3146 = vadd.f32 0.0, %v3145
        %v3147 = vpop.f32.mrb[0].mxu0
        %v3148 = vadd.f32 0.0, %v3147
        %v3149 = vpop.f32.mrb[0].mxu0
        %v3150 = vadd.f32 0.0, %v3149
        %3151 = vmatprep.mubr.bf16.mxu0 %v2876
        %3152 = vmatmul.mubr.bf16.gmra.mrb[0].mxu0 %v2875
        %v3153 = vpop.f32.mrb[0].mxu0
        %v3154 = vadd.f32 0.0, %v3153
        %v3155 = vpop.f32.mrb[0].mxu0
        %v3156 = vadd.f32 0.0, %v3155
        %v3157 = vpop.f32.mrb[0].mxu0
        %v3158 = vadd.f32 0.0, %v3157
        %v3159 = vpop.f32.mrb[0].mxu0
        %v3160 = vadd.f32 0.0, %v3159
        %3161 = vmatprep.mubr.bf16.mxu0 %v2878
        %3162 = vmatmul.mubr.bf16.gmra.mrb[0].mxu0 %v2877
        %v3163 = vpop.f32.mrb[0].mxu0
        %v3164 = vadd.f32 0.0, %v3163
        %v3165 = vpop.f32.mrb[0].mxu0
        %v3166 = vadd.f32 0.0, %v3165
        %v3167 = vpop.f32.mrb[0].mxu0
        %v3168 = vadd.f32 0.0, %v3167
        %v3169 = vpop.f32.mrb[0].mxu0
        %v3170 = vadd.f32 0.0, %v3169
        %3171 = vmatprep.mubr.bf16.mxu0 %v2880
        %3172 = vmatmul.mubr.bf16.gmra.mrb[0].mxu0 %v2879
        %v3173 = vpop.f32.mrb[0].mxu0
        %v3174 = vadd.f32 0.0, %v3173
        %v3175 = vpop.f32.mrb[0].mxu0
        %v3176 = vadd.f32 0.0, %v3175
        %v3177 = vpop.f32.mrb[0].mxu0
        %v3178 = vadd.f32 0.0, %v3177
        %v3179 = vpop.f32.mrb[0].mxu0
        %v3180 = vadd.f32 0.0, %v3179
        %3181 = vmatprep.mubr.bf16.mxu0 %v2882
        %3182 = vmatmul.mubr.bf16.gmra.mrb[0].mxu0 %v2881
        %v3183 = vpop.f32.mrb[0].mxu0
        %v3184 = vadd.f32 0.0, %v3183
        %v3185 = vpop.f32.mrb[0].mxu0
        %v3186 = vadd.f32 0.0, %v3185
        %v3187 = vpop.f32.mrb[0].mxu0
        %v3188 = vadd.f32 0.0, %v3187
        %v3189 = vpop.f32.mrb[0].mxu0
        %v3190 = vadd.f32 0.0, %v3189
        %3191 = vmatprep.mubr.bf16.mxu0 %v2884
        %3192 = vmatmul.mubr.bf16.gmra.mrb[0].mxu0 %v2883
        %v3193 = vpop.f32.mrb[0].mxu0
        %v3194 = vadd.f32 0.0, %v3193
        %v3195 = vpop.f32.mrb[0].mxu0
        %v3196 = vadd.f32 0.0, %v3195
        %v3197 = vpop.f32.mrb[0].mxu0
        %v3198 = vadd.f32 0.0, %v3197
        %v3199 = vpop.f32.mrb[0].mxu0
        %v3200 = vadd.f32 0.0, %v3199
        %3201 = vmatprep.mubr.bf16.mxu0 %v2886
        %3202 = vmatmul.mubr.bf16.gmra.mrb[0].mxu0 %v2885
        %v3203 = vpop.f32.mrb[0].mxu0
        %v3204 = vadd.f32 0.0, %v3203
        %v3205 = vpop.f32.mrb[0].mxu0
        %v3206 = vadd.f32 0.0, %v3205
        %v3207 = vpop.f32.mrb[0].mxu0
        %v3208 = vadd.f32 0.0, %v3207
        %v3209 = vpop.f32.mrb[0].mxu0
        %v3210 = vadd.f32 0.0, %v3209
        %3211 = vmatprep.mubr.bf16.mxu0 %v2888
        %3212 = vmatmul.mubr.bf16.gmra.mrb[0].mxu0 %v2887
        %v3213 = vpop.f32.mrb[0].mxu0
        %v3214 = vadd.f32 0.0, %v3213
        %v3215 = vpop.f32.mrb[0].mxu0
        %v3216 = vadd.f32 0.0, %v3215
        %v3217 = vpop.f32.mrb[0].mxu0
        %v3218 = vadd.f32 0.0, %v3217
        %v3219 = vpop.f32.mrb[0].mxu0
        %v3220 = vadd.f32 0.0, %v3219
        %3221 = vmatprep.mubr.bf16.mxu0 %v2890
        %3222 = vmatmul.mubr.bf16.gmra.mrb[0].mxu0 %v2889
        %v3223 = vpop.f32.mrb[0].mxu0
        %v3224 = vadd.f32 0.0, %v3223
        %v3225 = vpop.f32.mrb[0].mxu0
        %v3226 = vadd.f32 0.0, %v3225
        %v3227 = vpop.f32.mrb[0].mxu0
        %v3228 = vadd.f32 0.0, %v3227
        %v3229 = vpop.f32.mrb[0].mxu0
        %v3230 = vadd.f32 0.0, %v3229
        %3231 = vmatprep.mubr.bf16.mxu0 %v2892
        %3232 = vmatmul.mubr.bf16.gmra.mrb[0].mxu0 %v2891
        %v3233 = vpop.f32.mrb[0].mxu0
        %v3234 = vadd.f32 0.0, %v3233
        %v3235 = vpop.f32.mrb[0].mxu0
        %v3236 = vadd.f32 0.0, %v3235
        %v3237 = vpop.f32.mrb[0].mxu0
        %v3238 = vadd.f32 0.0, %v3237
        %v3239 = vpop.f32.mrb[0].mxu0
        %v3240 = vadd.f32 0.0, %v3239
        %3241 = vmatprep.mubr.bf16.mxu0 %v2894
        %3242 = vmatmul.mubr.bf16.gmra.mrb[0].mxu0 %v2893
        %v3243 = vpop.f32.mrb[0].mxu0
        %v3244 = vadd.f32 0.0, %v3243
        %v3245 = vpop.f32.mrb[0].mxu0
        %v3246 = vadd.f32 0.0, %v3245
        %v3247 = vpop.f32.mrb[0].mxu0
        %v3248 = vadd.f32 0.0, %v3247
        %v3249 = vpop.f32.mrb[0].mxu0
        %v3250 = vadd.f32 0.0, %v3249
        %3251 = vmatprep.mubr.bf16.mxu0 %v2896
        %3252 = vmatmul.mubr.bf16.gmra.mrb[0].mxu0 %v2895
        %v3253 = vpop.f32.mrb[0].mxu0
        %v3254 = vadd.f32 0.0, %v3253
        %v3255 = vpop.f32.mrb[0].mxu0
        %v3256 = vadd.f32 0.0, %v3255
        %v3257 = vpop.f32.mrb[0].mxu0
        %v3258 = vadd.f32 0.0, %v3257
        %v3259 = vpop.f32.mrb[0].mxu0
        %v3260 = vadd.f32 0.0, %v3259
        %3261 = vmatprep.mubr.bf16.mxu0 %v2898
        %3262 = vmatmul.mubr.bf16.gmra.mrb[0].mxu0 %v2897
        %v3263 = vpop.f32.mrb[0].mxu0
        %v3264 = vadd.f32 0.0, %v3263
        %v3265 = vpop.f32.mrb[0].mxu0
        %v3266 = vadd.f32 0.0, %v3265
        %v3267 = vpop.f32.mrb[0].mxu0
        %v3268 = vadd.f32 0.0, %v3267
        %v3269 = vpop.f32.mrb[0].mxu0
        %v3270 = vadd.f32 0.0, %v3269
        %3271 = vmatprep.mubr.bf16.mxu0 %v2900
        %3272 = vmatmul.mubr.bf16.gmra.mrb[0].mxu0 %v2899
        %v3273 = vpop.f32.mrb[0].mxu0
        %v3274 = vadd.f32 0.0, %v3273
        %v3275 = vpop.f32.mrb[0].mxu0
        %v3276 = vadd.f32 0.0, %v3275
        %v3277 = vpop.f32.mrb[0].mxu0
        %v3278 = vadd.f32 0.0, %v3277
        %v3279 = vpop.f32.mrb[0].mxu0
        %v3280 = vadd.f32 0.0, %v3279
        %3281 = vmatprep.mubr.bf16.mxu0 %v2902
        %3282 = vmatmul.mubr.bf16.gmra.mrb[0].mxu0 %v2901
        %v3283 = vpop.f32.mrb[0].mxu0
        %v3284 = vadd.f32 0.0, %v3283
        %v3285 = vpop.f32.mrb[0].mxu0
        %v3286 = vadd.f32 0.0, %v3285
        %v3287 = vpop.f32.mrb[0].mxu0
        %v3288 = vadd.f32 0.0, %v3287
        %v3289 = vpop.f32.mrb[0].mxu0
        %v3290 = vadd.f32 0.0, %v3289
        %3291 = vmatprep.mubr.bf16.mxu0 %v2904
        %3292 = vmatmul.mubr.bf16.gmra.mrb[0].mxu0 %v2903
        %v3293 = vpop.f32.mrb[0].mxu0
        %v3294 = vadd.f32 0.0, %v3293
        %v3295 = vpop.f32.mrb[0].mxu0
        %v3296 = vadd.f32 0.0, %v3295
        %v3297 = vpop.f32.mrb[0].mxu0
        %v3298 = vadd.f32 0.0, %v3297
        %v3299 = vpop.f32.mrb[0].mxu0
        %v3300 = vadd.f32 0.0, %v3299
        %3301 = vmatprep.mubr.bf16.mxu0 %v2906
        %3302 = vmatmul.mubr.bf16.gmra.mrb[0].mxu0 %v2905
        %v3303 = vpop.f32.mrb[0].mxu0
        %v3304 = vadd.f32 0.0, %v3303
        %v3305 = vpop.f32.mrb[0].mxu0
        %v3306 = vadd.f32 0.0, %v3305
        %v3307 = vpop.f32.mrb[0].mxu0
        %v3308 = vadd.f32 0.0, %v3307
        %v3309 = vpop.f32.mrb[0].mxu0
        %v3310 = vadd.f32 0.0, %v3309
        %3311 = vdwg.mxu0
        %v3312 = vmul.f32 %v3134, 0.00011111111
        %v3313 = vmul.f32 %v3136, 0.00011111111
        %v3314 = vmul.f32 %v3138, 0.00011111111
        %v3315 = vmul.f32 %v3140, 0.00011111111
        %v3316 = vmul.f32 %v3144, 0.00011111111
        %v3317 = vmul.f32 %v3146, 0.00011111111
        %v3318 = vmul.f32 %v3148, 0.00011111111
        %v3319 = vmul.f32 %v3150, 0.00011111111
        %v3320 = vmul.f32 %v3154, 0.00011111111
        %v3321 = vmul.f32 %v3156, 0.00011111111
        %v3322 = vmul.f32 %v3158, 0.00011111111
        %v3323 = vmul.f32 %v3160, 0.00011111111
        %v3324 = vmul.f32 %v3164, 0.00011111111
        %v3325 = vmul.f32 %v3166, 0.00011111111
        %v3326 = vmul.f32 %v3168, 0.00011111111
        %v3327 = vmul.f32 %v3170, 0.00011111111
        %v3328 = vmul.f32 %v3174, 0.00011111111
        %v3329 = vmul.f32 %v3176, 0.00011111111
        %v3330 = vmul.f32 %v3178, 0.00011111111
        %v3331 = vmul.f32 %v3180, 0.00011111111
        %v3332 = vmul.f32 %v3184, 0.00011111111
        %v3333 = vmul.f32 %v3186, 0.00011111111
        %v3334 = vmul.f32 %v3188, 0.00011111111
        %v3335 = vmul.f32 %v3190, 0.00011111111
        %v3336 = vmul.f32 %v3194, 0.00011111111
        %v3337 = vmul.f32 %v3196, 0.00011111111
        %v3338 = vmul.f32 %v3198, 0.00011111111
        %v3339 = vmul.f32 %v3200, 0.00011111111
        %v3340 = vmul.f32 %v3204, 0.00011111111
        %v3341 = vmul.f32 %v3206, 0.00011111111
        %v3342 = vmul.f32 %v3208, 0.00011111111
        %v3343 = vmul.f32 %v3210, 0.00011111111
        %v3344 = vmul.f32 %v3214, 0.00011111111
        %v3345 = vmul.f32 %v3216, 0.00011111111
        %v3346 = vmul.f32 %v3218, 0.00011111111
        %v3347 = vmul.f32 %v3220, 0.00011111111
        %v3348 = vmul.f32 %v3224, 0.00011111111
        %v3349 = vmul.f32 %v3226, 0.00011111111
        %v3350 = vmul.f32 %v3228, 0.00011111111
        %v3351 = vmul.f32 %v3230, 0.00011111111
        %v3352 = vmul.f32 %v3234, 0.00011111111
        %v3353 = vmul.f32 %v3236, 0.00011111111
        %v3354 = vmul.f32 %v3238, 0.00011111111
        %v3355 = vmul.f32 %v3240, 0.00011111111
        %v3356 = vmul.f32 %v3244, 0.00011111111
        %v3357 = vmul.f32 %v3246, 0.00011111111
        %v3358 = vmul.f32 %v3248, 0.00011111111
        %v3359 = vmul.f32 %v3250, 0.00011111111
        %v3360 = vmul.f32 %v3254, 0.00011111111
        %v3361 = vmul.f32 %v3256, 0.00011111111
        %v3362 = vmul.f32 %v3258, 0.00011111111
        %v3363 = vmul.f32 %v3260, 0.00011111111
        %v3364 = vmul.f32 %v3264, 0.00011111111
        %v3365 = vmul.f32 %v3266, 0.00011111111
        %v3366 = vmul.f32 %v3268, 0.00011111111
        %v3367 = vmul.f32 %v3270, 0.00011111111
        %v3368 = vmul.f32 %v3274, 0.00011111111
        %v3369 = vmul.f32 %v3276, 0.00011111111
        %v3370 = vmul.f32 %v3278, 0.00011111111
        %v3371 = vmul.f32 %v3280, 0.00011111111
        %v3372 = vmul.f32 %v3284, 0.00011111111
        %v3373 = vmul.f32 %v3286, 0.00011111111
        %v3374 = vmul.f32 %v3288, 0.00011111111
        %v3375 = vmul.f32 %v3290, 0.00011111111
        %v3376 = vmul.f32 %v3294, 0.00011111111
        %v3377 = vmul.f32 %v3296, 0.00011111111
        %v3378 = vmul.f32 %v3298, 0.00011111111
        %v3379 = vmul.f32 %v3300, 0.00011111111
        %v3380 = vmul.f32 %v3304, 0.00011111111
        %v3381 = vmul.f32 %v3306, 0.00011111111
        %v3382 = vmul.f32 %v3308, 0.00011111111
        %v3383 = vmul.f32 %v3310, 0.00011111111
        %v3384 = vadd.f32 %v3312, 1.0
        %v3385 = vadd.f32 %v3313, 1.0
        %v3386 = vadd.f32 %v3314, 1.0
        %v3387 = vadd.f32 %v3315, 1.0
        %v3388 = vadd.f32 %v3316, 1.0
        %v3389 = vadd.f32 %v3317, 1.0
        %v3390 = vadd.f32 %v3318, 1.0
        %v3391 = vadd.f32 %v3319, 1.0
        %v3392 = vadd.f32 %v3320, 1.0
        %v3393 = vadd.f32 %v3321, 1.0
        %v3394 = vadd.f32 %v3322, 1.0
        %v3395 = vadd.f32 %v3323, 1.0
        %v3396 = vadd.f32 %v3324, 1.0
        %v3397 = vadd.f32 %v3325, 1.0
        %v3398 = vadd.f32 %v3326, 1.0
        %v3399 = vadd.f32 %v3327, 1.0
        %v3400 = vadd.f32 %v3328, 1.0
        %v3401 = vadd.f32 %v3329, 1.0
        %v3402 = vadd.f32 %v3330, 1.0
        %v3403 = vadd.f32 %v3331, 1.0
        %v3404 = vadd.f32 %v3332, 1.0
        %v3405 = vadd.f32 %v3333, 1.0
        %v3406 = vadd.f32 %v3334, 1.0
        %v3407 = vadd.f32 %v3335, 1.0
        %v3408 = vadd.f32 %v3336, 1.0
        %v3409 = vadd.f32 %v3337, 1.0
        %v3410 = vadd.f32 %v3338, 1.0
        %v3411 = vadd.f32 %v3339, 1.0
        %v3412 = vadd.f32 %v3340, 1.0
        %v3413 = vadd.f32 %v3341, 1.0
        %v3414 = vadd.f32 %v3342, 1.0
        %v3415 = vadd.f32 %v3343, 1.0
        %v3416 = vadd.f32 %v3344, 1.0
        %v3417 = vadd.f32 %v3345, 1.0
        %v3418 = vadd.f32 %v3346, 1.0
        %v3419 = vadd.f32 %v3347, 1.0
        %v3420 = vadd.f32 %v3348, 1.0
        %v3421 = vadd.f32 %v3349, 1.0
        %v3422 = vadd.f32 %v3350, 1.0
        %v3423 = vadd.f32 %v3351, 1.0
        %v3424 = vadd.f32 %v3352, 1.0
        %v3425 = vadd.f32 %v3353, 1.0
        %v3426 = vadd.f32 %v3354, 1.0
        %v3427 = vadd.f32 %v3355, 1.0
        %v3428 = vadd.f32 %v3356, 1.0
        %v3429 = vadd.f32 %v3357, 1.0
        %v3430 = vadd.f32 %v3358, 1.0
        %v3431 = vadd.f32 %v3359, 1.0
        %v3432 = vadd.f32 %v3360, 1.0
        %v3433 = vadd.f32 %v3361, 1.0
        %v3434 = vadd.f32 %v3362, 1.0
        %v3435 = vadd.f32 %v3363, 1.0
        %v3436 = vadd.f32 %v3364, 1.0
        %v3437 = vadd.f32 %v3365, 1.0
        %v3438 = vadd.f32 %v3366, 1.0
        %v3439 = vadd.f32 %v3367, 1.0
        %v3440 = vadd.f32 %v3368, 1.0
        %v3441 = vadd.f32 %v3369, 1.0
        %v3442 = vadd.f32 %v3370, 1.0
        %v3443 = vadd.f32 %v3371, 1.0
        %v3444 = vadd.f32 %v3372, 1.0
        %v3445 = vadd.f32 %v3373, 1.0
        %v3446 = vadd.f32 %v3374, 1.0
        %v3447 = vadd.f32 %v3375, 1.0
        %v3448 = vadd.f32 %v3376, 1.0
        %v3449 = vadd.f32 %v3377, 1.0
        %v3450 = vadd.f32 %v3378, 1.0
        %v3451 = vadd.f32 %v3379, 1.0
        %v3452 = vadd.f32 %v3380, 1.0
        %v3453 = vadd.f32 %v3381, 1.0
        %v3454 = vadd.f32 %v3382, 1.0
        %v3455 = vadd.f32 %v3383, 1.0
        %v3456 = vrsqrt.pop %v3384
        %v3457 = vrsqrt.pop %v3385
        %v3458 = vrsqrt.pop %v3386
        %v3459 = vrsqrt.pop %v3387
        %v3460 = vrsqrt.pop %v3388
        %v3461 = vrsqrt.pop %v3389
        %v3462 = vrsqrt.pop %v3390
        %v3463 = vrsqrt.pop %v3391
        %v3464 = vrsqrt.pop %v3392
        %v3465 = vrsqrt.pop %v3393
        %v3466 = vrsqrt.pop %v3394
        %v3467 = vrsqrt.pop %v3395
        %v3468 = vrsqrt.pop %v3396
        %v3469 = vrsqrt.pop %v3397
        %v3470 = vrsqrt.pop %v3398
        %v3471 = vrsqrt.pop %v3399
        %v3472 = vrsqrt.pop %v3400
        %v3473 = vrsqrt.pop %v3401
        %v3474 = vrsqrt.pop %v3402
        %v3475 = vrsqrt.pop %v3403
        %v3476 = vrsqrt.pop %v3404
        %v3477 = vrsqrt.pop %v3405
        %v3478 = vrsqrt.pop %v3406
        %v3479 = vrsqrt.pop %v3407
        %v3480 = vrsqrt.pop %v3408
        %v3481 = vrsqrt.pop %v3409
        %v3482 = vrsqrt.pop %v3410
        %v3483 = vrsqrt.pop %v3411
        %v3484 = vrsqrt.pop %v3412
        %v3485 = vrsqrt.pop %v3413
        %v3486 = vrsqrt.pop %v3414
        %v3487 = vrsqrt.pop %v3415
        %v3488 = vrsqrt.pop %v3416
        %v3489 = vrsqrt.pop %v3417
        %v3490 = vrsqrt.pop %v3418
        %v3491 = vrsqrt.pop %v3419
        %v3492 = vrsqrt.pop %v3420
        %v3493 = vrsqrt.pop %v3421
        %v3494 = vrsqrt.pop %v3422
        %v3495 = vrsqrt.pop %v3423
        %v3496 = vrsqrt.pop %v3424
        %v3497 = vrsqrt.pop %v3425
        %v3498 = vrsqrt.pop %v3426
        %v3499 = vrsqrt.pop %v3427
        %v3500 = vrsqrt.pop %v3428
        %v3501 = vrsqrt.pop %v3429
        %v3502 = vrsqrt.pop %v3430
        %v3503 = vrsqrt.pop %v3431
        %v3504 = vrsqrt.pop %v3432
        %v3505 = vrsqrt.pop %v3433
        %v3506 = vrsqrt.pop %v3434
        %v3507 = vrsqrt.pop %v3435
        %v3508 = vrsqrt.pop %v3436
        %v3509 = vrsqrt.pop %v3437
        %v3510 = vrsqrt.pop %v3438
        %v3511 = vrsqrt.pop %v3439
        %v3512 = vrsqrt.pop %v3440
        %v3513 = vrsqrt.pop %v3441
        %v3514 = vrsqrt.pop %v3442
        %v3515 = vrsqrt.pop %v3443
        %v3516 = vrsqrt.pop %v3444
        %v3517 = vrsqrt.pop %v3445
        %v3518 = vrsqrt.pop %v3446
        %v3519 = vrsqrt.pop %v3447
        %v3520 = vrsqrt.pop %v3448
        %v3521 = vrsqrt.pop %v3449
        %v3522 = vrsqrt.pop %v3450
        %v3523 = vrsqrt.pop %v3451
        %v3524 = vrsqrt.pop %v3452
        %v3525 = vrsqrt.pop %v3453
        %v3526 = vrsqrt.pop %v3454
        %v3527 = vrsqrt.pop %v3455
        %v3528 = vrsqrt.pop %v3456
        %v3529 = vmul.f32 %v3456, %v3528
        %vm3530 = vcmp.eq.f32.partialorder %v3456, inf
        %v3531 = vsel %vm3530, %v3456, %v3529
        %vm3532 = vcmp.eq.f32.partialorder %v3456, 0.0
        %v3533 = vand.u32 %v3456, 2147483648
        %v3534 = vsel %vm3532, %v3533, %v3531
        %v3535 = vrsqrt.pop %v3457
        %v3536 = vmul.f32 %v3457, %v3535
        %vm3537 = vcmp.eq.f32.partialorder %v3457, inf
        %v3538 = vsel %vm3537, %v3457, %v3536
        %vm3539 = vcmp.eq.f32.partialorder %v3457, 0.0
        %v3540 = vand.u32 %v3457, 2147483648
        %v3541 = vsel %vm3539, %v3540, %v3538
        %v3542 = vrsqrt.pop %v3458
        %v3543 = vmul.f32 %v3458, %v3542
        %vm3544 = vcmp.eq.f32.partialorder %v3458, inf
        %v3545 = vsel %vm3544, %v3458, %v3543
        %vm3546 = vcmp.eq.f32.partialorder %v3458, 0.0
        %v3547 = vand.u32 %v3458, 2147483648
        %v3548 = vsel %vm3546, %v3547, %v3545
        %v3549 = vrsqrt.pop %v3459
        %v3550 = vmul.f32 %v3459, %v3549
        %vm3551 = vcmp.eq.f32.partialorder %v3459, inf
        %v3552 = vsel %vm3551, %v3459, %v3550
        %vm3553 = vcmp.eq.f32.partialorder %v3459, 0.0
        %v3554 = vand.u32 %v3459, 2147483648
        %v3555 = vsel %vm3553, %v3554, %v3552
        %v3556 = vrsqrt.pop %v3460
        %v3557 = vmul.f32 %v3460, %v3556
        %vm3558 = vcmp.eq.f32.partialorder %v3460, inf
        %v3559 = vsel %vm3558, %v3460, %v3557
        %vm3560 = vcmp.eq.f32.partialorder %v3460, 0.0
        %v3561 = vand.u32 %v3460, 2147483648
        %v3562 = vsel %vm3560, %v3561, %v3559
        %v3563 = vrsqrt.pop %v3461
        %v3564 = vmul.f32 %v3461, %v3563
        %vm3565 = vcmp.eq.f32.partialorder %v3461, inf
        %v3566 = vsel %vm3565, %v3461, %v3564
        %vm3567 = vcmp.eq.f32.partialorder %v3461, 0.0
        %v3568 = vand.u32 %v3461, 2147483648
        %v3569 = vsel %vm3567, %v3568, %v3566
        %v3570 = vrsqrt.pop %v3462
        %v3571 = vmul.f32 %v3462, %v3570
        %vm3572 = vcmp.eq.f32.partialorder %v3462, inf
        %v3573 = vsel %vm3572, %v3462, %v3571
        %vm3574 = vcmp.eq.f32.partialorder %v3462, 0.0
        %v3575 = vand.u32 %v3462, 2147483648
        %v3576 = vsel %vm3574, %v3575, %v3573
        %v3577 = vrsqrt.pop %v3463
        %v3578 = vmul.f32 %v3463, %v3577
        %vm3579 = vcmp.eq.f32.partialorder %v3463, inf
        %v3580 = vsel %vm3579, %v3463, %v3578
        %vm3581 = vcmp.eq.f32.partialorder %v3463, 0.0
        %v3582 = vand.u32 %v3463, 2147483648
        %v3583 = vsel %vm3581, %v3582, %v3580
        %v3584 = vrsqrt.pop %v3464
        %v3585 = vmul.f32 %v3464, %v3584
        %vm3586 = vcmp.eq.f32.partialorder %v3464, inf
        %v3587 = vsel %vm3586, %v3464, %v3585
        %vm3588 = vcmp.eq.f32.partialorder %v3464, 0.0
        %v3589 = vand.u32 %v3464, 2147483648
        %v3590 = vsel %vm3588, %v3589, %v3587
        %v3591 = vrsqrt.pop %v3465
        %v3592 = vmul.f32 %v3465, %v3591
        %vm3593 = vcmp.eq.f32.partialorder %v3465, inf
        %v3594 = vsel %vm3593, %v3465, %v3592
        %vm3595 = vcmp.eq.f32.partialorder %v3465, 0.0
        %v3596 = vand.u32 %v3465, 2147483648
        %v3597 = vsel %vm3595, %v3596, %v3594
        %v3598 = vrsqrt.pop %v3466
        %v3599 = vmul.f32 %v3466, %v3598
        %vm3600 = vcmp.eq.f32.partialorder %v3466, inf
        %v3601 = vsel %vm3600, %v3466, %v3599
        %vm3602 = vcmp.eq.f32.partialorder %v3466, 0.0
        %v3603 = vand.u32 %v3466, 2147483648
        %v3604 = vsel %vm3602, %v3603, %v3601
        %v3605 = vrsqrt.pop %v3467
        %v3606 = vmul.f32 %v3467, %v3605
        %vm3607 = vcmp.eq.f32.partialorder %v3467, inf
        %v3608 = vsel %vm3607, %v3467, %v3606
        %vm3609 = vcmp.eq.f32.partialorder %v3467, 0.0
        %v3610 = vand.u32 %v3467, 2147483648
        %v3611 = vsel %vm3609, %v3610, %v3608
        %v3612 = vrsqrt.pop %v3468
        %v3613 = vmul.f32 %v3468, %v3612
        %vm3614 = vcmp.eq.f32.partialorder %v3468, inf
        %v3615 = vsel %vm3614, %v3468, %v3613
        %vm3616 = vcmp.eq.f32.partialorder %v3468, 0.0
        %v3617 = vand.u32 %v3468, 2147483648
        %v3618 = vsel %vm3616, %v3617, %v3615
        %v3619 = vrsqrt.pop %v3469
        %v3620 = vmul.f32 %v3469, %v3619
        %vm3621 = vcmp.eq.f32.partialorder %v3469, inf
        %v3622 = vsel %vm3621, %v3469, %v3620
        %vm3623 = vcmp.eq.f32.partialorder %v3469, 0.0
        %v3624 = vand.u32 %v3469, 2147483648
        %v3625 = vsel %vm3623, %v3624, %v3622
        %v3626 = vrsqrt.pop %v3470
        %v3627 = vmul.f32 %v3470, %v3626
        %vm3628 = vcmp.eq.f32.partialorder %v3470, inf
        %v3629 = vsel %vm3628, %v3470, %v3627
        %vm3630 = vcmp.eq.f32.partialorder %v3470, 0.0
        %v3631 = vand.u32 %v3470, 2147483648
        %v3632 = vsel %vm3630, %v3631, %v3629
        %v3633 = vrsqrt.pop %v3471
        %v3634 = vmul.f32 %v3471, %v3633
        %vm3635 = vcmp.eq.f32.partialorder %v3471, inf
        %v3636 = vsel %vm3635, %v3471, %v3634
        %vm3637 = vcmp.eq.f32.partialorder %v3471, 0.0
        %v3638 = vand.u32 %v3471, 2147483648
        %v3639 = vsel %vm3637, %v3638, %v3636
        %v3640 = vrsqrt.pop %v3472
        %v3641 = vmul.f32 %v3472, %v3640
        %vm3642 = vcmp.eq.f32.partialorder %v3472, inf
        %v3643 = vsel %vm3642, %v3472, %v3641
        %vm3644 = vcmp.eq.f32.partialorder %v3472, 0.0
        %v3645 = vand.u32 %v3472, 2147483648
        %v3646 = vsel %vm3644, %v3645, %v3643
        %v3647 = vrsqrt.pop %v3473
        %v3648 = vmul.f32 %v3473, %v3647
        %vm3649 = vcmp.eq.f32.partialorder %v3473, inf
        %v3650 = vsel %vm3649, %v3473, %v3648
        %vm3651 = vcmp.eq.f32.partialorder %v3473, 0.0
        %v3652 = vand.u32 %v3473, 2147483648
        %v3653 = vsel %vm3651, %v3652, %v3650
        %v3654 = vrsqrt.pop %v3474
        %v3655 = vmul.f32 %v3474, %v3654
        %vm3656 = vcmp.eq.f32.partialorder %v3474, inf
        %v3657 = vsel %vm3656, %v3474, %v3655
        %vm3658 = vcmp.eq.f32.partialorder %v3474, 0.0
        %v3659 = vand.u32 %v3474, 2147483648
        %v3660 = vsel %vm3658, %v3659, %v3657
        %v3661 = vrsqrt.pop %v3475
        %v3662 = vmul.f32 %v3475, %v3661
        %vm3663 = vcmp.eq.f32.partialorder %v3475, inf
        %v3664 = vsel %vm3663, %v3475, %v3662
        %vm3665 = vcmp.eq.f32.partialorder %v3475, 0.0
        %v3666 = vand.u32 %v3475, 2147483648
        %v3667 = vsel %vm3665, %v3666, %v3664
        %v3668 = vrsqrt.pop %v3476
        %v3669 = vmul.f32 %v3476, %v3668
        %vm3670 = vcmp.eq.f32.partialorder %v3476, inf
        %v3671 = vsel %vm3670, %v3476, %v3669
        %vm3672 = vcmp.eq.f32.partialorder %v3476, 0.0
        %v3673 = vand.u32 %v3476, 2147483648
        %v3674 = vsel %vm3672, %v3673, %v3671
        %v3675 = vrsqrt.pop %v3477
        %v3676 = vmul.f32 %v3477, %v3675
        %vm3677 = vcmp.eq.f32.partialorder %v3477, inf
        %v3678 = vsel %vm3677, %v3477, %v3676
        %vm3679 = vcmp.eq.f32.partialorder %v3477, 0.0
        %v3680 = vand.u32 %v3477, 2147483648
        %v3681 = vsel %vm3679, %v3680, %v3678
        %v3682 = vrsqrt.pop %v3478
        %v3683 = vmul.f32 %v3478, %v3682
        %vm3684 = vcmp.eq.f32.partialorder %v3478, inf
        %v3685 = vsel %vm3684, %v3478, %v3683
        %vm3686 = vcmp.eq.f32.partialorder %v3478, 0.0
        %v3687 = vand.u32 %v3478, 2147483648
        %v3688 = vsel %vm3686, %v3687, %v3685
        %v3689 = vrsqrt.pop %v3479
        %v3690 = vmul.f32 %v3479, %v3689
        %vm3691 = vcmp.eq.f32.partialorder %v3479, inf
        %v3692 = vsel %vm3691, %v3479, %v3690
        %vm3693 = vcmp.eq.f32.partialorder %v3479, 0.0
        %v3694 = vand.u32 %v3479, 2147483648
        %v3695 = vsel %vm3693, %v3694, %v3692
        %v3696 = vrsqrt.pop %v3480
        %v3697 = vmul.f32 %v3480, %v3696
        %vm3698 = vcmp.eq.f32.partialorder %v3480, inf
        %v3699 = vsel %vm3698, %v3480, %v3697
        %vm3700 = vcmp.eq.f32.partialorder %v3480, 0.0
        %v3701 = vand.u32 %v3480, 2147483648
        %v3702 = vsel %vm3700, %v3701, %v3699
        %v3703 = vrsqrt.pop %v3481
        %v3704 = vmul.f32 %v3481, %v3703
        %vm3705 = vcmp.eq.f32.partialorder %v3481, inf
        %v3706 = vsel %vm3705, %v3481, %v3704
        %vm3707 = vcmp.eq.f32.partialorder %v3481, 0.0
        %v3708 = vand.u32 %v3481, 2147483648
        %v3709 = vsel %vm3707, %v3708, %v3706
        %v3710 = vrsqrt.pop %v3482
        %v3711 = vmul.f32 %v3482, %v3710
        %vm3712 = vcmp.eq.f32.partialorder %v3482, inf
        %v3713 = vsel %vm3712, %v3482, %v3711
        %vm3714 = vcmp.eq.f32.partialorder %v3482, 0.0
        %v3715 = vand.u32 %v3482, 2147483648
        %v3716 = vsel %vm3714, %v3715, %v3713
        %v3717 = vrsqrt.pop %v3483
        %v3718 = vmul.f32 %v3483, %v3717
        %vm3719 = vcmp.eq.f32.partialorder %v3483, inf
        %v3720 = vsel %vm3719, %v3483, %v3718
        %vm3721 = vcmp.eq.f32.partialorder %v3483, 0.0
        %v3722 = vand.u32 %v3483, 2147483648
        %v3723 = vsel %vm3721, %v3722, %v3720
        %v3724 = vrsqrt.pop %v3484
        %v3725 = vmul.f32 %v3484, %v3724
        %vm3726 = vcmp.eq.f32.partialorder %v3484, inf
        %v3727 = vsel %vm3726, %v3484, %v3725
        %vm3728 = vcmp.eq.f32.partialorder %v3484, 0.0
        %v3729 = vand.u32 %v3484, 2147483648
        %v3730 = vsel %vm3728, %v3729, %v3727
        %v3731 = vrsqrt.pop %v3485
        %v3732 = vmul.f32 %v3485, %v3731
        %vm3733 = vcmp.eq.f32.partialorder %v3485, inf
        %v3734 = vsel %vm3733, %v3485, %v3732
        %vm3735 = vcmp.eq.f32.partialorder %v3485, 0.0
        %v3736 = vand.u32 %v3485, 2147483648
        %v3737 = vsel %vm3735, %v3736, %v3734
        %v3738 = vrsqrt.pop %v3486
        %v3739 = vmul.f32 %v3486, %v3738
        %vm3740 = vcmp.eq.f32.partialorder %v3486, inf
        %v3741 = vsel %vm3740, %v3486, %v3739
        %vm3742 = vcmp.eq.f32.partialorder %v3486, 0.0
        %v3743 = vand.u32 %v3486, 2147483648
        %v3744 = vsel %vm3742, %v3743, %v3741
        %v3745 = vrsqrt.pop %v3487
        %v3746 = vmul.f32 %v3487, %v3745
        %vm3747 = vcmp.eq.f32.partialorder %v3487, inf
        %v3748 = vsel %vm3747, %v3487, %v3746
        %vm3749 = vcmp.eq.f32.partialorder %v3487, 0.0
        %v3750 = vand.u32 %v3487, 2147483648
        %v3751 = vsel %vm3749, %v3750, %v3748
        %v3752 = vrsqrt.pop %v3488
        %v3753 = vmul.f32 %v3488, %v3752
        %vm3754 = vcmp.eq.f32.partialorder %v3488, inf
        %v3755 = vsel %vm3754, %v3488, %v3753
        %vm3756 = vcmp.eq.f32.partialorder %v3488, 0.0
        %v3757 = vand.u32 %v3488, 2147483648
        %v3758 = vsel %vm3756, %v3757, %v3755
        %v3759 = vrsqrt.pop %v3489
        %v3760 = vmul.f32 %v3489, %v3759
        %vm3761 = vcmp.eq.f32.partialorder %v3489, inf
        %v3762 = vsel %vm3761, %v3489, %v3760
        %vm3763 = vcmp.eq.f32.partialorder %v3489, 0.0
        %v3764 = vand.u32 %v3489, 2147483648
        %v3765 = vsel %vm3763, %v3764, %v3762
        %v3766 = vrsqrt.pop %v3490
        %v3767 = vmul.f32 %v3490, %v3766
        %vm3768 = vcmp.eq.f32.partialorder %v3490, inf
        %v3769 = vsel %vm3768, %v3490, %v3767
        %vm3770 = vcmp.eq.f32.partialorder %v3490, 0.0
        %v3771 = vand.u32 %v3490, 2147483648
        %v3772 = vsel %vm3770, %v3771, %v3769
        %v3773 = vrsqrt.pop %v3491
        %v3774 = vmul.f32 %v3491, %v3773
        %vm3775 = vcmp.eq.f32.partialorder %v3491, inf
        %v3776 = vsel %vm3775, %v3491, %v3774
        %vm3777 = vcmp.eq.f32.partialorder %v3491, 0.0
        %v3778 = vand.u32 %v3491, 2147483648
        %v3779 = vsel %vm3777, %v3778, %v3776
        %v3780 = vrsqrt.pop %v3492
        %v3781 = vmul.f32 %v3492, %v3780
        %vm3782 = vcmp.eq.f32.partialorder %v3492, inf
        %v3783 = vsel %vm3782, %v3492, %v3781
        %vm3784 = vcmp.eq.f32.partialorder %v3492, 0.0
        %v3785 = vand.u32 %v3492, 2147483648
        %v3786 = vsel %vm3784, %v3785, %v3783
        %v3787 = vrsqrt.pop %v3493
        %v3788 = vmul.f32 %v3493, %v3787
        %vm3789 = vcmp.eq.f32.partialorder %v3493, inf
        %v3790 = vsel %vm3789, %v3493, %v3788
        %vm3791 = vcmp.eq.f32.partialorder %v3493, 0.0
        %v3792 = vand.u32 %v3493, 2147483648
        %v3793 = vsel %vm3791, %v3792, %v3790
        %v3794 = vrsqrt.pop %v3494
        %v3795 = vmul.f32 %v3494, %v3794
        %vm3796 = vcmp.eq.f32.partialorder %v3494, inf
        %v3797 = vsel %vm3796, %v3494, %v3795
        %vm3798 = vcmp.eq.f32.partialorder %v3494, 0.0
        %v3799 = vand.u32 %v3494, 2147483648
        %v3800 = vsel %vm3798, %v3799, %v3797
        %v3801 = vrsqrt.pop %v3495
        %v3802 = vmul.f32 %v3495, %v3801
        %vm3803 = vcmp.eq.f32.partialorder %v3495, inf
        %v3804 = vsel %vm3803, %v3495, %v3802
        %vm3805 = vcmp.eq.f32.partialorder %v3495, 0.0
        %v3806 = vand.u32 %v3495, 2147483648
        %v3807 = vsel %vm3805, %v3806, %v3804
        %v3808 = vrsqrt.pop %v3496
        %v3809 = vmul.f32 %v3496, %v3808
        %vm3810 = vcmp.eq.f32.partialorder %v3496, inf
        %v3811 = vsel %vm3810, %v3496, %v3809
        %vm3812 = vcmp.eq.f32.partialorder %v3496, 0.0
        %v3813 = vand.u32 %v3496, 2147483648
        %v3814 = vsel %vm3812, %v3813, %v3811
        %v3815 = vrsqrt.pop %v3497
        %v3816 = vmul.f32 %v3497, %v3815
        %vm3817 = vcmp.eq.f32.partialorder %v3497, inf
        %v3818 = vsel %vm3817, %v3497, %v3816
        %vm3819 = vcmp.eq.f32.partialorder %v3497, 0.0
        %v3820 = vand.u32 %v3497, 2147483648
        %v3821 = vsel %vm3819, %v3820, %v3818
        %v3822 = vrsqrt.pop %v3498
        %v3823 = vmul.f32 %v3498, %v3822
        %vm3824 = vcmp.eq.f32.partialorder %v3498, inf
        %v3825 = vsel %vm3824, %v3498, %v3823
        %vm3826 = vcmp.eq.f32.partialorder %v3498, 0.0
        %v3827 = vand.u32 %v3498, 2147483648
        %v3828 = vsel %vm3826, %v3827, %v3825
        %v3829 = vrsqrt.pop %v3499
        %v3830 = vmul.f32 %v3499, %v3829
        %vm3831 = vcmp.eq.f32.partialorder %v3499, inf
        %v3832 = vsel %vm3831, %v3499, %v3830
        %vm3833 = vcmp.eq.f32.partialorder %v3499, 0.0
        %v3834 = vand.u32 %v3499, 2147483648
        %v3835 = vsel %vm3833, %v3834, %v3832
        %v3836 = vrsqrt.pop %v3500
        %v3837 = vmul.f32 %v3500, %v3836
        %vm3838 = vcmp.eq.f32.partialorder %v3500, inf
        %v3839 = vsel %vm3838, %v3500, %v3837
        %vm3840 = vcmp.eq.f32.partialorder %v3500, 0.0
        %v3841 = vand.u32 %v3500, 2147483648
        %v3842 = vsel %vm3840, %v3841, %v3839
        %v3843 = vrsqrt.pop %v3501
        %v3844 = vmul.f32 %v3501, %v3843
        %vm3845 = vcmp.eq.f32.partialorder %v3501, inf
        %v3846 = vsel %vm3845, %v3501, %v3844
        %vm3847 = vcmp.eq.f32.partialorder %v3501, 0.0
        %v3848 = vand.u32 %v3501, 2147483648
        %v3849 = vsel %vm3847, %v3848, %v3846
        %v3850 = vrsqrt.pop %v3502
        %v3851 = vmul.f32 %v3502, %v3850
        %vm3852 = vcmp.eq.f32.partialorder %v3502, inf
        %v3853 = vsel %vm3852, %v3502, %v3851
        %vm3854 = vcmp.eq.f32.partialorder %v3502, 0.0
        %v3855 = vand.u32 %v3502, 2147483648
        %v3856 = vsel %vm3854, %v3855, %v3853
        %v3857 = vrsqrt.pop %v3503
        %v3858 = vmul.f32 %v3503, %v3857
        %vm3859 = vcmp.eq.f32.partialorder %v3503, inf
        %v3860 = vsel %vm3859, %v3503, %v3858
        %vm3861 = vcmp.eq.f32.partialorder %v3503, 0.0
        %v3862 = vand.u32 %v3503, 2147483648
        %v3863 = vsel %vm3861, %v3862, %v3860
        %v3864 = vrsqrt.pop %v3504
        %v3865 = vmul.f32 %v3504, %v3864
        %vm3866 = vcmp.eq.f32.partialorder %v3504, inf
        %v3867 = vsel %vm3866, %v3504, %v3865
        %vm3868 = vcmp.eq.f32.partialorder %v3504, 0.0
        %v3869 = vand.u32 %v3504, 2147483648
        %v3870 = vsel %vm3868, %v3869, %v3867
        %v3871 = vrsqrt.pop %v3505
        %v3872 = vmul.f32 %v3505, %v3871
        %vm3873 = vcmp.eq.f32.partialorder %v3505, inf
        %v3874 = vsel %vm3873, %v3505, %v3872
        %vm3875 = vcmp.eq.f32.partialorder %v3505, 0.0
        %v3876 = vand.u32 %v3505, 2147483648
        %v3877 = vsel %vm3875, %v3876, %v3874
        %v3878 = vrsqrt.pop %v3506
        %v3879 = vmul.f32 %v3506, %v3878
        %vm3880 = vcmp.eq.f32.partialorder %v3506, inf
        %v3881 = vsel %vm3880, %v3506, %v3879
        %vm3882 = vcmp.eq.f32.partialorder %v3506, 0.0
        %v3883 = vand.u32 %v3506, 2147483648
        %v3884 = vsel %vm3882, %v3883, %v3881
        %v3885 = vrsqrt.pop %v3507
        %v3886 = vmul.f32 %v3507, %v3885
        %vm3887 = vcmp.eq.f32.partialorder %v3507, inf
        %v3888 = vsel %vm3887, %v3507, %v3886
        %vm3889 = vcmp.eq.f32.partialorder %v3507, 0.0
        %v3890 = vand.u32 %v3507, 2147483648
        %v3891 = vsel %vm3889, %v3890, %v3888
        %v3892 = vrsqrt.pop %v3508
        %v3893 = vmul.f32 %v3508, %v3892
        %vm3894 = vcmp.eq.f32.partialorder %v3508, inf
        %v3895 = vsel %vm3894, %v3508, %v3893
        %vm3896 = vcmp.eq.f32.partialorder %v3508, 0.0
        %v3897 = vand.u32 %v3508, 2147483648
        %v3898 = vsel %vm3896, %v3897, %v3895
        %v3899 = vrsqrt.pop %v3509
        %v3900 = vmul.f32 %v3509, %v3899
        %vm3901 = vcmp.eq.f32.partialorder %v3509, inf
        %v3902 = vsel %vm3901, %v3509, %v3900
        %vm3903 = vcmp.eq.f32.partialorder %v3509, 0.0
        %v3904 = vand.u32 %v3509, 2147483648
        %v3905 = vsel %vm3903, %v3904, %v3902
        %v3906 = vrsqrt.pop %v3510
        %v3907 = vmul.f32 %v3510, %v3906
        %vm3908 = vcmp.eq.f32.partialorder %v3510, inf
        %v3909 = vsel %vm3908, %v3510, %v3907
        %vm3910 = vcmp.eq.f32.partialorder %v3510, 0.0
        %v3911 = vand.u32 %v3510, 2147483648
        %v3912 = vsel %vm3910, %v3911, %v3909
        %v3913 = vrsqrt.pop %v3511
        %v3914 = vmul.f32 %v3511, %v3913
        %vm3915 = vcmp.eq.f32.partialorder %v3511, inf
        %v3916 = vsel %vm3915, %v3511, %v3914
        %vm3917 = vcmp.eq.f32.partialorder %v3511, 0.0
        %v3918 = vand.u32 %v3511, 2147483648
        %v3919 = vsel %vm3917, %v3918, %v3916
        %v3920 = vrsqrt.pop %v3512
        %v3921 = vmul.f32 %v3512, %v3920
        %vm3922 = vcmp.eq.f32.partialorder %v3512, inf
        %v3923 = vsel %vm3922, %v3512, %v3921
        %vm3924 = vcmp.eq.f32.partialorder %v3512, 0.0
        %v3925 = vand.u32 %v3512, 2147483648
        %v3926 = vsel %vm3924, %v3925, %v3923
        %v3927 = vrsqrt.pop %v3513
        %v3928 = vmul.f32 %v3513, %v3927
        %vm3929 = vcmp.eq.f32.partialorder %v3513, inf
        %v3930 = vsel %vm3929, %v3513, %v3928
        %vm3931 = vcmp.eq.f32.partialorder %v3513, 0.0
        %v3932 = vand.u32 %v3513, 2147483648
        %v3933 = vsel %vm3931, %v3932, %v3930
        %v3934 = vrsqrt.pop %v3514
        %v3935 = vmul.f32 %v3514, %v3934
        %vm3936 = vcmp.eq.f32.partialorder %v3514, inf
        %v3937 = vsel %vm3936, %v3514, %v3935
        %vm3938 = vcmp.eq.f32.partialorder %v3514, 0.0
        %v3939 = vand.u32 %v3514, 2147483648
        %v3940 = vsel %vm3938, %v3939, %v3937
        %v3941 = vrsqrt.pop %v3515
        %v3942 = vmul.f32 %v3515, %v3941
        %vm3943 = vcmp.eq.f32.partialorder %v3515, inf
        %v3944 = vsel %vm3943, %v3515, %v3942
        %vm3945 = vcmp.eq.f32.partialorder %v3515, 0.0
        %v3946 = vand.u32 %v3515, 2147483648
        %v3947 = vsel %vm3945, %v3946, %v3944
        %v3948 = vrsqrt.pop %v3516
        %v3949 = vmul.f32 %v3516, %v3948
        %vm3950 = vcmp.eq.f32.partialorder %v3516, inf
        %v3951 = vsel %vm3950, %v3516, %v3949
        %vm3952 = vcmp.eq.f32.partialorder %v3516, 0.0
        %v3953 = vand.u32 %v3516, 2147483648
        %v3954 = vsel %vm3952, %v3953, %v3951
        %v3955 = vrsqrt.pop %v3517
        %v3956 = vmul.f32 %v3517, %v3955
        %vm3957 = vcmp.eq.f32.partialorder %v3517, inf
        %v3958 = vsel %vm3957, %v3517, %v3956
        %vm3959 = vcmp.eq.f32.partialorder %v3517, 0.0
        %v3960 = vand.u32 %v3517, 2147483648
        %v3961 = vsel %vm3959, %v3960, %v3958
        %v3962 = vrsqrt.pop %v3518
        %v3963 = vmul.f32 %v3518, %v3962
        %vm3964 = vcmp.eq.f32.partialorder %v3518, inf
        %v3965 = vsel %vm3964, %v3518, %v3963
        %vm3966 = vcmp.eq.f32.partialorder %v3518, 0.0
        %v3967 = vand.u32 %v3518, 2147483648
        %v3968 = vsel %vm3966, %v3967, %v3965
        %v3969 = vrsqrt.pop %v3519
        %v3970 = vmul.f32 %v3519, %v3969
        %vm3971 = vcmp.eq.f32.partialorder %v3519, inf
        %v3972 = vsel %vm3971, %v3519, %v3970
        %vm3973 = vcmp.eq.f32.partialorder %v3519, 0.0
        %v3974 = vand.u32 %v3519, 2147483648
        %v3975 = vsel %vm3973, %v3974, %v3972
        %v3976 = vrsqrt.pop %v3520
        %v3977 = vmul.f32 %v3520, %v3976
        %vm3978 = vcmp.eq.f32.partialorder %v3520, inf
        %v3979 = vsel %vm3978, %v3520, %v3977
        %vm3980 = vcmp.eq.f32.partialorder %v3520, 0.0
        %v3981 = vand.u32 %v3520, 2147483648
        %v3982 = vsel %vm3980, %v3981, %v3979
        %v3983 = vrsqrt.pop %v3521
        %v3984 = vmul.f32 %v3521, %v3983
        %vm3985 = vcmp.eq.f32.partialorder %v3521, inf
        %v3986 = vsel %vm3985, %v3521, %v3984
        %vm3987 = vcmp.eq.f32.partialorder %v3521, 0.0
        %v3988 = vand.u32 %v3521, 2147483648
        %v3989 = vsel %vm3987, %v3988, %v3986
        %v3990 = vrsqrt.pop %v3522
        %v3991 = vmul.f32 %v3522, %v3990
        %vm3992 = vcmp.eq.f32.partialorder %v3522, inf
        %v3993 = vsel %vm3992, %v3522, %v3991
        %vm3994 = vcmp.eq.f32.partialorder %v3522, 0.0
        %v3995 = vand.u32 %v3522, 2147483648
        %v3996 = vsel %vm3994, %v3995, %v3993
        %v3997 = vrsqrt.pop %v3523
        %v3998 = vmul.f32 %v3523, %v3997
        %vm3999 = vcmp.eq.f32.partialorder %v3523, inf
        %v4000 = vsel %vm3999, %v3523, %v3998
        %vm4001 = vcmp.eq.f32.partialorder %v3523, 0.0
        %v4002 = vand.u32 %v3523, 2147483648
        %v4003 = vsel %vm4001, %v4002, %v4000
        %v4004 = vrsqrt.pop %v3524
        %v4005 = vmul.f32 %v3524, %v4004
        %vm4006 = vcmp.eq.f32.partialorder %v3524, inf
        %v4007 = vsel %vm4006, %v3524, %v4005
        %vm4008 = vcmp.eq.f32.partialorder %v3524, 0.0
        %v4009 = vand.u32 %v3524, 2147483648
        %v4010 = vsel %vm4008, %v4009, %v4007
        %v4011 = vrsqrt.pop %v3525
        %v4012 = vmul.f32 %v3525, %v4011
        %vm4013 = vcmp.eq.f32.partialorder %v3525, inf
        %v4014 = vsel %vm4013, %v3525, %v4012
        %vm4015 = vcmp.eq.f32.partialorder %v3525, 0.0
        %v4016 = vand.u32 %v3525, 2147483648
        %v4017 = vsel %vm4015, %v4016, %v4014
        %v4018 = vrsqrt.pop %v3526
        %v4019 = vmul.f32 %v3526, %v4018
        %vm4020 = vcmp.eq.f32.partialorder %v3526, inf
        %v4021 = vsel %vm4020, %v3526, %v4019
        %vm4022 = vcmp.eq.f32.partialorder %v3526, 0.0
        %v4023 = vand.u32 %v3526, 2147483648
        %v4024 = vsel %vm4022, %v4023, %v4021
        %v4025 = vrsqrt.pop %v3527
        %v4026 = vmul.f32 %v3527, %v4025
        %vm4027 = vcmp.eq.f32.partialorder %v3527, inf
        %v4028 = vsel %vm4027, %v3527, %v4026
        %vm4029 = vcmp.eq.f32.partialorder %v3527, 0.0
        %v4030 = vand.u32 %v3527, 2147483648
        %v4031 = vsel %vm4029, %v4030, %v4028
        %v4032 = vmul.f32 %v3456, %v3534
        %v4033 = vmul.f32 %v3457, %v3541
        %v4034 = vmul.f32 %v3458, %v3548
        %v4035 = vmul.f32 %v3459, %v3555
        %v4036 = vmul.f32 %v3460, %v3562
        %v4037 = vmul.f32 %v3461, %v3569
        %v4038 = vmul.f32 %v3462, %v3576
        %v4039 = vmul.f32 %v3463, %v3583
        %v4040 = vmul.f32 %v3464, %v3590
        %v4041 = vmul.f32 %v3465, %v3597
        %v4042 = vmul.f32 %v3466, %v3604
        %v4043 = vmul.f32 %v3467, %v3611
        %v4044 = vmul.f32 %v3468, %v3618
        %v4045 = vmul.f32 %v3469, %v3625
        %v4046 = vmul.f32 %v3470, %v3632
        %v4047 = vmul.f32 %v3471, %v3639
        %v4048 = vmul.f32 %v3472, %v3646
        %v4049 = vmul.f32 %v3473, %v3653
        %v4050 = vmul.f32 %v3474, %v3660
        %v4051 = vmul.f32 %v3475, %v3667
        %v4052 = vmul.f32 %v3476, %v3674
        %v4053 = vmul.f32 %v3477, %v3681
        %v4054 = vmul.f32 %v3478, %v3688
        %v4055 = vmul.f32 %v3479, %v3695
        %v4056 = vmul.f32 %v3480, %v3702
        %v4057 = vmul.f32 %v3481, %v3709
        %v4058 = vmul.f32 %v3482, %v3716
        %v4059 = vmul.f32 %v3483, %v3723
        %v4060 = vmul.f32 %v3484, %v3730
        %v4061 = vmul.f32 %v3485, %v3737
        %v4062 = vmul.f32 %v3486, %v3744
        %v4063 = vmul.f32 %v3487, %v3751
        %v4064 = vmul.f32 %v3488, %v3758
        %v4065 = vmul.f32 %v3489, %v3765
        %v4066 = vmul.f32 %v3490, %v3772
        %v4067 = vmul.f32 %v3491, %v3779
        %v4068 = vmul.f32 %v3492, %v3786
        %v4069 = vmul.f32 %v3493, %v3793
        %v4070 = vmul.f32 %v3494, %v3800
        %v4071 = vmul.f32 %v3495, %v3807
        %v4072 = vmul.f32 %v3496, %v3814
        %v4073 = vmul.f32 %v3497, %v3821
        %v4074 = vmul.f32 %v3498, %v3828
        %v4075 = vmul.f32 %v3499, %v3835
        %v4076 = vmul.f32 %v3500, %v3842
        %v4077 = vmul.f32 %v3501, %v3849
        %v4078 = vmul.f32 %v3502, %v3856
        %v4079 = vmul.f32 %v3503, %v3863
        %v4080 = vmul.f32 %v3504, %v3870
        %v4081 = vmul.f32 %v3505, %v3877
        %v4082 = vmul.f32 %v3506, %v3884
        %v4083 = vmul.f32 %v3507, %v3891
        %v4084 = vmul.f32 %v3508, %v3898
        %v4085 = vmul.f32 %v3509, %v3905
        %v4086 = vmul.f32 %v3510, %v3912
        %v4087 = vmul.f32 %v3511, %v3919
        %v4088 = vmul.f32 %v3512, %v3926
        %v4089 = vmul.f32 %v3513, %v3933
        %v4090 = vmul.f32 %v3514, %v3940
        %v4091 = vmul.f32 %v3515, %v3947
        %v4092 = vmul.f32 %v3516, %v3954
        %v4093 = vmul.f32 %v3517, %v3961
        %v4094 = vmul.f32 %v3518, %v3968
        %v4095 = vmul.f32 %v3519, %v3975
        %v4096 = vmul.f32 %v3520, %v3982
        %v4097 = vmul.f32 %v3521, %v3989
        %v4098 = vmul.f32 %v3522, %v3996
        %v4099 = vmul.f32 %v3523, %v4003
        %v4100 = vmul.f32 %v3524, %v4010
        %v4101 = vmul.f32 %v3525, %v4017
        %v4102 = vmul.f32 %v3526, %v4024
        %v4103 = vmul.f32 %v3527, %v4031
        %v4104 = vmul.f32 %v2727, %v4032
        %v4105 = vmul.f32 %v2728, %v4033
        %v4106 = vmul.f32 %v2729, %v4034
        %v4107 = vmul.f32 %v2730, %v4035
        %v4108 = vmul.f32 %v2731, %v4036
        %v4109 = vmul.f32 %v2732, %v4037
        %v4110 = vmul.f32 %v2733, %v4038
        %v4111 = vmul.f32 %v2734, %v4039
        %v4112 = vmul.f32 %v2735, %v4040
        %v4113 = vmul.f32 %v2736, %v4041
        %v4114 = vmul.f32 %v2737, %v4042
        %v4115 = vmul.f32 %v2738, %v4043
        %v4116 = vmul.f32 %v2739, %v4044
        %v4117 = vmul.f32 %v2740, %v4045
        %v4118 = vmul.f32 %v2741, %v4046
        %v4119 = vmul.f32 %v2742, %v4047
        %v4120 = vmul.f32 %v2743, %v4048
        %v4121 = vmul.f32 %v2744, %v4049
        %v4122 = vmul.f32 %v2745, %v4050
        %v4123 = vmul.f32 %v2746, %v4051
        %v4124 = vmul.f32 %v2747, %v4052
        %v4125 = vmul.f32 %v2748, %v4053
        %v4126 = vmul.f32 %v2749, %v4054
        %v4127 = vmul.f32 %v2750, %v4055
        %v4128 = vmul.f32 %v2751, %v4056
        %v4129 = vmul.f32 %v2752, %v4057
        %v4130 = vmul.f32 %v2753, %v4058
        %v4131 = vmul.f32 %v2754, %v4059
        %v4132 = vmul.f32 %v2755, %v4060
        %v4133 = vmul.f32 %v2756, %v4061
        %v4134 = vmul.f32 %v2757, %v4062
        %v4135 = vmul.f32 %v2758, %v4063
        %v4136 = vmul.f32 %v2759, %v4064
        %v4137 = vmul.f32 %v2760, %v4065
        %v4138 = vmul.f32 %v2761, %v4066
        %v4139 = vmul.f32 %v2762, %v4067
        %v4140 = vmul.f32 %v2763, %v4068
        %v4141 = vmul.f32 %v2764, %v4069
        %v4142 = vmul.f32 %v2765, %v4070
        %v4143 = vmul.f32 %v2766, %v4071
        %v4144 = vmul.f32 %v2767, %v4072
        %v4145 = vmul.f32 %v2768, %v4073
        %v4146 = vmul.f32 %v2769, %v4074
        %v4147 = vmul.f32 %v2770, %v4075
        %v4148 = vmul.f32 %v2771, %v4076
        %v4149 = vmul.f32 %v2772, %v4077
        %v4150 = vmul.f32 %v2773, %v4078
        %v4151 = vmul.f32 %v2774, %v4079
        %v4152 = vmul.f32 %v2775, %v4080
        %v4153 = vmul.f32 %v2776, %v4081
        %v4154 = vmul.f32 %v2777, %v4082
        %v4155 = vmul.f32 %v2778, %v4083
        %v4156 = vmul.f32 %v2779, %v4084
        %v4157 = vmul.f32 %v2780, %v4085
        %v4158 = vmul.f32 %v2781, %v4086
        %v4159 = vmul.f32 %v2782, %v4087
        %v4160 = vmul.f32 %v2783, %v4088
        %v4161 = vmul.f32 %v2784, %v4089
        %v4162 = vmul.f32 %v2785, %v4090
        %v4163 = vmul.f32 %v2786, %v4091
        %v4164 = vmul.f32 %v2787, %v4092
        %v4165 = vmul.f32 %v2788, %v4093
        %v4166 = vmul.f32 %v2789, %v4094
        %v4167 = vmul.f32 %v2790, %v4095
        %v4168 = vmul.f32 %v2791, %v4096
        %v4169 = vmul.f32 %v2792, %v4097
        %v4170 = vmul.f32 %v2793, %v4098
        %v4171 = vmul.f32 %v2794, %v4099
        %v4172 = vmul.f32 %v2795, %v4100
        %v4173 = vmul.f32 %v2796, %v4101
        %v4174 = vmul.f32 %v2797, %v4102
        %v4175 = vmul.f32 %v2798, %v4103
        %v4176 = vpack.c.bf16 %v4106, %v4104
        %v4177 = vpack.c.bf16 %v4107, %v4105
        %v4178 = vpack.c.bf16 %v4110, %v4108
        %v4179 = vpack.c.bf16 %v4111, %v4109
        %v4180 = vpack.c.bf16 %v4114, %v4112
        %v4181 = vpack.c.bf16 %v4115, %v4113
        %v4182 = vpack.c.bf16 %v4118, %v4116
        %v4183 = vpack.c.bf16 %v4119, %v4117
        %v4184 = vpack.c.bf16 %v4122, %v4120
        %v4185 = vpack.c.bf16 %v4123, %v4121
        %v4186 = vpack.c.bf16 %v4126, %v4124
        %v4187 = vpack.c.bf16 %v4127, %v4125
        %v4188 = vpack.c.bf16 %v4130, %v4128
        %v4189 = vpack.c.bf16 %v4131, %v4129
        %v4190 = vpack.c.bf16 %v4134, %v4132
        %v4191 = vpack.c.bf16 %v4135, %v4133
        %v4192 = vpack.c.bf16 %v4138, %v4136
        %v4193 = vpack.c.bf16 %v4139, %v4137
        %v4194 = vpack.c.bf16 %v4142, %v4140
        %v4195 = vpack.c.bf16 %v4143, %v4141
        %v4196 = vpack.c.bf16 %v4146, %v4144
        %v4197 = vpack.c.bf16 %v4147, %v4145
        %v4198 = vpack.c.bf16 %v4150, %v4148
        %v4199 = vpack.c.bf16 %v4151, %v4149
        %v4200 = vpack.c.bf16 %v4154, %v4152
        %v4201 = vpack.c.bf16 %v4155, %v4153
        %v4202 = vpack.c.bf16 %v4158, %v4156
        %v4203 = vpack.c.bf16 %v4159, %v4157
        %v4204 = vpack.c.bf16 %v4162, %v4160
        %v4205 = vpack.c.bf16 %v4163, %v4161
        %v4206 = vpack.c.bf16 %v4166, %v4164
        %v4207 = vpack.c.bf16 %v4167, %v4165
        %v4208 = vpack.c.bf16 %v4170, %v4168
        %v4209 = vpack.c.bf16 %v4171, %v4169
        %v4210 = vpack.c.bf16 %v4174, %v4172
        %v4211 = vpack.c.bf16 %v4175, %v4173
        %v4212 = vld [vmem:[%s3] sm:$0xff]
        %v4213 = vld [vmem:[%s3 + $0x8] sm:$0xf]
        %v4214 = vld [vmem:[%s3 + $0xc] sm:$0xff]
        %v4215 = vld [vmem:[%s3 + $0x14] sm:$0xf]
        %v4216 = vld [vmem:[%s3 + $0x18] sm:$0xff]
        %v4217 = vld [vmem:[%s3 + $0x20] sm:$0xf]
        %v4218 = vld [vmem:[%s3 + $0x24] sm:$0xff]
        %v4219 = vld [vmem:[%s3 + $0x2c] sm:$0xf]
        %v4220 = vld [vmem:[%s3 + $0x30] sm:$0xff]
        %v4221 = vld [vmem:[%s3 + $0x38] sm:$0xf]
        %v4222 = vld [vmem:[%s3 + $0x3c] sm:$0xff]
        %v4223 = vld [vmem:[%s3 + $0x44] sm:$0xf]
        %v4224 = vld [vmem:[%s3 + $0x48] sm:$0xff]
        %v4225 = vld [vmem:[%s3 + $0x50] sm:$0xf]
        %v4226 = vld [vmem:[%s3 + $0x54] sm:$0xff]
        %v4227 = vld [vmem:[%s3 + $0x5c] sm:$0xf]
        %v4228 = vld [vmem:[%s3 + $0x60] sm:$0xff]
        %v4229 = vld [vmem:[%s3 + $0x68] sm:$0xf]
        %v4230 = vld [vmem:[%s3 + $0x6c] sm:$0xff]
        %v4231 = vld [vmem:[%s3 + $0x74] sm:$0xf]
        %v4232 = vld [vmem:[%s3 + $0x78] sm:$0xff]
        %v4233 = vld [vmem:[%s3 + $0x80] sm:$0xf]
        %v4234 = vld [vmem:[%s3 + $0x84] sm:$0xff]
        %v4235 = vld [vmem:[%s3 + $0x8c] sm:$0xf]
        %v4236 = vld [vmem:[%s3 + $0x90] sm:$0xff]
        %v4237 = vld [vmem:[%s3 + $0x98] sm:$0xf]
        %v4238 = vld [vmem:[%s3 + $0x9c] sm:$0xff]
        %v4239 = vld [vmem:[%s3 + $0xa4] sm:$0xf]
        %v4240 = vld [vmem:[%s3 + $0xa8] sm:$0xff]
        %v4241 = vld [vmem:[%s3 + $0xb0] sm:$0xf]
        %v4242 = vld [vmem:[%s3 + $0xb4] sm:$0xff]
        %v4243 = vld [vmem:[%s3 + $0xbc] sm:$0xf]
        %v4244 = vld [vmem:[%s3 + $0xc0] sm:$0xff]
        %v4245 = vld [vmem:[%s3 + $0xc8] sm:$0xf]
        %v4246 = vld [vmem:[%s3 + $0xcc] sm:$0xff]
        %v4247 = vld [vmem:[%s3 + $0xd4] sm:$0xf]
        %v4248 = vld [vmem:[%s3 + $0xd8] sm:$0xff]
        %v4249 = vld [vmem:[%s3 + $0xe0] sm:$0xf]
        %v4250 = vld [vmem:[%s3 + $0xe4] sm:$0xff]
        %v4251 = vld [vmem:[%s3 + $0xec] sm:$0xf]
        %v4292 = vunpack.c.l.b16 %v4212
        %v4293 = vunpack.c.h.b16 %v4212
        %v4294 = vunpack.c.l.b16 %v4213
        %v4295 = vunpack.c.l.b16 %v4214
        %v4296 = vunpack.c.h.b16 %v4214
        %v4297 = vunpack.c.l.b16 %v4215
        %v4298 = vunpack.c.l.b16 %v4216
        %v4299 = vunpack.c.h.b16 %v4216
        %v4300 = vunpack.c.l.b16 %v4217
        %v4301 = vunpack.c.l.b16 %v4218
        %v4302 = vunpack.c.h.b16 %v4218
        %v4303 = vunpack.c.l.b16 %v4219
        %v4304 = vunpack.c.l.b16 %v4220
        %v4305 = vunpack.c.h.b16 %v4220
        %v4306 = vunpack.c.l.b16 %v4221
        %v4307 = vunpack.c.l.b16 %v4222
        %v4308 = vunpack.c.h.b16 %v4222
        %v4309 = vunpack.c.l.b16 %v4223
        %v4310 = vunpack.c.l.b16 %v4224
        %v4311 = vunpack.c.h.b16 %v4224
        %v4312 = vunpack.c.l.b16 %v4225
        %v4313 = vunpack.c.l.b16 %v4226
        %v4314 = vunpack.c.h.b16 %v4226
        %v4315 = vunpack.c.l.b16 %v4227
        %v4316 = vunpack.c.l.b16 %v4228
        %v4317 = vunpack.c.h.b16 %v4228
        %v4318 = vunpack.c.l.b16 %v4229
        %v4319 = vunpack.c.l.b16 %v4230
        %v4320 = vunpack.c.h.b16 %v4230
        %v4321 = vunpack.c.l.b16 %v4231
        %v4322 = vunpack.c.l.b16 %v4232
        %v4323 = vunpack.c.h.b16 %v4232
        %v4324 = vunpack.c.l.b16 %v4233
        %v4325 = vunpack.c.l.b16 %v4234
        %v4326 = vunpack.c.h.b16 %v4234
        %v4327 = vunpack.c.l.b16 %v4235
        %v4328 = vunpack.c.l.b16 %v4236
        %v4329 = vunpack.c.h.b16 %v4236
        %v4330 = vunpack.c.l.b16 %v4237
        %v4331 = vunpack.c.l.b16 %v4238
        %v4332 = vunpack.c.h.b16 %v4238
        %v4333 = vunpack.c.l.b16 %v4239
        %v4334 = vunpack.c.l.b16 %v4240
        %v4335 = vunpack.c.h.b16 %v4240
        %v4336 = vunpack.c.l.b16 %v4241
        %v4337 = vunpack.c.l.b16 %v4242
        %v4338 = vunpack.c.h.b16 %v4242
        %v4339 = vunpack.c.l.b16 %v4243
        %v4340 = vunpack.c.l.b16 %v4244
        %v4341 = vunpack.c.h.b16 %v4244
        %v4342 = vunpack.c.l.b16 %v4245
        %v4343 = vunpack.c.l.b16 %v4246
        %v4344 = vunpack.c.h.b16 %v4246
        %v4345 = vunpack.c.l.b16 %v4247
        %v4346 = vunpack.c.l.b16 %v4248
        %v4347 = vunpack.c.h.b16 %v4248
        %v4348 = vunpack.c.l.b16 %v4249
        %v4349 = vunpack.c.l.b16 %v4250
        %v4350 = vunpack.c.h.b16 %v4250
        %v4351 = vunpack.c.l.b16 %v4251
        %v4352 = vpack.c.b16 %v4295, %v4292
        %v4353 = vpack.c.b16 %v4296, %v4293
        %v4354 = vpack.c.b16 %v4297, %v4294
        %v4355 = vpack.c.b16 %v4301, %v4298
        %v4356 = vpack.c.b16 %v4302, %v4299
        %v4357 = vpack.c.b16 %v4303, %v4300
        %v4358 = vpack.c.b16 %v4307, %v4304
        %v4359 = vpack.c.b16 %v4308, %v4305
        %v4360 = vpack.c.b16 %v4309, %v4306
        %v4361 = vpack.c.b16 %v4313, %v4310
        %v4362 = vpack.c.b16 %v4314, %v4311
        %v4363 = vpack.c.b16 %v4315, %v4312
        %v4364 = vpack.c.b16 %v4319, %v4316
        %v4365 = vpack.c.b16 %v4320, %v4317
        %v4366 = vpack.c.b16 %v4321, %v4318
        %v4367 = vpack.c.b16 %v4325, %v4322
        %v4368 = vpack.c.b16 %v4326, %v4323
        %v4369 = vpack.c.b16 %v4327, %v4324
        %v4370 = vpack.c.b16 %v4331, %v4328
        %v4371 = vpack.c.b16 %v4332, %v4329
        %v4372 = vpack.c.b16 %v4333, %v4330
        %v4373 = vpack.c.b16 %v4337, %v4334
        %v4374 = vpack.c.b16 %v4338, %v4335
        %v4375 = vpack.c.b16 %v4339, %v4336
        %v4376 = vpack.c.b16 %v4343, %v4340
        %v4377 = vpack.c.b16 %v4344, %v4341
        %v4378 = vpack.c.b16 %v4345, %v4342
        %v4379 = vpack.c.b16 %v4349, %v4346
        %v4380 = vpack.c.b16 %v4350, %v4347
        %v4381 = vpack.c.b16 %v4351, %v4348
        %vm4402 = vcmask 228352
        %v4404 = vsel %vm4402, %v4354, 0
        %v4407 = vsel %vm4402, %v4357, 0
        %v4410 = vsel %vm4402, %v4360, 0
        %v4413 = vsel %vm4402, %v4363, 0
        %v4416 = vsel %vm4402, %v4366, 0
        %v4419 = vsel %vm4402, %v4369, 0
        %v4422 = vsel %vm4402, %v4372, 0
        %v4425 = vsel %vm4402, %v4375, 0
        %v4428 = vsel %vm4402, %v4378, 0
        %v4431 = vsel %vm4402, %v4381, 0
        %vm4433 = vcmask 1045504
        %v4435 = vsel %vm4433, %v4210, 0
        %v4438 = vsel %vm4433, %v4211, 0
        %4440 = vmatprep.subr.bf16.mxu0 %v4177
        %4441 = vmatpush1.bf16.msra.mxu0 %v4176
        %4442 = vmatprep.subr.bf16.mxu0 %v4179
        %4443 = vmatpush1.bf16.msra.mxu0 %v4178
        %4444 = vmatprep.subr.bf16.mxu0 %v4181
        %4445 = vmatpush1.bf16.msra.mxu0 %v4180
        %4446 = vmatprep.subr.bf16.mxu0 %v4183
        %4447 = vmatpush1.bf16.msra.mxu0 %v4182
        %4448 = vmatprep.subr.bf16.mxu0 %v4185
        %4449 = vmatpush1.bf16.msra.mxu0 %v4184
        %4450 = vmatprep.subr.bf16.mxu0 %v4187
        %4451 = vmatpush1.bf16.msra.mxu0 %v4186
        %4452 = vmatprep.subr.bf16.mxu0 %v4189
        %4453 = vmatpush1.bf16.msra.mxu0 %v4188
        %4454 = vmatprep.subr.bf16.mxu0 %v4191
        %4455 = vmatpush1.bf16.msra.mxu0 %v4190
        %4456 = vmatprep.subr.bf16.mxu0 %v4193
        %4457 = vmatpush1.bf16.msra.mxu0 %v4192
        %4458 = vmatprep.subr.bf16.mxu0 %v4195
        %4459 = vmatpush1.bf16.msra.mxu0 %v4194
        %4460 = vmatprep.subr.bf16.mxu0 %v4197
        %4461 = vmatpush1.bf16.msra.mxu0 %v4196
        %4462 = vmatprep.subr.bf16.mxu0 %v4199
        %4463 = vmatpush1.bf16.msra.mxu0 %v4198
        %4464 = vmatprep.subr.bf16.mxu0 %v4201
        %4465 = vmatpush1.bf16.msra.mxu0 %v4200
        %4466 = vmatprep.subr.bf16.mxu0 %v4203
        %4467 = vmatpush1.bf16.msra.mxu0 %v4202
        %4468 = vmatprep.subr.bf16.mxu0 %v4205
        %4469 = vmatpush1.bf16.msra.mxu0 %v4204
        %4470 = vmatprep.subr.bf16.mxu0 %v4207
        %4471 = vmatpush1.bf16.msra.mxu0 %v4206
        %4472 = vmatprep.mubr.bf16.mxu0 %v4353
        %4473 = vmatmul.mubr.bf16.gmra.mrb[0].mxu0 %v4352
        %v4474 = vpop.f32.mrb[0].mxu0
        %v4475 = vadd.f32 0.0, %v4474
        %v4476 = vpop.f32.mrb[0].mxu0
        %v4477 = vadd.f32 0.0, %v4476
        %v4478 = vpop.f32.mrb[0].mxu0
        %v4479 = vadd.f32 0.0, %v4478
        %v4480 = vpop.f32.mrb[0].mxu0
        %v4481 = vadd.f32 0.0, %v4480
        %4482 = vmatprep.mubr.bf16.mxu0 %v4356
        %4483 = vmatmul.mubr.bf16.gmra.mrb[0].mxu0 %v4355
        %v4484 = vpop.f32.mrb[0].mxu0
        %v4485 = vadd.f32 0.0, %v4484
        %v4486 = vpop.f32.mrb[0].mxu0
        %v4487 = vadd.f32 0.0, %v4486
        %v4488 = vpop.f32.mrb[0].mxu0
        %v4489 = vadd.f32 0.0, %v4488
        %v4490 = vpop.f32.mrb[0].mxu0
        %v4491 = vadd.f32 0.0, %v4490
        %4492 = vmatprep.mubr.bf16.mxu0 %v4359
        %4493 = vmatmul.mubr.bf16.gmra.mrb[0].mxu0 %v4358
        %v4494 = vpop.f32.mrb[0].mxu0
        %v4495 = vadd.f32 0.0, %v4494
        %v4496 = vpop.f32.mrb[0].mxu0
        %v4497 = vadd.f32 0.0, %v4496
        %v4498 = vpop.f32.mrb[0].mxu0
        %v4499 = vadd.f32 0.0, %v4498
        %v4500 = vpop.f32.mrb[0].mxu0
        %v4501 = vadd.f32 0.0, %v4500
        %4502 = vmatprep.mubr.bf16.mxu0 %v4362
        %4503 = vmatmul.mubr.bf16.gmra.mrb[0].mxu0 %v4361
        %v4504 = vpop.f32.mrb[0].mxu0
        %v4505 = vadd.f32 0.0, %v4504
        %v4506 = vpop.f32.mrb[0].mxu0
        %v4507 = vadd.f32 0.0, %v4506
        %v4508 = vpop.f32.mrb[0].mxu0
        %v4509 = vadd.f32 0.0, %v4508
        %v4510 = vpop.f32.mrb[0].mxu0
        %v4511 = vadd.f32 0.0, %v4510
        %4512 = vmatprep.mubr.bf16.mxu0 %v4365
        %4513 = vmatmul.mubr.bf16.gmra.mrb[0].mxu0 %v4364
        %v4514 = vpop.f32.mrb[0].mxu0
        %v4515 = vadd.f32 0.0, %v4514
        %v4516 = vpop.f32.mrb[0].mxu0
        %v4517 = vadd.f32 0.0, %v4516
        %v4518 = vpop.f32.mrb[0].mxu0
        %v4519 = vadd.f32 0.0, %v4518
        %v4520 = vpop.f32.mrb[0].mxu0
        %v4521 = vadd.f32 0.0, %v4520
        %4522 = vmatprep.mubr.bf16.mxu0 %v4368
        %4523 = vmatmul.mubr.bf16.gmra.mrb[0].mxu0 %v4367
        %v4524 = vpop.f32.mrb[0].mxu0
        %v4525 = vadd.f32 0.0, %v4524
        %v4526 = vpop.f32.mrb[0].mxu0
        %v4527 = vadd.f32 0.0, %v4526
        %v4528 = vpop.f32.mrb[0].mxu0
        %v4529 = vadd.f32 0.0, %v4528
        %v4530 = vpop.f32.mrb[0].mxu0
        %v4531 = vadd.f32 0.0, %v4530
        %4532 = vmatprep.mubr.bf16.mxu0 %v4371
        %4533 = vmatmul.mubr.bf16.gmra.mrb[0].mxu0 %v4370
        %v4534 = vpop.f32.mrb[0].mxu0
        %v4535 = vadd.f32 0.0, %v4534
        %v4536 = vpop.f32.mrb[0].mxu0
        %v4537 = vadd.f32 0.0, %v4536
        %v4538 = vpop.f32.mrb[0].mxu0
        %v4539 = vadd.f32 0.0, %v4538
        %v4540 = vpop.f32.mrb[0].mxu0
        %v4541 = vadd.f32 0.0, %v4540
        %4542 = vmatprep.mubr.bf16.mxu0 %v4374
        %4543 = vmatmul.mubr.bf16.gmra.mrb[0].mxu0 %v4373
        %v4544 = vpop.f32.mrb[0].mxu0
        %v4545 = vadd.f32 0.0, %v4544
        %v4546 = vpop.f32.mrb[0].mxu0
        %v4547 = vadd.f32 0.0, %v4546
        %v4548 = vpop.f32.mrb[0].mxu0
        %v4549 = vadd.f32 0.0, %v4548
        %v4550 = vpop.f32.mrb[0].mxu0
        %v4551 = vadd.f32 0.0, %v4550
        %4552 = vmatprep.mubr.bf16.mxu0 %v4377
        %4553 = vmatmul.mubr.bf16.gmra.mrb[0].mxu0 %v4376
        %v4554 = vpop.f32.mrb[0].mxu0
        %v4555 = vadd.f32 0.0, %v4554
        %v4556 = vpop.f32.mrb[0].mxu0
        %v4557 = vadd.f32 0.0, %v4556
        %v4558 = vpop.f32.mrb[0].mxu0
        %v4559 = vadd.f32 0.0, %v4558
        %v4560 = vpop.f32.mrb[0].mxu0
        %v4561 = vadd.f32 0.0, %v4560
        %4562 = vmatprep.mubr.bf16.mxu0 %v4380
        %4563 = vmatmul.mubr.bf16.gmra.mrb[0].mxu0 %v4379
        %v4564 = vpop.f32.mrb[0].mxu0
        %v4565 = vadd.f32 0.0, %v4564
        %v4566 = vpop.f32.mrb[0].mxu0
        %v4567 = vadd.f32 0.0, %v4566
        %v4568 = vpop.f32.mrb[0].mxu0
        %v4569 = vadd.f32 0.0, %v4568
        %v4570 = vpop.f32.mrb[0].mxu0
        %v4571 = vadd.f32 0.0, %v4570
        %4572 = vdwg.mxu0
        %4573 = vmatprep.subr.bf16.mxu0 %v4209
        %4574 = vmatpush1.bf16.msra.mxu0 %v4208
        %4575 = vmatprep.subr.bf16.mxu0 %v4438
        %4576 = vmatpush1.bf16.msra.mxu0 %v4435
        %4577 = vmatprep.subr.bf16.mxu0 0
        %4578 = vmatpush1.bf16.msra.mxu0 0
        %4579 = vmatprep.subr.bf16.mxu0 0
        %4580 = vmatpush1.bf16.msra.mxu0 0
        %4581 = vmatprep.subr.bf16.mxu0 0
        %4582 = vmatpush1.bf16.msra.mxu0 0
        %4583 = vmatprep.subr.bf16.mxu0 0
        %4584 = vmatpush1.bf16.msra.mxu0 0
        %4585 = vmatprep.subr.bf16.mxu0 0
        %4586 = vmatpush1.bf16.msra.mxu0 0
        %4587 = vmatprep.subr.bf16.mxu0 0
        %4588 = vmatpush1.bf16.msra.mxu0 0
        %4589 = vmatprep.subr.bf16.mxu0 0
        %4590 = vmatpush1.bf16.msra.mxu0 0
        %4591 = vmatprep.subr.bf16.mxu0 0
        %4592 = vmatpush1.bf16.msra.mxu0 0
        %4593 = vmatprep.subr.bf16.mxu0 0
        %4594 = vmatpush1.bf16.msra.mxu0 0
        %4595 = vmatprep.subr.bf16.mxu0 0
        %4596 = vmatpush1.bf16.msra.mxu0 0
        %4597 = vmatprep.subr.bf16.mxu0 0
        %4598 = vmatpush1.bf16.msra.mxu0 0
        %4599 = vmatprep.subr.bf16.mxu0 0
        %4600 = vmatpush1.bf16.msra.mxu0 0
        %4601 = vmatprep.subr.bf16.mxu0 0
        %4602 = vmatpush1.bf16.msra.mxu0 0
        %4603 = vmatprep.subr.bf16.mxu0 0
        %4604 = vmatpush1.bf16.msra.mxu0 0
        %4605 = vmatprep.mubr.bf16.mxu0 0
        %4606 = vmatmul.mubr.bf16.gmra.mrb[0].mxu0 %v4404
        %v4607 = vpop.f32.mrb[0].mxu0
        %v4608 = vadd.f32 %v4475, %v4607
        %v4609 = vpop.f32.mrb[0].mxu0
        %v4610 = vadd.f32 %v4477, %v4609
        %v4611 = vpop.f32.mrb[0].mxu0
        %v4612 = vadd.f32 %v4479, %v4611
        %v4613 = vpop.f32.mrb[0].mxu0
        %v4614 = vadd.f32 %v4481, %v4613
        %4615 = vmatprep.mubr.bf16.mxu0 0
        %4616 = vmatmul.mubr.bf16.gmra.mrb[0].mxu0 %v4407
        %v4617 = vpop.f32.mrb[0].mxu0
        %v4618 = vadd.f32 %v4485, %v4617
        %v4619 = vpop.f32.mrb[0].mxu0
        %v4620 = vadd.f32 %v4487, %v4619
        %v4621 = vpop.f32.mrb[0].mxu0
        %v4622 = vadd.f32 %v4489, %v4621
        %v4623 = vpop.f32.mrb[0].mxu0
        %v4624 = vadd.f32 %v4491, %v4623
        %4625 = vmatprep.mubr.bf16.mxu0 0
        %4626 = vmatmul.mubr.bf16.gmra.mrb[0].mxu0 %v4410
        %v4627 = vpop.f32.mrb[0].mxu0
        %v4628 = vadd.f32 %v4495, %v4627
        %v4629 = vpop.f32.mrb[0].mxu0
        %v4630 = vadd.f32 %v4497, %v4629
        %v4631 = vpop.f32.mrb[0].mxu0
        %v4632 = vadd.f32 %v4499, %v4631
        %v4633 = vpop.f32.mrb[0].mxu0
        %v4634 = vadd.f32 %v4501, %v4633
        %4635 = vmatprep.mubr.bf16.mxu0 0
        %4636 = vmatmul.mubr.bf16.gmra.mrb[0].mxu0 %v4413
        %v4637 = vpop.f32.mrb[0].mxu0
        %v4638 = vadd.f32 %v4505, %v4637
        %v4639 = vpop.f32.mrb[0].mxu0
        %v4640 = vadd.f32 %v4507, %v4639
        %v4641 = vpop.f32.mrb[0].mxu0
        %v4642 = vadd.f32 %v4509, %v4641
        %v4643 = vpop.f32.mrb[0].mxu0
        %v4644 = vadd.f32 %v4511, %v4643
        %4645 = vmatprep.mubr.bf16.mxu0 0
        %4646 = vmatmul.mubr.bf16.gmra.mrb[0].mxu0 %v4416
        %v4647 = vpop.f32.mrb[0].mxu0
        %v4648 = vadd.f32 %v4515, %v4647
        %v4649 = vpop.f32.mrb[0].mxu0
        %v4650 = vadd.f32 %v4517, %v4649
        %v4651 = vpop.f32.mrb[0].mxu0
        %v4652 = vadd.f32 %v4519, %v4651
        %v4653 = vpop.f32.mrb[0].mxu0
        %v4654 = vadd.f32 %v4521, %v4653
        %4655 = vmatprep.mubr.bf16.mxu0 0
        %4656 = vmatmul.mubr.bf16.gmra.mrb[0].mxu0 %v4419
        %v4657 = vpop.f32.mrb[0].mxu0
        %v4658 = vadd.f32 %v4525, %v4657
        %v4659 = vpop.f32.mrb[0].mxu0
        %v4660 = vadd.f32 %v4527, %v4659
        %v4661 = vpop.f32.mrb[0].mxu0
        %v4662 = vadd.f32 %v4529, %v4661
        %v4663 = vpop.f32.mrb[0].mxu0
        %v4664 = vadd.f32 %v4531, %v4663
        %4665 = vmatprep.mubr.bf16.mxu0 0
        %4666 = vmatmul.mubr.bf16.gmra.mrb[0].mxu0 %v4422
        %v4667 = vpop.f32.mrb[0].mxu0
        %v4668 = vadd.f32 %v4535, %v4667
        %v4669 = vpop.f32.mrb[0].mxu0
        %v4670 = vadd.f32 %v4537, %v4669
        %v4671 = vpop.f32.mrb[0].mxu0
        %v4672 = vadd.f32 %v4539, %v4671
        %v4673 = vpop.f32.mrb[0].mxu0
        %v4674 = vadd.f32 %v4541, %v4673
        %4675 = vmatprep.mubr.bf16.mxu0 0
        %4676 = vmatmul.mubr.bf16.gmra.mrb[0].mxu0 %v4425
        %v4677 = vpop.f32.mrb[0].mxu0
        %v4678 = vadd.f32 %v4545, %v4677
        %v4679 = vpop.f32.mrb[0].mxu0
        %v4680 = vadd.f32 %v4547, %v4679
        %v4681 = vpop.f32.mrb[0].mxu0
        %v4682 = vadd.f32 %v4549, %v4681
        %v4683 = vpop.f32.mrb[0].mxu0
        %v4684 = vadd.f32 %v4551, %v4683
        %4685 = vmatprep.mubr.bf16.mxu0 0
        %4686 = vmatmul.mubr.bf16.gmra.mrb[0].mxu0 %v4428
        %v4687 = vpop.f32.mrb[0].mxu0
        %v4688 = vadd.f32 %v4555, %v4687
        %v4689 = vpop.f32.mrb[0].mxu0
        %v4690 = vadd.f32 %v4557, %v4689
        %v4691 = vpop.f32.mrb[0].mxu0
        %v4692 = vadd.f32 %v4559, %v4691
        %v4693 = vpop.f32.mrb[0].mxu0
        %v4694 = vadd.f32 %v4561, %v4693
        %4695 = vmatprep.mubr.bf16.mxu0 0
        %4696 = vmatmul.mubr.bf16.gmra.mrb[0].mxu0 %v4431
        %v4697 = vpop.f32.mrb[0].mxu0
        %v4698 = vadd.f32 %v4565, %v4697
        %v4699 = vpop.f32.mrb[0].mxu0
        %v4700 = vadd.f32 %v4567, %v4699
        %v4701 = vpop.f32.mrb[0].mxu0
        %v4702 = vadd.f32 %v4569, %v4701
        %v4703 = vpop.f32.mrb[0].mxu0
        %v4704 = vadd.f32 %v4571, %v4703
        %4705 = vdwg.mxu0
        %s4706 = scalar_lea.vmem %s3, 240
        %v4707 = vld [vmem:[%s4706] sm:$0xff]
        %v4708 = vld [vmem:[%s4706 + $0x8] sm:$0xf]
        %v4709 = vld [vmem:[%s4706 + $0xc] sm:$0xff]
        %v4710 = vld [vmem:[%s4706 + $0x14] sm:$0xf]
        %v4711 = vld [vmem:[%s4706 + $0x18] sm:$0xff]
        %v4712 = vld [vmem:[%s4706 + $0x20] sm:$0xf]
        %v4713 = vld [vmem:[%s4706 + $0x24] sm:$0xff]
        %v4714 = vld [vmem:[%s4706 + $0x2c] sm:$0xf]
        %v4715 = vld [vmem:[%s4706 + $0x30] sm:$0xff]
        %v4716 = vld [vmem:[%s4706 + $0x38] sm:$0xf]
        %v4717 = vld [vmem:[%s4706 + $0x3c] sm:$0xff]
        %v4718 = vld [vmem:[%s4706 + $0x44] sm:$0xf]
        %v4719 = vld [vmem:[%s4706 + $0x48] sm:$0xff]
        %v4720 = vld [vmem:[%s4706 + $0x50] sm:$0xf]
        %v4721 = vld [vmem:[%s4706 + $0x54] sm:$0xff]
        %v4722 = vld [vmem:[%s4706 + $0x5c] sm:$0xf]
        %v4723 = vld [vmem:[%s4706 + $0x60] sm:$0xff]
        %v4724 = vld [vmem:[%s4706 + $0x68] sm:$0xf]
        %v4725 = vld [vmem:[%s4706 + $0x6c] sm:$0xff]
        %v4726 = vld [vmem:[%s4706 + $0x74] sm:$0xf]
        %v4727 = vld [vmem:[%s4706 + $0x78] sm:$0xff]
        %v4728 = vld [vmem:[%s4706 + $0x80] sm:$0xf]
        %v4729 = vld [vmem:[%s4706 + $0x84] sm:$0xff]
        %v4730 = vld [vmem:[%s4706 + $0x8c] sm:$0xf]
        %v4731 = vld [vmem:[%s4706 + $0x90] sm:$0xff]
        %v4732 = vld [vmem:[%s4706 + $0x98] sm:$0xf]
        %v4733 = vld [vmem:[%s4706 + $0x9c] sm:$0xff]
        %v4734 = vld [vmem:[%s4706 + $0xa4] sm:$0xf]
        %v4735 = vld [vmem:[%s4706 + $0xa8] sm:$0xff]
        %v4736 = vld [vmem:[%s4706 + $0xb0] sm:$0xf]
        %v4737 = vld [vmem:[%s4706 + $0xb4] sm:$0xff]
        %v4738 = vld [vmem:[%s4706 + $0xbc] sm:$0xf]
        %v4739 = vld [vmem:[%s4706 + $0xc0] sm:$0xff]
        %v4740 = vld [vmem:[%s4706 + $0xc8] sm:$0xf]
        %v4741 = vld [vmem:[%s4706 + $0xcc] sm:$0xff]
        %v4742 = vld [vmem:[%s4706 + $0xd4] sm:$0xf]
        %v4743 = vld [vmem:[%s4706 + $0xd8] sm:$0xff]
        %v4744 = vld [vmem:[%s4706 + $0xe0] sm:$0xf]
        %v4745 = vld [vmem:[%s4706 + $0xe4] sm:$0xff]
        %v4746 = vld [vmem:[%s4706 + $0xec] sm:$0xf]
        %v4787 = vunpack.c.l.b16 %v4707
        %v4788 = vunpack.c.h.b16 %v4707
        %v4789 = vunpack.c.l.b16 %v4708
        %v4790 = vunpack.c.l.b16 %v4709
        %v4791 = vunpack.c.h.b16 %v4709
        %v4792 = vunpack.c.l.b16 %v4710
        %v4793 = vunpack.c.l.b16 %v4711
        %v4794 = vunpack.c.h.b16 %v4711
        %v4795 = vunpack.c.l.b16 %v4712
        %v4796 = vunpack.c.l.b16 %v4713
        %v4797 = vunpack.c.h.b16 %v4713
        %v4798 = vunpack.c.l.b16 %v4714
        %v4799 = vunpack.c.l.b16 %v4715
        %v4800 = vunpack.c.h.b16 %v4715
        %v4801 = vunpack.c.l.b16 %v4716
        %v4802 = vunpack.c.l.b16 %v4717
        %v4803 = vunpack.c.h.b16 %v4717
        %v4804 = vunpack.c.l.b16 %v4718
        %v4805 = vunpack.c.l.b16 %v4719
        %v4806 = vunpack.c.h.b16 %v4719
        %v4807 = vunpack.c.l.b16 %v4720
        %v4808 = vunpack.c.l.b16 %v4721
        %v4809 = vunpack.c.h.b16 %v4721
        %v4810 = vunpack.c.l.b16 %v4722
        %v4811 = vunpack.c.l.b16 %v4723
        %v4812 = vunpack.c.h.b16 %v4723
        %v4813 = vunpack.c.l.b16 %v4724
        %v4814 = vunpack.c.l.b16 %v4725
        %v4815 = vunpack.c.h.b16 %v4725
        %v4816 = vunpack.c.l.b16 %v4726
        %v4817 = vunpack.c.l.b16 %v4727
        %v4818 = vunpack.c.h.b16 %v4727
        %v4819 = vunpack.c.l.b16 %v4728
        %v4820 = vunpack.c.l.b16 %v4729
        %v4821 = vunpack.c.h.b16 %v4729
        %v4822 = vunpack.c.l.b16 %v4730
        %v4823 = vunpack.c.l.b16 %v4731
        %v4824 = vunpack.c.h.b16 %v4731
        %v4825 = vunpack.c.l.b16 %v4732
        %v4826 = vunpack.c.l.b16 %v4733
        %v4827 = vunpack.c.h.b16 %v4733
        %v4828 = vunpack.c.l.b16 %v4734
        %v4829 = vunpack.c.l.b16 %v4735
        %v4830 = vunpack.c.h.b16 %v4735
        %v4831 = vunpack.c.l.b16 %v4736
        %v4832 = vunpack.c.l.b16 %v4737
        %v4833 = vunpack.c.h.b16 %v4737
        %v4834 = vunpack.c.l.b16 %v4738
        %v4835 = vunpack.c.l.b16 %v4739
        %v4836 = vunpack.c.h.b16 %v4739
        %v4837 = vunpack.c.l.b16 %v4740
        %v4838 = vunpack.c.l.b16 %v4741
        %v4839 = vunpack.c.h.b16 %v4741
        %v4840 = vunpack.c.l.b16 %v4742
        %v4841 = vunpack.c.l.b16 %v4743
        %v4842 = vunpack.c.h.b16 %v4743
        %v4843 = vunpack.c.l.b16 %v4744
        %v4844 = vunpack.c.l.b16 %v4745
        %v4845 = vunpack.c.h.b16 %v4745
        %v4846 = vunpack.c.l.b16 %v4746
        %v4847 = vpack.c.b16 %v4790, %v4787
        %v4848 = vpack.c.b16 %v4791, %v4788
        %v4849 = vpack.c.b16 %v4792, %v4789
        %v4850 = vpack.c.b16 %v4796, %v4793
        %v4851 = vpack.c.b16 %v4797, %v4794
        %v4852 = vpack.c.b16 %v4798, %v4795
        %v4853 = vpack.c.b16 %v4802, %v4799
        %v4854 = vpack.c.b16 %v4803, %v4800
        %v4855 = vpack.c.b16 %v4804, %v4801
        %v4856 = vpack.c.b16 %v4808, %v4805
        %v4857 = vpack.c.b16 %v4809, %v4806
        %v4858 = vpack.c.b16 %v4810, %v4807
        %v4859 = vpack.c.b16 %v4814, %v4811
        %v4860 = vpack.c.b16 %v4815, %v4812
        %v4861 = vpack.c.b16 %v4816, %v4813
        %v4862 = vpack.c.b16 %v4820, %v4817
        %v4863 = vpack.c.b16 %v4821, %v4818
        %v4864 = vpack.c.b16 %v4822, %v4819
        %v4865 = vpack.c.b16 %v4826, %v4823
        %v4866 = vpack.c.b16 %v4827, %v4824
        %v4867 = vpack.c.b16 %v4828, %v4825
        %v4868 = vpack.c.b16 %v4832, %v4829
        %v4869 = vpack.c.b16 %v4833, %v4830
        %v4870 = vpack.c.b16 %v4834, %v4831
        %v4871 = vpack.c.b16 %v4838, %v4835
        %v4872 = vpack.c.b16 %v4839, %v4836
        %v4873 = vpack.c.b16 %v4840, %v4837
        %v4874 = vpack.c.b16 %v4844, %v4841
        %v4875 = vpack.c.b16 %v4845, %v4842
        %v4876 = vpack.c.b16 %v4846, %v4843
        %v4898 = vsel %vm4402, %v4849, 0
        %v4901 = vsel %vm4402, %v4852, 0
        %v4904 = vsel %vm4402, %v4855, 0
        %v4907 = vsel %vm4402, %v4858, 0
        %v4910 = vsel %vm4402, %v4861, 0
        %v4913 = vsel %vm4402, %v4864, 0
        %v4916 = vsel %vm4402, %v4867, 0
        %v4919 = vsel %vm4402, %v4870, 0
        %v4922 = vsel %vm4402, %v4873, 0
        %v4925 = vsel %vm4402, %v4876, 0
        %4927 = vmatprep.subr.bf16.mxu0 %v4177
        %4928 = vmatpush1.bf16.msra.mxu0 %v4176
        %4929 = vmatprep.subr.bf16.mxu0 %v4179
        %4930 = vmatpush1.bf16.msra.mxu0 %v4178
        %4931 = vmatprep.subr.bf16.mxu0 %v4181
        %4932 = vmatpush1.bf16.msra.mxu0 %v4180
        %4933 = vmatprep.subr.bf16.mxu0 %v4183
        %4934 = vmatpush1.bf16.msra.mxu0 %v4182
        %4935 = vmatprep.subr.bf16.mxu0 %v4185
        %4936 = vmatpush1.bf16.msra.mxu0 %v4184
        %4937 = vmatprep.subr.bf16.mxu0 %v4187
        %4938 = vmatpush1.bf16.msra.mxu0 %v4186
        %4939 = vmatprep.subr.bf16.mxu0 %v4189
        %4940 = vmatpush1.bf16.msra.mxu0 %v4188
        %4941 = vmatprep.subr.bf16.mxu0 %v4191
        %4942 = vmatpush1.bf16.msra.mxu0 %v4190
        %4943 = vmatprep.subr.bf16.mxu0 %v4193
        %4944 = vmatpush1.bf16.msra.mxu0 %v4192
        %4945 = vmatprep.subr.bf16.mxu0 %v4195
        %4946 = vmatpush1.bf16.msra.mxu0 %v4194
        %4947 = vmatprep.subr.bf16.mxu0 %v4197
        %4948 = vmatpush1.bf16.msra.mxu0 %v4196
        %4949 = vmatprep.subr.bf16.mxu0 %v4199
        %4950 = vmatpush1.bf16.msra.mxu0 %v4198
        %4951 = vmatprep.subr.bf16.mxu0 %v4201
        %4952 = vmatpush1.bf16.msra.mxu0 %v4200
        %4953 = vmatprep.subr.bf16.mxu0 %v4203
        %4954 = vmatpush1.bf16.msra.mxu0 %v4202
        %4955 = vmatprep.subr.bf16.mxu0 %v4205
        %4956 = vmatpush1.bf16.msra.mxu0 %v4204
        %4957 = vmatprep.subr.bf16.mxu0 %v4207
        %4958 = vmatpush1.bf16.msra.mxu0 %v4206
        %4959 = vmatprep.mubr.bf16.mxu0 %v4848
        %4960 = vmatmul.mubr.bf16.gmra.mrb[0].mxu0 %v4847
        %v4961 = vpop.f32.mrb[0].mxu0
        %v4962 = vadd.f32 0.0, %v4961
        %v4963 = vpop.f32.mrb[0].mxu0
        %v4964 = vadd.f32 0.0, %v4963
        %v4965 = vpop.f32.mrb[0].mxu0
        %v4966 = vadd.f32 0.0, %v4965
        %v4967 = vpop.f32.mrb[0].mxu0
        %v4968 = vadd.f32 0.0, %v4967
        %4969 = vmatprep.mubr.bf16.mxu0 %v4851
        %4970 = vmatmul.mubr.bf16.gmra.mrb[0].mxu0 %v4850
        %v4971 = vpop.f32.mrb[0].mxu0
        %v4972 = vadd.f32 0.0, %v4971
        %v4973 = vpop.f32.mrb[0].mxu0
        %v4974 = vadd.f32 0.0, %v4973
        %v4975 = vpop.f32.mrb[0].mxu0
        %v4976 = vadd.f32 0.0, %v4975
        %v4977 = vpop.f32.mrb[0].mxu0
        %v4978 = vadd.f32 0.0, %v4977
        %4979 = vmatprep.mubr.bf16.mxu0 %v4854
        %4980 = vmatmul.mubr.bf16.gmra.mrb[0].mxu0 %v4853
        %v4981 = vpop.f32.mrb[0].mxu0
        %v4982 = vadd.f32 0.0, %v4981
        %v4983 = vpop.f32.mrb[0].mxu0
        %v4984 = vadd.f32 0.0, %v4983
        %v4985 = vpop.f32.mrb[0].mxu0
        %v4986 = vadd.f32 0.0, %v4985
        %v4987 = vpop.f32.mrb[0].mxu0
        %v4988 = vadd.f32 0.0, %v4987
        %4989 = vmatprep.mubr.bf16.mxu0 %v4857
        %4990 = vmatmul.mubr.bf16.gmra.mrb[0].mxu0 %v4856
        %v4991 = vpop.f32.mrb[0].mxu0
        %v4992 = vadd.f32 0.0, %v4991
        %v4993 = vpop.f32.mrb[0].mxu0
        %v4994 = vadd.f32 0.0, %v4993
        %v4995 = vpop.f32.mrb[0].mxu0
        %v4996 = vadd.f32 0.0, %v4995
        %v4997 = vpop.f32.mrb[0].mxu0
        %v4998 = vadd.f32 0.0, %v4997
        %4999 = vmatprep.mubr.bf16.mxu0 %v4860
        %5000 = vmatmul.mubr.bf16.gmra.mrb[0].mxu0 %v4859
        %v5001 = vpop.f32.mrb[0].mxu0
        %v5002 = vadd.f32 0.0, %v5001
        %v5003 = vpop.f32.mrb[0].mxu0
        %v5004 = vadd.f32 0.0, %v5003
        %v5005 = vpop.f32.mrb[0].mxu0
        %v5006 = vadd.f32 0.0, %v5005
        %v5007 = vpop.f32.mrb[0].mxu0
        %v5008 = vadd.f32 0.0, %v5007
        %5009 = vmatprep.mubr.bf16.mxu0 %v4863
        %5010 = vmatmul.mubr.bf16.gmra.mrb[0].mxu0 %v4862
        %v5011 = vpop.f32.mrb[0].mxu0
        %v5012 = vadd.f32 0.0, %v5011
        %v5013 = vpop.f32.mrb[0].mxu0
        %v5014 = vadd.f32 0.0, %v5013
        %v5015 = vpop.f32.mrb[0].mxu0
        %v5016 = vadd.f32 0.0, %v5015
        %v5017 = vpop.f32.mrb[0].mxu0
        %v5018 = vadd.f32 0.0, %v5017
        %5019 = vmatprep.mubr.bf16.mxu0 %v4866
        %5020 = vmatmul.mubr.bf16.gmra.mrb[0].mxu0 %v4865
        %v5021 = vpop.f32.mrb[0].mxu0
        %v5022 = vadd.f32 0.0, %v5021
        %v5023 = vpop.f32.mrb[0].mxu0
        %v5024 = vadd.f32 0.0, %v5023
        %v5025 = vpop.f32.mrb[0].mxu0
        %v5026 = vadd.f32 0.0, %v5025
        %v5027 = vpop.f32.mrb[0].mxu0
        %v5028 = vadd.f32 0.0, %v5027
        %5029 = vmatprep.mubr.bf16.mxu0 %v4869
        %5030 = vmatmul.mubr.bf16.gmra.mrb[0].mxu0 %v4868
        %v5031 = vpop.f32.mrb[0].mxu0
        %v5032 = vadd.f32 0.0, %v5031
        %v5033 = vpop.f32.mrb[0].mxu0
        %v5034 = vadd.f32 0.0, %v5033
        %v5035 = vpop.f32.mrb[0].mxu0
        %v5036 = vadd.f32 0.0, %v5035
        %v5037 = vpop.f32.mrb[0].mxu0
        %v5038 = vadd.f32 0.0, %v5037
        %5039 = vmatprep.mubr.bf16.mxu0 %v4872
        %5040 = vmatmul.mubr.bf16.gmra.mrb[0].mxu0 %v4871
        %v5041 = vpop.f32.mrb[0].mxu0
        %v5042 = vadd.f32 0.0, %v5041
        %v5043 = vpop.f32.mrb[0].mxu0
        %v5044 = vadd.f32 0.0, %v5043
        %v5045 = vpop.f32.mrb[0].mxu0
        %v5046 = vadd.f32 0.0, %v5045
        %v5047 = vpop.f32.mrb[0].mxu0
        %v5048 = vadd.f32 0.0, %v5047
        %5049 = vmatprep.mubr.bf16.mxu0 %v4875
        %5050 = vmatmul.mubr.bf16.gmra.mrb[0].mxu0 %v4874
        %v5051 = vpop.f32.mrb[0].mxu0
        %v5052 = vadd.f32 0.0, %v5051
        %v5053 = vpop.f32.mrb[0].mxu0
        %v5054 = vadd.f32 0.0, %v5053
        %v5055 = vpop.f32.mrb[0].mxu0
        %v5056 = vadd.f32 0.0, %v5055
        %v5057 = vpop.f32.mrb[0].mxu0
        %v5058 = vadd.f32 0.0, %v5057
        %5059 = vdwg.mxu0
        %5060 = vmatprep.subr.bf16.mxu0 %v4209
        %5061 = vmatpush1.bf16.msra.mxu0 %v4208
        %5062 = vmatprep.subr.bf16.mxu0 %v4438
        %5063 = vmatpush1.bf16.msra.mxu0 %v4435
        %5064 = vmatprep.subr.bf16.mxu0 0
        %5065 = vmatpush1.bf16.msra.mxu0 0
        %5066 = vmatprep.subr.bf16.mxu0 0
        %5067 = vmatpush1.bf16.msra.mxu0 0
        %5068 = vmatprep.subr.bf16.mxu0 0
        %5069 = vmatpush1.bf16.msra.mxu0 0
        %5070 = vmatprep.subr.bf16.mxu0 0
        %5071 = vmatpush1.bf16.msra.mxu0 0
        %5072 = vmatprep.subr.bf16.mxu0 0
        %5073 = vmatpush1.bf16.msra.mxu0 0
        %5074 = vmatprep.subr.bf16.mxu0 0
        %5075 = vmatpush1.bf16.msra.mxu0 0
        %5076 = vmatprep.subr.bf16.mxu0 0
        %5077 = vmatpush1.bf16.msra.mxu0 0
        %5078 = vmatprep.subr.bf16.mxu0 0
        %5079 = vmatpush1.bf16.msra.mxu0 0
        %5080 = vmatprep.subr.bf16.mxu0 0
        %5081 = vmatpush1.bf16.msra.mxu0 0
        %5082 = vmatprep.subr.bf16.mxu0 0
        %5083 = vmatpush1.bf16.msra.mxu0 0
        %5084 = vmatprep.subr.bf16.mxu0 0
        %5085 = vmatpush1.bf16.msra.mxu0 0
        %5086 = vmatprep.subr.bf16.mxu0 0
        %5087 = vmatpush1.bf16.msra.mxu0 0
        %5088 = vmatprep.subr.bf16.mxu0 0
        %5089 = vmatpush1.bf16.msra.mxu0 0
        %5090 = vmatprep.subr.bf16.mxu0 0
        %5091 = vmatpush1.bf16.msra.mxu0 0
        %5092 = vmatprep.mubr.bf16.mxu0 0
        %5093 = vmatmul.mubr.bf16.gmra.mrb[0].mxu0 %v4898
        %v5094 = vpop.f32.mrb[0].mxu0
        %v5095 = vadd.f32 %v4962, %v5094
        %v5096 = vpop.f32.mrb[0].mxu0
        %v5097 = vadd.f32 %v4964, %v5096
        %v5098 = vpop.f32.mrb[0].mxu0
        %v5099 = vadd.f32 %v4966, %v5098
        %v5100 = vpop.f32.mrb[0].mxu0
        %v5101 = vadd.f32 %v4968, %v5100
        %5102 = vmatprep.mubr.bf16.mxu0 0
        %5103 = vmatmul.mubr.bf16.gmra.mrb[0].mxu0 %v4901
        %v5104 = vpop.f32.mrb[0].mxu0
        %v5105 = vadd.f32 %v4972, %v5104
        %v5106 = vpop.f32.mrb[0].mxu0
        %v5107 = vadd.f32 %v4974, %v5106
        %v5108 = vpop.f32.mrb[0].mxu0
        %v5109 = vadd.f32 %v4976, %v5108
        %v5110 = vpop.f32.mrb[0].mxu0
        %v5111 = vadd.f32 %v4978, %v5110
        %5112 = vmatprep.mubr.bf16.mxu0 0
        %5113 = vmatmul.mubr.bf16.gmra.mrb[0].mxu0 %v4904
        %v5114 = vpop.f32.mrb[0].mxu0
        %v5115 = vadd.f32 %v4982, %v5114
        %v5116 = vpop.f32.mrb[0].mxu0
        %v5117 = vadd.f32 %v4984, %v5116
        %v5118 = vpop.f32.mrb[0].mxu0
        %v5119 = vadd.f32 %v4986, %v5118
        %v5120 = vpop.f32.mrb[0].mxu0
        %v5121 = vadd.f32 %v4988, %v5120
        %5122 = vmatprep.mubr.bf16.mxu0 0
        %5123 = vmatmul.mubr.bf16.gmra.mrb[0].mxu0 %v4907
        %v5124 = vpop.f32.mrb[0].mxu0
        %v5125 = vadd.f32 %v4992, %v5124
        %v5126 = vpop.f32.mrb[0].mxu0
        %v5127 = vadd.f32 %v4994, %v5126
        %v5128 = vpop.f32.mrb[0].mxu0
        %v5129 = vadd.f32 %v4996, %v5128
        %v5130 = vpop.f32.mrb[0].mxu0
        %v5131 = vadd.f32 %v4998, %v5130
        %5132 = vmatprep.mubr.bf16.mxu0 0
        %5133 = vmatmul.mubr.bf16.gmra.mrb[0].mxu0 %v4910
        %v5134 = vpop.f32.mrb[0].mxu0
        %v5135 = vadd.f32 %v5002, %v5134
        %v5136 = vpop.f32.mrb[0].mxu0
        %v5137 = vadd.f32 %v5004, %v5136
        %v5138 = vpop.f32.mrb[0].mxu0
        %v5139 = vadd.f32 %v5006, %v5138
        %v5140 = vpop.f32.mrb[0].mxu0
        %v5141 = vadd.f32 %v5008, %v5140
        %5142 = vmatprep.mubr.bf16.mxu0 0
        %5143 = vmatmul.mubr.bf16.gmra.mrb[0].mxu0 %v4913
        %v5144 = vpop.f32.mrb[0].mxu0
        %v5145 = vadd.f32 %v5012, %v5144
        %v5146 = vpop.f32.mrb[0].mxu0
        %v5147 = vadd.f32 %v5014, %v5146
        %v5148 = vpop.f32.mrb[0].mxu0
        %v5149 = vadd.f32 %v5016, %v5148
        %v5150 = vpop.f32.mrb[0].mxu0
        %v5151 = vadd.f32 %v5018, %v5150
        %5152 = vmatprep.mubr.bf16.mxu0 0
        %5153 = vmatmul.mubr.bf16.gmra.mrb[0].mxu0 %v4916
        %v5154 = vpop.f32.mrb[0].mxu0
        %v5155 = vadd.f32 %v5022, %v5154
        %v5156 = vpop.f32.mrb[0].mxu0
        %v5157 = vadd.f32 %v5024, %v5156
        %v5158 = vpop.f32.mrb[0].mxu0
        %v5159 = vadd.f32 %v5026, %v5158
        %v5160 = vpop.f32.mrb[0].mxu0
        %v5161 = vadd.f32 %v5028, %v5160
        %5162 = vmatprep.mubr.bf16.mxu0 0
        %5163 = vmatmul.mubr.bf16.gmra.mrb[0].mxu0 %v4919
        %v5164 = vpop.f32.mrb[0].mxu0
        %v5165 = vadd.f32 %v5032, %v5164
        %v5166 = vpop.f32.mrb[0].mxu0
        %v5167 = vadd.f32 %v5034, %v5166
        %v5168 = vpop.f32.mrb[0].mxu0
        %v5169 = vadd.f32 %v5036, %v5168
        %v5170 = vpop.f32.mrb[0].mxu0
        %v5171 = vadd.f32 %v5038, %v5170
        %5172 = vmatprep.mubr.bf16.mxu0 0
        %5173 = vmatmul.mubr.bf16.gmra.mrb[0].mxu0 %v4922
        %v5174 = vpop.f32.mrb[0].mxu0
        %v5175 = vadd.f32 %v5042, %v5174
        %v5176 = vpop.f32.mrb[0].mxu0
        %v5177 = vadd.f32 %v5044, %v5176
        %v5178 = vpop.f32.mrb[0].mxu0
        %v5179 = vadd.f32 %v5046, %v5178
        %v5180 = vpop.f32.mrb[0].mxu0
        %v5181 = vadd.f32 %v5048, %v5180
        %5182 = vmatprep.mubr.bf16.mxu0 0
        %5183 = vmatmul.mubr.bf16.gmra.mrb[0].mxu0 %v4925
        %v5184 = vpop.f32.mrb[0].mxu0
        %v5185 = vadd.f32 %v5052, %v5184
        %v5186 = vpop.f32.mrb[0].mxu0
        %v5187 = vadd.f32 %v5054, %v5186
        %v5188 = vpop.f32.mrb[0].mxu0
        %v5189 = vadd.f32 %v5056, %v5188
        %v5190 = vpop.f32.mrb[0].mxu0
        %v5191 = vadd.f32 %v5058, %v5190
        %5192 = vdwg.mxu0
        %v5193 = vmax.f32 %v4608, %v5095
        %v5194 = vmax.f32 %v4610, %v5097
        %v5195 = vmax.f32 %v4612, %v5099
        %v5196 = vmax.f32 %v4614, %v5101
        %v5197 = vmax.f32 %v4618, %v5105
        %v5198 = vmax.f32 %v4620, %v5107
        %v5199 = vmax.f32 %v4622, %v5109
        %v5200 = vmax.f32 %v4624, %v5111
        %v5201 = vmax.f32 %v4628, %v5115
        %v5202 = vmax.f32 %v4630, %v5117
        %v5203 = vmax.f32 %v4632, %v5119
        %v5204 = vmax.f32 %v4634, %v5121
        %v5205 = vmax.f32 %v4638, %v5125
        %v5206 = vmax.f32 %v4640, %v5127
        %v5207 = vmax.f32 %v4642, %v5129
        %v5208 = vmax.f32 %v4644, %v5131
        %v5209 = vmax.f32 %v4648, %v5135
        %v5210 = vmax.f32 %v4650, %v5137
        %v5211 = vmax.f32 %v4652, %v5139
        %v5212 = vmax.f32 %v4654, %v5141
        %v5213 = vmax.f32 %v4658, %v5145
        %v5214 = vmax.f32 %v4660, %v5147
        %v5215 = vmax.f32 %v4662, %v5149
        %v5216 = vmax.f32 %v4664, %v5151
        %v5217 = vmax.f32 %v4668, %v5155
        %v5218 = vmax.f32 %v4670, %v5157
        %v5219 = vmax.f32 %v4672, %v5159
        %v5220 = vmax.f32 %v4674, %v5161
        %v5221 = vmax.f32 %v4678, %v5165
        %v5222 = vmax.f32 %v4680, %v5167
        %v5223 = vmax.f32 %v4682, %v5169
        %v5224 = vmax.f32 %v4684, %v5171
        %v5225 = vmax.f32 %v4688, %v5175
        %v5226 = vmax.f32 %v4690, %v5177
        %v5227 = vmax.f32 %v4692, %v5179
        %v5228 = vmax.f32 %v4694, %v5181
        %v5229 = vmax.f32 %v4698, %v5185
        %v5230 = vmax.f32 %v4700, %v5187
        %v5231 = vmax.f32 %v4702, %v5189
        %v5232 = vmax.f32 %v4704, %v5191
        %s5233 = scalar_lea.vmem %s3, 480
        %v5234 = vld [vmem:[%s5233] sm:$0xff]
        %v5235 = vld [vmem:[%s5233 + $0x8] sm:$0xf]
        %v5236 = vld [vmem:[%s5233 + $0xc] sm:$0xff]
        %v5237 = vld [vmem:[%s5233 + $0x14] sm:$0xf]
        %v5238 = vld [vmem:[%s5233 + $0x18] sm:$0xff]
        %v5239 = vld [vmem:[%s5233 + $0x20] sm:$0xf]
        %v5240 = vld [vmem:[%s5233 + $0x24] sm:$0xff]
        %v5241 = vld [vmem:[%s5233 + $0x2c] sm:$0xf]
        %v5242 = vld [vmem:[%s5233 + $0x30] sm:$0xff]
        %v5243 = vld [vmem:[%s5233 + $0x38] sm:$0xf]
        %v5244 = vld [vmem:[%s5233 + $0x3c] sm:$0xff]
        %v5245 = vld [vmem:[%s5233 + $0x44] sm:$0xf]
        %v5246 = vld [vmem:[%s5233 + $0x48] sm:$0xff]
        %v5247 = vld [vmem:[%s5233 + $0x50] sm:$0xf]
        %v5248 = vld [vmem:[%s5233 + $0x54] sm:$0xff]
        %v5249 = vld [vmem:[%s5233 + $0x5c] sm:$0xf]
        %v5250 = vld [vmem:[%s5233 + $0x60] sm:$0xff]
        %v5251 = vld [vmem:[%s5233 + $0x68] sm:$0xf]
        %v5252 = vld [vmem:[%s5233 + $0x6c] sm:$0xff]
        %v5253 = vld [vmem:[%s5233 + $0x74] sm:$0xf]
        %v5254 = vld [vmem:[%s5233 + $0x78] sm:$0xff]
        %v5255 = vld [vmem:[%s5233 + $0x80] sm:$0xf]
        %v5256 = vld [vmem:[%s5233 + $0x84] sm:$0xff]
        %v5257 = vld [vmem:[%s5233 + $0x8c] sm:$0xf]
        %v5258 = vld [vmem:[%s5233 + $0x90] sm:$0xff]
        %v5259 = vld [vmem:[%s5233 + $0x98] sm:$0xf]
        %v5260 = vld [vmem:[%s5233 + $0x9c] sm:$0xff]
        %v5261 = vld [vmem:[%s5233 + $0xa4] sm:$0xf]
        %v5262 = vld [vmem:[%s5233 + $0xa8] sm:$0xff]
        %v5263 = vld [vmem:[%s5233 + $0xb0] sm:$0xf]
        %v5264 = vld [vmem:[%s5233 + $0xb4] sm:$0xff]
        %v5265 = vld [vmem:[%s5233 + $0xbc] sm:$0xf]
        %v5266 = vld [vmem:[%s5233 + $0xc0] sm:$0xff]
        %v5267 = vld [vmem:[%s5233 + $0xc8] sm:$0xf]
        %v5268 = vld [vmem:[%s5233 + $0xcc] sm:$0xff]
        %v5269 = vld [vmem:[%s5233 + $0xd4] sm:$0xf]
        %v5270 = vld [vmem:[%s5233 + $0xd8] sm:$0xff]
        %v5271 = vld [vmem:[%s5233 + $0xe0] sm:$0xf]
        %v5272 = vld [vmem:[%s5233 + $0xe4] sm:$0xff]
        %v5273 = vld [vmem:[%s5233 + $0xec] sm:$0xf]
        %v5314 = vunpack.c.l.b16 %v5234
        %v5315 = vunpack.c.h.b16 %v5234
        %v5316 = vunpack.c.l.b16 %v5235
        %v5317 = vunpack.c.l.b16 %v5236
        %v5318 = vunpack.c.h.b16 %v5236
        %v5319 = vunpack.c.l.b16 %v5237
        %v5320 = vunpack.c.l.b16 %v5238
        %v5321 = vunpack.c.h.b16 %v5238
        %v5322 = vunpack.c.l.b16 %v5239
        %v5323 = vunpack.c.l.b16 %v5240
        %v5324 = vunpack.c.h.b16 %v5240
        %v5325 = vunpack.c.l.b16 %v5241
        %v5326 = vunpack.c.l.b16 %v5242
        %v5327 = vunpack.c.h.b16 %v5242
        %v5328 = vunpack.c.l.b16 %v5243
        %v5329 = vunpack.c.l.b16 %v5244
        %v5330 = vunpack.c.h.b16 %v5244
        %v5331 = vunpack.c.l.b16 %v5245
        %v5332 = vunpack.c.l.b16 %v5246
        %v5333 = vunpack.c.h.b16 %v5246
        %v5334 = vunpack.c.l.b16 %v5247
        %v5335 = vunpack.c.l.b16 %v5248
        %v5336 = vunpack.c.h.b16 %v5248
        %v5337 = vunpack.c.l.b16 %v5249
        %v5338 = vunpack.c.l.b16 %v5250
        %v5339 = vunpack.c.h.b16 %v5250
        %v5340 = vunpack.c.l.b16 %v5251
        %v5341 = vunpack.c.l.b16 %v5252
        %v5342 = vunpack.c.h.b16 %v5252
        %v5343 = vunpack.c.l.b16 %v5253
        %v5344 = vunpack.c.l.b16 %v5254
        %v5345 = vunpack.c.h.b16 %v5254
        %v5346 = vunpack.c.l.b16 %v5255
        %v5347 = vunpack.c.l.b16 %v5256
        %v5348 = vunpack.c.h.b16 %v5256
        %v5349 = vunpack.c.l.b16 %v5257
        %v5350 = vunpack.c.l.b16 %v5258
        %v5351 = vunpack.c.h.b16 %v5258
        %v5352 = vunpack.c.l.b16 %v5259
        %v5353 = vunpack.c.l.b16 %v5260
        %v5354 = vunpack.c.h.b16 %v5260
        %v5355 = vunpack.c.l.b16 %v5261
        %v5356 = vunpack.c.l.b16 %v5262
        %v5357 = vunpack.c.h.b16 %v5262
        %v5358 = vunpack.c.l.b16 %v5263
        %v5359 = vunpack.c.l.b16 %v5264
        %v5360 = vunpack.c.h.b16 %v5264
        %v5361 = vunpack.c.l.b16 %v5265
        %v5362 = vunpack.c.l.b16 %v5266
        %v5363 = vunpack.c.h.b16 %v5266
        %v5364 = vunpack.c.l.b16 %v5267
        %v5365 = vunpack.c.l.b16 %v5268
        %v5366 = vunpack.c.h.b16 %v5268
        %v5367 = vunpack.c.l.b16 %v5269
        %v5368 = vunpack.c.l.b16 %v5270
        %v5369 = vunpack.c.h.b16 %v5270
        %v5370 = vunpack.c.l.b16 %v5271
        %v5371 = vunpack.c.l.b16 %v5272
        %v5372 = vunpack.c.h.b16 %v5272
        %v5373 = vunpack.c.l.b16 %v5273
        %v5374 = vpack.c.b16 %v5317, %v5314
        %v5375 = vpack.c.b16 %v5318, %v5315
        %v5376 = vpack.c.b16 %v5319, %v5316
        %v5377 = vpack.c.b16 %v5323, %v5320
        %v5378 = vpack.c.b16 %v5324, %v5321
        %v5379 = vpack.c.b16 %v5325, %v5322
        %v5380 = vpack.c.b16 %v5329, %v5326
        %v5381 = vpack.c.b16 %v5330, %v5327
        %v5382 = vpack.c.b16 %v5331, %v5328
        %v5383 = vpack.c.b16 %v5335, %v5332
        %v5384 = vpack.c.b16 %v5336, %v5333
        %v5385 = vpack.c.b16 %v5337, %v5334
        %v5386 = vpack.c.b16 %v5341, %v5338
        %v5387 = vpack.c.b16 %v5342, %v5339
        %v5388 = vpack.c.b16 %v5343, %v5340
        %v5389 = vpack.c.b16 %v5347, %v5344
        %v5390 = vpack.c.b16 %v5348, %v5345
        %v5391 = vpack.c.b16 %v5349, %v5346
        %v5392 = vpack.c.b16 %v5353, %v5350
        %v5393 = vpack.c.b16 %v5354, %v5351
        %v5394 = vpack.c.b16 %v5355, %v5352
        %v5395 = vpack.c.b16 %v5359, %v5356
        %v5396 = vpack.c.b16 %v5360, %v5357
        %v5397 = vpack.c.b16 %v5361, %v5358
        %v5398 = vpack.c.b16 %v5365, %v5362
        %v5399 = vpack.c.b16 %v5366, %v5363
        %v5400 = vpack.c.b16 %v5367, %v5364
        %v5401 = vpack.c.b16 %v5371, %v5368
        %v5402 = vpack.c.b16 %v5372, %v5369
        %v5403 = vpack.c.b16 %v5373, %v5370
        %v5425 = vsel %vm4402, %v5376, 0
        %v5428 = vsel %vm4402, %v5379, 0
        %v5431 = vsel %vm4402, %v5382, 0
        %v5434 = vsel %vm4402, %v5385, 0
        %v5437 = vsel %vm4402, %v5388, 0
        %v5440 = vsel %vm4402, %v5391, 0
        %v5443 = vsel %vm4402, %v5394, 0
        %v5446 = vsel %vm4402, %v5397, 0
        %v5449 = vsel %vm4402, %v5400, 0
        %v5452 = vsel %vm4402, %v5403, 0
        %5454 = vmatprep.subr.bf16.mxu0 %v4177
        %5455 = vmatpush1.bf16.msra.mxu0 %v4176
        %5456 = vmatprep.subr.bf16.mxu0 %v4179
        %5457 = vmatpush1.bf16.msra.mxu0 %v4178
        %5458 = vmatprep.subr.bf16.mxu0 %v4181
        %5459 = vmatpush1.bf16.msra.mxu0 %v4180
        %5460 = vmatprep.subr.bf16.mxu0 %v4183
        %5461 = vmatpush1.bf16.msra.mxu0 %v4182
        %5462 = vmatprep.subr.bf16.mxu0 %v4185
        %5463 = vmatpush1.bf16.msra.mxu0 %v4184
        %5464 = vmatprep.subr.bf16.mxu0 %v4187
        %5465 = vmatpush1.bf16.msra.mxu0 %v4186
        %5466 = vmatprep.subr.bf16.mxu0 %v4189
        %5467 = vmatpush1.bf16.msra.mxu0 %v4188
        %5468 = vmatprep.subr.bf16.mxu0 %v4191
        %5469 = vmatpush1.bf16.msra.mxu0 %v4190
        %5470 = vmatprep.subr.bf16.mxu0 %v4193
        %5471 = vmatpush1.bf16.msra.mxu0 %v4192
        %5472 = vmatprep.subr.bf16.mxu0 %v4195
        %5473 = vmatpush1.bf16.msra.mxu0 %v4194
        %5474 = vmatprep.subr.bf16.mxu0 %v4197
        %5475 = vmatpush1.bf16.msra.mxu0 %v4196
        %5476 = vmatprep.subr.bf16.mxu0 %v4199
        %5477 = vmatpush1.bf16.msra.mxu0 %v4198
        %5478 = vmatprep.subr.bf16.mxu0 %v4201
        %5479 = vmatpush1.bf16.msra.mxu0 %v4200
        %5480 = vmatprep.subr.bf16.mxu0 %v4203
        %5481 = vmatpush1.bf16.msra.mxu0 %v4202
        %5482 = vmatprep.subr.bf16.mxu0 %v4205
        %5483 = vmatpush1.bf16.msra.mxu0 %v4204
        %5484 = vmatprep.subr.bf16.mxu0 %v4207
        %5485 = vmatpush1.bf16.msra.mxu0 %v4206
        %5486 = vmatprep.mubr.bf16.mxu0 %v5375
        %5487 = vmatmul.mubr.bf16.gmra.mrb[0].mxu0 %v5374
        %v5488 = vpop.f32.mrb[0].mxu0
        %v5489 = vadd.f32 0.0, %v5488
        %v5490 = vpop.f32.mrb[0].mxu0
        %v5491 = vadd.f32 0.0, %v5490
        %v5492 = vpop.f32.mrb[0].mxu0
        %v5493 = vadd.f32 0.0, %v5492
        %v5494 = vpop.f32.mrb[0].mxu0
        %v5495 = vadd.f32 0.0, %v5494
        %5496 = vmatprep.mubr.bf16.mxu0 %v5378
        %5497 = vmatmul.mubr.bf16.gmra.mrb[0].mxu0 %v5377
        %v5498 = vpop.f32.mrb[0].mxu0
        %v5499 = vadd.f32 0.0, %v5498
        %v5500 = vpop.f32.mrb[0].mxu0
        %v5501 = vadd.f32 0.0, %v5500
        %v5502 = vpop.f32.mrb[0].mxu0
        %v5503 = vadd.f32 0.0, %v5502
        %v5504 = vpop.f32.mrb[0].mxu0
        %v5505 = vadd.f32 0.0, %v5504
        %5506 = vmatprep.mubr.bf16.mxu0 %v5381
        %5507 = vmatmul.mubr.bf16.gmra.mrb[0].mxu0 %v5380
        %v5508 = vpop.f32.mrb[0].mxu0
        %v5509 = vadd.f32 0.0, %v5508
        %v5510 = vpop.f32.mrb[0].mxu0
        %v5511 = vadd.f32 0.0, %v5510
        %v5512 = vpop.f32.mrb[0].mxu0
        %v5513 = vadd.f32 0.0, %v5512
        %v5514 = vpop.f32.mrb[0].mxu0
        %v5515 = vadd.f32 0.0, %v5514
        %5516 = vmatprep.mubr.bf16.mxu0 %v5384
        %5517 = vmatmul.mubr.bf16.gmra.mrb[0].mxu0 %v5383
        %v5518 = vpop.f32.mrb[0].mxu0
        %v5519 = vadd.f32 0.0, %v5518
        %v5520 = vpop.f32.mrb[0].mxu0
        %v5521 = vadd.f32 0.0, %v5520
        %v5522 = vpop.f32.mrb[0].mxu0
        %v5523 = vadd.f32 0.0, %v5522
        %v5524 = vpop.f32.mrb[0].mxu0
        %v5525 = vadd.f32 0.0, %v5524
        %5526 = vmatprep.mubr.bf16.mxu0 %v5387
        %5527 = vmatmul.mubr.bf16.gmra.mrb[0].mxu0 %v5386
        %v5528 = vpop.f32.mrb[0].mxu0
        %v5529 = vadd.f32 0.0, %v5528
        %v5530 = vpop.f32.mrb[0].mxu0
        %v5531 = vadd.f32 0.0, %v5530
        %v5532 = vpop.f32.mrb[0].mxu0
        %v5533 = vadd.f32 0.0, %v5532
        %v5534 = vpop.f32.mrb[0].mxu0
        %v5535 = vadd.f32 0.0, %v5534
        %5536 = vmatprep.mubr.bf16.mxu0 %v5390
        %5537 = vmatmul.mubr.bf16.gmra.mrb[0].mxu0 %v5389
        %v5538 = vpop.f32.mrb[0].mxu0
        %v5539 = vadd.f32 0.0, %v5538
        %v5540 = vpop.f32.mrb[0].mxu0
        %v5541 = vadd.f32 0.0, %v5540
        %v5542 = vpop.f32.mrb[0].mxu0
        %v5543 = vadd.f32 0.0, %v5542
        %v5544 = vpop.f32.mrb[0].mxu0
        %v5545 = vadd.f32 0.0, %v5544
        %5546 = vmatprep.mubr.bf16.mxu0 %v5393
        %5547 = vmatmul.mubr.bf16.gmra.mrb[0].mxu0 %v5392
        %v5548 = vpop.f32.mrb[0].mxu0
        %v5549 = vadd.f32 0.0, %v5548
        %v5550 = vpop.f32.mrb[0].mxu0
        %v5551 = vadd.f32 0.0, %v5550
        %v5552 = vpop.f32.mrb[0].mxu0
        %v5553 = vadd.f32 0.0, %v5552
        %v5554 = vpop.f32.mrb[0].mxu0
        %v5555 = vadd.f32 0.0, %v5554
        %5556 = vmatprep.mubr.bf16.mxu0 %v5396
        %5557 = vmatmul.mubr.bf16.gmra.mrb[0].mxu0 %v5395
        %v5558 = vpop.f32.mrb[0].mxu0
        %v5559 = vadd.f32 0.0, %v5558
        %v5560 = vpop.f32.mrb[0].mxu0
        %v5561 = vadd.f32 0.0, %v5560
        %v5562 = vpop.f32.mrb[0].mxu0
        %v5563 = vadd.f32 0.0, %v5562
        %v5564 = vpop.f32.mrb[0].mxu0
        %v5565 = vadd.f32 0.0, %v5564
        %5566 = vmatprep.mubr.bf16.mxu0 %v5399
        %5567 = vmatmul.mubr.bf16.gmra.mrb[0].mxu0 %v5398
        %v5568 = vpop.f32.mrb[0].mxu0
        %v5569 = vadd.f32 0.0, %v5568
        %v5570 = vpop.f32.mrb[0].mxu0
        %v5571 = vadd.f32 0.0, %v5570
        %v5572 = vpop.f32.mrb[0].mxu0
        %v5573 = vadd.f32 0.0, %v5572
        %v5574 = vpop.f32.mrb[0].mxu0
        %v5575 = vadd.f32 0.0, %v5574
        %5576 = vmatprep.mubr.bf16.mxu0 %v5402
        %5577 = vmatmul.mubr.bf16.gmra.mrb[0].mxu0 %v5401
        %v5578 = vpop.f32.mrb[0].mxu0
        %v5579 = vadd.f32 0.0, %v5578
        %v5580 = vpop.f32.mrb[0].mxu0
        %v5581 = vadd.f32 0.0, %v5580
        %v5582 = vpop.f32.mrb[0].mxu0
        %v5583 = vadd.f32 0.0, %v5582
        %v5584 = vpop.f32.mrb[0].mxu0
        %v5585 = vadd.f32 0.0, %v5584
        %5586 = vdwg.mxu0
        %5587 = vmatprep.subr.bf16.mxu0 %v4209
        %5588 = vmatpush1.bf16.msra.mxu0 %v4208
        %5589 = vmatprep.subr.bf16.mxu0 %v4438
        %5590 = vmatpush1.bf16.msra.mxu0 %v4435
        %5591 = vmatprep.subr.bf16.mxu0 0
        %5592 = vmatpush1.bf16.msra.mxu0 0
        %5593 = vmatprep.subr.bf16.mxu0 0
        %5594 = vmatpush1.bf16.msra.mxu0 0
        %5595 = vmatprep.subr.bf16.mxu0 0
        %5596 = vmatpush1.bf16.msra.mxu0 0
        %5597 = vmatprep.subr.bf16.mxu0 0
        %5598 = vmatpush1.bf16.msra.mxu0 0
        %5599 = vmatprep.subr.bf16.mxu0 0
        %5600 = vmatpush1.bf16.msra.mxu0 0
        %5601 = vmatprep.subr.bf16.mxu0 0
        %5602 = vmatpush1.bf16.msra.mxu0 0
        %5603 = vmatprep.subr.bf16.mxu0 0
        %5604 = vmatpush1.bf16.msra.mxu0 0
        %5605 = vmatprep.subr.bf16.mxu0 0
        %5606 = vmatpush1.bf16.msra.mxu0 0
        %5607 = vmatprep.subr.bf16.mxu0 0
        %5608 = vmatpush1.bf16.msra.mxu0 0
        %5609 = vmatprep.subr.bf16.mxu0 0
        %5610 = vmatpush1.bf16.msra.mxu0 0
        %5611 = vmatprep.subr.bf16.mxu0 0
        %5612 = vmatpush1.bf16.msra.mxu0 0
        %5613 = vmatprep.subr.bf16.mxu0 0
        %5614 = vmatpush1.bf16.msra.mxu0 0
        %5615 = vmatprep.subr.bf16.mxu0 0
        %5616 = vmatpush1.bf16.msra.mxu0 0
        %5617 = vmatprep.subr.bf16.mxu0 0
        %5618 = vmatpush1.bf16.msra.mxu0 0
        %5619 = vmatprep.mubr.bf16.mxu0 0
        %5620 = vmatmul.mubr.bf16.gmra.mrb[0].mxu0 %v5425
        %v5621 = vpop.f32.mrb[0].mxu0
        %v5622 = vadd.f32 %v5489, %v5621
        %v5623 = vpop.f32.mrb[0].mxu0
        %v5624 = vadd.f32 %v5491, %v5623
        %v5625 = vpop.f32.mrb[0].mxu0
        %v5626 = vadd.f32 %v5493, %v5625
        %v5627 = vpop.f32.mrb[0].mxu0
        %v5628 = vadd.f32 %v5495, %v5627
        %5629 = vmatprep.mubr.bf16.mxu0 0
        %5630 = vmatmul.mubr.bf16.gmra.mrb[0].mxu0 %v5428
        %v5631 = vpop.f32.mrb[0].mxu0
        %v5632 = vadd.f32 %v5499, %v5631
        %v5633 = vpop.f32.mrb[0].mxu0
        %v5634 = vadd.f32 %v5501, %v5633
        %v5635 = vpop.f32.mrb[0].mxu0
        %v5636 = vadd.f32 %v5503, %v5635
        %v5637 = vpop.f32.mrb[0].mxu0
        %v5638 = vadd.f32 %v5505, %v5637
        %5639 = vmatprep.mubr.bf16.mxu0 0
        %5640 = vmatmul.mubr.bf16.gmra.mrb[0].mxu0 %v5431
        %v5641 = vpop.f32.mrb[0].mxu0
        %v5642 = vadd.f32 %v5509, %v5641
        %v5643 = vpop.f32.mrb[0].mxu0
        %v5644 = vadd.f32 %v5511, %v5643
        %v5645 = vpop.f32.mrb[0].mxu0
        %v5646 = vadd.f32 %v5513, %v5645
        %v5647 = vpop.f32.mrb[0].mxu0
        %v5648 = vadd.f32 %v5515, %v5647
        %5649 = vmatprep.mubr.bf16.mxu0 0
        %5650 = vmatmul.mubr.bf16.gmra.mrb[0].mxu0 %v5434
        %v5651 = vpop.f32.mrb[0].mxu0
        %v5652 = vadd.f32 %v5519, %v5651
        %v5653 = vpop.f32.mrb[0].mxu0
        %v5654 = vadd.f32 %v5521, %v5653
        %v5655 = vpop.f32.mrb[0].mxu0
        %v5656 = vadd.f32 %v5523, %v5655
        %v5657 = vpop.f32.mrb[0].mxu0
        %v5658 = vadd.f32 %v5525, %v5657
        %5659 = vmatprep.mubr.bf16.mxu0 0
        %5660 = vmatmul.mubr.bf16.gmra.mrb[0].mxu0 %v5437
        %v5661 = vpop.f32.mrb[0].mxu0
        %v5662 = vadd.f32 %v5529, %v5661
        %v5663 = vpop.f32.mrb[0].mxu0
        %v5664 = vadd.f32 %v5531, %v5663
        %v5665 = vpop.f32.mrb[0].mxu0
        %v5666 = vadd.f32 %v5533, %v5665
        %v5667 = vpop.f32.mrb[0].mxu0
        %v5668 = vadd.f32 %v5535, %v5667
        %5669 = vmatprep.mubr.bf16.mxu0 0
        %5670 = vmatmul.mubr.bf16.gmra.mrb[0].mxu0 %v5440
        %v5671 = vpop.f32.mrb[0].mxu0
        %v5672 = vadd.f32 %v5539, %v5671
        %v5673 = vpop.f32.mrb[0].mxu0
        %v5674 = vadd.f32 %v5541, %v5673
        %v5675 = vpop.f32.mrb[0].mxu0
        %v5676 = vadd.f32 %v5543, %v5675
        %v5677 = vpop.f32.mrb[0].mxu0
        %v5678 = vadd.f32 %v5545, %v5677
        %5679 = vmatprep.mubr.bf16.mxu0 0
        %5680 = vmatmul.mubr.bf16.gmra.mrb[0].mxu0 %v5443
        %v5681 = vpop.f32.mrb[0].mxu0
        %v5682 = vadd.f32 %v5549, %v5681
        %v5683 = vpop.f32.mrb[0].mxu0
        %v5684 = vadd.f32 %v5551, %v5683
        %v5685 = vpop.f32.mrb[0].mxu0
        %v5686 = vadd.f32 %v5553, %v5685
        %v5687 = vpop.f32.mrb[0].mxu0
        %v5688 = vadd.f32 %v5555, %v5687
        %5689 = vmatprep.mubr.bf16.mxu0 0
        %5690 = vmatmul.mubr.bf16.gmra.mrb[0].mxu0 %v5446
        %v5691 = vpop.f32.mrb[0].mxu0
        %v5692 = vadd.f32 %v5559, %v5691
        %v5693 = vpop.f32.mrb[0].mxu0
        %v5694 = vadd.f32 %v5561, %v5693
        %v5695 = vpop.f32.mrb[0].mxu0
        %v5696 = vadd.f32 %v5563, %v5695
        %v5697 = vpop.f32.mrb[0].mxu0
        %v5698 = vadd.f32 %v5565, %v5697
        %5699 = vmatprep.mubr.bf16.mxu0 0
        %5700 = vmatmul.mubr.bf16.gmra.mrb[0].mxu0 %v5449
        %v5701 = vpop.f32.mrb[0].mxu0
        %v5702 = vadd.f32 %v5569, %v5701
        %v5703 = vpop.f32.mrb[0].mxu0
        %v5704 = vadd.f32 %v5571, %v5703
        %v5705 = vpop.f32.mrb[0].mxu0
        %v5706 = vadd.f32 %v5573, %v5705
        %v5707 = vpop.f32.mrb[0].mxu0
        %v5708 = vadd.f32 %v5575, %v5707
        %5709 = vmatprep.mubr.bf16.mxu0 0
        %5710 = vmatmul.mubr.bf16.gmra.mrb[0].mxu0 %v5452
        %v5711 = vpop.f32.mrb[0].mxu0
        %v5712 = vadd.f32 %v5579, %v5711
        %v5713 = vpop.f32.mrb[0].mxu0
        %v5714 = vadd.f32 %v5581, %v5713
        %v5715 = vpop.f32.mrb[0].mxu0
        %v5716 = vadd.f32 %v5583, %v5715
        %v5717 = vpop.f32.mrb[0].mxu0
        %v5718 = vadd.f32 %v5585, %v5717
        %5719 = vdwg.mxu0
        %v5720 = vmax.f32 %v5193, %v5622
        %v5721 = vmax.f32 %v5194, %v5624
        %v5722 = vmax.f32 %v5195, %v5626
        %v5723 = vmax.f32 %v5196, %v5628
        %v5724 = vmax.f32 %v5197, %v5632
        %v5725 = vmax.f32 %v5198, %v5634
        %v5726 = vmax.f32 %v5199, %v5636
        %v5727 = vmax.f32 %v5200, %v5638
        %v5728 = vmax.f32 %v5201, %v5642
        %v5729 = vmax.f32 %v5202, %v5644
        %v5730 = vmax.f32 %v5203, %v5646
        %v5731 = vmax.f32 %v5204, %v5648
        %v5732 = vmax.f32 %v5205, %v5652
        %v5733 = vmax.f32 %v5206, %v5654
        %v5734 = vmax.f32 %v5207, %v5656
        %v5735 = vmax.f32 %v5208, %v5658
        %v5736 = vmax.f32 %v5209, %v5662
        %v5737 = vmax.f32 %v5210, %v5664
        %v5738 = vmax.f32 %v5211, %v5666
        %v5739 = vmax.f32 %v5212, %v5668
        %v5740 = vmax.f32 %v5213, %v5672
        %v5741 = vmax.f32 %v5214, %v5674
        %v5742 = vmax.f32 %v5215, %v5676
        %v5743 = vmax.f32 %v5216, %v5678
        %v5744 = vmax.f32 %v5217, %v5682
        %v5745 = vmax.f32 %v5218, %v5684
        %v5746 = vmax.f32 %v5219, %v5686
        %v5747 = vmax.f32 %v5220, %v5688
        %v5748 = vmax.f32 %v5221, %v5692
        %v5749 = vmax.f32 %v5222, %v5694
        %v5750 = vmax.f32 %v5223, %v5696
        %v5751 = vmax.f32 %v5224, %v5698
        %v5752 = vmax.f32 %v5225, %v5702
        %v5753 = vmax.f32 %v5226, %v5704
        %v5754 = vmax.f32 %v5227, %v5706
        %v5755 = vmax.f32 %v5228, %v5708
        %v5756 = vmax.f32 %v5229, %v5712
        %v5757 = vmax.f32 %v5230, %v5714
        %v5758 = vmax.f32 %v5231, %v5716
        %v5759 = vmax.f32 %v5232, %v5718
        %v5760 = vpack.c.bf16 %v5722, %v5720
        %v5761 = vpack.c.bf16 %v5723, %v5721
        %v5762 = vpack.c.bf16 %v5726, %v5724
        %v5763 = vpack.c.bf16 %v5727, %v5725
        %v5764 = vpack.c.bf16 %v5730, %v5728
        %v5765 = vpack.c.bf16 %v5731, %v5729
        %v5766 = vpack.c.bf16 %v5734, %v5732
        %v5767 = vpack.c.bf16 %v5735, %v5733
        %v5768 = vpack.c.bf16 %v5738, %v5736
        %v5769 = vpack.c.bf16 %v5739, %v5737
        %v5770 = vpack.c.bf16 %v5742, %v5740
        %v5771 = vpack.c.bf16 %v5743, %v5741
        %v5772 = vpack.c.bf16 %v5746, %v5744
        %v5773 = vpack.c.bf16 %v5747, %v5745
        %v5774 = vpack.c.bf16 %v5750, %v5748
        %v5775 = vpack.c.bf16 %v5751, %v5749
        %v5776 = vpack.c.bf16 %v5754, %v5752
        %v5777 = vpack.c.bf16 %v5755, %v5753
        %v5778 = vpack.c.bf16 %v5758, %v5756
        %v5779 = vpack.c.bf16 %v5759, %v5757
        %v5780 = vld [vmem:[%s4] sm:$0xf]
        %v5781 = vld [vmem:[%s4 + $0x4] sm:$0xf]
        %v5782 = vld [vmem:[%s4 + $0x8] sm:$0xf]
        %v5783 = vld [vmem:[%s4 + $0xc] sm:$0xf]
        %v5784 = vld [vmem:[%s4 + $0x10] sm:$0xf]
        %v5785 = vld [vmem:[%s4 + $0x14] sm:$0xf]
        %v5786 = vld [vmem:[%s4 + $0x18] sm:$0xf]
        %v5787 = vld [vmem:[%s4 + $0x1c] sm:$0xf]
        %v5788 = vld [vmem:[%s4 + $0x20] sm:$0xf]
        %v5789 = vld [vmem:[%s4 + $0x24] sm:$0xf]
        %v5790 = vld [vmem:[%s4 + $0x28] sm:$0xf]
        %v5791 = vld [vmem:[%s4 + $0x2c] sm:$0xf]
        %v5792 = vld [vmem:[%s4 + $0x30] sm:$0xf]
        %v5793 = vld [vmem:[%s4 + $0x34] sm:$0xf]
        %v5794 = vld [vmem:[%s4 + $0x38] sm:$0xf]
        %v5795 = vld [vmem:[%s4 + $0x3c] sm:$0xf]
        %v5796 = vld [vmem:[%s4 + $0x40] sm:$0xf]
        %v5797 = vld [vmem:[%s4 + $0x44] sm:$0xf]
        %v5798 = vld [vmem:[%s4 + $0x48] sm:$0xf]
        %v5799 = vld [vmem:[%s4 + $0x4c] sm:$0xf]
        %v5800 = vld [vmem:[%s4 + $0x50] sm:$0xf]
        %v5801 = vld [vmem:[%s4 + $0x54] sm:$0xf]
        %v5802 = vld [vmem:[%s4 + $0x58] sm:$0xf]
        %v5803 = vld [vmem:[%s4 + $0x5c] sm:$0xf]
        %v5804 = vld [vmem:[%s4 + $0x60] sm:$0xf]
        %v5805 = vld [vmem:[%s4 + $0x64] sm:$0xf]
        %v5806 = vld [vmem:[%s4 + $0x68] sm:$0xf]
        %v5807 = vld [vmem:[%s4 + $0x6c] sm:$0xf]
        %v5808 = vld [vmem:[%s4 + $0x70] sm:$0xf]
        %v5809 = vld [vmem:[%s4 + $0x74] sm:$0xf]
        %v5810 = vld [vmem:[%s4 + $0x78] sm:$0xf]
        %v5811 = vld [vmem:[%s4 + $0x7c] sm:$0xf]
        %v5844 = vunpack.c.l.b16 %v5780
        %v5845 = vunpack.c.l.b16 %v5781
        %v5846 = vunpack.c.l.b16 %v5782
        %v5847 = vunpack.c.l.b16 %v5783
        %v5848 = vunpack.c.l.b16 %v5784
        %v5849 = vunpack.c.l.b16 %v5785
        %v5850 = vunpack.c.l.b16 %v5786
        %v5851 = vunpack.c.l.b16 %v5787
        %v5852 = vunpack.c.l.b16 %v5788
        %v5853 = vunpack.c.l.b16 %v5789
        %v5854 = vunpack.c.l.b16 %v5790
        %v5855 = vunpack.c.l.b16 %v5791
        %v5856 = vunpack.c.l.b16 %v5792
        %v5857 = vunpack.c.l.b16 %v5793
        %v5858 = vunpack.c.l.b16 %v5794
        %v5859 = vunpack.c.l.b16 %v5795
        %v5860 = vunpack.c.l.b16 %v5796
        %v5861 = vunpack.c.l.b16 %v5797
        %v5862 = vunpack.c.l.b16 %v5798
        %v5863 = vunpack.c.l.b16 %v5799
        %v5864 = vunpack.c.l.b16 %v5800
        %v5865 = vunpack.c.l.b16 %v5801
        %v5866 = vunpack.c.l.b16 %v5802
        %v5867 = vunpack.c.l.b16 %v5803
        %v5868 = vunpack.c.l.b16 %v5804
        %v5869 = vunpack.c.l.b16 %v5805
        %v5870 = vunpack.c.l.b16 %v5806
        %v5871 = vunpack.c.l.b16 %v5807
        %v5872 = vunpack.c.l.b16 %v5808
        %v5873 = vunpack.c.l.b16 %v5809
        %v5874 = vunpack.c.l.b16 %v5810
        %v5875 = vunpack.c.l.b16 %v5811
        %v5876 = vpack.c.b16 %v5845, %v5844
        %v5877 = vpack.c.b16 %v5847, %v5846
        %v5878 = vpack.c.b16 %v5849, %v5848
        %v5879 = vpack.c.b16 %v5851, %v5850
        %v5880 = vpack.c.b16 %v5853, %v5852
        %v5881 = vpack.c.b16 %v5855, %v5854
        %v5882 = vpack.c.b16 %v5857, %v5856
        %v5883 = vpack.c.b16 %v5859, %v5858
        %v5884 = vpack.c.b16 %v5861, %v5860
        %v5885 = vpack.c.b16 %v5863, %v5862
        %v5886 = vpack.c.b16 %v5865, %v5864
        %v5887 = vpack.c.b16 %v5867, %v5866
        %v5888 = vpack.c.b16 %v5869, %v5868
        %v5889 = vpack.c.b16 %v5871, %v5870
        %v5890 = vpack.c.b16 %v5873, %v5872
        %v5891 = vpack.c.b16 %v5875, %v5874
        %5908 = vmatprep.subr.bf16.mxu0 0
        %5909 = vmatpush1.bf16.msra.mxu0 %v5876
        %5910 = vmatprep.subr.bf16.mxu0 0
        %5911 = vmatpush1.bf16.msra.mxu0 %v5877
        %5912 = vmatprep.subr.bf16.mxu0 0
        %5913 = vmatpush1.bf16.msra.mxu0 %v5878
        %5914 = vmatprep.subr.bf16.mxu0 0
        %5915 = vmatpush1.bf16.msra.mxu0 %v5879
        %5916 = vmatprep.subr.bf16.mxu0 0
        %5917 = vmatpush1.bf16.msra.mxu0 %v5880
        %5918 = vmatprep.subr.bf16.mxu0 0
        %5919 = vmatpush1.bf16.msra.mxu0 %v5881
        %5920 = vmatprep.subr.bf16.mxu0 0
        %5921 = vmatpush1.bf16.msra.mxu0 %v5882
        %5922 = vmatprep.subr.bf16.mxu0 0
        %5923 = vmatpush1.bf16.msra.mxu0 %v5883
        %5924 = vmatprep.subr.bf16.mxu0 0
        %5925 = vmatpush1.bf16.msra.mxu0 %v5884
        %5926 = vmatprep.subr.bf16.mxu0 0
        %5927 = vmatpush1.bf16.msra.mxu0 %v5885
        %5928 = vmatprep.subr.bf16.mxu0 0
        %5929 = vmatpush1.bf16.msra.mxu0 %v5886
        %5930 = vmatprep.subr.bf16.mxu0 0
        %5931 = vmatpush1.bf16.msra.mxu0 %v5887
        %5932 = vmatprep.subr.bf16.mxu0 0
        %5933 = vmatpush1.bf16.msra.mxu0 %v5888
        %5934 = vmatprep.subr.bf16.mxu0 0
        %5935 = vmatpush1.bf16.msra.mxu0 %v5889
        %5936 = vmatprep.subr.bf16.mxu0 0
        %5937 = vmatpush1.bf16.msra.mxu0 %v5890
        %5938 = vmatprep.subr.bf16.mxu0 0
        %5939 = vmatpush1.bf16.msra.mxu0 %v5891
        %5940 = vmatprep.mubr.bf16.mxu0 %v5761
        %5941 = vmatmul.mubr.bf16.gmra.mrb[0].mxu0 %v5760
        %v5942 = vpop.f32.mrb[0].mxu0
        %v5943 = vadd.f32 0.0, %v5942
        %v5944 = vpop.f32.mrb[0].mxu0
        %v5945 = vpop.f32.mrb[0].mxu0
        %v5946 = vadd.f32 0.0, %v5945
        %v5947 = vpop.f32.mrb[0].mxu0
        %5948 = vmatprep.mubr.bf16.mxu0 %v5763
        %5949 = vmatmul.mubr.bf16.gmra.mrb[0].mxu0 %v5762
        %v5950 = vpop.f32.mrb[0].mxu0
        %v5951 = vadd.f32 0.0, %v5950
        %v5952 = vpop.f32.mrb[0].mxu0
        %v5953 = vpop.f32.mrb[0].mxu0
        %v5954 = vadd.f32 0.0, %v5953
        %v5955 = vpop.f32.mrb[0].mxu0
        %5956 = vmatprep.mubr.bf16.mxu0 %v5765
        %5957 = vmatmul.mubr.bf16.gmra.mrb[0].mxu0 %v5764
        %v5958 = vpop.f32.mrb[0].mxu0
        %v5959 = vadd.f32 0.0, %v5958
        %v5960 = vpop.f32.mrb[0].mxu0
        %v5961 = vpop.f32.mrb[0].mxu0
        %v5962 = vadd.f32 0.0, %v5961
        %v5963 = vpop.f32.mrb[0].mxu0
        %5964 = vmatprep.mubr.bf16.mxu0 %v5767
        %5965 = vmatmul.mubr.bf16.gmra.mrb[0].mxu0 %v5766
        %v5966 = vpop.f32.mrb[0].mxu0
        %v5967 = vadd.f32 0.0, %v5966
        %v5968 = vpop.f32.mrb[0].mxu0
        %v5969 = vpop.f32.mrb[0].mxu0
        %v5970 = vadd.f32 0.0, %v5969
        %v5971 = vpop.f32.mrb[0].mxu0
        %5972 = vmatprep.mubr.bf16.mxu0 %v5769
        %5973 = vmatmul.mubr.bf16.gmra.mrb[0].mxu0 %v5768
        %v5974 = vpop.f32.mrb[0].mxu0
        %v5975 = vadd.f32 0.0, %v5974
        %v5976 = vpop.f32.mrb[0].mxu0
        %v5977 = vpop.f32.mrb[0].mxu0
        %v5978 = vadd.f32 0.0, %v5977
        %v5979 = vpop.f32.mrb[0].mxu0
        %5980 = vmatprep.mubr.bf16.mxu0 %v5771
        %5981 = vmatmul.mubr.bf16.gmra.mrb[0].mxu0 %v5770
        %v5982 = vpop.f32.mrb[0].mxu0
        %v5983 = vadd.f32 0.0, %v5982
        %v5984 = vpop.f32.mrb[0].mxu0
        %v5985 = vpop.f32.mrb[0].mxu0
        %v5986 = vadd.f32 0.0, %v5985
        %v5987 = vpop.f32.mrb[0].mxu0
        %5988 = vmatprep.mubr.bf16.mxu0 %v5773
        %5989 = vmatmul.mubr.bf16.gmra.mrb[0].mxu0 %v5772
        %v5990 = vpop.f32.mrb[0].mxu0
        %v5991 = vadd.f32 0.0, %v5990
        %v5992 = vpop.f32.mrb[0].mxu0
        %v5993 = vpop.f32.mrb[0].mxu0
        %v5994 = vadd.f32 0.0, %v5993
        %v5995 = vpop.f32.mrb[0].mxu0
        %5996 = vmatprep.mubr.bf16.mxu0 %v5775
        %5997 = vmatmul.mubr.bf16.gmra.mrb[0].mxu0 %v5774
        %v5998 = vpop.f32.mrb[0].mxu0
        %v5999 = vadd.f32 0.0, %v5998
        %v6000 = vpop.f32.mrb[0].mxu0
        %v6001 = vpop.f32.mrb[0].mxu0
        %v6002 = vadd.f32 0.0, %v6001
        %v6003 = vpop.f32.mrb[0].mxu0
        %6004 = vmatprep.mubr.bf16.mxu0 %v5777
        %6005 = vmatmul.mubr.bf16.gmra.mrb[0].mxu0 %v5776
        %v6006 = vpop.f32.mrb[0].mxu0
        %v6007 = vadd.f32 0.0, %v6006
        %v6008 = vpop.f32.mrb[0].mxu0
        %v6009 = vpop.f32.mrb[0].mxu0
        %v6010 = vadd.f32 0.0, %v6009
        %v6011 = vpop.f32.mrb[0].mxu0
        %6012 = vmatprep.mubr.bf16.mxu0 %v5779
        %6013 = vmatmul.mubr.bf16.gmra.mrb[0].mxu0 %v5778
        %v6014 = vpop.f32.mrb[0].mxu0
        %v6015 = vadd.f32 0.0, %v6014
        %v6016 = vpop.f32.mrb[0].mxu0
        %v6017 = vpop.f32.mrb[0].mxu0
        %v6018 = vadd.f32 0.0, %v6017
        %v6019 = vpop.f32.mrb[0].mxu0
        %6020 = vdwg.mxu0
        %s6021 = scalar_lea.vmem %s4, 128
        %v6022 = vld [vmem:[%s6021] sm:$0xf]
        %v6023 = vld [vmem:[%s6021 + $0x4] sm:$0xf]
        %v6024 = vld [vmem:[%s6021 + $0x8] sm:$0xf]
        %v6025 = vld [vmem:[%s6021 + $0xc] sm:$0xf]
        %v6026 = vld [vmem:[%s6021 + $0x10] sm:$0xf]
        %v6027 = vld [vmem:[%s6021 + $0x14] sm:$0xf]
        %v6028 = vld [vmem:[%s6021 + $0x18] sm:$0xf]
        %v6029 = vld [vmem:[%s6021 + $0x1c] sm:$0xf]
        %v6030 = vld [vmem:[%s6021 + $0x20] sm:$0xf]
        %v6031 = vld [vmem:[%s6021 + $0x24] sm:$0xf]
        %v6032 = vld [vmem:[%s6021 + $0x28] sm:$0xf]
        %v6033 = vld [vmem:[%s6021 + $0x2c] sm:$0xf]
        %v6034 = vld [vmem:[%s6021 + $0x30] sm:$0xf]
        %v6035 = vld [vmem:[%s6021 + $0x34] sm:$0xf]
        %v6036 = vld [vmem:[%s6021 + $0x38] sm:$0xf]
        %v6037 = vld [vmem:[%s6021 + $0x3c] sm:$0xf]
        %v6038 = vld [vmem:[%s6021 + $0x40] sm:$0xf]
        %v6039 = vld [vmem:[%s6021 + $0x44] sm:$0xf]
        %v6040 = vld [vmem:[%s6021 + $0x48] sm:$0xf]
        %v6041 = vld [vmem:[%s6021 + $0x4c] sm:$0xf]
        %v6042 = vld [vmem:[%s6021 + $0x50] sm:$0xf]
        %v6043 = vld [vmem:[%s6021 + $0x54] sm:$0xf]
        %v6044 = vld [vmem:[%s6021 + $0x58] sm:$0xf]
        %v6045 = vld [vmem:[%s6021 + $0x5c] sm:$0xf]
        %v6046 = vld [vmem:[%s6021 + $0x60] sm:$0xf]
        %v6047 = vld [vmem:[%s6021 + $0x64] sm:$0xf]
        %v6048 = vld [vmem:[%s6021 + $0x68] sm:$0xf]
        %v6049 = vld [vmem:[%s6021 + $0x6c] sm:$0xf]
        %v6050 = vld [vmem:[%s6021 + $0x70] sm:$0xf]
        %v6051 = vld [vmem:[%s6021 + $0x74] sm:$0xf]
        %v6052 = vld [vmem:[%s6021 + $0x78] sm:$0xf]
        %v6053 = vld [vmem:[%s6021 + $0x7c] sm:$0xf]
        %v6086 = vunpack.c.l.b16 %v6022
        %v6087 = vunpack.c.l.b16 %v6023
        %v6088 = vunpack.c.l.b16 %v6024
        %v6089 = vunpack.c.l.b16 %v6025
        %v6090 = vunpack.c.l.b16 %v6026
        %v6091 = vunpack.c.l.b16 %v6027
        %v6092 = vunpack.c.l.b16 %v6028
        %v6093 = vunpack.c.l.b16 %v6029
        %v6094 = vunpack.c.l.b16 %v6030
        %v6095 = vunpack.c.l.b16 %v6031
        %v6096 = vunpack.c.l.b16 %v6032
        %v6097 = vunpack.c.l.b16 %v6033
        %v6098 = vunpack.c.l.b16 %v6034
        %v6099 = vunpack.c.l.b16 %v6035
        %v6100 = vunpack.c.l.b16 %v6036
        %v6101 = vunpack.c.l.b16 %v6037
        %v6102 = vunpack.c.l.b16 %v6038
        %v6103 = vunpack.c.l.b16 %v6039
        %v6104 = vunpack.c.l.b16 %v6040
        %v6105 = vunpack.c.l.b16 %v6041
        %v6106 = vunpack.c.l.b16 %v6042
        %v6107 = vunpack.c.l.b16 %v6043
        %v6108 = vunpack.c.l.b16 %v6044
        %v6109 = vunpack.c.l.b16 %v6045
        %v6110 = vunpack.c.l.b16 %v6046
        %v6111 = vunpack.c.l.b16 %v6047
        %v6112 = vunpack.c.l.b16 %v6048
        %v6113 = vunpack.c.l.b16 %v6049
        %v6114 = vunpack.c.l.b16 %v6050
        %v6115 = vunpack.c.l.b16 %v6051
        %v6116 = vunpack.c.l.b16 %v6052
        %v6117 = vunpack.c.l.b16 %v6053
        %v6118 = vpack.c.b16 %v6087, %v6086
        %v6119 = vpack.c.b16 %v6089, %v6088
        %v6120 = vpack.c.b16 %v6091, %v6090
        %v6121 = vpack.c.b16 %v6093, %v6092
        %v6122 = vpack.c.b16 %v6095, %v6094
        %v6123 = vpack.c.b16 %v6097, %v6096
        %v6124 = vpack.c.b16 %v6099, %v6098
        %v6125 = vpack.c.b16 %v6101, %v6100
        %v6126 = vpack.c.b16 %v6103, %v6102
        %v6127 = vpack.c.b16 %v6105, %v6104
        %v6128 = vpack.c.b16 %v6107, %v6106
        %v6129 = vpack.c.b16 %v6109, %v6108
        %v6130 = vpack.c.b16 %v6111, %v6110
        %v6131 = vpack.c.b16 %v6113, %v6112
        %v6132 = vpack.c.b16 %v6115, %v6114
        %v6133 = vpack.c.b16 %v6117, %v6116
        %6150 = vmatprep.subr.bf16.mxu0 0
        %6151 = vmatpush1.bf16.msra.mxu0 %v6118
        %6152 = vmatprep.subr.bf16.mxu0 0
        %6153 = vmatpush1.bf16.msra.mxu0 %v6119
        %6154 = vmatprep.subr.bf16.mxu0 0
        %6155 = vmatpush1.bf16.msra.mxu0 %v6120
        %6156 = vmatprep.subr.bf16.mxu0 0
        %6157 = vmatpush1.bf16.msra.mxu0 %v6121
        %6158 = vmatprep.subr.bf16.mxu0 0
        %6159 = vmatpush1.bf16.msra.mxu0 %v6122
        %6160 = vmatprep.subr.bf16.mxu0 0
        %6161 = vmatpush1.bf16.msra.mxu0 %v6123
        %6162 = vmatprep.subr.bf16.mxu0 0
        %6163 = vmatpush1.bf16.msra.mxu0 %v6124
        %6164 = vmatprep.subr.bf16.mxu0 0
        %6165 = vmatpush1.bf16.msra.mxu0 %v6125
        %6166 = vmatprep.subr.bf16.mxu0 0
        %6167 = vmatpush1.bf16.msra.mxu0 %v6126
        %6168 = vmatprep.subr.bf16.mxu0 0
        %6169 = vmatpush1.bf16.msra.mxu0 %v6127
        %6170 = vmatprep.subr.bf16.mxu0 0
        %6171 = vmatpush1.bf16.msra.mxu0 %v6128
        %6172 = vmatprep.subr.bf16.mxu0 0
        %6173 = vmatpush1.bf16.msra.mxu0 %v6129
        %6174 = vmatprep.subr.bf16.mxu0 0
        %6175 = vmatpush1.bf16.msra.mxu0 %v6130
        %6176 = vmatprep.subr.bf16.mxu0 0
        %6177 = vmatpush1.bf16.msra.mxu0 %v6131
        %6178 = vmatprep.subr.bf16.mxu0 0
        %6179 = vmatpush1.bf16.msra.mxu0 %v6132
        %6180 = vmatprep.subr.bf16.mxu0 0
        %6181 = vmatpush1.bf16.msra.mxu0 %v6133
        %6182 = vmatprep.mubr.bf16.mxu0 %v5761
        %6183 = vmatmul.mubr.bf16.gmra.mrb[0].mxu0 %v5760
        %v6184 = vpop.f32.mrb[0].mxu0
        %v6185 = vadd.f32 0.0, %v6184
        %v6186 = vpop.f32.mrb[0].mxu0
        %v6187 = vpop.f32.mrb[0].mxu0
        %v6188 = vadd.f32 0.0, %v6187
        %v6189 = vpop.f32.mrb[0].mxu0
        %6190 = vmatprep.mubr.bf16.mxu0 %v5763
        %6191 = vmatmul.mubr.bf16.gmra.mrb[0].mxu0 %v5762
        %v6192 = vpop.f32.mrb[0].mxu0
        %v6193 = vadd.f32 0.0, %v6192
        %v6194 = vpop.f32.mrb[0].mxu0
        %v6195 = vpop.f32.mrb[0].mxu0
        %v6196 = vadd.f32 0.0, %v6195
        %v6197 = vpop.f32.mrb[0].mxu0
        %6198 = vmatprep.mubr.bf16.mxu0 %v5765
        %6199 = vmatmul.mubr.bf16.gmra.mrb[0].mxu0 %v5764
        %v6200 = vpop.f32.mrb[0].mxu0
        %v6201 = vadd.f32 0.0, %v6200
        %v6202 = vpop.f32.mrb[0].mxu0
        %v6203 = vpop.f32.mrb[0].mxu0
        %v6204 = vadd.f32 0.0, %v6203
        %v6205 = vpop.f32.mrb[0].mxu0
        %6206 = vmatprep.mubr.bf16.mxu0 %v5767
        %6207 = vmatmul.mubr.bf16.gmra.mrb[0].mxu0 %v5766
        %v6208 = vpop.f32.mrb[0].mxu0
        %v6209 = vadd.f32 0.0, %v6208
        %v6210 = vpop.f32.mrb[0].mxu0
        %v6211 = vpop.f32.mrb[0].mxu0
        %v6212 = vadd.f32 0.0, %v6211
        %v6213 = vpop.f32.mrb[0].mxu0
        %6214 = vmatprep.mubr.bf16.mxu0 %v5769
        %6215 = vmatmul.mubr.bf16.gmra.mrb[0].mxu0 %v5768
        %v6216 = vpop.f32.mrb[0].mxu0
        %v6217 = vadd.f32 0.0, %v6216
        %v6218 = vpop.f32.mrb[0].mxu0
        %v6219 = vpop.f32.mrb[0].mxu0
        %v6220 = vadd.f32 0.0, %v6219
        %v6221 = vpop.f32.mrb[0].mxu0
        %6222 = vmatprep.mubr.bf16.mxu0 %v5771
        %6223 = vmatmul.mubr.bf16.gmra.mrb[0].mxu0 %v5770
        %v6224 = vpop.f32.mrb[0].mxu0
        %v6225 = vadd.f32 0.0, %v6224
        %v6226 = vpop.f32.mrb[0].mxu0
        %v6227 = vpop.f32.mrb[0].mxu0
        %v6228 = vadd.f32 0.0, %v6227
        %v6229 = vpop.f32.mrb[0].mxu0
        %6230 = vmatprep.mubr.bf16.mxu0 %v5773
        %6231 = vmatmul.mubr.bf16.gmra.mrb[0].mxu0 %v5772
        %v6232 = vpop.f32.mrb[0].mxu0
        %v6233 = vadd.f32 0.0, %v6232
        %v6234 = vpop.f32.mrb[0].mxu0
        %v6235 = vpop.f32.mrb[0].mxu0
        %v6236 = vadd.f32 0.0, %v6235
        %v6237 = vpop.f32.mrb[0].mxu0
        %6238 = vmatprep.mubr.bf16.mxu0 %v5775
        %6239 = vmatmul.mubr.bf16.gmra.mrb[0].mxu0 %v5774
        %v6240 = vpop.f32.mrb[0].mxu0
        %v6241 = vadd.f32 0.0, %v6240
        %v6242 = vpop.f32.mrb[0].mxu0
        %v6243 = vpop.f32.mrb[0].mxu0
        %v6244 = vadd.f32 0.0, %v6243
        %v6245 = vpop.f32.mrb[0].mxu0
        %6246 = vmatprep.mubr.bf16.mxu0 %v5777
        %6247 = vmatmul.mubr.bf16.gmra.mrb[0].mxu0 %v5776
        %v6248 = vpop.f32.mrb[0].mxu0
        %v6249 = vadd.f32 0.0, %v6248
        %v6250 = vpop.f32.mrb[0].mxu0
        %v6251 = vpop.f32.mrb[0].mxu0
        %v6252 = vadd.f32 0.0, %v6251
        %v6253 = vpop.f32.mrb[0].mxu0
        %6254 = vmatprep.mubr.bf16.mxu0 %v5779
        %6255 = vmatmul.mubr.bf16.gmra.mrb[0].mxu0 %v5778
        %v6256 = vpop.f32.mrb[0].mxu0
        %v6257 = vadd.f32 0.0, %v6256
        %v6258 = vpop.f32.mrb[0].mxu0
        %v6259 = vpop.f32.mrb[0].mxu0
        %v6260 = vadd.f32 0.0, %v6259
        %v6261 = vpop.f32.mrb[0].mxu0
        %6262 = vdwg.mxu0
        %v6263 = vmax.f32 %v5943, %v6185
        %v6264 = vmax.f32 %v5946, %v6188
        %v6265 = vmax.f32 %v5951, %v6193
        %v6266 = vmax.f32 %v5954, %v6196
        %v6267 = vmax.f32 %v5959, %v6201
        %v6268 = vmax.f32 %v5962, %v6204
        %v6269 = vmax.f32 %v5967, %v6209
        %v6270 = vmax.f32 %v5970, %v6212
        %v6271 = vmax.f32 %v5975, %v6217
        %v6272 = vmax.f32 %v5978, %v6220
        %v6273 = vmax.f32 %v5983, %v6225
        %v6274 = vmax.f32 %v5986, %v6228
        %v6275 = vmax.f32 %v5991, %v6233
        %v6276 = vmax.f32 %v5994, %v6236
        %v6277 = vmax.f32 %v5999, %v6241
        %v6278 = vmax.f32 %v6002, %v6244
        %v6279 = vmax.f32 %v6007, %v6249
        %v6280 = vmax.f32 %v6010, %v6252
        %v6281 = vmax.f32 %v6015, %v6257
        %v6282 = vmax.f32 %v6018, %v6260
        %s6283 = scalar_lea.vmem %s4, 256
        %v6284 = vld [vmem:[%s6283] sm:$0xf]
        %v6285 = vld [vmem:[%s6283 + $0x4] sm:$0xf]
        %v6286 = vld [vmem:[%s6283 + $0x8] sm:$0xf]
        %v6287 = vld [vmem:[%s6283 + $0xc] sm:$0xf]
        %v6288 = vld [vmem:[%s6283 + $0x10] sm:$0xf]
        %v6289 = vld [vmem:[%s6283 + $0x14] sm:$0xf]
        %v6290 = vld [vmem:[%s6283 + $0x18] sm:$0xf]
        %v6291 = vld [vmem:[%s6283 + $0x1c] sm:$0xf]
        %v6292 = vld [vmem:[%s6283 + $0x20] sm:$0xf]
        %v6293 = vld [vmem:[%s6283 + $0x24] sm:$0xf]
        %v6294 = vld [vmem:[%s6283 + $0x28] sm:$0xf]
        %v6295 = vld [vmem:[%s6283 + $0x2c] sm:$0xf]
        %v6296 = vld [vmem:[%s6283 + $0x30] sm:$0xf]
        %v6297 = vld [vmem:[%s6283 + $0x34] sm:$0xf]
        %v6298 = vld [vmem:[%s6283 + $0x38] sm:$0xf]
        %v6299 = vld [vmem:[%s6283 + $0x3c] sm:$0xf]
        %v6300 = vld [vmem:[%s6283 + $0x40] sm:$0xf]
        %v6301 = vld [vmem:[%s6283 + $0x44] sm:$0xf]
        %v6302 = vld [vmem:[%s6283 + $0x48] sm:$0xf]
        %v6303 = vld [vmem:[%s6283 + $0x4c] sm:$0xf]
        %v6304 = vld [vmem:[%s6283 + $0x50] sm:$0xf]
        %v6305 = vld [vmem:[%s6283 + $0x54] sm:$0xf]
        %v6306 = vld [vmem:[%s6283 + $0x58] sm:$0xf]
        %v6307 = vld [vmem:[%s6283 + $0x5c] sm:$0xf]
        %v6308 = vld [vmem:[%s6283 + $0x60] sm:$0xf]
        %v6309 = vld [vmem:[%s6283 + $0x64] sm:$0xf]
        %v6310 = vld [vmem:[%s6283 + $0x68] sm:$0xf]
        %v6311 = vld [vmem:[%s6283 + $0x6c] sm:$0xf]
        %v6312 = vld [vmem:[%s6283 + $0x70] sm:$0xf]
        %v6313 = vld [vmem:[%s6283 + $0x74] sm:$0xf]
        %v6314 = vld [vmem:[%s6283 + $0x78] sm:$0xf]
        %v6315 = vld [vmem:[%s6283 + $0x7c] sm:$0xf]
        %v6348 = vunpack.c.l.b16 %v6284
        %v6349 = vunpack.c.l.b16 %v6285
        %v6350 = vunpack.c.l.b16 %v6286
        %v6351 = vunpack.c.l.b16 %v6287
        %v6352 = vunpack.c.l.b16 %v6288
        %v6353 = vunpack.c.l.b16 %v6289
        %v6354 = vunpack.c.l.b16 %v6290
        %v6355 = vunpack.c.l.b16 %v6291
        %v6356 = vunpack.c.l.b16 %v6292
        %v6357 = vunpack.c.l.b16 %v6293
        %v6358 = vunpack.c.l.b16 %v6294
        %v6359 = vunpack.c.l.b16 %v6295
        %v6360 = vunpack.c.l.b16 %v6296
        %v6361 = vunpack.c.l.b16 %v6297
        %v6362 = vunpack.c.l.b16 %v6298
        %v6363 = vunpack.c.l.b16 %v6299
        %v6364 = vunpack.c.l.b16 %v6300
        %v6365 = vunpack.c.l.b16 %v6301
        %v6366 = vunpack.c.l.b16 %v6302
        %v6367 = vunpack.c.l.b16 %v6303
        %v6368 = vunpack.c.l.b16 %v6304
        %v6369 = vunpack.c.l.b16 %v6305
        %v6370 = vunpack.c.l.b16 %v6306
        %v6371 = vunpack.c.l.b16 %v6307
        %v6372 = vunpack.c.l.b16 %v6308
        %v6373 = vunpack.c.l.b16 %v6309
        %v6374 = vunpack.c.l.b16 %v6310
        %v6375 = vunpack.c.l.b16 %v6311
        %v6376 = vunpack.c.l.b16 %v6312
        %v6377 = vunpack.c.l.b16 %v6313
        %v6378 = vunpack.c.l.b16 %v6314
        %v6379 = vunpack.c.l.b16 %v6315
        %v6380 = vpack.c.b16 %v6349, %v6348
        %v6381 = vpack.c.b16 %v6351, %v6350
        %v6382 = vpack.c.b16 %v6353, %v6352
        %v6383 = vpack.c.b16 %v6355, %v6354
        %v6384 = vpack.c.b16 %v6357, %v6356
        %v6385 = vpack.c.b16 %v6359, %v6358
        %v6386 = vpack.c.b16 %v6361, %v6360
        %v6387 = vpack.c.b16 %v6363, %v6362
        %v6388 = vpack.c.b16 %v6365, %v6364
        %v6389 = vpack.c.b16 %v6367, %v6366
        %v6390 = vpack.c.b16 %v6369, %v6368
        %v6391 = vpack.c.b16 %v6371, %v6370
        %v6392 = vpack.c.b16 %v6373, %v6372
        %v6393 = vpack.c.b16 %v6375, %v6374
        %v6394 = vpack.c.b16 %v6377, %v6376
        %v6395 = vpack.c.b16 %v6379, %v6378
        %6412 = vmatprep.subr.bf16.mxu0 0
        %6413 = vmatpush1.bf16.msra.mxu0 %v6380
        %6414 = vmatprep.subr.bf16.mxu0 0
        %6415 = vmatpush1.bf16.msra.mxu0 %v6381
        %6416 = vmatprep.subr.bf16.mxu0 0
        %6417 = vmatpush1.bf16.msra.mxu0 %v6382
        %6418 = vmatprep.subr.bf16.mxu0 0
        %6419 = vmatpush1.bf16.msra.mxu0 %v6383
        %6420 = vmatprep.subr.bf16.mxu0 0
        %6421 = vmatpush1.bf16.msra.mxu0 %v6384
        %6422 = vmatprep.subr.bf16.mxu0 0
        %6423 = vmatpush1.bf16.msra.mxu0 %v6385
        %6424 = vmatprep.subr.bf16.mxu0 0
        %6425 = vmatpush1.bf16.msra.mxu0 %v6386
        %6426 = vmatprep.subr.bf16.mxu0 0
        %6427 = vmatpush1.bf16.msra.mxu0 %v6387
        %6428 = vmatprep.subr.bf16.mxu0 0
        %6429 = vmatpush1.bf16.msra.mxu0 %v6388
        %6430 = vmatprep.subr.bf16.mxu0 0
        %6431 = vmatpush1.bf16.msra.mxu0 %v6389
        %6432 = vmatprep.subr.bf16.mxu0 0
        %6433 = vmatpush1.bf16.msra.mxu0 %v6390
        %6434 = vmatprep.subr.bf16.mxu0 0
        %6435 = vmatpush1.bf16.msra.mxu0 %v6391
        %6436 = vmatprep.subr.bf16.mxu0 0
        %6437 = vmatpush1.bf16.msra.mxu0 %v6392
        %6438 = vmatprep.subr.bf16.mxu0 0
        %6439 = vmatpush1.bf16.msra.mxu0 %v6393
        %6440 = vmatprep.subr.bf16.mxu0 0
        %6441 = vmatpush1.bf16.msra.mxu0 %v6394
        %6442 = vmatprep.subr.bf16.mxu0 0
        %6443 = vmatpush1.bf16.msra.mxu0 %v6395
        %6444 = vmatprep.mubr.bf16.mxu0 %v5761
        %6445 = vmatmul.mubr.bf16.gmra.mrb[0].mxu0 %v5760
        %v6446 = vpop.f32.mrb[0].mxu0
        %v6447 = vadd.f32 0.0, %v6446
        %v6448 = vpop.f32.mrb[0].mxu0
        %v6449 = vpop.f32.mrb[0].mxu0
        %v6450 = vadd.f32 0.0, %v6449
        %v6451 = vpop.f32.mrb[0].mxu0
        %6452 = vmatprep.mubr.bf16.mxu0 %v5763
        %6453 = vmatmul.mubr.bf16.gmra.mrb[0].mxu0 %v5762
        %v6454 = vpop.f32.mrb[0].mxu0
        %v6455 = vadd.f32 0.0, %v6454
        %v6456 = vpop.f32.mrb[0].mxu0
        %v6457 = vpop.f32.mrb[0].mxu0
        %v6458 = vadd.f32 0.0, %v6457
        %v6459 = vpop.f32.mrb[0].mxu0
        %6460 = vmatprep.mubr.bf16.mxu0 %v5765
        %6461 = vmatmul.mubr.bf16.gmra.mrb[0].mxu0 %v5764
        %v6462 = vpop.f32.mrb[0].mxu0
        %v6463 = vadd.f32 0.0, %v6462
        %v6464 = vpop.f32.mrb[0].mxu0
        %v6465 = vpop.f32.mrb[0].mxu0
        %v6466 = vadd.f32 0.0, %v6465
        %v6467 = vpop.f32.mrb[0].mxu0
        %6468 = vmatprep.mubr.bf16.mxu0 %v5767
        %6469 = vmatmul.mubr.bf16.gmra.mrb[0].mxu0 %v5766
        %v6470 = vpop.f32.mrb[0].mxu0
        %v6471 = vadd.f32 0.0, %v6470
        %v6472 = vpop.f32.mrb[0].mxu0
        %v6473 = vpop.f32.mrb[0].mxu0
        %v6474 = vadd.f32 0.0, %v6473
        %v6475 = vpop.f32.mrb[0].mxu0
        %6476 = vmatprep.mubr.bf16.mxu0 %v5769
        %6477 = vmatmul.mubr.bf16.gmra.mrb[0].mxu0 %v5768
        %v6478 = vpop.f32.mrb[0].mxu0
        %v6479 = vadd.f32 0.0, %v6478
        %v6480 = vpop.f32.mrb[0].mxu0
        %v6481 = vpop.f32.mrb[0].mxu0
        %v6482 = vadd.f32 0.0, %v6481
        %v6483 = vpop.f32.mrb[0].mxu0
        %6484 = vmatprep.mubr.bf16.mxu0 %v5771
        %6485 = vmatmul.mubr.bf16.gmra.mrb[0].mxu0 %v5770
        %v6486 = vpop.f32.mrb[0].mxu0
        %v6487 = vadd.f32 0.0, %v6486
        %v6488 = vpop.f32.mrb[0].mxu0
        %v6489 = vpop.f32.mrb[0].mxu0
        %v6490 = vadd.f32 0.0, %v6489
        %v6491 = vpop.f32.mrb[0].mxu0
        %6492 = vmatprep.mubr.bf16.mxu0 %v5773
        %6493 = vmatmul.mubr.bf16.gmra.mrb[0].mxu0 %v5772
        %v6494 = vpop.f32.mrb[0].mxu0
        %v6495 = vadd.f32 0.0, %v6494
        %v6496 = vpop.f32.mrb[0].mxu0
        %v6497 = vpop.f32.mrb[0].mxu0
        %v6498 = vadd.f32 0.0, %v6497
        %v6499 = vpop.f32.mrb[0].mxu0
        %6500 = vmatprep.mubr.bf16.mxu0 %v5775
        %6501 = vmatmul.mubr.bf16.gmra.mrb[0].mxu0 %v5774
        %v6502 = vpop.f32.mrb[0].mxu0
        %v6503 = vadd.f32 0.0, %v6502
        %v6504 = vpop.f32.mrb[0].mxu0
        %v6505 = vpop.f32.mrb[0].mxu0
        %v6506 = vadd.f32 0.0, %v6505
        %v6507 = vpop.f32.mrb[0].mxu0
        %6508 = vmatprep.mubr.bf16.mxu0 %v5777
        %6509 = vmatmul.mubr.bf16.gmra.mrb[0].mxu0 %v5776
        %v6510 = vpop.f32.mrb[0].mxu0
        %v6511 = vadd.f32 0.0, %v6510
        %v6512 = vpop.f32.mrb[0].mxu0
        %v6513 = vpop.f32.mrb[0].mxu0
        %v6514 = vadd.f32 0.0, %v6513
        %v6515 = vpop.f32.mrb[0].mxu0
        %6516 = vmatprep.mubr.bf16.mxu0 %v5779
        %6517 = vmatmul.mubr.bf16.gmra.mrb[0].mxu0 %v5778
        %v6518 = vpop.f32.mrb[0].mxu0
        %v6519 = vadd.f32 0.0, %v6518
        %v6520 = vpop.f32.mrb[0].mxu0
        %v6521 = vpop.f32.mrb[0].mxu0
        %v6522 = vadd.f32 0.0, %v6521
        %v6523 = vpop.f32.mrb[0].mxu0
        %6524 = vdwg.mxu0
        %v6525 = vmax.f32 %v6263, %v6447
        %v6526 = vmax.f32 %v6264, %v6450
        %v6527 = vmax.f32 %v6265, %v6455
        %v6528 = vmax.f32 %v6266, %v6458
        %v6529 = vmax.f32 %v6267, %v6463
        %v6530 = vmax.f32 %v6268, %v6466
        %v6531 = vmax.f32 %v6269, %v6471
        %v6532 = vmax.f32 %v6270, %v6474
        %v6533 = vmax.f32 %v6271, %v6479
        %v6534 = vmax.f32 %v6272, %v6482
        %v6535 = vmax.f32 %v6273, %v6487
        %v6536 = vmax.f32 %v6274, %v6490
        %v6537 = vmax.f32 %v6275, %v6495
        %v6538 = vmax.f32 %v6276, %v6498
        %v6539 = vmax.f32 %v6277, %v6503
        %v6540 = vmax.f32 %v6278, %v6506
        %v6541 = vmax.f32 %v6279, %v6511
        %v6542 = vmax.f32 %v6280, %v6514
        %v6543 = vmax.f32 %v6281, %v6519
        %v6544 = vmax.f32 %v6282, %v6522
        %v6545 = vpack.c.bf16 %v6526, %v6525
        %v6546 = vpack.c.bf16 %v6528, %v6527
        %v6547 = vpack.c.bf16 %v6530, %v6529
        %v6548 = vpack.c.bf16 %v6532, %v6531
        %v6549 = vpack.c.bf16 %v6534, %v6533
        %v6550 = vpack.c.bf16 %v6536, %v6535
        %v6551 = vpack.c.bf16 %v6538, %v6537
        %v6552 = vpack.c.bf16 %v6540, %v6539
        %v6553 = vpack.c.bf16 %v6542, %v6541
        %v6554 = vpack.c.bf16 %v6544, %v6543
        %v6555 = vld [vmem:[%s5] sm:$0xff]
        %v6556 = vld [vmem:[%s5 + $0x8] sm:$0xff]
        %v6557 = vld [vmem:[%s5 + $0x10] sm:$0xff]
        %v6558 = vld [vmem:[%s5 + $0x18] sm:$0xff]
        %v6559 = vld [vmem:[%s5 + $0x20] sm:$0xff]
        %v6560 = vld [vmem:[%s5 + $0x28] sm:$0xff]
        %v6561 = vld [vmem:[%s5 + $0x30] sm:$0xff]
        %v6562 = vld [vmem:[%s5 + $0x38] sm:$0xff]
        %v6563 = vld [vmem:[%s5 + $0x40] sm:$0xff]
        %v6564 = vld [vmem:[%s5 + $0x48] sm:$0xff]
        %v6565 = vld [vmem:[%s5 + $0x50] sm:$0xff]
        %v6566 = vld [vmem:[%s5 + $0x58] sm:$0xff]
        %v6567 = vld [vmem:[%s5 + $0x60] sm:$0xff]
        %v6568 = vld [vmem:[%s5 + $0x68] sm:$0xff]
        %v6569 = vld [vmem:[%s5 + $0x70] sm:$0xff]
        %v6570 = vld [vmem:[%s5 + $0x78] sm:$0xff]
        %s6571 = scalar_lea.vmem %s5, 128
        %v6572 = vld [vmem:[%s6571] sm:$0xff]
        %v6573 = vld [vmem:[%s6571 + $0x8] sm:$0xff]
        %v6574 = vld [vmem:[%s6571 + $0x10] sm:$0xff]
        %v6575 = vld [vmem:[%s6571 + $0x18] sm:$0xff]
        %v6576 = vld [vmem:[%s6571 + $0x20] sm:$0xff]
        %v6577 = vld [vmem:[%s6571 + $0x28] sm:$0xff]
        %v6578 = vld [vmem:[%s6571 + $0x30] sm:$0xff]
        %v6579 = vld [vmem:[%s6571 + $0x38] sm:$0xff]
        %v6580 = vld [vmem:[%s6571 + $0x40] sm:$0xff]
        %v6581 = vld [vmem:[%s6571 + $0x48] sm:$0xff]
        %v6582 = vld [vmem:[%s6571 + $0x50] sm:$0xff]
        %v6583 = vld [vmem:[%s6571 + $0x58] sm:$0xff]
        %v6584 = vld [vmem:[%s6571 + $0x60] sm:$0xff]
        %v6585 = vld [vmem:[%s6571 + $0x68] sm:$0xff]
        %v6586 = vld [vmem:[%s6571 + $0x70] sm:$0xff]
        %v6587 = vld [vmem:[%s6571 + $0x78] sm:$0xff]
        %v6589 = vshrl.u32 %v6545, 16
        %v6591 = vshll.u32 %v6545, 16
        %v6593 = vrot.slane %v6591, 1
        %v6594 = vor.u32 %v6589, %v6593
        %v6596 = vshll.u32 %v6546, 16
        %v6598 = vrot.slane %v6596, 1
        %v6599 = vsel %vm566, %v6594, %v6598
        %v6600 = vshrl.u32 %v6546, 16
        %v6602 = vor.u32 %v6600, %v6598
        %v6604 = vshll.u32 %v6547, 16
        %v6606 = vrot.slane %v6604, 1
        %v6607 = vsel %vm566, %v6602, %v6606
        %v6608 = vshrl.u32 %v6547, 16
        %v6610 = vor.u32 %v6608, %v6606
        %v6612 = vshll.u32 %v6548, 16
        %v6614 = vrot.slane %v6612, 1
        %v6615 = vsel %vm566, %v6610, %v6614
        %v6616 = vshrl.u32 %v6548, 16
        %v6618 = vor.u32 %v6616, %v6614
        %v6620 = vshll.u32 %v6549, 16
        %v6622 = vrot.slane %v6620, 1
        %v6623 = vsel %vm566, %v6618, %v6622
        %v6624 = vshrl.u32 %v6549, 16
        %v6626 = vor.u32 %v6624, %v6622
        %v6628 = vshll.u32 %v6550, 16
        %v6630 = vrot.slane %v6628, 1
        %v6631 = vsel %vm566, %v6626, %v6630
        %v6632 = vshrl.u32 %v6550, 16
        %v6634 = vor.u32 %v6632, %v6630
        %v6636 = vshll.u32 %v6551, 16
        %v6638 = vrot.slane %v6636, 1
        %v6639 = vsel %vm566, %v6634, %v6638
        %v6640 = vshrl.u32 %v6551, 16
        %v6642 = vor.u32 %v6640, %v6638
        %v6644 = vshll.u32 %v6552, 16
        %v6646 = vrot.slane %v6644, 1
        %v6647 = vsel %vm566, %v6642, %v6646
        %v6648 = vshrl.u32 %v6552, 16
        %v6650 = vor.u32 %v6648, %v6646
        %v6652 = vshll.u32 %v6553, 16
        %v6654 = vrot.slane %v6652, 1
        %v6655 = vsel %vm566, %v6650, %v6654
        %v6656 = vshrl.u32 %v6553, 16
        %v6658 = vor.u32 %v6656, %v6654
        %v6660 = vshll.u32 %v6554, 16
        %v6662 = vrot.slane %v6660, 1
        %v6663 = vsel %vm566, %v6658, %v6662
        %v6664 = vshrl.u32 %v6554, 16
        %v6666 = vor.u32 %v6664, %v6662
        %v6693 = vunpack.c.l.b16 %v6572
        %v6694 = vunpack.c.h.b16 %v6572
        %v6695 = vunpack.c.l.b16 %v6573
        %v6696 = vunpack.c.h.b16 %v6573
        %v6697 = vunpack.c.l.b16 %v6574
        %v6698 = vunpack.c.h.b16 %v6574
        %v6699 = vunpack.c.l.b16 %v6575
        %v6700 = vunpack.c.h.b16 %v6575
        %v6701 = vunpack.c.l.b16 %v6576
        %v6702 = vunpack.c.h.b16 %v6576
        %v6703 = vunpack.c.l.b16 %v6577
        %v6704 = vunpack.c.h.b16 %v6577
        %v6705 = vunpack.c.l.b16 %v6578
        %v6706 = vunpack.c.h.b16 %v6578
        %v6707 = vunpack.c.l.b16 %v6579
        %v6708 = vunpack.c.h.b16 %v6579
        %v6709 = vunpack.c.l.b16 %v6580
        %v6710 = vunpack.c.h.b16 %v6580
        %v6711 = vunpack.c.l.b16 %v6581
        %v6712 = vunpack.c.h.b16 %v6581
        %v6713 = vunpack.c.l.b16 %v6582
        %v6714 = vunpack.c.h.b16 %v6582
        %v6715 = vunpack.c.l.b16 %v6583
        %v6716 = vunpack.c.h.b16 %v6583
        %v6717 = vunpack.c.l.b16 %v6584
        %v6718 = vunpack.c.h.b16 %v6584
        %v6719 = vunpack.c.l.b16 %v6585
        %v6720 = vunpack.c.h.b16 %v6585
        %v6721 = vunpack.c.l.b16 %v6586
        %v6722 = vunpack.c.h.b16 %v6586
        %v6723 = vunpack.c.l.b16 %v6587
        %v6724 = vunpack.c.h.b16 %v6587
        %v6725 = vpack.c.b16 %v6695, %v6693
        %v6726 = vpack.c.b16 %v6696, %v6694
        %v6727 = vpack.c.b16 %v6699, %v6697
        %v6728 = vpack.c.b16 %v6700, %v6698
        %v6729 = vpack.c.b16 %v6703, %v6701
        %v6730 = vpack.c.b16 %v6704, %v6702
        %v6731 = vpack.c.b16 %v6707, %v6705
        %v6732 = vpack.c.b16 %v6708, %v6706
        %v6733 = vpack.c.b16 %v6711, %v6709
        %v6734 = vpack.c.b16 %v6712, %v6710
        %v6735 = vpack.c.b16 %v6715, %v6713
        %v6736 = vpack.c.b16 %v6716, %v6714
        %v6737 = vpack.c.b16 %v6719, %v6717
        %v6738 = vpack.c.b16 %v6720, %v6718
        %v6739 = vpack.c.b16 %v6723, %v6721
        %v6740 = vpack.c.b16 %v6724, %v6722
        %6757 = vmatprep.subr.bf16.mxu0 %v6726
        %6758 = vmatpush1.bf16.msra.mxu0 %v6725
        %6759 = vmatprep.subr.bf16.mxu0 %v6728
        %6760 = vmatpush1.bf16.msra.mxu0 %v6727
        %6761 = vmatprep.subr.bf16.mxu0 %v6730
        %6762 = vmatpush1.bf16.msra.mxu0 %v6729
        %6763 = vmatprep.subr.bf16.mxu0 %v6732
        %6764 = vmatpush1.bf16.msra.mxu0 %v6731
        %6765 = vmatprep.subr.bf16.mxu0 %v6734
        %6766 = vmatpush1.bf16.msra.mxu0 %v6733
        %6767 = vmatprep.subr.bf16.mxu0 %v6736
        %6768 = vmatpush1.bf16.msra.mxu0 %v6735
        %6769 = vmatprep.subr.bf16.mxu0 %v6738
        %6770 = vmatpush1.bf16.msra.mxu0 %v6737
        %6771 = vmatprep.subr.bf16.mxu0 %v6740
        %6772 = vmatpush1.bf16.msra.mxu0 %v6739
        %6773 = vmatprep.subr.bf16.mxu0 0
        %6774 = vmatpush1.bf16.msra.mxu0 0
        %6775 = vmatprep.subr.bf16.mxu0 0
        %6776 = vmatpush1.bf16.msra.mxu0 0
        %6777 = vmatprep.subr.bf16.mxu0 0
        %6778 = vmatpush1.bf16.msra.mxu0 0
        %6779 = vmatprep.subr.bf16.mxu0 0
        %6780 = vmatpush1.bf16.msra.mxu0 0
        %6781 = vmatprep.subr.bf16.mxu0 0
        %6782 = vmatpush1.bf16.msra.mxu0 0
        %6783 = vmatprep.subr.bf16.mxu0 0
        %6784 = vmatpush1.bf16.msra.mxu0 0
        %6785 = vmatprep.subr.bf16.mxu0 0
        %6786 = vmatpush1.bf16.msra.mxu0 0
        %6787 = vmatprep.subr.bf16.mxu0 0
        %6788 = vmatpush1.bf16.msra.mxu0 0
        %6789 = vmatprep.mubr.bf16.mxu0 0
        %6790 = vmatmul.mubr.bf16.gmra.mrb[0].mxu0 %v6599
        %v6791 = vpop.f32.mrb[0].mxu0
        %v6792 = vadd.f32 0.0, %v6791
        %v6793 = vpop.f32.mrb[0].mxu0
        %v6794 = vadd.f32 0.0, %v6793
        %v6795 = vpop.f32.mrb[0].mxu0
        %v6796 = vadd.f32 0.0, %v6795
        %v6797 = vpop.f32.mrb[0].mxu0
        %v6798 = vadd.f32 0.0, %v6797
        %6799 = vmatprep.mubr.bf16.mxu0 0
        %6800 = vmatmul.mubr.bf16.gmra.mrb[0].mxu0 %v6607
        %v6801 = vpop.f32.mrb[0].mxu0
        %v6802 = vadd.f32 0.0, %v6801
        %v6803 = vpop.f32.mrb[0].mxu0
        %v6804 = vadd.f32 0.0, %v6803
        %v6805 = vpop.f32.mrb[0].mxu0
        %v6806 = vadd.f32 0.0, %v6805
        %v6807 = vpop.f32.mrb[0].mxu0
        %v6808 = vadd.f32 0.0, %v6807
        %6809 = vmatprep.mubr.bf16.mxu0 0
        %6810 = vmatmul.mubr.bf16.gmra.mrb[0].mxu0 %v6615
        %v6811 = vpop.f32.mrb[0].mxu0
        %v6812 = vadd.f32 0.0, %v6811
        %v6813 = vpop.f32.mrb[0].mxu0
        %v6814 = vadd.f32 0.0, %v6813
        %v6815 = vpop.f32.mrb[0].mxu0
        %v6816 = vadd.f32 0.0, %v6815
        %v6817 = vpop.f32.mrb[0].mxu0
        %v6818 = vadd.f32 0.0, %v6817
        %6819 = vmatprep.mubr.bf16.mxu0 0
        %6820 = vmatmul.mubr.bf16.gmra.mrb[0].mxu0 %v6623
        %v6821 = vpop.f32.mrb[0].mxu0
        %v6822 = vadd.f32 0.0, %v6821
        %v6823 = vpop.f32.mrb[0].mxu0
        %v6824 = vadd.f32 0.0, %v6823
        %v6825 = vpop.f32.mrb[0].mxu0
        %v6826 = vadd.f32 0.0, %v6825
        %v6827 = vpop.f32.mrb[0].mxu0
        %v6828 = vadd.f32 0.0, %v6827
        %6829 = vmatprep.mubr.bf16.mxu0 0
        %6830 = vmatmul.mubr.bf16.gmra.mrb[0].mxu0 %v6631
        %v6831 = vpop.f32.mrb[0].mxu0
        %v6832 = vadd.f32 0.0, %v6831
        %v6833 = vpop.f32.mrb[0].mxu0
        %v6834 = vadd.f32 0.0, %v6833
        %v6835 = vpop.f32.mrb[0].mxu0
        %v6836 = vadd.f32 0.0, %v6835
        %v6837 = vpop.f32.mrb[0].mxu0
        %v6838 = vadd.f32 0.0, %v6837
        %6839 = vmatprep.mubr.bf16.mxu0 0
        %6840 = vmatmul.mubr.bf16.gmra.mrb[0].mxu0 %v6639
        %v6841 = vpop.f32.mrb[0].mxu0
        %v6842 = vadd.f32 0.0, %v6841
        %v6843 = vpop.f32.mrb[0].mxu0
        %v6844 = vadd.f32 0.0, %v6843
        %v6845 = vpop.f32.mrb[0].mxu0
        %v6846 = vadd.f32 0.0, %v6845
        %v6847 = vpop.f32.mrb[0].mxu0
        %v6848 = vadd.f32 0.0, %v6847
        %6849 = vmatprep.mubr.bf16.mxu0 0
        %6850 = vmatmul.mubr.bf16.gmra.mrb[0].mxu0 %v6647
        %v6851 = vpop.f32.mrb[0].mxu0
        %v6852 = vadd.f32 0.0, %v6851
        %v6853 = vpop.f32.mrb[0].mxu0
        %v6854 = vadd.f32 0.0, %v6853
        %v6855 = vpop.f32.mrb[0].mxu0
        %v6856 = vadd.f32 0.0, %v6855
        %v6857 = vpop.f32.mrb[0].mxu0
        %v6858 = vadd.f32 0.0, %v6857
        %6859 = vmatprep.mubr.bf16.mxu0 0
        %6860 = vmatmul.mubr.bf16.gmra.mrb[0].mxu0 %v6655
        %v6861 = vpop.f32.mrb[0].mxu0
        %v6862 = vadd.f32 0.0, %v6861
        %v6863 = vpop.f32.mrb[0].mxu0
        %v6864 = vadd.f32 0.0, %v6863
        %v6865 = vpop.f32.mrb[0].mxu0
        %v6866 = vadd.f32 0.0, %v6865
        %v6867 = vpop.f32.mrb[0].mxu0
        %v6868 = vadd.f32 0.0, %v6867
        %6869 = vmatprep.mubr.bf16.mxu0 0
        %6870 = vmatmul.mubr.bf16.gmra.mrb[0].mxu0 %v6663
        %v6871 = vpop.f32.mrb[0].mxu0
        %v6872 = vadd.f32 0.0, %v6871
        %v6873 = vpop.f32.mrb[0].mxu0
        %v6874 = vadd.f32 0.0, %v6873
        %v6875 = vpop.f32.mrb[0].mxu0
        %v6876 = vadd.f32 0.0, %v6875
        %v6877 = vpop.f32.mrb[0].mxu0
        %v6878 = vadd.f32 0.0, %v6877
        %6879 = vmatprep.mubr.bf16.mxu0 0
        %6880 = vmatmul.mubr.bf16.gmra.mrb[0].mxu0 %v6666
        %v6881 = vpop.f32.mrb[0].mxu0
        %v6882 = vadd.f32 0.0, %v6881
        %v6883 = vpop.f32.mrb[0].mxu0
        %v6884 = vadd.f32 0.0, %v6883
        %v6885 = vpop.f32.mrb[0].mxu0
        %v6886 = vadd.f32 0.0, %v6885
        %v6887 = vpop.f32.mrb[0].mxu0
        %v6888 = vadd.f32 0.0, %v6887
        %6889 = vdwg.mxu0
        %v6906 = vunpack.c.l.b16 %v6555
        %v6907 = vunpack.c.h.b16 %v6555
        %v6908 = vunpack.c.l.b16 %v6556
        %v6909 = vunpack.c.h.b16 %v6556
        %v6910 = vunpack.c.l.b16 %v6557
        %v6911 = vunpack.c.h.b16 %v6557
        %v6912 = vunpack.c.l.b16 %v6558
        %v6913 = vunpack.c.h.b16 %v6558
        %v6914 = vunpack.c.l.b16 %v6559
        %v6915 = vunpack.c.h.b16 %v6559
        %v6916 = vunpack.c.l.b16 %v6560
        %v6917 = vunpack.c.h.b16 %v6560
        %v6918 = vunpack.c.l.b16 %v6561
        %v6919 = vunpack.c.h.b16 %v6561
        %v6920 = vunpack.c.l.b16 %v6562
        %v6921 = vunpack.c.h.b16 %v6562
        %v6922 = vunpack.c.l.b16 %v6563
        %v6923 = vunpack.c.h.b16 %v6563
        %v6924 = vunpack.c.l.b16 %v6564
        %v6925 = vunpack.c.h.b16 %v6564
        %v6926 = vunpack.c.l.b16 %v6565
        %v6927 = vunpack.c.h.b16 %v6565
        %v6928 = vunpack.c.l.b16 %v6566
        %v6929 = vunpack.c.h.b16 %v6566
        %v6930 = vunpack.c.l.b16 %v6567
        %v6931 = vunpack.c.h.b16 %v6567
        %v6932 = vunpack.c.l.b16 %v6568
        %v6933 = vunpack.c.h.b16 %v6568
        %v6934 = vunpack.c.l.b16 %v6569
        %v6935 = vunpack.c.h.b16 %v6569
        %v6936 = vunpack.c.l.b16 %v6570
        %v6937 = vunpack.c.h.b16 %v6570
        %v6938 = vpack.c.b16 %v6908, %v6906
        %v6939 = vpack.c.b16 %v6909, %v6907
        %v6940 = vpack.c.b16 %v6912, %v6910
        %v6941 = vpack.c.b16 %v6913, %v6911
        %v6942 = vpack.c.b16 %v6916, %v6914
        %v6943 = vpack.c.b16 %v6917, %v6915
        %v6944 = vpack.c.b16 %v6920, %v6918
        %v6945 = vpack.c.b16 %v6921, %v6919
        %v6946 = vpack.c.b16 %v6924, %v6922
        %v6947 = vpack.c.b16 %v6925, %v6923
        %v6948 = vpack.c.b16 %v6928, %v6926
        %v6949 = vpack.c.b16 %v6929, %v6927
        %v6950 = vpack.c.b16 %v6932, %v6930
        %v6951 = vpack.c.b16 %v6933, %v6931
        %v6952 = vpack.c.b16 %v6936, %v6934
        %v6953 = vpack.c.b16 %v6937, %v6935
        %6970 = vmatprep.subr.bf16.mxu0 %v6939
        %6971 = vmatpush1.bf16.msra.mxu0 %v6938
        %6972 = vmatprep.subr.bf16.mxu0 %v6941
        %6973 = vmatpush1.bf16.msra.mxu0 %v6940
        %6974 = vmatprep.subr.bf16.mxu0 %v6943
        %6975 = vmatpush1.bf16.msra.mxu0 %v6942
        %6976 = vmatprep.subr.bf16.mxu0 %v6945
        %6977 = vmatpush1.bf16.msra.mxu0 %v6944
        %6978 = vmatprep.subr.bf16.mxu0 %v6947
        %6979 = vmatpush1.bf16.msra.mxu0 %v6946
        %6980 = vmatprep.subr.bf16.mxu0 %v6949
        %6981 = vmatpush1.bf16.msra.mxu0 %v6948
        %6982 = vmatprep.subr.bf16.mxu0 %v6951
        %6983 = vmatpush1.bf16.msra.mxu0 %v6950
        %6984 = vmatprep.subr.bf16.mxu0 %v6953
        %6985 = vmatpush1.bf16.msra.mxu0 %v6952
        %6986 = vmatprep.subr.bf16.mxu0 0
        %6987 = vmatpush1.bf16.msra.mxu0 0
        %6988 = vmatprep.subr.bf16.mxu0 0
        %6989 = vmatpush1.bf16.msra.mxu0 0
        %6990 = vmatprep.subr.bf16.mxu0 0
        %6991 = vmatpush1.bf16.msra.mxu0 0
        %6992 = vmatprep.subr.bf16.mxu0 0
        %6993 = vmatpush1.bf16.msra.mxu0 0
        %6994 = vmatprep.subr.bf16.mxu0 0
        %6995 = vmatpush1.bf16.msra.mxu0 0
        %6996 = vmatprep.subr.bf16.mxu0 0
        %6997 = vmatpush1.bf16.msra.mxu0 0
        %6998 = vmatprep.subr.bf16.mxu0 0
        %6999 = vmatpush1.bf16.msra.mxu0 0
        %7000 = vmatprep.subr.bf16.mxu0 0
        %7001 = vmatpush1.bf16.msra.mxu0 0
        %7002 = vmatprep.mubr.bf16.mxu0 0
        %7003 = vmatmul.mubr.bf16.gmra.mrb[0].mxu0 %v6545
        %v7004 = vpop.f32.mrb[0].mxu0
        %v7005 = vadd.f32 %v6792, %v7004
        %v7006 = vpop.f32.mrb[0].mxu0
        %v7007 = vadd.f32 %v6794, %v7006
        %v7008 = vpop.f32.mrb[0].mxu0
        %v7009 = vadd.f32 %v6796, %v7008
        %v7010 = vpop.f32.mrb[0].mxu0
        %v7011 = vadd.f32 %v6798, %v7010
        %7012 = vmatprep.mubr.bf16.mxu0 0
        %7013 = vmatmul.mubr.bf16.gmra.mrb[0].mxu0 %v6546
        %v7014 = vpop.f32.mrb[0].mxu0
        %v7015 = vadd.f32 %v6802, %v7014
        %v7016 = vpop.f32.mrb[0].mxu0
        %v7017 = vadd.f32 %v6804, %v7016
        %v7018 = vpop.f32.mrb[0].mxu0
        %v7019 = vadd.f32 %v6806, %v7018
        %v7020 = vpop.f32.mrb[0].mxu0
        %v7021 = vadd.f32 %v6808, %v7020
        %7022 = vmatprep.mubr.bf16.mxu0 0
        %7023 = vmatmul.mubr.bf16.gmra.mrb[0].mxu0 %v6547
        %v7024 = vpop.f32.mrb[0].mxu0
        %v7025 = vadd.f32 %v6812, %v7024
        %v7026 = vpop.f32.mrb[0].mxu0
        %v7027 = vadd.f32 %v6814, %v7026
        %v7028 = vpop.f32.mrb[0].mxu0
        %v7029 = vadd.f32 %v6816, %v7028
        %v7030 = vpop.f32.mrb[0].mxu0
        %v7031 = vadd.f32 %v6818, %v7030
        %7032 = vmatprep.mubr.bf16.mxu0 0
        %7033 = vmatmul.mubr.bf16.gmra.mrb[0].mxu0 %v6548
        %v7034 = vpop.f32.mrb[0].mxu0
        %v7035 = vadd.f32 %v6822, %v7034
        %v7036 = vpop.f32.mrb[0].mxu0
        %v7037 = vadd.f32 %v6824, %v7036
        %v7038 = vpop.f32.mrb[0].mxu0
        %v7039 = vadd.f32 %v6826, %v7038
        %v7040 = vpop.f32.mrb[0].mxu0
        %v7041 = vadd.f32 %v6828, %v7040
        %7042 = vmatprep.mubr.bf16.mxu0 0
        %7043 = vmatmul.mubr.bf16.gmra.mrb[0].mxu0 %v6549
        %v7044 = vpop.f32.mrb[0].mxu0
        %v7045 = vadd.f32 %v6832, %v7044
        %v7046 = vpop.f32.mrb[0].mxu0
        %v7047 = vadd.f32 %v6834, %v7046
        %v7048 = vpop.f32.mrb[0].mxu0
        %v7049 = vadd.f32 %v6836, %v7048
        %v7050 = vpop.f32.mrb[0].mxu0
        %v7051 = vadd.f32 %v6838, %v7050
        %7052 = vmatprep.mubr.bf16.mxu0 0
        %7053 = vmatmul.mubr.bf16.gmra.mrb[0].mxu0 %v6550
        %v7054 = vpop.f32.mrb[0].mxu0
        %v7055 = vadd.f32 %v6842, %v7054
        %v7056 = vpop.f32.mrb[0].mxu0
        %v7057 = vadd.f32 %v6844, %v7056
        %v7058 = vpop.f32.mrb[0].mxu0
        %v7059 = vadd.f32 %v6846, %v7058
        %v7060 = vpop.f32.mrb[0].mxu0
        %v7061 = vadd.f32 %v6848, %v7060
        %7062 = vmatprep.mubr.bf16.mxu0 0
        %7063 = vmatmul.mubr.bf16.gmra.mrb[0].mxu0 %v6551
        %v7064 = vpop.f32.mrb[0].mxu0
        %v7065 = vadd.f32 %v6852, %v7064
        %v7066 = vpop.f32.mrb[0].mxu0
        %v7067 = vadd.f32 %v6854, %v7066
        %v7068 = vpop.f32.mrb[0].mxu0
        %v7069 = vadd.f32 %v6856, %v7068
        %v7070 = vpop.f32.mrb[0].mxu0
        %v7071 = vadd.f32 %v6858, %v7070
        %7072 = vmatprep.mubr.bf16.mxu0 0
        %7073 = vmatmul.mubr.bf16.gmra.mrb[0].mxu0 %v6552
        %v7074 = vpop.f32.mrb[0].mxu0
        %v7075 = vadd.f32 %v6862, %v7074
        %v7076 = vpop.f32.mrb[0].mxu0
        %v7077 = vadd.f32 %v6864, %v7076
        %v7078 = vpop.f32.mrb[0].mxu0
        %v7079 = vadd.f32 %v6866, %v7078
        %v7080 = vpop.f32.mrb[0].mxu0
        %v7081 = vadd.f32 %v6868, %v7080
        %7082 = vmatprep.mubr.bf16.mxu0 0
        %7083 = vmatmul.mubr.bf16.gmra.mrb[0].mxu0 %v6553
        %v7084 = vpop.f32.mrb[0].mxu0
        %v7085 = vadd.f32 %v6872, %v7084
        %v7086 = vpop.f32.mrb[0].mxu0
        %v7087 = vadd.f32 %v6874, %v7086
        %v7088 = vpop.f32.mrb[0].mxu0
        %v7089 = vadd.f32 %v6876, %v7088
        %v7090 = vpop.f32.mrb[0].mxu0
        %v7091 = vadd.f32 %v6878, %v7090
        %7092 = vmatprep.mubr.bf16.mxu0 0
        %7093 = vmatmul.mubr.bf16.gmra.mrb[0].mxu0 %v6554
        %v7094 = vpop.f32.mrb[0].mxu0
        %v7095 = vadd.f32 %v6882, %v7094
        %v7096 = vpop.f32.mrb[0].mxu0
        %v7097 = vadd.f32 %v6884, %v7096
        %v7098 = vpop.f32.mrb[0].mxu0
        %v7099 = vadd.f32 %v6886, %v7098
        %v7100 = vpop.f32.mrb[0].mxu0
        %v7101 = vadd.f32 %v6888, %v7100
        %7102 = vdwg.mxu0
        %s7103 = scalar_lea.vmem %s5, 256
        %v7104 = vld [vmem:[%s7103] sm:$0xff]
        %v7105 = vld [vmem:[%s7103 + $0x8] sm:$0xff]
        %v7106 = vld [vmem:[%s7103 + $0x10] sm:$0xff]
        %v7107 = vld [vmem:[%s7103 + $0x18] sm:$0xff]
        %v7108 = vld [vmem:[%s7103 + $0x20] sm:$0xff]
        %v7109 = vld [vmem:[%s7103 + $0x28] sm:$0xff]
        %v7110 = vld [vmem:[%s7103 + $0x30] sm:$0xff]
        %v7111 = vld [vmem:[%s7103 + $0x38] sm:$0xff]
        %v7112 = vld [vmem:[%s7103 + $0x40] sm:$0xff]
        %v7113 = vld [vmem:[%s7103 + $0x48] sm:$0xff]
        %v7114 = vld [vmem:[%s7103 + $0x50] sm:$0xff]
        %v7115 = vld [vmem:[%s7103 + $0x58] sm:$0xff]
        %v7116 = vld [vmem:[%s7103 + $0x60] sm:$0xff]
        %v7117 = vld [vmem:[%s7103 + $0x68] sm:$0xff]
        %v7118 = vld [vmem:[%s7103 + $0x70] sm:$0xff]
        %v7119 = vld [vmem:[%s7103 + $0x78] sm:$0xff]
        %v7130 = vrot.slane %v6545, 1
        %v7131 = vrot.slane %v6546, 1
        %v7132 = vsel %vm1360, %v7130, %v7131
        %v7133 = vrot.slane %v6547, 1
        %v7134 = vsel %vm1360, %v7131, %v7133
        %v7135 = vrot.slane %v6548, 1
        %v7136 = vsel %vm1360, %v7133, %v7135
        %v7137 = vrot.slane %v6549, 1
        %v7138 = vsel %vm1360, %v7135, %v7137
        %v7139 = vrot.slane %v6550, 1
        %v7140 = vsel %vm1360, %v7137, %v7139
        %v7141 = vrot.slane %v6551, 1
        %v7142 = vsel %vm1360, %v7139, %v7141
        %v7143 = vrot.slane %v6552, 1
        %v7144 = vsel %vm1360, %v7141, %v7143
        %v7145 = vrot.slane %v6553, 1
        %v7146 = vsel %vm1360, %v7143, %v7145
        %v7147 = vrot.slane %v6554, 1
        %v7148 = vsel %vm1360, %v7145, %v7147
        %v7175 = vunpack.c.l.b16 %v7104
        %v7176 = vunpack.c.h.b16 %v7104
        %v7177 = vunpack.c.l.b16 %v7105
        %v7178 = vunpack.c.h.b16 %v7105
        %v7179 = vunpack.c.l.b16 %v7106
        %v7180 = vunpack.c.h.b16 %v7106
        %v7181 = vunpack.c.l.b16 %v7107
        %v7182 = vunpack.c.h.b16 %v7107
        %v7183 = vunpack.c.l.b16 %v7108
        %v7184 = vunpack.c.h.b16 %v7108
        %v7185 = vunpack.c.l.b16 %v7109
        %v7186 = vunpack.c.h.b16 %v7109
        %v7187 = vunpack.c.l.b16 %v7110
        %v7188 = vunpack.c.h.b16 %v7110
        %v7189 = vunpack.c.l.b16 %v7111
        %v7190 = vunpack.c.h.b16 %v7111
        %v7191 = vunpack.c.l.b16 %v7112
        %v7192 = vunpack.c.h.b16 %v7112
        %v7193 = vunpack.c.l.b16 %v7113
        %v7194 = vunpack.c.h.b16 %v7113
        %v7195 = vunpack.c.l.b16 %v7114
        %v7196 = vunpack.c.h.b16 %v7114
        %v7197 = vunpack.c.l.b16 %v7115
        %v7198 = vunpack.c.h.b16 %v7115
        %v7199 = vunpack.c.l.b16 %v7116
        %v7200 = vunpack.c.h.b16 %v7116
        %v7201 = vunpack.c.l.b16 %v7117
        %v7202 = vunpack.c.h.b16 %v7117
        %v7203 = vunpack.c.l.b16 %v7118
        %v7204 = vunpack.c.h.b16 %v7118
        %v7205 = vunpack.c.l.b16 %v7119
        %v7206 = vunpack.c.h.b16 %v7119
        %v7207 = vpack.c.b16 %v7177, %v7175
        %v7208 = vpack.c.b16 %v7178, %v7176
        %v7209 = vpack.c.b16 %v7181, %v7179
        %v7210 = vpack.c.b16 %v7182, %v7180
        %v7211 = vpack.c.b16 %v7185, %v7183
        %v7212 = vpack.c.b16 %v7186, %v7184
        %v7213 = vpack.c.b16 %v7189, %v7187
        %v7214 = vpack.c.b16 %v7190, %v7188
        %v7215 = vpack.c.b16 %v7193, %v7191
        %v7216 = vpack.c.b16 %v7194, %v7192
        %v7217 = vpack.c.b16 %v7197, %v7195
        %v7218 = vpack.c.b16 %v7198, %v7196
        %v7219 = vpack.c.b16 %v7201, %v7199
        %v7220 = vpack.c.b16 %v7202, %v7200
        %v7221 = vpack.c.b16 %v7205, %v7203
        %v7222 = vpack.c.b16 %v7206, %v7204
        %7239 = vmatprep.subr.bf16.mxu0 %v7208
        %7240 = vmatpush1.bf16.msra.mxu0 %v7207
        %7241 = vmatprep.subr.bf16.mxu0 %v7210
        %7242 = vmatpush1.bf16.msra.mxu0 %v7209
        %7243 = vmatprep.subr.bf16.mxu0 %v7212
        %7244 = vmatpush1.bf16.msra.mxu0 %v7211
        %7245 = vmatprep.subr.bf16.mxu0 %v7214
        %7246 = vmatpush1.bf16.msra.mxu0 %v7213
        %7247 = vmatprep.subr.bf16.mxu0 %v7216
        %7248 = vmatpush1.bf16.msra.mxu0 %v7215
        %7249 = vmatprep.subr.bf16.mxu0 %v7218
        %7250 = vmatpush1.bf16.msra.mxu0 %v7217
        %7251 = vmatprep.subr.bf16.mxu0 %v7220
        %7252 = vmatpush1.bf16.msra.mxu0 %v7219
        %7253 = vmatprep.subr.bf16.mxu0 %v7222
        %7254 = vmatpush1.bf16.msra.mxu0 %v7221
        %7255 = vmatprep.subr.bf16.mxu0 0
        %7256 = vmatpush1.bf16.msra.mxu0 0
        %7257 = vmatprep.subr.bf16.mxu0 0
        %7258 = vmatpush1.bf16.msra.mxu0 0
        %7259 = vmatprep.subr.bf16.mxu0 0
        %7260 = vmatpush1.bf16.msra.mxu0 0
        %7261 = vmatprep.subr.bf16.mxu0 0
        %7262 = vmatpush1.bf16.msra.mxu0 0
        %7263 = vmatprep.subr.bf16.mxu0 0
        %7264 = vmatpush1.bf16.msra.mxu0 0
        %7265 = vmatprep.subr.bf16.mxu0 0
        %7266 = vmatpush1.bf16.msra.mxu0 0
        %7267 = vmatprep.subr.bf16.mxu0 0
        %7268 = vmatpush1.bf16.msra.mxu0 0
        %7269 = vmatprep.subr.bf16.mxu0 0
        %7270 = vmatpush1.bf16.msra.mxu0 0
        %7271 = vmatprep.mubr.bf16.mxu0 0
        %7272 = vmatmul.mubr.bf16.gmra.mrb[0].mxu0 %v7132
        %v7273 = vpop.f32.mrb[0].mxu0
        %v7274 = vadd.f32 0.0, %v7273
        %v7275 = vpop.f32.mrb[0].mxu0
        %v7276 = vadd.f32 0.0, %v7275
        %v7277 = vpop.f32.mrb[0].mxu0
        %v7278 = vadd.f32 0.0, %v7277
        %v7279 = vpop.f32.mrb[0].mxu0
        %v7280 = vadd.f32 0.0, %v7279
        %7281 = vmatprep.mubr.bf16.mxu0 0
        %7282 = vmatmul.mubr.bf16.gmra.mrb[0].mxu0 %v7134
        %v7283 = vpop.f32.mrb[0].mxu0
        %v7284 = vadd.f32 0.0, %v7283
        %v7285 = vpop.f32.mrb[0].mxu0
        %v7286 = vadd.f32 0.0, %v7285
        %v7287 = vpop.f32.mrb[0].mxu0
        %v7288 = vadd.f32 0.0, %v7287
        %v7289 = vpop.f32.mrb[0].mxu0
        %v7290 = vadd.f32 0.0, %v7289
        %7291 = vmatprep.mubr.bf16.mxu0 0
        %7292 = vmatmul.mubr.bf16.gmra.mrb[0].mxu0 %v7136
        %v7293 = vpop.f32.mrb[0].mxu0
        %v7294 = vadd.f32 0.0, %v7293
        %v7295 = vpop.f32.mrb[0].mxu0
        %v7296 = vadd.f32 0.0, %v7295
        %v7297 = vpop.f32.mrb[0].mxu0
        %v7298 = vadd.f32 0.0, %v7297
        %v7299 = vpop.f32.mrb[0].mxu0
        %v7300 = vadd.f32 0.0, %v7299
        %7301 = vmatprep.mubr.bf16.mxu0 0
        %7302 = vmatmul.mubr.bf16.gmra.mrb[0].mxu0 %v7138
        %v7303 = vpop.f32.mrb[0].mxu0
        %v7304 = vadd.f32 0.0, %v7303
        %v7305 = vpop.f32.mrb[0].mxu0
        %v7306 = vadd.f32 0.0, %v7305
        %v7307 = vpop.f32.mrb[0].mxu0
        %v7308 = vadd.f32 0.0, %v7307
        %v7309 = vpop.f32.mrb[0].mxu0
        %v7310 = vadd.f32 0.0, %v7309
        %7311 = vmatprep.mubr.bf16.mxu0 0
        %7312 = vmatmul.mubr.bf16.gmra.mrb[0].mxu0 %v7140
        %v7313 = vpop.f32.mrb[0].mxu0
        %v7314 = vadd.f32 0.0, %v7313
        %v7315 = vpop.f32.mrb[0].mxu0
        %v7316 = vadd.f32 0.0, %v7315
        %v7317 = vpop.f32.mrb[0].mxu0
        %v7318 = vadd.f32 0.0, %v7317
        %v7319 = vpop.f32.mrb[0].mxu0
        %v7320 = vadd.f32 0.0, %v7319
        %7321 = vmatprep.mubr.bf16.mxu0 0
        %7322 = vmatmul.mubr.bf16.gmra.mrb[0].mxu0 %v7142
        %v7323 = vpop.f32.mrb[0].mxu0
        %v7324 = vadd.f32 0.0, %v7323
        %v7325 = vpop.f32.mrb[0].mxu0
        %v7326 = vadd.f32 0.0, %v7325
        %v7327 = vpop.f32.mrb[0].mxu0
        %v7328 = vadd.f32 0.0, %v7327
        %v7329 = vpop.f32.mrb[0].mxu0
        %v7330 = vadd.f32 0.0, %v7329
        %7331 = vmatprep.mubr.bf16.mxu0 0
        %7332 = vmatmul.mubr.bf16.gmra.mrb[0].mxu0 %v7144
        %v7333 = vpop.f32.mrb[0].mxu0
        %v7334 = vadd.f32 0.0, %v7333
        %v7335 = vpop.f32.mrb[0].mxu0
        %v7336 = vadd.f32 0.0, %v7335
        %v7337 = vpop.f32.mrb[0].mxu0
        %v7338 = vadd.f32 0.0, %v7337
        %v7339 = vpop.f32.mrb[0].mxu0
        %v7340 = vadd.f32 0.0, %v7339
        %7341 = vmatprep.mubr.bf16.mxu0 0
        %7342 = vmatmul.mubr.bf16.gmra.mrb[0].mxu0 %v7146
        %v7343 = vpop.f32.mrb[0].mxu0
        %v7344 = vadd.f32 0.0, %v7343
        %v7345 = vpop.f32.mrb[0].mxu0
        %v7346 = vadd.f32 0.0, %v7345
        %v7347 = vpop.f32.mrb[0].mxu0
        %v7348 = vadd.f32 0.0, %v7347
        %v7349 = vpop.f32.mrb[0].mxu0
        %v7350 = vadd.f32 0.0, %v7349
        %7351 = vmatprep.mubr.bf16.mxu0 0
        %7352 = vmatmul.mubr.bf16.gmra.mrb[0].mxu0 %v7148
        %v7353 = vpop.f32.mrb[0].mxu0
        %v7354 = vadd.f32 0.0, %v7353
        %v7355 = vpop.f32.mrb[0].mxu0
        %v7356 = vadd.f32 0.0, %v7355
        %v7357 = vpop.f32.mrb[0].mxu0
        %v7358 = vadd.f32 0.0, %v7357
        %v7359 = vpop.f32.mrb[0].mxu0
        %v7360 = vadd.f32 0.0, %v7359
        %7361 = vmatprep.mubr.bf16.mxu0 0
        %7362 = vmatmul.mubr.bf16.gmra.mrb[0].mxu0 %v7147
        %v7363 = vpop.f32.mrb[0].mxu0
        %v7364 = vadd.f32 0.0, %v7363
        %v7365 = vpop.f32.mrb[0].mxu0
        %v7366 = vadd.f32 0.0, %v7365
        %v7367 = vpop.f32.mrb[0].mxu0
        %v7368 = vadd.f32 0.0, %v7367
        %v7369 = vpop.f32.mrb[0].mxu0
        %v7370 = vadd.f32 0.0, %v7369
        %7371 = vdwg.mxu0
        %v7372 = vadd.f32 %v7005, %v7274
        %v7373 = vadd.f32 %v7007, %v7276
        %v7374 = vadd.f32 %v7009, %v7278
        %v7375 = vadd.f32 %v7011, %v7280
        %v7376 = vadd.f32 %v7015, %v7284
        %v7377 = vadd.f32 %v7017, %v7286
        %v7378 = vadd.f32 %v7019, %v7288
        %v7379 = vadd.f32 %v7021, %v7290
        %v7380 = vadd.f32 %v7025, %v7294
        %v7381 = vadd.f32 %v7027, %v7296
        %v7382 = vadd.f32 %v7029, %v7298
        %v7383 = vadd.f32 %v7031, %v7300
        %v7384 = vadd.f32 %v7035, %v7304
        %v7385 = vadd.f32 %v7037, %v7306
        %v7386 = vadd.f32 %v7039, %v7308
        %v7387 = vadd.f32 %v7041, %v7310
        %v7388 = vadd.f32 %v7045, %v7314
        %v7389 = vadd.f32 %v7047, %v7316
        %v7390 = vadd.f32 %v7049, %v7318
        %v7391 = vadd.f32 %v7051, %v7320
        %v7392 = vadd.f32 %v7055, %v7324
        %v7393 = vadd.f32 %v7057, %v7326
        %v7394 = vadd.f32 %v7059, %v7328
        %v7395 = vadd.f32 %v7061, %v7330
        %v7396 = vadd.f32 %v7065, %v7334
        %v7397 = vadd.f32 %v7067, %v7336
        %v7398 = vadd.f32 %v7069, %v7338
        %v7399 = vadd.f32 %v7071, %v7340
        %v7400 = vadd.f32 %v7075, %v7344
        %v7401 = vadd.f32 %v7077, %v7346
        %v7402 = vadd.f32 %v7079, %v7348
        %v7403 = vadd.f32 %v7081, %v7350
        %v7404 = vadd.f32 %v7085, %v7354
        %v7405 = vadd.f32 %v7087, %v7356
        %v7406 = vadd.f32 %v7089, %v7358
        %v7407 = vadd.f32 %v7091, %v7360
        %v7408 = vadd.f32 %v7095, %v7364
        %v7409 = vadd.f32 %v7097, %v7366
        %v7410 = vadd.f32 %v7099, %v7368
        %v7411 = vadd.f32 %v7101, %v7370
        %s7412 = scalar_lea.vmem %s5, 384
        %v7413 = vld [vmem:[%s7412] sm:$0xff]
        %v7414 = vld [vmem:[%s7412 + $0x8] sm:$0xff]
        %v7415 = vld [vmem:[%s7412 + $0x10] sm:$0xff]
        %v7416 = vld [vmem:[%s7412 + $0x18] sm:$0xff]
        %v7417 = vld [vmem:[%s7412 + $0x20] sm:$0xff]
        %v7418 = vld [vmem:[%s7412 + $0x28] sm:$0xff]
        %v7419 = vld [vmem:[%s7412 + $0x30] sm:$0xff]
        %v7420 = vld [vmem:[%s7412 + $0x38] sm:$0xff]
        %v7421 = vld [vmem:[%s7412 + $0x40] sm:$0xff]
        %v7422 = vld [vmem:[%s7412 + $0x48] sm:$0xff]
        %v7423 = vld [vmem:[%s7412 + $0x50] sm:$0xff]
        %v7424 = vld [vmem:[%s7412 + $0x58] sm:$0xff]
        %v7425 = vld [vmem:[%s7412 + $0x60] sm:$0xff]
        %v7426 = vld [vmem:[%s7412 + $0x68] sm:$0xff]
        %v7427 = vld [vmem:[%s7412 + $0x70] sm:$0xff]
        %v7428 = vld [vmem:[%s7412 + $0x78] sm:$0xff]
        %v7429 = vrot.slane %v6589, 1
        %v7430 = vrot.slane %v6591, 2
        %v7431 = vor.u32 %v7429, %v7430
        %v7432 = vrot.slane %v6600, 1
        %v7433 = vrot.slane %v6596, 2
        %v7434 = vor.u32 %v7432, %v7433
        %v7435 = vsel %vm1808, %v7431, %v7434
        %v7436 = vrot.slane %v6608, 1
        %v7437 = vrot.slane %v6604, 2
        %v7438 = vor.u32 %v7436, %v7437
        %v7439 = vsel %vm1808, %v7434, %v7438
        %v7440 = vrot.slane %v6616, 1
        %v7441 = vrot.slane %v6612, 2
        %v7442 = vor.u32 %v7440, %v7441
        %v7443 = vsel %vm1808, %v7438, %v7442
        %v7444 = vrot.slane %v6624, 1
        %v7445 = vrot.slane %v6620, 2
        %v7446 = vor.u32 %v7444, %v7445
        %v7447 = vsel %vm1808, %v7442, %v7446
        %v7448 = vrot.slane %v6632, 1
        %v7449 = vrot.slane %v6628, 2
        %v7450 = vor.u32 %v7448, %v7449
        %v7451 = vsel %vm1808, %v7446, %v7450
        %v7452 = vrot.slane %v6640, 1
        %v7453 = vrot.slane %v6636, 2
        %v7454 = vor.u32 %v7452, %v7453
        %v7455 = vsel %vm1808, %v7450, %v7454
        %v7456 = vrot.slane %v6648, 1
        %v7457 = vrot.slane %v6644, 2
        %v7458 = vor.u32 %v7456, %v7457
        %v7459 = vsel %vm1808, %v7454, %v7458
        %v7460 = vrot.slane %v6656, 1
        %v7461 = vrot.slane %v6652, 2
        %v7462 = vor.u32 %v7460, %v7461
        %v7463 = vsel %vm1808, %v7458, %v7462
        %v7464 = vrot.slane %v6664, 1
        %v7465 = vrot.slane %v6660, 2
        %v7466 = vor.u32 %v7464, %v7465
        %v7467 = vsel %vm1808, %v7462, %v7466
        %v7494 = vunpack.c.l.b16 %v7413
        %v7495 = vunpack.c.h.b16 %v7413
        %v7496 = vunpack.c.l.b16 %v7414
        %v7497 = vunpack.c.h.b16 %v7414
        %v7498 = vunpack.c.l.b16 %v7415
        %v7499 = vunpack.c.h.b16 %v7415
        %v7500 = vunpack.c.l.b16 %v7416
        %v7501 = vunpack.c.h.b16 %v7416
        %v7502 = vunpack.c.l.b16 %v7417
        %v7503 = vunpack.c.h.b16 %v7417
        %v7504 = vunpack.c.l.b16 %v7418
        %v7505 = vunpack.c.h.b16 %v7418
        %v7506 = vunpack.c.l.b16 %v7419
        %v7507 = vunpack.c.h.b16 %v7419
        %v7508 = vunpack.c.l.b16 %v7420
        %v7509 = vunpack.c.h.b16 %v7420
        %v7510 = vunpack.c.l.b16 %v7421
        %v7511 = vunpack.c.h.b16 %v7421
        %v7512 = vunpack.c.l.b16 %v7422
        %v7513 = vunpack.c.h.b16 %v7422
        %v7514 = vunpack.c.l.b16 %v7423
        %v7515 = vunpack.c.h.b16 %v7423
        %v7516 = vunpack.c.l.b16 %v7424
        %v7517 = vunpack.c.h.b16 %v7424
        %v7518 = vunpack.c.l.b16 %v7425
        %v7519 = vunpack.c.h.b16 %v7425
        %v7520 = vunpack.c.l.b16 %v7426
        %v7521 = vunpack.c.h.b16 %v7426
        %v7522 = vunpack.c.l.b16 %v7427
        %v7523 = vunpack.c.h.b16 %v7427
        %v7524 = vunpack.c.l.b16 %v7428
        %v7525 = vunpack.c.h.b16 %v7428
        %v7526 = vpack.c.b16 %v7496, %v7494
        %v7527 = vpack.c.b16 %v7497, %v7495
        %v7528 = vpack.c.b16 %v7500, %v7498
        %v7529 = vpack.c.b16 %v7501, %v7499
        %v7530 = vpack.c.b16 %v7504, %v7502
        %v7531 = vpack.c.b16 %v7505, %v7503
        %v7532 = vpack.c.b16 %v7508, %v7506
        %v7533 = vpack.c.b16 %v7509, %v7507
        %v7534 = vpack.c.b16 %v7512, %v7510
        %v7535 = vpack.c.b16 %v7513, %v7511
        %v7536 = vpack.c.b16 %v7516, %v7514
        %v7537 = vpack.c.b16 %v7517, %v7515
        %v7538 = vpack.c.b16 %v7520, %v7518
        %v7539 = vpack.c.b16 %v7521, %v7519
        %v7540 = vpack.c.b16 %v7524, %v7522
        %v7541 = vpack.c.b16 %v7525, %v7523
        %7558 = vmatprep.subr.bf16.mxu0 %v7527
        %7559 = vmatpush1.bf16.msra.mxu0 %v7526
        %7560 = vmatprep.subr.bf16.mxu0 %v7529
        %7561 = vmatpush1.bf16.msra.mxu0 %v7528
        %7562 = vmatprep.subr.bf16.mxu0 %v7531
        %7563 = vmatpush1.bf16.msra.mxu0 %v7530
        %7564 = vmatprep.subr.bf16.mxu0 %v7533
        %7565 = vmatpush1.bf16.msra.mxu0 %v7532
        %7566 = vmatprep.subr.bf16.mxu0 %v7535
        %7567 = vmatpush1.bf16.msra.mxu0 %v7534
        %7568 = vmatprep.subr.bf16.mxu0 %v7537
        %7569 = vmatpush1.bf16.msra.mxu0 %v7536
        %7570 = vmatprep.subr.bf16.mxu0 %v7539
        %7571 = vmatpush1.bf16.msra.mxu0 %v7538
        %7572 = vmatprep.subr.bf16.mxu0 %v7541
        %7573 = vmatpush1.bf16.msra.mxu0 %v7540
        %7574 = vmatprep.subr.bf16.mxu0 0
        %7575 = vmatpush1.bf16.msra.mxu0 0
        %7576 = vmatprep.subr.bf16.mxu0 0
        %7577 = vmatpush1.bf16.msra.mxu0 0
        %7578 = vmatprep.subr.bf16.mxu0 0
        %7579 = vmatpush1.bf16.msra.mxu0 0
        %7580 = vmatprep.subr.bf16.mxu0 0
        %7581 = vmatpush1.bf16.msra.mxu0 0
        %7582 = vmatprep.subr.bf16.mxu0 0
        %7583 = vmatpush1.bf16.msra.mxu0 0
        %7584 = vmatprep.subr.bf16.mxu0 0
        %7585 = vmatpush1.bf16.msra.mxu0 0
        %7586 = vmatprep.subr.bf16.mxu0 0
        %7587 = vmatpush1.bf16.msra.mxu0 0
        %7588 = vmatprep.subr.bf16.mxu0 0
        %7589 = vmatpush1.bf16.msra.mxu0 0
        %7590 = vmatprep.mubr.bf16.mxu0 0
        %7591 = vmatmul.mubr.bf16.gmra.mrb[0].mxu0 %v7435
        %v7592 = vpop.f32.mrb[0].mxu0
        %v7593 = vadd.f32 0.0, %v7592
        %v7594 = vpop.f32.mrb[0].mxu0
        %v7595 = vadd.f32 0.0, %v7594
        %v7596 = vpop.f32.mrb[0].mxu0
        %v7597 = vadd.f32 0.0, %v7596
        %v7598 = vpop.f32.mrb[0].mxu0
        %v7599 = vadd.f32 0.0, %v7598
        %7600 = vmatprep.mubr.bf16.mxu0 0
        %7601 = vmatmul.mubr.bf16.gmra.mrb[0].mxu0 %v7439
        %v7602 = vpop.f32.mrb[0].mxu0
        %v7603 = vadd.f32 0.0, %v7602
        %v7604 = vpop.f32.mrb[0].mxu0
        %v7605 = vadd.f32 0.0, %v7604
        %v7606 = vpop.f32.mrb[0].mxu0
        %v7607 = vadd.f32 0.0, %v7606
        %v7608 = vpop.f32.mrb[0].mxu0
        %v7609 = vadd.f32 0.0, %v7608
        %7610 = vmatprep.mubr.bf16.mxu0 0
        %7611 = vmatmul.mubr.bf16.gmra.mrb[0].mxu0 %v7443
        %v7612 = vpop.f32.mrb[0].mxu0
        %v7613 = vadd.f32 0.0, %v7612
        %v7614 = vpop.f32.mrb[0].mxu0
        %v7615 = vadd.f32 0.0, %v7614
        %v7616 = vpop.f32.mrb[0].mxu0
        %v7617 = vadd.f32 0.0, %v7616
        %v7618 = vpop.f32.mrb[0].mxu0
        %v7619 = vadd.f32 0.0, %v7618
        %7620 = vmatprep.mubr.bf16.mxu0 0
        %7621 = vmatmul.mubr.bf16.gmra.mrb[0].mxu0 %v7447
        %v7622 = vpop.f32.mrb[0].mxu0
        %v7623 = vadd.f32 0.0, %v7622
        %v7624 = vpop.f32.mrb[0].mxu0
        %v7625 = vadd.f32 0.0, %v7624
        %v7626 = vpop.f32.mrb[0].mxu0
        %v7627 = vadd.f32 0.0, %v7626
        %v7628 = vpop.f32.mrb[0].mxu0
        %v7629 = vadd.f32 0.0, %v7628
        %7630 = vmatprep.mubr.bf16.mxu0 0
        %7631 = vmatmul.mubr.bf16.gmra.mrb[0].mxu0 %v7451
        %v7632 = vpop.f32.mrb[0].mxu0
        %v7633 = vadd.f32 0.0, %v7632
        %v7634 = vpop.f32.mrb[0].mxu0
        %v7635 = vadd.f32 0.0, %v7634
        %v7636 = vpop.f32.mrb[0].mxu0
        %v7637 = vadd.f32 0.0, %v7636
        %v7638 = vpop.f32.mrb[0].mxu0
        %v7639 = vadd.f32 0.0, %v7638
        %7640 = vmatprep.mubr.bf16.mxu0 0
        %7641 = vmatmul.mubr.bf16.gmra.mrb[0].mxu0 %v7455
        %v7642 = vpop.f32.mrb[0].mxu0
        %v7643 = vadd.f32 0.0, %v7642
        %v7644 = vpop.f32.mrb[0].mxu0
        %v7645 = vadd.f32 0.0, %v7644
        %v7646 = vpop.f32.mrb[0].mxu0
        %v7647 = vadd.f32 0.0, %v7646
        %v7648 = vpop.f32.mrb[0].mxu0
        %v7649 = vadd.f32 0.0, %v7648
        %7650 = vmatprep.mubr.bf16.mxu0 0
        %7651 = vmatmul.mubr.bf16.gmra.mrb[0].mxu0 %v7459
        %v7652 = vpop.f32.mrb[0].mxu0
        %v7653 = vadd.f32 0.0, %v7652
        %v7654 = vpop.f32.mrb[0].mxu0
        %v7655 = vadd.f32 0.0, %v7654
        %v7656 = vpop.f32.mrb[0].mxu0
        %v7657 = vadd.f32 0.0, %v7656
        %v7658 = vpop.f32.mrb[0].mxu0
        %v7659 = vadd.f32 0.0, %v7658
        %7660 = vmatprep.mubr.bf16.mxu0 0
        %7661 = vmatmul.mubr.bf16.gmra.mrb[0].mxu0 %v7463
        %v7662 = vpop.f32.mrb[0].mxu0
        %v7663 = vadd.f32 0.0, %v7662
        %v7664 = vpop.f32.mrb[0].mxu0
        %v7665 = vadd.f32 0.0, %v7664
        %v7666 = vpop.f32.mrb[0].mxu0
        %v7667 = vadd.f32 0.0, %v7666
        %v7668 = vpop.f32.mrb[0].mxu0
        %v7669 = vadd.f32 0.0, %v7668
        %7670 = vmatprep.mubr.bf16.mxu0 0
        %7671 = vmatmul.mubr.bf16.gmra.mrb[0].mxu0 %v7467
        %v7672 = vpop.f32.mrb[0].mxu0
        %v7673 = vadd.f32 0.0, %v7672
        %v7674 = vpop.f32.mrb[0].mxu0
        %v7675 = vadd.f32 0.0, %v7674
        %v7676 = vpop.f32.mrb[0].mxu0
        %v7677 = vadd.f32 0.0, %v7676
        %v7678 = vpop.f32.mrb[0].mxu0
        %v7679 = vadd.f32 0.0, %v7678
        %7680 = vmatprep.mubr.bf16.mxu0 0
        %7681 = vmatmul.mubr.bf16.gmra.mrb[0].mxu0 %v7466
        %v7682 = vpop.f32.mrb[0].mxu0
        %v7683 = vadd.f32 0.0, %v7682
        %v7684 = vpop.f32.mrb[0].mxu0
        %v7685 = vadd.f32 0.0, %v7684
        %v7686 = vpop.f32.mrb[0].mxu0
        %v7687 = vadd.f32 0.0, %v7686
        %v7688 = vpop.f32.mrb[0].mxu0
        %v7689 = vadd.f32 0.0, %v7688
        %7690 = vdwg.mxu0
        %v7691 = vadd.f32 %v7372, %v7593
        %v7692 = vadd.f32 %v7373, %v7595
        %v7693 = vadd.f32 %v7374, %v7597
        %v7694 = vadd.f32 %v7375, %v7599
        %v7695 = vadd.f32 %v7376, %v7603
        %v7696 = vadd.f32 %v7377, %v7605
        %v7697 = vadd.f32 %v7378, %v7607
        %v7698 = vadd.f32 %v7379, %v7609
        %v7699 = vadd.f32 %v7380, %v7613
        %v7700 = vadd.f32 %v7381, %v7615
        %v7701 = vadd.f32 %v7382, %v7617
        %v7702 = vadd.f32 %v7383, %v7619
        %v7703 = vadd.f32 %v7384, %v7623
        %v7704 = vadd.f32 %v7385, %v7625
        %v7705 = vadd.f32 %v7386, %v7627
        %v7706 = vadd.f32 %v7387, %v7629
        %v7707 = vadd.f32 %v7388, %v7633
        %v7708 = vadd.f32 %v7389, %v7635
        %v7709 = vadd.f32 %v7390, %v7637
        %v7710 = vadd.f32 %v7391, %v7639
        %v7711 = vadd.f32 %v7392, %v7643
        %v7712 = vadd.f32 %v7393, %v7645
        %v7713 = vadd.f32 %v7394, %v7647
        %v7714 = vadd.f32 %v7395, %v7649
        %v7715 = vadd.f32 %v7396, %v7653
        %v7716 = vadd.f32 %v7397, %v7655
        %v7717 = vadd.f32 %v7398, %v7657
        %v7718 = vadd.f32 %v7399, %v7659
        %v7719 = vadd.f32 %v7400, %v7663
        %v7720 = vadd.f32 %v7401, %v7665
        %v7721 = vadd.f32 %v7402, %v7667
        %v7722 = vadd.f32 %v7403, %v7669
        %v7723 = vadd.f32 %v7404, %v7673
        %v7724 = vadd.f32 %v7405, %v7675
        %v7725 = vadd.f32 %v7406, %v7677
        %v7726 = vadd.f32 %v7407, %v7679
        %v7727 = vadd.f32 %v7408, %v7683
        %v7728 = vadd.f32 %v7409, %v7685
        %v7729 = vadd.f32 %v7410, %v7687
        %v7730 = vadd.f32 %v7411, %v7689
        %s7731 = scalar_lea.vmem %s5, 512
        %v7732 = vld [vmem:[%s7731] sm:$0xff]
        %v7733 = vld [vmem:[%s7731 + $0x8] sm:$0xff]
        %v7734 = vld [vmem:[%s7731 + $0x10] sm:$0xff]
        %v7735 = vld [vmem:[%s7731 + $0x18] sm:$0xff]
        %v7736 = vld [vmem:[%s7731 + $0x20] sm:$0xff]
        %v7737 = vld [vmem:[%s7731 + $0x28] sm:$0xff]
        %v7738 = vld [vmem:[%s7731 + $0x30] sm:$0xff]
        %v7739 = vld [vmem:[%s7731 + $0x38] sm:$0xff]
        %v7740 = vld [vmem:[%s7731 + $0x40] sm:$0xff]
        %v7741 = vld [vmem:[%s7731 + $0x48] sm:$0xff]
        %v7742 = vld [vmem:[%s7731 + $0x50] sm:$0xff]
        %v7743 = vld [vmem:[%s7731 + $0x58] sm:$0xff]
        %v7744 = vld [vmem:[%s7731 + $0x60] sm:$0xff]
        %v7745 = vld [vmem:[%s7731 + $0x68] sm:$0xff]
        %v7746 = vld [vmem:[%s7731 + $0x70] sm:$0xff]
        %v7747 = vld [vmem:[%s7731 + $0x78] sm:$0xff]
        %v7748 = vrot.slane %v6545, 2
        %v7749 = vrot.slane %v6546, 2
        %v7750 = vsel %vm2292, %v7748, %v7749
        %v7751 = vrot.slane %v6547, 2
        %v7752 = vsel %vm2292, %v7749, %v7751
        %v7753 = vrot.slane %v6548, 2
        %v7754 = vsel %vm2292, %v7751, %v7753
        %v7755 = vrot.slane %v6549, 2
        %v7756 = vsel %vm2292, %v7753, %v7755
        %v7757 = vrot.slane %v6550, 2
        %v7758 = vsel %vm2292, %v7755, %v7757
        %v7759 = vrot.slane %v6551, 2
        %v7760 = vsel %vm2292, %v7757, %v7759
        %v7761 = vrot.slane %v6552, 2
        %v7762 = vsel %vm2292, %v7759, %v7761
        %v7763 = vrot.slane %v6553, 2
        %v7764 = vsel %vm2292, %v7761, %v7763
        %v7765 = vrot.slane %v6554, 2
        %v7766 = vsel %vm2292, %v7763, %v7765
        %v7793 = vunpack.c.l.b16 %v7732
        %v7794 = vunpack.c.h.b16 %v7732
        %v7795 = vunpack.c.l.b16 %v7733
        %v7796 = vunpack.c.h.b16 %v7733
        %v7797 = vunpack.c.l.b16 %v7734
        %v7798 = vunpack.c.h.b16 %v7734
        %v7799 = vunpack.c.l.b16 %v7735
        %v7800 = vunpack.c.h.b16 %v7735
        %v7801 = vunpack.c.l.b16 %v7736
        %v7802 = vunpack.c.h.b16 %v7736
        %v7803 = vunpack.c.l.b16 %v7737
        %v7804 = vunpack.c.h.b16 %v7737
        %v7805 = vunpack.c.l.b16 %v7738
        %v7806 = vunpack.c.h.b16 %v7738
        %v7807 = vunpack.c.l.b16 %v7739
        %v7808 = vunpack.c.h.b16 %v7739
        %v7809 = vunpack.c.l.b16 %v7740
        %v7810 = vunpack.c.h.b16 %v7740
        %v7811 = vunpack.c.l.b16 %v7741
        %v7812 = vunpack.c.h.b16 %v7741
        %v7813 = vunpack.c.l.b16 %v7742
        %v7814 = vunpack.c.h.b16 %v7742
        %v7815 = vunpack.c.l.b16 %v7743
        %v7816 = vunpack.c.h.b16 %v7743
        %v7817 = vunpack.c.l.b16 %v7744
        %v7818 = vunpack.c.h.b16 %v7744
        %v7819 = vunpack.c.l.b16 %v7745
        %v7820 = vunpack.c.h.b16 %v7745
        %v7821 = vunpack.c.l.b16 %v7746
        %v7822 = vunpack.c.h.b16 %v7746
        %v7823 = vunpack.c.l.b16 %v7747
        %v7824 = vunpack.c.h.b16 %v7747
        %v7825 = vpack.c.b16 %v7795, %v7793
        %v7826 = vpack.c.b16 %v7796, %v7794
        %v7827 = vpack.c.b16 %v7799, %v7797
        %v7828 = vpack.c.b16 %v7800, %v7798
        %v7829 = vpack.c.b16 %v7803, %v7801
        %v7830 = vpack.c.b16 %v7804, %v7802
        %v7831 = vpack.c.b16 %v7807, %v7805
        %v7832 = vpack.c.b16 %v7808, %v7806
        %v7833 = vpack.c.b16 %v7811, %v7809
        %v7834 = vpack.c.b16 %v7812, %v7810
        %v7835 = vpack.c.b16 %v7815, %v7813
        %v7836 = vpack.c.b16 %v7816, %v7814
        %v7837 = vpack.c.b16 %v7819, %v7817
        %v7838 = vpack.c.b16 %v7820, %v7818
        %v7839 = vpack.c.b16 %v7823, %v7821
        %v7840 = vpack.c.b16 %v7824, %v7822
        %7857 = vmatprep.subr.bf16.mxu0 %v7826
        %7858 = vmatpush1.bf16.msra.mxu0 %v7825
        %7859 = vmatprep.subr.bf16.mxu0 %v7828
        %7860 = vmatpush1.bf16.msra.mxu0 %v7827
        %7861 = vmatprep.subr.bf16.mxu0 %v7830
        %7862 = vmatpush1.bf16.msra.mxu0 %v7829
        %7863 = vmatprep.subr.bf16.mxu0 %v7832
        %7864 = vmatpush1.bf16.msra.mxu0 %v7831
        %7865 = vmatprep.subr.bf16.mxu0 %v7834
        %7866 = vmatpush1.bf16.msra.mxu0 %v7833
        %7867 = vmatprep.subr.bf16.mxu0 %v7836
        %7868 = vmatpush1.bf16.msra.mxu0 %v7835
        %7869 = vmatprep.subr.bf16.mxu0 %v7838
        %7870 = vmatpush1.bf16.msra.mxu0 %v7837
        %7871 = vmatprep.subr.bf16.mxu0 %v7840
        %7872 = vmatpush1.bf16.msra.mxu0 %v7839
        %7873 = vmatprep.subr.bf16.mxu0 0
        %7874 = vmatpush1.bf16.msra.mxu0 0
        %7875 = vmatprep.subr.bf16.mxu0 0
        %7876 = vmatpush1.bf16.msra.mxu0 0
        %7877 = vmatprep.subr.bf16.mxu0 0
        %7878 = vmatpush1.bf16.msra.mxu0 0
        %7879 = vmatprep.subr.bf16.mxu0 0
        %7880 = vmatpush1.bf16.msra.mxu0 0
        %7881 = vmatprep.subr.bf16.mxu0 0
        %7882 = vmatpush1.bf16.msra.mxu0 0
        %7883 = vmatprep.subr.bf16.mxu0 0
        %7884 = vmatpush1.bf16.msra.mxu0 0
        %7885 = vmatprep.subr.bf16.mxu0 0
        %7886 = vmatpush1.bf16.msra.mxu0 0
        %7887 = vmatprep.subr.bf16.mxu0 0
        %7888 = vmatpush1.bf16.msra.mxu0 0
        %7889 = vmatprep.mubr.bf16.mxu0 0
        %7890 = vmatmul.mubr.bf16.gmra.mrb[0].mxu0 %v7750
        %v7891 = vpop.f32.mrb[0].mxu0
        %v7892 = vadd.f32 0.0, %v7891
        %v7893 = vpop.f32.mrb[0].mxu0
        %v7894 = vadd.f32 0.0, %v7893
        %v7895 = vpop.f32.mrb[0].mxu0
        %v7896 = vadd.f32 0.0, %v7895
        %v7897 = vpop.f32.mrb[0].mxu0
        %v7898 = vadd.f32 0.0, %v7897
        %7899 = vmatprep.mubr.bf16.mxu0 0
        %7900 = vmatmul.mubr.bf16.gmra.mrb[0].mxu0 %v7752
        %v7901 = vpop.f32.mrb[0].mxu0
        %v7902 = vadd.f32 0.0, %v7901
        %v7903 = vpop.f32.mrb[0].mxu0
        %v7904 = vadd.f32 0.0, %v7903
        %v7905 = vpop.f32.mrb[0].mxu0
        %v7906 = vadd.f32 0.0, %v7905
        %v7907 = vpop.f32.mrb[0].mxu0
        %v7908 = vadd.f32 0.0, %v7907
        %7909 = vmatprep.mubr.bf16.mxu0 0
        %7910 = vmatmul.mubr.bf16.gmra.mrb[0].mxu0 %v7754
        %v7911 = vpop.f32.mrb[0].mxu0
        %v7912 = vadd.f32 0.0, %v7911
        %v7913 = vpop.f32.mrb[0].mxu0
        %v7914 = vadd.f32 0.0, %v7913
        %v7915 = vpop.f32.mrb[0].mxu0
        %v7916 = vadd.f32 0.0, %v7915
        %v7917 = vpop.f32.mrb[0].mxu0
        %v7918 = vadd.f32 0.0, %v7917
        %7919 = vmatprep.mubr.bf16.mxu0 0
        %7920 = vmatmul.mubr.bf16.gmra.mrb[0].mxu0 %v7756
        %v7921 = vpop.f32.mrb[0].mxu0
        %v7922 = vadd.f32 0.0, %v7921
        %v7923 = vpop.f32.mrb[0].mxu0
        %v7924 = vadd.f32 0.0, %v7923
        %v7925 = vpop.f32.mrb[0].mxu0
        %v7926 = vadd.f32 0.0, %v7925
        %v7927 = vpop.f32.mrb[0].mxu0
        %v7928 = vadd.f32 0.0, %v7927
        %7929 = vmatprep.mubr.bf16.mxu0 0
        %7930 = vmatmul.mubr.bf16.gmra.mrb[0].mxu0 %v7758
        %v7931 = vpop.f32.mrb[0].mxu0
        %v7932 = vadd.f32 0.0, %v7931
        %v7933 = vpop.f32.mrb[0].mxu0
        %v7934 = vadd.f32 0.0, %v7933
        %v7935 = vpop.f32.mrb[0].mxu0
        %v7936 = vadd.f32 0.0, %v7935
        %v7937 = vpop.f32.mrb[0].mxu0
        %v7938 = vadd.f32 0.0, %v7937
        %7939 = vmatprep.mubr.bf16.mxu0 0
        %7940 = vmatmul.mubr.bf16.gmra.mrb[0].mxu0 %v7760
        %v7941 = vpop.f32.mrb[0].mxu0
        %v7942 = vadd.f32 0.0, %v7941
        %v7943 = vpop.f32.mrb[0].mxu0
        %v7944 = vadd.f32 0.0, %v7943
        %v7945 = vpop.f32.mrb[0].mxu0
        %v7946 = vadd.f32 0.0, %v7945
        %v7947 = vpop.f32.mrb[0].mxu0
        %v7948 = vadd.f32 0.0, %v7947
        %7949 = vmatprep.mubr.bf16.mxu0 0
        %7950 = vmatmul.mubr.bf16.gmra.mrb[0].mxu0 %v7762
        %v7951 = vpop.f32.mrb[0].mxu0
        %v7952 = vadd.f32 0.0, %v7951
        %v7953 = vpop.f32.mrb[0].mxu0
        %v7954 = vadd.f32 0.0, %v7953
        %v7955 = vpop.f32.mrb[0].mxu0
        %v7956 = vadd.f32 0.0, %v7955
        %v7957 = vpop.f32.mrb[0].mxu0
        %v7958 = vadd.f32 0.0, %v7957
        %7959 = vmatprep.mubr.bf16.mxu0 0
        %7960 = vmatmul.mubr.bf16.gmra.mrb[0].mxu0 %v7764
        %v7961 = vpop.f32.mrb[0].mxu0
        %v7962 = vadd.f32 0.0, %v7961
        %v7963 = vpop.f32.mrb[0].mxu0
        %v7964 = vadd.f32 0.0, %v7963
        %v7965 = vpop.f32.mrb[0].mxu0
        %v7966 = vadd.f32 0.0, %v7965
        %v7967 = vpop.f32.mrb[0].mxu0
        %v7968 = vadd.f32 0.0, %v7967
        %7969 = vmatprep.mubr.bf16.mxu0 0
        %7970 = vmatmul.mubr.bf16.gmra.mrb[0].mxu0 %v7766
        %v7971 = vpop.f32.mrb[0].mxu0
        %v7972 = vadd.f32 0.0, %v7971
        %v7973 = vpop.f32.mrb[0].mxu0
        %v7974 = vadd.f32 0.0, %v7973
        %v7975 = vpop.f32.mrb[0].mxu0
        %v7976 = vadd.f32 0.0, %v7975
        %v7977 = vpop.f32.mrb[0].mxu0
        %v7978 = vadd.f32 0.0, %v7977
        %7979 = vmatprep.mubr.bf16.mxu0 0
        %7980 = vmatmul.mubr.bf16.gmra.mrb[0].mxu0 %v7765
        %v7981 = vpop.f32.mrb[0].mxu0
        %v7982 = vadd.f32 0.0, %v7981
        %v7983 = vpop.f32.mrb[0].mxu0
        %v7984 = vadd.f32 0.0, %v7983
        %v7985 = vpop.f32.mrb[0].mxu0
        %v7986 = vadd.f32 0.0, %v7985
        %v7987 = vpop.f32.mrb[0].mxu0
        %v7988 = vadd.f32 0.0, %v7987
        %7989 = vdwg.mxu0
        %v7990 = vadd.f32 %v7691, %v7892
        %v7991 = vadd.f32 %v7692, %v7894
        %v7992 = vadd.f32 %v7693, %v7896
        %v7993 = vadd.f32 %v7694, %v7898
        %v7994 = vadd.f32 %v7695, %v7902
        %v7995 = vadd.f32 %v7696, %v7904
        %v7996 = vadd.f32 %v7697, %v7906
        %v7997 = vadd.f32 %v7698, %v7908
        %v7998 = vadd.f32 %v7699, %v7912
        %v7999 = vadd.f32 %v7700, %v7914
        %v8000 = vadd.f32 %v7701, %v7916
        %v8001 = vadd.f32 %v7702, %v7918
        %v8002 = vadd.f32 %v7703, %v7922
        %v8003 = vadd.f32 %v7704, %v7924
        %v8004 = vadd.f32 %v7705, %v7926
        %v8005 = vadd.f32 %v7706, %v7928
        %v8006 = vadd.f32 %v7707, %v7932
        %v8007 = vadd.f32 %v7708, %v7934
        %v8008 = vadd.f32 %v7709, %v7936
        %v8009 = vadd.f32 %v7710, %v7938
        %v8010 = vadd.f32 %v7711, %v7942
        %v8011 = vadd.f32 %v7712, %v7944
        %v8012 = vadd.f32 %v7713, %v7946
        %v8013 = vadd.f32 %v7714, %v7948
        %v8014 = vadd.f32 %v7715, %v7952
        %v8015 = vadd.f32 %v7716, %v7954
        %v8016 = vadd.f32 %v7717, %v7956
        %v8017 = vadd.f32 %v7718, %v7958
        %v8018 = vadd.f32 %v7719, %v7962
        %v8019 = vadd.f32 %v7720, %v7964
        %v8020 = vadd.f32 %v7721, %v7966
        %v8021 = vadd.f32 %v7722, %v7968
        %v8022 = vadd.f32 %v7723, %v7972
        %v8023 = vadd.f32 %v7724, %v7974
        %v8024 = vadd.f32 %v7725, %v7976
        %v8025 = vadd.f32 %v7726, %v7978
        %v8026 = vadd.f32 %v7727, %v7982
        %v8027 = vadd.f32 %v7728, %v7984
        %v8028 = vadd.f32 %v7729, %v7986
        %v8029 = vadd.f32 %v7730, %v7988
        %v8030 = vmax.f32 %v7990, 0.0
        %v8031 = vmax.f32 %v7991, 0.0
        %v8032 = vmax.f32 %v7992, 0.0
        %v8033 = vmax.f32 %v7993, 0.0
        %v8034 = vmax.f32 %v7994, 0.0
        %v8035 = vmax.f32 %v7995, 0.0
        %v8036 = vmax.f32 %v7996, 0.0
        %v8037 = vmax.f32 %v7997, 0.0
        %v8038 = vmax.f32 %v7998, 0.0
        %v8039 = vmax.f32 %v7999, 0.0
        %v8040 = vmax.f32 %v8000, 0.0
        %v8041 = vmax.f32 %v8001, 0.0
        %v8042 = vmax.f32 %v8002, 0.0
        %v8043 = vmax.f32 %v8003, 0.0
        %v8044 = vmax.f32 %v8004, 0.0
        %v8045 = vmax.f32 %v8005, 0.0
        %v8046 = vmax.f32 %v8006, 0.0
        %v8047 = vmax.f32 %v8007, 0.0
        %v8048 = vmax.f32 %v8008, 0.0
        %v8049 = vmax.f32 %v8009, 0.0
        %v8050 = vmax.f32 %v8010, 0.0
        %v8051 = vmax.f32 %v8011, 0.0
        %v8052 = vmax.f32 %v8012, 0.0
        %v8053 = vmax.f32 %v8013, 0.0
        %v8054 = vmax.f32 %v8014, 0.0
        %v8055 = vmax.f32 %v8015, 0.0
        %v8056 = vmax.f32 %v8016, 0.0
        %v8057 = vmax.f32 %v8017, 0.0
        %v8058 = vmax.f32 %v8018, 0.0
        %v8059 = vmax.f32 %v8019, 0.0
        %v8060 = vmax.f32 %v8020, 0.0
        %v8061 = vmax.f32 %v8021, 0.0
        %v8062 = vmax.f32 %v8022, 0.0
        %v8063 = vmax.f32 %v8023, 0.0
        %v8064 = vmax.f32 %v8024, 0.0
        %v8065 = vmax.f32 %v8025, 0.0
        %v8066 = vmax.f32 %v8026, 0.0
        %v8067 = vmax.f32 %v8027, 0.0
        %v8068 = vmax.f32 %v8028, 0.0
        %v8069 = vmax.f32 %v8029, 0.0
        %v8070 = vmul.f32 %v8030, %v8030
        %v8071 = vmul.f32 %v8031, %v8031
        %v8072 = vmul.f32 %v8032, %v8032
        %v8073 = vmul.f32 %v8033, %v8033
        %v8074 = vmul.f32 %v8034, %v8034
        %v8075 = vmul.f32 %v8035, %v8035
        %v8076 = vmul.f32 %v8036, %v8036
        %v8077 = vmul.f32 %v8037, %v8037
        %v8078 = vmul.f32 %v8038, %v8038
        %v8079 = vmul.f32 %v8039, %v8039
        %v8080 = vmul.f32 %v8040, %v8040
        %v8081 = vmul.f32 %v8041, %v8041
        %v8082 = vmul.f32 %v8042, %v8042
        %v8083 = vmul.f32 %v8043, %v8043
        %v8084 = vmul.f32 %v8044, %v8044
        %v8085 = vmul.f32 %v8045, %v8045
        %v8086 = vmul.f32 %v8046, %v8046
        %v8087 = vmul.f32 %v8047, %v8047
        %v8088 = vmul.f32 %v8048, %v8048
        %v8089 = vmul.f32 %v8049, %v8049
        %v8090 = vmul.f32 %v8050, %v8050
        %v8091 = vmul.f32 %v8051, %v8051
        %v8092 = vmul.f32 %v8052, %v8052
        %v8093 = vmul.f32 %v8053, %v8053
        %v8094 = vmul.f32 %v8054, %v8054
        %v8095 = vmul.f32 %v8055, %v8055
        %v8096 = vmul.f32 %v8056, %v8056
        %v8097 = vmul.f32 %v8057, %v8057
        %v8098 = vmul.f32 %v8058, %v8058
        %v8099 = vmul.f32 %v8059, %v8059
        %v8100 = vmul.f32 %v8060, %v8060
        %v8101 = vmul.f32 %v8061, %v8061
        %v8102 = vmul.f32 %v8062, %v8062
        %v8103 = vmul.f32 %v8063, %v8063
        %v8104 = vmul.f32 %v8064, %v8064
        %v8105 = vmul.f32 %v8065, %v8065
        %v8106 = vmul.f32 %v8066, %v8066
        %v8107 = vmul.f32 %v8067, %v8067
        %v8108 = vmul.f32 %v8068, %v8068
        %v8109 = vmul.f32 %v8069, %v8069
        %v8110 = vpack.c.bf16 %v8072, %v8070
        %v8111 = vpack.c.bf16 %v8073, %v8071
        %v8112 = vpack.c.bf16 %v8076, %v8074
        %v8113 = vpack.c.bf16 %v8077, %v8075
        %v8114 = vpack.c.bf16 %v8080, %v8078
        %v8115 = vpack.c.bf16 %v8081, %v8079
        %v8116 = vpack.c.bf16 %v8084, %v8082
        %v8117 = vpack.c.bf16 %v8085, %v8083
        %v8118 = vpack.c.bf16 %v8088, %v8086
        %v8119 = vpack.c.bf16 %v8089, %v8087
        %v8120 = vpack.c.bf16 %v8092, %v8090
        %v8121 = vpack.c.bf16 %v8093, %v8091
        %v8122 = vpack.c.bf16 %v8096, %v8094
        %v8123 = vpack.c.bf16 %v8097, %v8095
        %v8124 = vpack.c.bf16 %v8100, %v8098
        %v8125 = vpack.c.bf16 %v8101, %v8099
        %v8126 = vpack.c.bf16 %v8104, %v8102
        %v8127 = vpack.c.bf16 %v8105, %v8103
        %v8128 = vpack.c.bf16 %v8108, %v8106
        %v8129 = vpack.c.bf16 %v8109, %v8107
        %v8130 = vld [vmem:[%s6] sm:$0xff]
        %v8131 = vld [vmem:[%s6 + $0x8] sm:$0xff]
        %v8132 = vld [vmem:[%s6 + $0x10] sm:$0xff]
        %v8133 = vld [vmem:[%s6 + $0x18] sm:$0xff]
        %v8134 = vld [vmem:[%s6 + $0x20] sm:$0xff]
        %v8135 = vld [vmem:[%s6 + $0x28] sm:$0xff]
        %v8136 = vld [vmem:[%s6 + $0x30] sm:$0xff]
        %v8137 = vld [vmem:[%s6 + $0x38] sm:$0xff]
        %v8138 = vld [vmem:[%s6 + $0x40] sm:$0xff]
        %v8139 = vld [vmem:[%s6 + $0x48] sm:$0xff]
        %v8140 = vld [vmem:[%s6 + $0x50] sm:$0xff]
        %v8141 = vld [vmem:[%s6 + $0x58] sm:$0xff]
        %v8142 = vld [vmem:[%s6 + $0x60] sm:$0xff]
        %v8143 = vld [vmem:[%s6 + $0x68] sm:$0xff]
        %v8144 = vld [vmem:[%s6 + $0x70] sm:$0xff]
        %v8145 = vld [vmem:[%s6 + $0x78] sm:$0xff]
        %v8146 = vld [vmem:[%s6 + $0x80] sm:$0xff]
        %v8147 = vld [vmem:[%s6 + $0x88] sm:$0xff]
        %v8148 = vld [vmem:[%s6 + $0x90] sm:$0xff]
        %v8149 = vld [vmem:[%s6 + $0x98] sm:$0xff]
        %v8150 = vld [vmem:[%s6 + $0xa0] sm:$0xff]
        %v8151 = vld [vmem:[%s6 + $0xa8] sm:$0xff]
        %v8152 = vld [vmem:[%s6 + $0xb0] sm:$0xff]
        %v8153 = vld [vmem:[%s6 + $0xb8] sm:$0xff]
        %v8154 = vld [vmem:[%s6 + $0xc0] sm:$0xff]
        %v8155 = vld [vmem:[%s6 + $0xc8] sm:$0xff]
        %v8156 = vld [vmem:[%s6 + $0xd0] sm:$0xff]
        %v8157 = vld [vmem:[%s6 + $0xd8] sm:$0xff]
        %v8158 = vld [vmem:[%s6 + $0xe0] sm:$0xff]
        %v8159 = vld [vmem:[%s6 + $0xe8] sm:$0xff]
        %v8160 = vld [vmem:[%s6 + $0xf0] sm:$0xff]
        %v8161 = vld [vmem:[%s6 + $0xf8] sm:$0xff]
        %v8194 = vunpack.c.l.b16 %v8130
        %v8195 = vunpack.c.h.b16 %v8130
        %v8196 = vunpack.c.l.b16 %v8131
        %v8197 = vunpack.c.h.b16 %v8131
        %v8198 = vunpack.c.l.b16 %v8132
        %v8199 = vunpack.c.h.b16 %v8132
        %v8200 = vunpack.c.l.b16 %v8133
        %v8201 = vunpack.c.h.b16 %v8133
        %v8202 = vunpack.c.l.b16 %v8134
        %v8203 = vunpack.c.h.b16 %v8134
        %v8204 = vunpack.c.l.b16 %v8135
        %v8205 = vunpack.c.h.b16 %v8135
        %v8206 = vunpack.c.l.b16 %v8136
        %v8207 = vunpack.c.h.b16 %v8136
        %v8208 = vunpack.c.l.b16 %v8137
        %v8209 = vunpack.c.h.b16 %v8137
        %v8210 = vunpack.c.l.b16 %v8138
        %v8211 = vunpack.c.h.b16 %v8138
        %v8212 = vunpack.c.l.b16 %v8139
        %v8213 = vunpack.c.h.b16 %v8139
        %v8214 = vunpack.c.l.b16 %v8140
        %v8215 = vunpack.c.h.b16 %v8140
        %v8216 = vunpack.c.l.b16 %v8141
        %v8217 = vunpack.c.h.b16 %v8141
        %v8218 = vunpack.c.l.b16 %v8142
        %v8219 = vunpack.c.h.b16 %v8142
        %v8220 = vunpack.c.l.b16 %v8143
        %v8221 = vunpack.c.h.b16 %v8143
        %v8222 = vunpack.c.l.b16 %v8144
        %v8223 = vunpack.c.h.b16 %v8144
        %v8224 = vunpack.c.l.b16 %v8145
        %v8225 = vunpack.c.h.b16 %v8145
        %v8226 = vunpack.c.l.b16 %v8146
        %v8227 = vunpack.c.h.b16 %v8146
        %v8228 = vunpack.c.l.b16 %v8147
        %v8229 = vunpack.c.h.b16 %v8147
        %v8230 = vunpack.c.l.b16 %v8148
        %v8231 = vunpack.c.h.b16 %v8148
        %v8232 = vunpack.c.l.b16 %v8149
        %v8233 = vunpack.c.h.b16 %v8149
        %v8234 = vunpack.c.l.b16 %v8150
        %v8235 = vunpack.c.h.b16 %v8150
        %v8236 = vunpack.c.l.b16 %v8151
        %v8237 = vunpack.c.h.b16 %v8151
        %v8238 = vunpack.c.l.b16 %v8152
        %v8239 = vunpack.c.h.b16 %v8152
        %v8240 = vunpack.c.l.b16 %v8153
        %v8241 = vunpack.c.h.b16 %v8153
        %v8242 = vunpack.c.l.b16 %v8154
        %v8243 = vunpack.c.h.b16 %v8154
        %v8244 = vunpack.c.l.b16 %v8155
        %v8245 = vunpack.c.h.b16 %v8155
        %v8246 = vunpack.c.l.b16 %v8156
        %v8247 = vunpack.c.h.b16 %v8156
        %v8248 = vunpack.c.l.b16 %v8157
        %v8249 = vunpack.c.h.b16 %v8157
        %v8250 = vunpack.c.l.b16 %v8158
        %v8251 = vunpack.c.h.b16 %v8158
        %v8252 = vunpack.c.l.b16 %v8159
        %v8253 = vunpack.c.h.b16 %v8159
        %v8254 = vunpack.c.l.b16 %v8160
        %v8255 = vunpack.c.h.b16 %v8160
        %v8256 = vunpack.c.l.b16 %v8161
        %v8257 = vunpack.c.h.b16 %v8161
        %v8258 = vpack.c.b16 %v8196, %v8194
        %v8259 = vpack.c.b16 %v8197, %v8195
        %v8260 = vpack.c.b16 %v8200, %v8198
        %v8261 = vpack.c.b16 %v8201, %v8199
        %v8262 = vpack.c.b16 %v8204, %v8202
        %v8263 = vpack.c.b16 %v8205, %v8203
        %v8264 = vpack.c.b16 %v8208, %v8206
        %v8265 = vpack.c.b16 %v8209, %v8207
        %v8266 = vpack.c.b16 %v8212, %v8210
        %v8267 = vpack.c.b16 %v8213, %v8211
        %v8268 = vpack.c.b16 %v8216, %v8214
        %v8269 = vpack.c.b16 %v8217, %v8215
        %v8270 = vpack.c.b16 %v8220, %v8218
        %v8271 = vpack.c.b16 %v8221, %v8219
        %v8272 = vpack.c.b16 %v8224, %v8222
        %v8273 = vpack.c.b16 %v8225, %v8223
        %v8274 = vpack.c.b16 %v8228, %v8226
        %v8275 = vpack.c.b16 %v8229, %v8227
        %v8276 = vpack.c.b16 %v8232, %v8230
        %v8277 = vpack.c.b16 %v8233, %v8231
        %v8278 = vpack.c.b16 %v8236, %v8234
        %v8279 = vpack.c.b16 %v8237, %v8235
        %v8280 = vpack.c.b16 %v8240, %v8238
        %v8281 = vpack.c.b16 %v8241, %v8239
        %v8282 = vpack.c.b16 %v8244, %v8242
        %v8283 = vpack.c.b16 %v8245, %v8243
        %v8284 = vpack.c.b16 %v8248, %v8246
        %v8285 = vpack.c.b16 %v8249, %v8247
        %v8286 = vpack.c.b16 %v8252, %v8250
        %v8287 = vpack.c.b16 %v8253, %v8251
        %v8288 = vpack.c.b16 %v8256, %v8254
        %v8289 = vpack.c.b16 %v8257, %v8255
        %8322 = vmatprep.subr.bf16.mxu0 %v8259
        %8323 = vmatpush1.bf16.msra.mxu0 %v8258
        %8324 = vmatprep.subr.bf16.mxu0 %v8261
        %8325 = vmatpush1.bf16.msra.mxu0 %v8260
        %8326 = vmatprep.subr.bf16.mxu0 %v8263
        %8327 = vmatpush1.bf16.msra.mxu0 %v8262
        %8328 = vmatprep.subr.bf16.mxu0 %v8265
        %8329 = vmatpush1.bf16.msra.mxu0 %v8264
        %8330 = vmatprep.subr.bf16.mxu0 %v8267
        %8331 = vmatpush1.bf16.msra.mxu0 %v8266
        %8332 = vmatprep.subr.bf16.mxu0 %v8269
        %8333 = vmatpush1.bf16.msra.mxu0 %v8268
        %8334 = vmatprep.subr.bf16.mxu0 %v8271
        %8335 = vmatpush1.bf16.msra.mxu0 %v8270
        %8336 = vmatprep.subr.bf16.mxu0 %v8273
        %8337 = vmatpush1.bf16.msra.mxu0 %v8272
        %8338 = vmatprep.subr.bf16.mxu0 %v8275
        %8339 = vmatpush1.bf16.msra.mxu0 %v8274
        %8340 = vmatprep.subr.bf16.mxu0 %v8277
        %8341 = vmatpush1.bf16.msra.mxu0 %v8276
        %8342 = vmatprep.subr.bf16.mxu0 %v8279
        %8343 = vmatpush1.bf16.msra.mxu0 %v8278
        %8344 = vmatprep.subr.bf16.mxu0 %v8281
        %8345 = vmatpush1.bf16.msra.mxu0 %v8280
        %8346 = vmatprep.subr.bf16.mxu0 %v8283
        %8347 = vmatpush1.bf16.msra.mxu0 %v8282
        %8348 = vmatprep.subr.bf16.mxu0 %v8285
        %8349 = vmatpush1.bf16.msra.mxu0 %v8284
        %8350 = vmatprep.subr.bf16.mxu0 %v8287
        %8351 = vmatpush1.bf16.msra.mxu0 %v8286
        %8352 = vmatprep.subr.bf16.mxu0 %v8289
        %8353 = vmatpush1.bf16.msra.mxu0 %v8288
        %8354 = vmatprep.mubr.bf16.mxu0 %v8111
        %8355 = vmatmul.mubr.bf16.gmra.mrb[0].mxu0 %v8110
        %v8356 = vpop.f32.mrb[0].mxu0
        %v8357 = vadd.f32 0.0, %v8356
        %v8358 = vpop.f32.mrb[0].mxu0
        %v8359 = vadd.f32 0.0, %v8358
        %v8360 = vpop.f32.mrb[0].mxu0
        %v8361 = vadd.f32 0.0, %v8360
        %v8362 = vpop.f32.mrb[0].mxu0
        %v8363 = vadd.f32 0.0, %v8362
        %8364 = vmatprep.mubr.bf16.mxu0 %v8113
        %8365 = vmatmul.mubr.bf16.gmra.mrb[0].mxu0 %v8112
        %v8366 = vpop.f32.mrb[0].mxu0
        %v8367 = vadd.f32 0.0, %v8366
        %v8368 = vpop.f32.mrb[0].mxu0
        %v8369 = vadd.f32 0.0, %v8368
        %v8370 = vpop.f32.mrb[0].mxu0
        %v8371 = vadd.f32 0.0, %v8370
        %v8372 = vpop.f32.mrb[0].mxu0
        %v8373 = vadd.f32 0.0, %v8372
        %8374 = vmatprep.mubr.bf16.mxu0 %v8115
        %8375 = vmatmul.mubr.bf16.gmra.mrb[0].mxu0 %v8114
        %v8376 = vpop.f32.mrb[0].mxu0
        %v8377 = vadd.f32 0.0, %v8376
        %v8378 = vpop.f32.mrb[0].mxu0
        %v8379 = vadd.f32 0.0, %v8378
        %v8380 = vpop.f32.mrb[0].mxu0
        %v8381 = vadd.f32 0.0, %v8380
        %v8382 = vpop.f32.mrb[0].mxu0
        %v8383 = vadd.f32 0.0, %v8382
        %8384 = vmatprep.mubr.bf16.mxu0 %v8117
        %8385 = vmatmul.mubr.bf16.gmra.mrb[0].mxu0 %v8116
        %v8386 = vpop.f32.mrb[0].mxu0
        %v8387 = vadd.f32 0.0, %v8386
        %v8388 = vpop.f32.mrb[0].mxu0
        %v8389 = vadd.f32 0.0, %v8388
        %v8390 = vpop.f32.mrb[0].mxu0
        %v8391 = vadd.f32 0.0, %v8390
        %v8392 = vpop.f32.mrb[0].mxu0
        %v8393 = vadd.f32 0.0, %v8392
        %8394 = vmatprep.mubr.bf16.mxu0 %v8119
        %8395 = vmatmul.mubr.bf16.gmra.mrb[0].mxu0 %v8118
        %v8396 = vpop.f32.mrb[0].mxu0
        %v8397 = vadd.f32 0.0, %v8396
        %v8398 = vpop.f32.mrb[0].mxu0
        %v8399 = vadd.f32 0.0, %v8398
        %v8400 = vpop.f32.mrb[0].mxu0
        %v8401 = vadd.f32 0.0, %v8400
        %v8402 = vpop.f32.mrb[0].mxu0
        %v8403 = vadd.f32 0.0, %v8402
        %8404 = vmatprep.mubr.bf16.mxu0 %v8121
        %8405 = vmatmul.mubr.bf16.gmra.mrb[0].mxu0 %v8120
        %v8406 = vpop.f32.mrb[0].mxu0
        %v8407 = vadd.f32 0.0, %v8406
        %v8408 = vpop.f32.mrb[0].mxu0
        %v8409 = vadd.f32 0.0, %v8408
        %v8410 = vpop.f32.mrb[0].mxu0
        %v8411 = vadd.f32 0.0, %v8410
        %v8412 = vpop.f32.mrb[0].mxu0
        %v8413 = vadd.f32 0.0, %v8412
        %8414 = vmatprep.mubr.bf16.mxu0 %v8123
        %8415 = vmatmul.mubr.bf16.gmra.mrb[0].mxu0 %v8122
        %v8416 = vpop.f32.mrb[0].mxu0
        %v8417 = vadd.f32 0.0, %v8416
        %v8418 = vpop.f32.mrb[0].mxu0
        %v8419 = vadd.f32 0.0, %v8418
        %v8420 = vpop.f32.mrb[0].mxu0
        %v8421 = vadd.f32 0.0, %v8420
        %v8422 = vpop.f32.mrb[0].mxu0
        %v8423 = vadd.f32 0.0, %v8422
        %8424 = vmatprep.mubr.bf16.mxu0 %v8125
        %8425 = vmatmul.mubr.bf16.gmra.mrb[0].mxu0 %v8124
        %v8426 = vpop.f32.mrb[0].mxu0
        %v8427 = vadd.f32 0.0, %v8426
        %v8428 = vpop.f32.mrb[0].mxu0
        %v8429 = vadd.f32 0.0, %v8428
        %v8430 = vpop.f32.mrb[0].mxu0
        %v8431 = vadd.f32 0.0, %v8430
        %v8432 = vpop.f32.mrb[0].mxu0
        %v8433 = vadd.f32 0.0, %v8432
        %8434 = vmatprep.mubr.bf16.mxu0 %v8127
        %8435 = vmatmul.mubr.bf16.gmra.mrb[0].mxu0 %v8126
        %v8436 = vpop.f32.mrb[0].mxu0
        %v8437 = vadd.f32 0.0, %v8436
        %v8438 = vpop.f32.mrb[0].mxu0
        %v8439 = vadd.f32 0.0, %v8438
        %v8440 = vpop.f32.mrb[0].mxu0
        %v8441 = vadd.f32 0.0, %v8440
        %v8442 = vpop.f32.mrb[0].mxu0
        %v8443 = vadd.f32 0.0, %v8442
        %8444 = vmatprep.mubr.bf16.mxu0 %v8129
        %8445 = vmatmul.mubr.bf16.gmra.mrb[0].mxu0 %v8128
        %v8446 = vpop.f32.mrb[0].mxu0
        %v8447 = vadd.f32 0.0, %v8446
        %v8448 = vpop.f32.mrb[0].mxu0
        %v8449 = vadd.f32 0.0, %v8448
        %v8450 = vpop.f32.mrb[0].mxu0
        %v8451 = vadd.f32 0.0, %v8450
        %v8452 = vpop.f32.mrb[0].mxu0
        %v8453 = vadd.f32 0.0, %v8452
        %8454 = vdwg.mxu0
        %v8455 = vmul.f32 %v8357, 0.00011111111
        %v8456 = vmul.f32 %v8359, 0.00011111111
        %v8457 = vmul.f32 %v8361, 0.00011111111
        %v8458 = vmul.f32 %v8363, 0.00011111111
        %v8459 = vmul.f32 %v8367, 0.00011111111
        %v8460 = vmul.f32 %v8369, 0.00011111111
        %v8461 = vmul.f32 %v8371, 0.00011111111
        %v8462 = vmul.f32 %v8373, 0.00011111111
        %v8463 = vmul.f32 %v8377, 0.00011111111
        %v8464 = vmul.f32 %v8379, 0.00011111111
        %v8465 = vmul.f32 %v8381, 0.00011111111
        %v8466 = vmul.f32 %v8383, 0.00011111111
        %v8467 = vmul.f32 %v8387, 0.00011111111
        %v8468 = vmul.f32 %v8389, 0.00011111111
        %v8469 = vmul.f32 %v8391, 0.00011111111
        %v8470 = vmul.f32 %v8393, 0.00011111111
        %v8471 = vmul.f32 %v8397, 0.00011111111
        %v8472 = vmul.f32 %v8399, 0.00011111111
        %v8473 = vmul.f32 %v8401, 0.00011111111
        %v8474 = vmul.f32 %v8403, 0.00011111111
        %v8475 = vmul.f32 %v8407, 0.00011111111
        %v8476 = vmul.f32 %v8409, 0.00011111111
        %v8477 = vmul.f32 %v8411, 0.00011111111
        %v8478 = vmul.f32 %v8413, 0.00011111111
        %v8479 = vmul.f32 %v8417, 0.00011111111
        %v8480 = vmul.f32 %v8419, 0.00011111111
        %v8481 = vmul.f32 %v8421, 0.00011111111
        %v8482 = vmul.f32 %v8423, 0.00011111111
        %v8483 = vmul.f32 %v8427, 0.00011111111
        %v8484 = vmul.f32 %v8429, 0.00011111111
        %v8485 = vmul.f32 %v8431, 0.00011111111
        %v8486 = vmul.f32 %v8433, 0.00011111111
        %v8487 = vmul.f32 %v8437, 0.00011111111
        %v8488 = vmul.f32 %v8439, 0.00011111111
        %v8489 = vmul.f32 %v8441, 0.00011111111
        %v8490 = vmul.f32 %v8443, 0.00011111111
        %v8491 = vmul.f32 %v8447, 0.00011111111
        %v8492 = vmul.f32 %v8449, 0.00011111111
        %v8493 = vmul.f32 %v8451, 0.00011111111
        %v8494 = vmul.f32 %v8453, 0.00011111111
        %v8495 = vadd.f32 %v8455, 1.0
        %v8496 = vadd.f32 %v8456, 1.0
        %v8497 = vadd.f32 %v8457, 1.0
        %v8498 = vadd.f32 %v8458, 1.0
        %v8499 = vadd.f32 %v8459, 1.0
        %v8500 = vadd.f32 %v8460, 1.0
        %v8501 = vadd.f32 %v8461, 1.0
        %v8502 = vadd.f32 %v8462, 1.0
        %v8503 = vadd.f32 %v8463, 1.0
        %v8504 = vadd.f32 %v8464, 1.0
        %v8505 = vadd.f32 %v8465, 1.0
        %v8506 = vadd.f32 %v8466, 1.0
        %v8507 = vadd.f32 %v8467, 1.0
        %v8508 = vadd.f32 %v8468, 1.0
        %v8509 = vadd.f32 %v8469, 1.0
        %v8510 = vadd.f32 %v8470, 1.0
        %v8511 = vadd.f32 %v8471, 1.0
        %v8512 = vadd.f32 %v8472, 1.0
        %v8513 = vadd.f32 %v8473, 1.0
        %v8514 = vadd.f32 %v8474, 1.0
        %v8515 = vadd.f32 %v8475, 1.0
        %v8516 = vadd.f32 %v8476, 1.0
        %v8517 = vadd.f32 %v8477, 1.0
        %v8518 = vadd.f32 %v8478, 1.0
        %v8519 = vadd.f32 %v8479, 1.0
        %v8520 = vadd.f32 %v8480, 1.0
        %v8521 = vadd.f32 %v8481, 1.0
        %v8522 = vadd.f32 %v8482, 1.0
        %v8523 = vadd.f32 %v8483, 1.0
        %v8524 = vadd.f32 %v8484, 1.0
        %v8525 = vadd.f32 %v8485, 1.0
        %v8526 = vadd.f32 %v8486, 1.0
        %v8527 = vadd.f32 %v8487, 1.0
        %v8528 = vadd.f32 %v8488, 1.0
        %v8529 = vadd.f32 %v8489, 1.0
        %v8530 = vadd.f32 %v8490, 1.0
        %v8531 = vadd.f32 %v8491, 1.0
        %v8532 = vadd.f32 %v8492, 1.0
        %v8533 = vadd.f32 %v8493, 1.0
        %v8534 = vadd.f32 %v8494, 1.0
        %v8535 = vrsqrt.pop %v8495
        %v8536 = vrsqrt.pop %v8496
        %v8537 = vrsqrt.pop %v8497
        %v8538 = vrsqrt.pop %v8498
        %v8539 = vrsqrt.pop %v8499
        %v8540 = vrsqrt.pop %v8500
        %v8541 = vrsqrt.pop %v8501
        %v8542 = vrsqrt.pop %v8502
        %v8543 = vrsqrt.pop %v8503
        %v8544 = vrsqrt.pop %v8504
        %v8545 = vrsqrt.pop %v8505
        %v8546 = vrsqrt.pop %v8506
        %v8547 = vrsqrt.pop %v8507
        %v8548 = vrsqrt.pop %v8508
        %v8549 = vrsqrt.pop %v8509
        %v8550 = vrsqrt.pop %v8510
        %v8551 = vrsqrt.pop %v8511
        %v8552 = vrsqrt.pop %v8512
        %v8553 = vrsqrt.pop %v8513
        %v8554 = vrsqrt.pop %v8514
        %v8555 = vrsqrt.pop %v8515
        %v8556 = vrsqrt.pop %v8516
        %v8557 = vrsqrt.pop %v8517
        %v8558 = vrsqrt.pop %v8518
        %v8559 = vrsqrt.pop %v8519
        %v8560 = vrsqrt.pop %v8520
        %v8561 = vrsqrt.pop %v8521
        %v8562 = vrsqrt.pop %v8522
        %v8563 = vrsqrt.pop %v8523
        %v8564 = vrsqrt.pop %v8524
        %v8565 = vrsqrt.pop %v8525
        %v8566 = vrsqrt.pop %v8526
        %v8567 = vrsqrt.pop %v8527
        %v8568 = vrsqrt.pop %v8528
        %v8569 = vrsqrt.pop %v8529
        %v8570 = vrsqrt.pop %v8530
        %v8571 = vrsqrt.pop %v8531
        %v8572 = vrsqrt.pop %v8532
        %v8573 = vrsqrt.pop %v8533
        %v8574 = vrsqrt.pop %v8534
        %v8575 = vrsqrt.pop %v8535
        %v8576 = vmul.f32 %v8535, %v8575
        %vm8577 = vcmp.eq.f32.partialorder %v8535, inf
        %v8578 = vsel %vm8577, %v8535, %v8576
        %vm8579 = vcmp.eq.f32.partialorder %v8535, 0.0
        %v8580 = vand.u32 %v8535, 2147483648
        %v8581 = vsel %vm8579, %v8580, %v8578
        %v8582 = vrsqrt.pop %v8536
        %v8583 = vmul.f32 %v8536, %v8582
        %vm8584 = vcmp.eq.f32.partialorder %v8536, inf
        %v8585 = vsel %vm8584, %v8536, %v8583
        %vm8586 = vcmp.eq.f32.partialorder %v8536, 0.0
        %v8587 = vand.u32 %v8536, 2147483648
        %v8588 = vsel %vm8586, %v8587, %v8585
        %v8589 = vrsqrt.pop %v8537
        %v8590 = vmul.f32 %v8537, %v8589
        %vm8591 = vcmp.eq.f32.partialorder %v8537, inf
        %v8592 = vsel %vm8591, %v8537, %v8590
        %vm8593 = vcmp.eq.f32.partialorder %v8537, 0.0
        %v8594 = vand.u32 %v8537, 2147483648
        %v8595 = vsel %vm8593, %v8594, %v8592
        %v8596 = vrsqrt.pop %v8538
        %v8597 = vmul.f32 %v8538, %v8596
        %vm8598 = vcmp.eq.f32.partialorder %v8538, inf
        %v8599 = vsel %vm8598, %v8538, %v8597
        %vm8600 = vcmp.eq.f32.partialorder %v8538, 0.0
        %v8601 = vand.u32 %v8538, 2147483648
        %v8602 = vsel %vm8600, %v8601, %v8599
        %v8603 = vrsqrt.pop %v8539
        %v8604 = vmul.f32 %v8539, %v8603
        %vm8605 = vcmp.eq.f32.partialorder %v8539, inf
        %v8606 = vsel %vm8605, %v8539, %v8604
        %vm8607 = vcmp.eq.f32.partialorder %v8539, 0.0
        %v8608 = vand.u32 %v8539, 2147483648
        %v8609 = vsel %vm8607, %v8608, %v8606
        %v8610 = vrsqrt.pop %v8540
        %v8611 = vmul.f32 %v8540, %v8610
        %vm8612 = vcmp.eq.f32.partialorder %v8540, inf
        %v8613 = vsel %vm8612, %v8540, %v8611
        %vm8614 = vcmp.eq.f32.partialorder %v8540, 0.0
        %v8615 = vand.u32 %v8540, 2147483648
        %v8616 = vsel %vm8614, %v8615, %v8613
        %v8617 = vrsqrt.pop %v8541
        %v8618 = vmul.f32 %v8541, %v8617
        %vm8619 = vcmp.eq.f32.partialorder %v8541, inf
        %v8620 = vsel %vm8619, %v8541, %v8618
        %vm8621 = vcmp.eq.f32.partialorder %v8541, 0.0
        %v8622 = vand.u32 %v8541, 2147483648
        %v8623 = vsel %vm8621, %v8622, %v8620
        %v8624 = vrsqrt.pop %v8542
        %v8625 = vmul.f32 %v8542, %v8624
        %vm8626 = vcmp.eq.f32.partialorder %v8542, inf
        %v8627 = vsel %vm8626, %v8542, %v8625
        %vm8628 = vcmp.eq.f32.partialorder %v8542, 0.0
        %v8629 = vand.u32 %v8542, 2147483648
        %v8630 = vsel %vm8628, %v8629, %v8627
        %v8631 = vrsqrt.pop %v8543
        %v8632 = vmul.f32 %v8543, %v8631
        %vm8633 = vcmp.eq.f32.partialorder %v8543, inf
        %v8634 = vsel %vm8633, %v8543, %v8632
        %vm8635 = vcmp.eq.f32.partialorder %v8543, 0.0
        %v8636 = vand.u32 %v8543, 2147483648
        %v8637 = vsel %vm8635, %v8636, %v8634
        %v8638 = vrsqrt.pop %v8544
        %v8639 = vmul.f32 %v8544, %v8638
        %vm8640 = vcmp.eq.f32.partialorder %v8544, inf
        %v8641 = vsel %vm8640, %v8544, %v8639
        %vm8642 = vcmp.eq.f32.partialorder %v8544, 0.0
        %v8643 = vand.u32 %v8544, 2147483648
        %v8644 = vsel %vm8642, %v8643, %v8641
        %v8645 = vrsqrt.pop %v8545
        %v8646 = vmul.f32 %v8545, %v8645
        %vm8647 = vcmp.eq.f32.partialorder %v8545, inf
        %v8648 = vsel %vm8647, %v8545, %v8646
        %vm8649 = vcmp.eq.f32.partialorder %v8545, 0.0
        %v8650 = vand.u32 %v8545, 2147483648
        %v8651 = vsel %vm8649, %v8650, %v8648
        %v8652 = vrsqrt.pop %v8546
        %v8653 = vmul.f32 %v8546, %v8652
        %vm8654 = vcmp.eq.f32.partialorder %v8546, inf
        %v8655 = vsel %vm8654, %v8546, %v8653
        %vm8656 = vcmp.eq.f32.partialorder %v8546, 0.0
        %v8657 = vand.u32 %v8546, 2147483648
        %v8658 = vsel %vm8656, %v8657, %v8655
        %v8659 = vrsqrt.pop %v8547
        %v8660 = vmul.f32 %v8547, %v8659
        %vm8661 = vcmp.eq.f32.partialorder %v8547, inf
        %v8662 = vsel %vm8661, %v8547, %v8660
        %vm8663 = vcmp.eq.f32.partialorder %v8547, 0.0
        %v8664 = vand.u32 %v8547, 2147483648
        %v8665 = vsel %vm8663, %v8664, %v8662
        %v8666 = vrsqrt.pop %v8548
        %v8667 = vmul.f32 %v8548, %v8666
        %vm8668 = vcmp.eq.f32.partialorder %v8548, inf
        %v8669 = vsel %vm8668, %v8548, %v8667
        %vm8670 = vcmp.eq.f32.partialorder %v8548, 0.0
        %v8671 = vand.u32 %v8548, 2147483648
        %v8672 = vsel %vm8670, %v8671, %v8669
        %v8673 = vrsqrt.pop %v8549
        %v8674 = vmul.f32 %v8549, %v8673
        %vm8675 = vcmp.eq.f32.partialorder %v8549, inf
        %v8676 = vsel %vm8675, %v8549, %v8674
        %vm8677 = vcmp.eq.f32.partialorder %v8549, 0.0
        %v8678 = vand.u32 %v8549, 2147483648
        %v8679 = vsel %vm8677, %v8678, %v8676
        %v8680 = vrsqrt.pop %v8550
        %v8681 = vmul.f32 %v8550, %v8680
        %vm8682 = vcmp.eq.f32.partialorder %v8550, inf
        %v8683 = vsel %vm8682, %v8550, %v8681
        %vm8684 = vcmp.eq.f32.partialorder %v8550, 0.0
        %v8685 = vand.u32 %v8550, 2147483648
        %v8686 = vsel %vm8684, %v8685, %v8683
        %v8687 = vrsqrt.pop %v8551
        %v8688 = vmul.f32 %v8551, %v8687
        %vm8689 = vcmp.eq.f32.partialorder %v8551, inf
        %v8690 = vsel %vm8689, %v8551, %v8688
        %vm8691 = vcmp.eq.f32.partialorder %v8551, 0.0
        %v8692 = vand.u32 %v8551, 2147483648
        %v8693 = vsel %vm8691, %v8692, %v8690
        %v8694 = vrsqrt.pop %v8552
        %v8695 = vmul.f32 %v8552, %v8694
        %vm8696 = vcmp.eq.f32.partialorder %v8552, inf
        %v8697 = vsel %vm8696, %v8552, %v8695
        %vm8698 = vcmp.eq.f32.partialorder %v8552, 0.0
        %v8699 = vand.u32 %v8552, 2147483648
        %v8700 = vsel %vm8698, %v8699, %v8697
        %v8701 = vrsqrt.pop %v8553
        %v8702 = vmul.f32 %v8553, %v8701
        %vm8703 = vcmp.eq.f32.partialorder %v8553, inf
        %v8704 = vsel %vm8703, %v8553, %v8702
        %vm8705 = vcmp.eq.f32.partialorder %v8553, 0.0
        %v8706 = vand.u32 %v8553, 2147483648
        %v8707 = vsel %vm8705, %v8706, %v8704
        %v8708 = vrsqrt.pop %v8554
        %v8709 = vmul.f32 %v8554, %v8708
        %vm8710 = vcmp.eq.f32.partialorder %v8554, inf
        %v8711 = vsel %vm8710, %v8554, %v8709
        %vm8712 = vcmp.eq.f32.partialorder %v8554, 0.0
        %v8713 = vand.u32 %v8554, 2147483648
        %v8714 = vsel %vm8712, %v8713, %v8711
        %v8715 = vrsqrt.pop %v8555
        %v8716 = vmul.f32 %v8555, %v8715
        %vm8717 = vcmp.eq.f32.partialorder %v8555, inf
        %v8718 = vsel %vm8717, %v8555, %v8716
        %vm8719 = vcmp.eq.f32.partialorder %v8555, 0.0
        %v8720 = vand.u32 %v8555, 2147483648
        %v8721 = vsel %vm8719, %v8720, %v8718
        %v8722 = vrsqrt.pop %v8556
        %v8723 = vmul.f32 %v8556, %v8722
        %vm8724 = vcmp.eq.f32.partialorder %v8556, inf
        %v8725 = vsel %vm8724, %v8556, %v8723
        %vm8726 = vcmp.eq.f32.partialorder %v8556, 0.0
        %v8727 = vand.u32 %v8556, 2147483648
        %v8728 = vsel %vm8726, %v8727, %v8725
        %v8729 = vrsqrt.pop %v8557
        %v8730 = vmul.f32 %v8557, %v8729
        %vm8731 = vcmp.eq.f32.partialorder %v8557, inf
        %v8732 = vsel %vm8731, %v8557, %v8730
        %vm8733 = vcmp.eq.f32.partialorder %v8557, 0.0
        %v8734 = vand.u32 %v8557, 2147483648
        %v8735 = vsel %vm8733, %v8734, %v8732
        %v8736 = vrsqrt.pop %v8558
        %v8737 = vmul.f32 %v8558, %v8736
        %vm8738 = vcmp.eq.f32.partialorder %v8558, inf
        %v8739 = vsel %vm8738, %v8558, %v8737
        %vm8740 = vcmp.eq.f32.partialorder %v8558, 0.0
        %v8741 = vand.u32 %v8558, 2147483648
        %v8742 = vsel %vm8740, %v8741, %v8739
        %v8743 = vrsqrt.pop %v8559
        %v8744 = vmul.f32 %v8559, %v8743
        %vm8745 = vcmp.eq.f32.partialorder %v8559, inf
        %v8746 = vsel %vm8745, %v8559, %v8744
        %vm8747 = vcmp.eq.f32.partialorder %v8559, 0.0
        %v8748 = vand.u32 %v8559, 2147483648
        %v8749 = vsel %vm8747, %v8748, %v8746
        %v8750 = vrsqrt.pop %v8560
        %v8751 = vmul.f32 %v8560, %v8750
        %vm8752 = vcmp.eq.f32.partialorder %v8560, inf
        %v8753 = vsel %vm8752, %v8560, %v8751
        %vm8754 = vcmp.eq.f32.partialorder %v8560, 0.0
        %v8755 = vand.u32 %v8560, 2147483648
        %v8756 = vsel %vm8754, %v8755, %v8753
        %v8757 = vrsqrt.pop %v8561
        %v8758 = vmul.f32 %v8561, %v8757
        %vm8759 = vcmp.eq.f32.partialorder %v8561, inf
        %v8760 = vsel %vm8759, %v8561, %v8758
        %vm8761 = vcmp.eq.f32.partialorder %v8561, 0.0
        %v8762 = vand.u32 %v8561, 2147483648
        %v8763 = vsel %vm8761, %v8762, %v8760
        %v8764 = vrsqrt.pop %v8562
        %v8765 = vmul.f32 %v8562, %v8764
        %vm8766 = vcmp.eq.f32.partialorder %v8562, inf
        %v8767 = vsel %vm8766, %v8562, %v8765
        %vm8768 = vcmp.eq.f32.partialorder %v8562, 0.0
        %v8769 = vand.u32 %v8562, 2147483648
        %v8770 = vsel %vm8768, %v8769, %v8767
        %v8771 = vrsqrt.pop %v8563
        %v8772 = vmul.f32 %v8563, %v8771
        %vm8773 = vcmp.eq.f32.partialorder %v8563, inf
        %v8774 = vsel %vm8773, %v8563, %v8772
        %vm8775 = vcmp.eq.f32.partialorder %v8563, 0.0
        %v8776 = vand.u32 %v8563, 2147483648
        %v8777 = vsel %vm8775, %v8776, %v8774
        %v8778 = vrsqrt.pop %v8564
        %v8779 = vmul.f32 %v8564, %v8778
        %vm8780 = vcmp.eq.f32.partialorder %v8564, inf
        %v8781 = vsel %vm8780, %v8564, %v8779
        %vm8782 = vcmp.eq.f32.partialorder %v8564, 0.0
        %v8783 = vand.u32 %v8564, 2147483648
        %v8784 = vsel %vm8782, %v8783, %v8781
        %v8785 = vrsqrt.pop %v8565
        %v8786 = vmul.f32 %v8565, %v8785
        %vm8787 = vcmp.eq.f32.partialorder %v8565, inf
        %v8788 = vsel %vm8787, %v8565, %v8786
        %vm8789 = vcmp.eq.f32.partialorder %v8565, 0.0
        %v8790 = vand.u32 %v8565, 2147483648
        %v8791 = vsel %vm8789, %v8790, %v8788
        %v8792 = vrsqrt.pop %v8566
        %v8793 = vmul.f32 %v8566, %v8792
        %vm8794 = vcmp.eq.f32.partialorder %v8566, inf
        %v8795 = vsel %vm8794, %v8566, %v8793
        %vm8796 = vcmp.eq.f32.partialorder %v8566, 0.0
        %v8797 = vand.u32 %v8566, 2147483648
        %v8798 = vsel %vm8796, %v8797, %v8795
        %v8799 = vrsqrt.pop %v8567
        %v8800 = vmul.f32 %v8567, %v8799
        %vm8801 = vcmp.eq.f32.partialorder %v8567, inf
        %v8802 = vsel %vm8801, %v8567, %v8800
        %vm8803 = vcmp.eq.f32.partialorder %v8567, 0.0
        %v8804 = vand.u32 %v8567, 2147483648
        %v8805 = vsel %vm8803, %v8804, %v8802
        %v8806 = vrsqrt.pop %v8568
        %v8807 = vmul.f32 %v8568, %v8806
        %vm8808 = vcmp.eq.f32.partialorder %v8568, inf
        %v8809 = vsel %vm8808, %v8568, %v8807
        %vm8810 = vcmp.eq.f32.partialorder %v8568, 0.0
        %v8811 = vand.u32 %v8568, 2147483648
        %v8812 = vsel %vm8810, %v8811, %v8809
        %v8813 = vrsqrt.pop %v8569
        %v8814 = vmul.f32 %v8569, %v8813
        %vm8815 = vcmp.eq.f32.partialorder %v8569, inf
        %v8816 = vsel %vm8815, %v8569, %v8814
        %vm8817 = vcmp.eq.f32.partialorder %v8569, 0.0
        %v8818 = vand.u32 %v8569, 2147483648
        %v8819 = vsel %vm8817, %v8818, %v8816
        %v8820 = vrsqrt.pop %v8570
        %v8821 = vmul.f32 %v8570, %v8820
        %vm8822 = vcmp.eq.f32.partialorder %v8570, inf
        %v8823 = vsel %vm8822, %v8570, %v8821
        %vm8824 = vcmp.eq.f32.partialorder %v8570, 0.0
        %v8825 = vand.u32 %v8570, 2147483648
        %v8826 = vsel %vm8824, %v8825, %v8823
        %v8827 = vrsqrt.pop %v8571
        %v8828 = vmul.f32 %v8571, %v8827
        %vm8829 = vcmp.eq.f32.partialorder %v8571, inf
        %v8830 = vsel %vm8829, %v8571, %v8828
        %vm8831 = vcmp.eq.f32.partialorder %v8571, 0.0
        %v8832 = vand.u32 %v8571, 2147483648
        %v8833 = vsel %vm8831, %v8832, %v8830
        %v8834 = vrsqrt.pop %v8572
        %v8835 = vmul.f32 %v8572, %v8834
        %vm8836 = vcmp.eq.f32.partialorder %v8572, inf
        %v8837 = vsel %vm8836, %v8572, %v8835
        %vm8838 = vcmp.eq.f32.partialorder %v8572, 0.0
        %v8839 = vand.u32 %v8572, 2147483648
        %v8840 = vsel %vm8838, %v8839, %v8837
        %v8841 = vrsqrt.pop %v8573
        %v8842 = vmul.f32 %v8573, %v8841
        %vm8843 = vcmp.eq.f32.partialorder %v8573, inf
        %v8844 = vsel %vm8843, %v8573, %v8842
        %vm8845 = vcmp.eq.f32.partialorder %v8573, 0.0
        %v8846 = vand.u32 %v8573, 2147483648
        %v8847 = vsel %vm8845, %v8846, %v8844
        %v8848 = vrsqrt.pop %v8574
        %v8849 = vmul.f32 %v8574, %v8848
        %vm8850 = vcmp.eq.f32.partialorder %v8574, inf
        %v8851 = vsel %vm8850, %v8574, %v8849
        %vm8852 = vcmp.eq.f32.partialorder %v8574, 0.0
        %v8853 = vand.u32 %v8574, 2147483648
        %v8854 = vsel %vm8852, %v8853, %v8851
        %v8855 = vmul.f32 %v8535, %v8581
        %v8856 = vmul.f32 %v8536, %v8588
        %v8857 = vmul.f32 %v8537, %v8595
        %v8858 = vmul.f32 %v8538, %v8602
        %v8859 = vmul.f32 %v8539, %v8609
        %v8860 = vmul.f32 %v8540, %v8616
        %v8861 = vmul.f32 %v8541, %v8623
        %v8862 = vmul.f32 %v8542, %v8630
        %v8863 = vmul.f32 %v8543, %v8637
        %v8864 = vmul.f32 %v8544, %v8644
        %v8865 = vmul.f32 %v8545, %v8651
        %v8866 = vmul.f32 %v8546, %v8658
        %v8867 = vmul.f32 %v8547, %v8665
        %v8868 = vmul.f32 %v8548, %v8672
        %v8869 = vmul.f32 %v8549, %v8679
        %v8870 = vmul.f32 %v8550, %v8686
        %v8871 = vmul.f32 %v8551, %v8693
        %v8872 = vmul.f32 %v8552, %v8700
        %v8873 = vmul.f32 %v8553, %v8707
        %v8874 = vmul.f32 %v8554, %v8714
        %v8875 = vmul.f32 %v8555, %v8721
        %v8876 = vmul.f32 %v8556, %v8728
        %v8877 = vmul.f32 %v8557, %v8735
        %v8878 = vmul.f32 %v8558, %v8742
        %v8879 = vmul.f32 %v8559, %v8749
        %v8880 = vmul.f32 %v8560, %v8756
        %v8881 = vmul.f32 %v8561, %v8763
        %v8882 = vmul.f32 %v8562, %v8770
        %v8883 = vmul.f32 %v8563, %v8777
        %v8884 = vmul.f32 %v8564, %v8784
        %v8885 = vmul.f32 %v8565, %v8791
        %v8886 = vmul.f32 %v8566, %v8798
        %v8887 = vmul.f32 %v8567, %v8805
        %v8888 = vmul.f32 %v8568, %v8812
        %v8889 = vmul.f32 %v8569, %v8819
        %v8890 = vmul.f32 %v8570, %v8826
        %v8891 = vmul.f32 %v8571, %v8833
        %v8892 = vmul.f32 %v8572, %v8840
        %v8893 = vmul.f32 %v8573, %v8847
        %v8894 = vmul.f32 %v8574, %v8854
        %v8895 = vmul.f32 %v8030, %v8855
        %v8896 = vmul.f32 %v8031, %v8856
        %v8897 = vmul.f32 %v8032, %v8857
        %v8898 = vmul.f32 %v8033, %v8858
        %v8899 = vmul.f32 %v8034, %v8859
        %v8900 = vmul.f32 %v8035, %v8860
        %v8901 = vmul.f32 %v8036, %v8861
        %v8902 = vmul.f32 %v8037, %v8862
        %v8903 = vmul.f32 %v8038, %v8863
        %v8904 = vmul.f32 %v8039, %v8864
        %v8905 = vmul.f32 %v8040, %v8865
        %v8906 = vmul.f32 %v8041, %v8866
        %v8907 = vmul.f32 %v8042, %v8867
        %v8908 = vmul.f32 %v8043, %v8868
        %v8909 = vmul.f32 %v8044, %v8869
        %v8910 = vmul.f32 %v8045, %v8870
        %v8911 = vmul.f32 %v8046, %v8871
        %v8912 = vmul.f32 %v8047, %v8872
        %v8913 = vmul.f32 %v8048, %v8873
        %v8914 = vmul.f32 %v8049, %v8874
        %v8915 = vmul.f32 %v8050, %v8875
        %v8916 = vmul.f32 %v8051, %v8876
        %v8917 = vmul.f32 %v8052, %v8877
        %v8918 = vmul.f32 %v8053, %v8878
        %v8919 = vmul.f32 %v8054, %v8879
        %v8920 = vmul.f32 %v8055, %v8880
        %v8921 = vmul.f32 %v8056, %v8881
        %v8922 = vmul.f32 %v8057, %v8882
        %v8923 = vmul.f32 %v8058, %v8883
        %v8924 = vmul.f32 %v8059, %v8884
        %v8925 = vmul.f32 %v8060, %v8885
        %v8926 = vmul.f32 %v8061, %v8886
        %v8927 = vmul.f32 %v8062, %v8887
        %v8928 = vmul.f32 %v8063, %v8888
        %v8929 = vmul.f32 %v8064, %v8889
        %v8930 = vmul.f32 %v8065, %v8890
        %v8931 = vmul.f32 %v8066, %v8891
        %v8932 = vmul.f32 %v8067, %v8892
        %v8933 = vmul.f32 %v8068, %v8893
        %v8934 = vmul.f32 %v8069, %v8894
        %v8935 = vpack.c.bf16 %v8897, %v8895
        %v8936 = vpack.c.bf16 %v8898, %v8896
        %v8937 = vpack.c.bf16 %v8901, %v8899
        %v8938 = vpack.c.bf16 %v8902, %v8900
        %v8939 = vpack.c.bf16 %v8905, %v8903
        %v8940 = vpack.c.bf16 %v8906, %v8904
        %v8941 = vpack.c.bf16 %v8909, %v8907
        %v8942 = vpack.c.bf16 %v8910, %v8908
        %v8943 = vpack.c.bf16 %v8913, %v8911
        %v8944 = vpack.c.bf16 %v8914, %v8912
        %v8945 = vpack.c.bf16 %v8917, %v8915
        %v8946 = vpack.c.bf16 %v8918, %v8916
        %v8947 = vpack.c.bf16 %v8921, %v8919
        %v8948 = vpack.c.bf16 %v8922, %v8920
        %v8949 = vpack.c.bf16 %v8925, %v8923
        %v8950 = vpack.c.bf16 %v8926, %v8924
        %v8951 = vpack.c.bf16 %v8929, %v8927
        %v8952 = vpack.c.bf16 %v8930, %v8928
        %v8953 = vpack.c.bf16 %v8933, %v8931
        %v8954 = vpack.c.bf16 %v8934, %v8932
        %v8955 = vld [vmem:[%s7] sm:$0xff]
        %v8956 = vld [vmem:[%s7 + $0x8] sm:$0xff]
        %v8957 = vld [vmem:[%s7 + $0x10] sm:$0xff]
        %v8958 = vld [vmem:[%s7 + $0x18] sm:$0xff]
        %v8959 = vld [vmem:[%s7 + $0x20] sm:$0xff]
        %v8960 = vld [vmem:[%s7 + $0x28] sm:$0xff]
        %v8961 = vld [vmem:[%s7 + $0x30] sm:$0xff]
        %v8962 = vld [vmem:[%s7 + $0x38] sm:$0xff]
        %v8971 = vunpack.c.l.b16 %v8955
        %v8972 = vunpack.c.h.b16 %v8955
        %v8973 = vunpack.c.l.b16 %v8956
        %v8974 = vunpack.c.h.b16 %v8956
        %v8975 = vunpack.c.l.b16 %v8957
        %v8976 = vunpack.c.h.b16 %v8957
        %v8977 = vunpack.c.l.b16 %v8958
        %v8978 = vunpack.c.h.b16 %v8958
        %v8979 = vunpack.c.l.b16 %v8959
        %v8980 = vunpack.c.h.b16 %v8959
        %v8981 = vunpack.c.l.b16 %v8960
        %v8982 = vunpack.c.h.b16 %v8960
        %v8983 = vunpack.c.l.b16 %v8961
        %v8984 = vunpack.c.h.b16 %v8961
        %v8985 = vunpack.c.l.b16 %v8962
        %v8986 = vunpack.c.h.b16 %v8962
        %v8987 = vpack.c.b16 %v8973, %v8971
        %v8988 = vpack.c.b16 %v8974, %v8972
        %v8989 = vpack.c.b16 %v8977, %v8975
        %v8990 = vpack.c.b16 %v8978, %v8976
        %v8991 = vpack.c.b16 %v8981, %v8979
        %v8992 = vpack.c.b16 %v8982, %v8980
        %v8993 = vpack.c.b16 %v8985, %v8983
        %v8994 = vpack.c.b16 %v8986, %v8984
        %v9000 = vsel %vm4402, %v8988, 0
        %v9003 = vsel %vm4402, %v8990, 0
        %v9006 = vsel %vm4402, %v8992, 0
        %v9009 = vsel %vm4402, %v8994, 0
        %v9012 = vsel %vm4433, %v8953, 0
        %v9015 = vsel %vm4433, %v8954, 0
        %9017 = vmatprep.subr.bf16.mxu0 %v8936
        %9018 = vmatpush1.bf16.msra.mxu0 %v8935
        %9019 = vmatprep.subr.bf16.mxu0 %v8938
        %9020 = vmatpush1.bf16.msra.mxu0 %v8937
        %9021 = vmatprep.subr.bf16.mxu0 %v8940
        %9022 = vmatpush1.bf16.msra.mxu0 %v8939
        %9023 = vmatprep.subr.bf16.mxu0 %v8942
        %9024 = vmatpush1.bf16.msra.mxu0 %v8941
        %9025 = vmatprep.subr.bf16.mxu0 %v8944
        %9026 = vmatpush1.bf16.msra.mxu0 %v8943
        %9027 = vmatprep.subr.bf16.mxu0 %v8946
        %9028 = vmatpush1.bf16.msra.mxu0 %v8945
        %9029 = vmatprep.subr.bf16.mxu0 %v8948
        %9030 = vmatpush1.bf16.msra.mxu0 %v8947
        %9031 = vmatprep.subr.bf16.mxu0 %v8950
        %9032 = vmatpush1.bf16.msra.mxu0 %v8949
        %9033 = vmatprep.subr.bf16.mxu0 %v8952
        %9034 = vmatpush1.bf16.msra.mxu0 %v8951
        %9035 = vmatprep.subr.bf16.mxu0 %v9015
        %9036 = vmatpush1.bf16.msra.mxu0 %v9012
        %9037 = vmatprep.subr.bf16.mxu0 0
        %9038 = vmatpush1.bf16.msra.mxu0 0
        %9039 = vmatprep.subr.bf16.mxu0 0
        %9040 = vmatpush1.bf16.msra.mxu0 0
        %9041 = vmatprep.subr.bf16.mxu0 0
        %9042 = vmatpush1.bf16.msra.mxu0 0
        %9043 = vmatprep.subr.bf16.mxu0 0
        %9044 = vmatpush1.bf16.msra.mxu0 0
        %9045 = vmatprep.subr.bf16.mxu0 0
        %9046 = vmatpush1.bf16.msra.mxu0 0
        %9047 = vmatprep.subr.bf16.mxu0 0
        %9048 = vmatpush1.bf16.msra.mxu0 0
        %9049 = vmatprep.mubr.bf16.mxu0 %v9000
        %9050 = vmatmul.mubr.bf16.gmra.mrb[0].mxu0 %v8987
        %v9051 = vpop.f32.mrb[0].mxu0
        %v9052 = vadd.f32 0.0, %v9051
        %v9053 = vpop.f32.mrb[0].mxu0
        %v9054 = vadd.f32 0.0, %v9053
        %v9055 = vpop.f32.mrb[0].mxu0
        %v9056 = vadd.f32 0.0, %v9055
        %v9057 = vpop.f32.mrb[0].mxu0
        %v9058 = vadd.f32 0.0, %v9057
        %9059 = vmatprep.mubr.bf16.mxu0 %v9003
        %9060 = vmatmul.mubr.bf16.gmra.mrb[0].mxu0 %v8989
        %v9061 = vpop.f32.mrb[0].mxu0
        %v9062 = vadd.f32 0.0, %v9061
        %v9063 = vpop.f32.mrb[0].mxu0
        %v9064 = vadd.f32 0.0, %v9063
        %v9065 = vpop.f32.mrb[0].mxu0
        %v9066 = vadd.f32 0.0, %v9065
        %v9067 = vpop.f32.mrb[0].mxu0
        %v9068 = vadd.f32 0.0, %v9067
        %9069 = vmatprep.mubr.bf16.mxu0 %v9006
        %9070 = vmatmul.mubr.bf16.gmra.mrb[0].mxu0 %v8991
        %v9071 = vpop.f32.mrb[0].mxu0
        %v9072 = vadd.f32 0.0, %v9071
        %v9073 = vpop.f32.mrb[0].mxu0
        %v9074 = vadd.f32 0.0, %v9073
        %v9075 = vpop.f32.mrb[0].mxu0
        %v9076 = vadd.f32 0.0, %v9075
        %v9077 = vpop.f32.mrb[0].mxu0
        %v9078 = vadd.f32 0.0, %v9077
        %9079 = vmatprep.mubr.bf16.mxu0 %v9009
        %9080 = vmatmul.mubr.bf16.gmra.mrb[0].mxu0 %v8993
        %v9081 = vpop.f32.mrb[0].mxu0
        %v9082 = vadd.f32 0.0, %v9081
        %v9083 = vpop.f32.mrb[0].mxu0
        %v9084 = vadd.f32 0.0, %v9083
        %v9085 = vpop.f32.mrb[0].mxu0
        %v9086 = vadd.f32 0.0, %v9085
        %v9087 = vpop.f32.mrb[0].mxu0
        %v9088 = vadd.f32 0.0, %v9087
        %9089 = vdwg.mxu0
        %s9090 = scalar_lea.vmem %s7, 64
        %v9091 = vld [vmem:[%s9090] sm:$0xff]
        %v9092 = vld [vmem:[%s9090 + $0x8] sm:$0xff]
        %v9093 = vld [vmem:[%s9090 + $0x10] sm:$0xff]
        %v9094 = vld [vmem:[%s9090 + $0x18] sm:$0xff]
        %v9095 = vld [vmem:[%s9090 + $0x20] sm:$0xff]
        %v9096 = vld [vmem:[%s9090 + $0x28] sm:$0xff]
        %v9097 = vld [vmem:[%s9090 + $0x30] sm:$0xff]
        %v9098 = vld [vmem:[%s9090 + $0x38] sm:$0xff]
        %v9107 = vunpack.c.l.b16 %v9091
        %v9108 = vunpack.c.h.b16 %v9091
        %v9109 = vunpack.c.l.b16 %v9092
        %v9110 = vunpack.c.h.b16 %v9092
        %v9111 = vunpack.c.l.b16 %v9093
        %v9112 = vunpack.c.h.b16 %v9093
        %v9113 = vunpack.c.l.b16 %v9094
        %v9114 = vunpack.c.h.b16 %v9094
        %v9115 = vunpack.c.l.b16 %v9095
        %v9116 = vunpack.c.h.b16 %v9095
        %v9117 = vunpack.c.l.b16 %v9096
        %v9118 = vunpack.c.h.b16 %v9096
        %v9119 = vunpack.c.l.b16 %v9097
        %v9120 = vunpack.c.h.b16 %v9097
        %v9121 = vunpack.c.l.b16 %v9098
        %v9122 = vunpack.c.h.b16 %v9098
        %v9123 = vpack.c.b16 %v9109, %v9107
        %v9124 = vpack.c.b16 %v9110, %v9108
        %v9125 = vpack.c.b16 %v9113, %v9111
        %v9126 = vpack.c.b16 %v9114, %v9112
        %v9127 = vpack.c.b16 %v9117, %v9115
        %v9128 = vpack.c.b16 %v9118, %v9116
        %v9129 = vpack.c.b16 %v9121, %v9119
        %v9130 = vpack.c.b16 %v9122, %v9120
        %v9136 = vsel %vm4402, %v9124, 0
        %v9139 = vsel %vm4402, %v9126, 0
        %v9142 = vsel %vm4402, %v9128, 0
        %v9145 = vsel %vm4402, %v9130, 0
        %9147 = vmatprep.subr.bf16.mxu0 %v8936
        %9148 = vmatpush1.bf16.msra.mxu0 %v8935
        %9149 = vmatprep.subr.bf16.mxu0 %v8938
        %9150 = vmatpush1.bf16.msra.mxu0 %v8937
        %9151 = vmatprep.subr.bf16.mxu0 %v8940
        %9152 = vmatpush1.bf16.msra.mxu0 %v8939
        %9153 = vmatprep.subr.bf16.mxu0 %v8942
        %9154 = vmatpush1.bf16.msra.mxu0 %v8941
        %9155 = vmatprep.subr.bf16.mxu0 %v8944
        %9156 = vmatpush1.bf16.msra.mxu0 %v8943
        %9157 = vmatprep.subr.bf16.mxu0 %v8946
        %9158 = vmatpush1.bf16.msra.mxu0 %v8945
        %9159 = vmatprep.subr.bf16.mxu0 %v8948
        %9160 = vmatpush1.bf16.msra.mxu0 %v8947
        %9161 = vmatprep.subr.bf16.mxu0 %v8950
        %9162 = vmatpush1.bf16.msra.mxu0 %v8949
        %9163 = vmatprep.subr.bf16.mxu0 %v8952
        %9164 = vmatpush1.bf16.msra.mxu0 %v8951
        %9165 = vmatprep.subr.bf16.mxu0 %v9015
        %9166 = vmatpush1.bf16.msra.mxu0 %v9012
        %9167 = vmatprep.subr.bf16.mxu0 0
        %9168 = vmatpush1.bf16.msra.mxu0 0
        %9169 = vmatprep.subr.bf16.mxu0 0
        %9170 = vmatpush1.bf16.msra.mxu0 0
        %9171 = vmatprep.subr.bf16.mxu0 0
        %9172 = vmatpush1.bf16.msra.mxu0 0
        %9173 = vmatprep.subr.bf16.mxu0 0
        %9174 = vmatpush1.bf16.msra.mxu0 0
        %9175 = vmatprep.subr.bf16.mxu0 0
        %9176 = vmatpush1.bf16.msra.mxu0 0
        %9177 = vmatprep.subr.bf16.mxu0 0
        %9178 = vmatpush1.bf16.msra.mxu0 0
        %9179 = vmatprep.mubr.bf16.mxu0 %v9136
        %9180 = vmatmul.mubr.bf16.gmra.mrb[0].mxu0 %v9123
        %v9181 = vpop.f32.mrb[0].mxu0
        %v9182 = vadd.f32 0.0, %v9181
        %v9183 = vpop.f32.mrb[0].mxu0
        %v9184 = vadd.f32 0.0, %v9183
        %v9185 = vpop.f32.mrb[0].mxu0
        %v9186 = vadd.f32 0.0, %v9185
        %v9187 = vpop.f32.mrb[0].mxu0
        %v9188 = vadd.f32 0.0, %v9187
        %9189 = vmatprep.mubr.bf16.mxu0 %v9139
        %9190 = vmatmul.mubr.bf16.gmra.mrb[0].mxu0 %v9125
        %v9191 = vpop.f32.mrb[0].mxu0
        %v9192 = vadd.f32 0.0, %v9191
        %v9193 = vpop.f32.mrb[0].mxu0
        %v9194 = vadd.f32 0.0, %v9193
        %v9195 = vpop.f32.mrb[0].mxu0
        %v9196 = vadd.f32 0.0, %v9195
        %v9197 = vpop.f32.mrb[0].mxu0
        %v9198 = vadd.f32 0.0, %v9197
        %9199 = vmatprep.mubr.bf16.mxu0 %v9142
        %9200 = vmatmul.mubr.bf16.gmra.mrb[0].mxu0 %v9127
        %v9201 = vpop.f32.mrb[0].mxu0
        %v9202 = vadd.f32 0.0, %v9201
        %v9203 = vpop.f32.mrb[0].mxu0
        %v9204 = vadd.f32 0.0, %v9203
        %v9205 = vpop.f32.mrb[0].mxu0
        %v9206 = vadd.f32 0.0, %v9205
        %v9207 = vpop.f32.mrb[0].mxu0
        %v9208 = vadd.f32 0.0, %v9207
        %9209 = vmatprep.mubr.bf16.mxu0 %v9145
        %9210 = vmatmul.mubr.bf16.gmra.mrb[0].mxu0 %v9129
        %v9211 = vpop.f32.mrb[0].mxu0
        %v9212 = vadd.f32 0.0, %v9211
        %v9213 = vpop.f32.mrb[0].mxu0
        %v9214 = vadd.f32 0.0, %v9213
        %v9215 = vpop.f32.mrb[0].mxu0
        %v9216 = vadd.f32 0.0, %v9215
        %v9217 = vpop.f32.mrb[0].mxu0
        %v9218 = vadd.f32 0.0, %v9217
        %9219 = vdwg.mxu0
        %v9220 = vmax.f32 %v9052, %v9182
        %v9221 = vmax.f32 %v9054, %v9184
        %v9222 = vmax.f32 %v9056, %v9186
        %v9223 = vmax.f32 %v9058, %v9188
        %v9224 = vmax.f32 %v9062, %v9192
        %v9225 = vmax.f32 %v9064, %v9194
        %v9226 = vmax.f32 %v9066, %v9196
        %v9227 = vmax.f32 %v9068, %v9198
        %v9228 = vmax.f32 %v9072, %v9202
        %v9229 = vmax.f32 %v9074, %v9204
        %v9230 = vmax.f32 %v9076, %v9206
        %v9231 = vmax.f32 %v9078, %v9208
        %v9232 = vmax.f32 %v9082, %v9212
        %v9233 = vmax.f32 %v9084, %v9214
        %v9234 = vmax.f32 %v9086, %v9216
        %v9235 = vmax.f32 %v9088, %v9218
        %s9236 = scalar_lea.vmem %s7, 128
        %v9237 = vld [vmem:[%s9236] sm:$0xff]
        %v9238 = vld [vmem:[%s9236 + $0x8] sm:$0xff]
        %v9239 = vld [vmem:[%s9236 + $0x10] sm:$0xff]
        %v9240 = vld [vmem:[%s9236 + $0x18] sm:$0xff]
        %v9241 = vld [vmem:[%s9236 + $0x20] sm:$0xff]
        %v9242 = vld [vmem:[%s9236 + $0x28] sm:$0xff]
        %v9243 = vld [vmem:[%s9236 + $0x30] sm:$0xff]
        %v9244 = vld [vmem:[%s9236 + $0x38] sm:$0xff]
        %v9253 = vunpack.c.l.b16 %v9237
        %v9254 = vunpack.c.h.b16 %v9237
        %v9255 = vunpack.c.l.b16 %v9238
        %v9256 = vunpack.c.h.b16 %v9238
        %v9257 = vunpack.c.l.b16 %v9239
        %v9258 = vunpack.c.h.b16 %v9239
        %v9259 = vunpack.c.l.b16 %v9240
        %v9260 = vunpack.c.h.b16 %v9240
        %v9261 = vunpack.c.l.b16 %v9241
        %v9262 = vunpack.c.h.b16 %v9241
        %v9263 = vunpack.c.l.b16 %v9242
        %v9264 = vunpack.c.h.b16 %v9242
        %v9265 = vunpack.c.l.b16 %v9243
        %v9266 = vunpack.c.h.b16 %v9243
        %v9267 = vunpack.c.l.b16 %v9244
        %v9268 = vunpack.c.h.b16 %v9244
        %v9269 = vpack.c.b16 %v9255, %v9253
        %v9270 = vpack.c.b16 %v9256, %v9254
        %v9271 = vpack.c.b16 %v9259, %v9257
        %v9272 = vpack.c.b16 %v9260, %v9258
        %v9273 = vpack.c.b16 %v9263, %v9261
        %v9274 = vpack.c.b16 %v9264, %v9262
        %v9275 = vpack.c.b16 %v9267, %v9265
        %v9276 = vpack.c.b16 %v9268, %v9266
        %v9282 = vsel %vm4402, %v9270, 0
        %v9285 = vsel %vm4402, %v9272, 0
        %v9288 = vsel %vm4402, %v9274, 0
        %v9291 = vsel %vm4402, %v9276, 0
        %9293 = vmatprep.subr.bf16.mxu0 %v8936
        %9294 = vmatpush1.bf16.msra.mxu0 %v8935
        %9295 = vmatprep.subr.bf16.mxu0 %v8938
        %9296 = vmatpush1.bf16.msra.mxu0 %v8937
        %9297 = vmatprep.subr.bf16.mxu0 %v8940
        %9298 = vmatpush1.bf16.msra.mxu0 %v8939
        %9299 = vmatprep.subr.bf16.mxu0 %v8942
        %9300 = vmatpush1.bf16.msra.mxu0 %v8941
        %9301 = vmatprep.subr.bf16.mxu0 %v8944
        %9302 = vmatpush1.bf16.msra.mxu0 %v8943
        %9303 = vmatprep.subr.bf16.mxu0 %v8946
        %9304 = vmatpush1.bf16.msra.mxu0 %v8945
        %9305 = vmatprep.subr.bf16.mxu0 %v8948
        %9306 = vmatpush1.bf16.msra.mxu0 %v8947
        %9307 = vmatprep.subr.bf16.mxu0 %v8950
        %9308 = vmatpush1.bf16.msra.mxu0 %v8949
        %9309 = vmatprep.subr.bf16.mxu0 %v8952
        %9310 = vmatpush1.bf16.msra.mxu0 %v8951
        %9311 = vmatprep.subr.bf16.mxu0 %v9015
        %9312 = vmatpush1.bf16.msra.mxu0 %v9012
        %9313 = vmatprep.subr.bf16.mxu0 0
        %9314 = vmatpush1.bf16.msra.mxu0 0
        %9315 = vmatprep.subr.bf16.mxu0 0
        %9316 = vmatpush1.bf16.msra.mxu0 0
        %9317 = vmatprep.subr.bf16.mxu0 0
        %9318 = vmatpush1.bf16.msra.mxu0 0
        %9319 = vmatprep.subr.bf16.mxu0 0
        %9320 = vmatpush1.bf16.msra.mxu0 0
        %9321 = vmatprep.subr.bf16.mxu0 0
        %9322 = vmatpush1.bf16.msra.mxu0 0
        %9323 = vmatprep.subr.bf16.mxu0 0
        %9324 = vmatpush1.bf16.msra.mxu0 0
        %9325 = vmatprep.mubr.bf16.mxu0 %v9282
        %9326 = vmatmul.mubr.bf16.gmra.mrb[0].mxu0 %v9269
        %v9327 = vpop.f32.mrb[0].mxu0
        %v9328 = vadd.f32 0.0, %v9327
        %v9329 = vpop.f32.mrb[0].mxu0
        %v9330 = vadd.f32 0.0, %v9329
        %v9331 = vpop.f32.mrb[0].mxu0
        %v9332 = vadd.f32 0.0, %v9331
        %v9333 = vpop.f32.mrb[0].mxu0
        %v9334 = vadd.f32 0.0, %v9333
        %9335 = vmatprep.mubr.bf16.mxu0 %v9285
        %9336 = vmatmul.mubr.bf16.gmra.mrb[0].mxu0 %v9271
        %v9337 = vpop.f32.mrb[0].mxu0
        %v9338 = vadd.f32 0.0, %v9337
        %v9339 = vpop.f32.mrb[0].mxu0
        %v9340 = vadd.f32 0.0, %v9339
        %v9341 = vpop.f32.mrb[0].mxu0
        %v9342 = vadd.f32 0.0, %v9341
        %v9343 = vpop.f32.mrb[0].mxu0
        %v9344 = vadd.f32 0.0, %v9343
        %9345 = vmatprep.mubr.bf16.mxu0 %v9288
        %9346 = vmatmul.mubr.bf16.gmra.mrb[0].mxu0 %v9273
        %v9347 = vpop.f32.mrb[0].mxu0
        %v9348 = vadd.f32 0.0, %v9347
        %v9349 = vpop.f32.mrb[0].mxu0
        %v9350 = vadd.f32 0.0, %v9349
        %v9351 = vpop.f32.mrb[0].mxu0
        %v9352 = vadd.f32 0.0, %v9351
        %v9353 = vpop.f32.mrb[0].mxu0
        %v9354 = vadd.f32 0.0, %v9353
        %9355 = vmatprep.mubr.bf16.mxu0 %v9291
        %9356 = vmatmul.mubr.bf16.gmra.mrb[0].mxu0 %v9275
        %v9357 = vpop.f32.mrb[0].mxu0
        %v9358 = vadd.f32 0.0, %v9357
        %v9359 = vpop.f32.mrb[0].mxu0
        %v9360 = vadd.f32 0.0, %v9359
        %v9361 = vpop.f32.mrb[0].mxu0
        %v9362 = vadd.f32 0.0, %v9361
        %v9363 = vpop.f32.mrb[0].mxu0
        %v9364 = vadd.f32 0.0, %v9363
        %9365 = vdwg.mxu0
        %v9366 = vmax.f32 %v9220, %v9328
        %v9367 = vmax.f32 %v9221, %v9330
        %v9368 = vmax.f32 %v9222, %v9332
        %v9369 = vmax.f32 %v9223, %v9334
        %v9370 = vmax.f32 %v9224, %v9338
        %v9371 = vmax.f32 %v9225, %v9340
        %v9372 = vmax.f32 %v9226, %v9342
        %v9373 = vmax.f32 %v9227, %v9344
        %v9374 = vmax.f32 %v9228, %v9348
        %v9375 = vmax.f32 %v9229, %v9350
        %v9376 = vmax.f32 %v9230, %v9352
        %v9377 = vmax.f32 %v9231, %v9354
        %v9378 = vmax.f32 %v9232, %v9358
        %v9379 = vmax.f32 %v9233, %v9360
        %v9380 = vmax.f32 %v9234, %v9362
        %v9381 = vmax.f32 %v9235, %v9364
        %v9382 = vpack.c.bf16 %v9368, %v9366
        %v9383 = vpack.c.bf16 %v9369, %v9367
        %v9384 = vpack.c.bf16 %v9372, %v9370
        %v9385 = vpack.c.bf16 %v9373, %v9371
        %v9386 = vpack.c.bf16 %v9376, %v9374
        %v9387 = vpack.c.bf16 %v9377, %v9375
        %v9388 = vpack.c.bf16 %v9380, %v9378
        %v9389 = vpack.c.bf16 %v9381, %v9379
        %v9390 = vld [vmem:[%s8] sm:$0xf]
        %v9391 = vld [vmem:[%s8 + $0x4] sm:$0xf]
        %v9392 = vld [vmem:[%s8 + $0x8] sm:$0xf]
        %v9393 = vld [vmem:[%s8 + $0xc] sm:$0xf]
        %v9394 = vld [vmem:[%s8 + $0x10] sm:$0xf]
        %v9395 = vld [vmem:[%s8 + $0x14] sm:$0xf]
        %v9396 = vld [vmem:[%s8 + $0x18] sm:$0xf]
        %v9397 = vld [vmem:[%s8 + $0x1c] sm:$0xf]
        %v9398 = vld [vmem:[%s8 + $0x20] sm:$0xf]
        %v9399 = vld [vmem:[%s8 + $0x24] sm:$0xf]
        %v9400 = vld [vmem:[%s8 + $0x28] sm:$0xf]
        %v9401 = vld [vmem:[%s8 + $0x2c] sm:$0xf]
        %v9402 = vld [vmem:[%s8 + $0x30] sm:$0xf]
        %v9403 = vld [vmem:[%s8 + $0x34] sm:$0xf]
        %v9404 = vld [vmem:[%s8 + $0x38] sm:$0xf]
        %v9405 = vld [vmem:[%s8 + $0x3c] sm:$0xf]
        %v9406 = vld [vmem:[%s8 + $0x40] sm:$0xf]
        %v9407 = vld [vmem:[%s8 + $0x44] sm:$0xf]
        %v9408 = vld [vmem:[%s8 + $0x48] sm:$0xf]
        %v9409 = vld [vmem:[%s8 + $0x4c] sm:$0xf]
        %v9410 = vld [vmem:[%s8 + $0x50] sm:$0xf]
        %v9411 = vld [vmem:[%s8 + $0x54] sm:$0xf]
        %v9412 = vld [vmem:[%s8 + $0x58] sm:$0xf]
        %v9413 = vld [vmem:[%s8 + $0x5c] sm:$0xf]
        %v9414 = vld [vmem:[%s8 + $0x60] sm:$0xf]
        %v9415 = vld [vmem:[%s8 + $0x64] sm:$0xf]
        %v9416 = vld [vmem:[%s8 + $0x68] sm:$0xf]
        %v9417 = vld [vmem:[%s8 + $0x6c] sm:$0xf]
        %v9418 = vld [vmem:[%s8 + $0x70] sm:$0xf]
        %v9419 = vld [vmem:[%s8 + $0x74] sm:$0xf]
        %v9420 = vld [vmem:[%s8 + $0x78] sm:$0xf]
        %v9421 = vld [vmem:[%s8 + $0x7c] sm:$0xf]
        %v9454 = vunpack.c.l.b16 %v9390
        %v9455 = vunpack.c.l.b16 %v9391
        %v9456 = vunpack.c.l.b16 %v9392
        %v9457 = vunpack.c.l.b16 %v9393
        %v9458 = vunpack.c.l.b16 %v9394
        %v9459 = vunpack.c.l.b16 %v9395
        %v9460 = vunpack.c.l.b16 %v9396
        %v9461 = vunpack.c.l.b16 %v9397
        %v9462 = vunpack.c.l.b16 %v9398
        %v9463 = vunpack.c.l.b16 %v9399
        %v9464 = vunpack.c.l.b16 %v9400
        %v9465 = vunpack.c.l.b16 %v9401
        %v9466 = vunpack.c.l.b16 %v9402
        %v9467 = vunpack.c.l.b16 %v9403
        %v9468 = vunpack.c.l.b16 %v9404
        %v9469 = vunpack.c.l.b16 %v9405
        %v9470 = vunpack.c.l.b16 %v9406
        %v9471 = vunpack.c.l.b16 %v9407
        %v9472 = vunpack.c.l.b16 %v9408
        %v9473 = vunpack.c.l.b16 %v9409
        %v9474 = vunpack.c.l.b16 %v9410
        %v9475 = vunpack.c.l.b16 %v9411
        %v9476 = vunpack.c.l.b16 %v9412
        %v9477 = vunpack.c.l.b16 %v9413
        %v9478 = vunpack.c.l.b16 %v9414
        %v9479 = vunpack.c.l.b16 %v9415
        %v9480 = vunpack.c.l.b16 %v9416
        %v9481 = vunpack.c.l.b16 %v9417
        %v9482 = vunpack.c.l.b16 %v9418
        %v9483 = vunpack.c.l.b16 %v9419
        %v9484 = vunpack.c.l.b16 %v9420
        %v9485 = vunpack.c.l.b16 %v9421
        %v9486 = vpack.c.b16 %v9455, %v9454
        %v9487 = vpack.c.b16 %v9457, %v9456
        %v9488 = vpack.c.b16 %v9459, %v9458
        %v9489 = vpack.c.b16 %v9461, %v9460
        %v9490 = vpack.c.b16 %v9463, %v9462
        %v9491 = vpack.c.b16 %v9465, %v9464
        %v9492 = vpack.c.b16 %v9467, %v9466
        %v9493 = vpack.c.b16 %v9469, %v9468
        %v9494 = vpack.c.b16 %v9471, %v9470
        %v9495 = vpack.c.b16 %v9473, %v9472
        %v9496 = vpack.c.b16 %v9475, %v9474
        %v9497 = vpack.c.b16 %v9477, %v9476
        %v9498 = vpack.c.b16 %v9479, %v9478
        %v9499 = vpack.c.b16 %v9481, %v9480
        %v9500 = vpack.c.b16 %v9483, %v9482
        %v9501 = vpack.c.b16 %v9485, %v9484
        %9518 = vmatprep.subr.bf16.mxu0 0
        %9519 = vmatpush1.bf16.msra.mxu0 %v9486
        %9520 = vmatprep.subr.bf16.mxu0 0
        %9521 = vmatpush1.bf16.msra.mxu0 %v9487
        %9522 = vmatprep.subr.bf16.mxu0 0
        %9523 = vmatpush1.bf16.msra.mxu0 %v9488
        %9524 = vmatprep.subr.bf16.mxu0 0
        %9525 = vmatpush1.bf16.msra.mxu0 %v9489
        %9526 = vmatprep.subr.bf16.mxu0 0
        %9527 = vmatpush1.bf16.msra.mxu0 %v9490
        %9528 = vmatprep.subr.bf16.mxu0 0
        %9529 = vmatpush1.bf16.msra.mxu0 %v9491
        %9530 = vmatprep.subr.bf16.mxu0 0
        %9531 = vmatpush1.bf16.msra.mxu0 %v9492
        %9532 = vmatprep.subr.bf16.mxu0 0
        %9533 = vmatpush1.bf16.msra.mxu0 %v9493
        %9534 = vmatprep.subr.bf16.mxu0 0
        %9535 = vmatpush1.bf16.msra.mxu0 %v9494
        %9536 = vmatprep.subr.bf16.mxu0 0
        %9537 = vmatpush1.bf16.msra.mxu0 %v9495
        %9538 = vmatprep.subr.bf16.mxu0 0
        %9539 = vmatpush1.bf16.msra.mxu0 %v9496
        %9540 = vmatprep.subr.bf16.mxu0 0
        %9541 = vmatpush1.bf16.msra.mxu0 %v9497
        %9542 = vmatprep.subr.bf16.mxu0 0
        %9543 = vmatpush1.bf16.msra.mxu0 %v9498
        %9544 = vmatprep.subr.bf16.mxu0 0
        %9545 = vmatpush1.bf16.msra.mxu0 %v9499
        %9546 = vmatprep.subr.bf16.mxu0 0
        %9547 = vmatpush1.bf16.msra.mxu0 %v9500
        %9548 = vmatprep.subr.bf16.mxu0 0
        %9549 = vmatpush1.bf16.msra.mxu0 %v9501
        %9550 = vmatprep.mubr.bf16.mxu0 %v9383
        %9551 = vmatmul.mubr.bf16.gmra.mrb[0].mxu0 %v9382
        %v9552 = vpop.f32.mrb[0].mxu0
        %v9553 = vadd.f32 0.0, %v9552
        %v9554 = vpop.f32.mrb[0].mxu0
        %v9555 = vpop.f32.mrb[0].mxu0
        %v9556 = vadd.f32 0.0, %v9555
        %v9557 = vpop.f32.mrb[0].mxu0
        %9558 = vmatprep.mubr.bf16.mxu0 %v9385
        %9559 = vmatmul.mubr.bf16.gmra.mrb[0].mxu0 %v9384
        %v9560 = vpop.f32.mrb[0].mxu0
        %v9561 = vadd.f32 0.0, %v9560
        %v9562 = vpop.f32.mrb[0].mxu0
        %v9563 = vpop.f32.mrb[0].mxu0
        %v9564 = vadd.f32 0.0, %v9563
        %v9565 = vpop.f32.mrb[0].mxu0
        %9566 = vmatprep.mubr.bf16.mxu0 %v9387
        %9567 = vmatmul.mubr.bf16.gmra.mrb[0].mxu0 %v9386
        %v9568 = vpop.f32.mrb[0].mxu0
        %v9569 = vadd.f32 0.0, %v9568
        %v9570 = vpop.f32.mrb[0].mxu0
        %v9571 = vpop.f32.mrb[0].mxu0
        %v9572 = vadd.f32 0.0, %v9571
        %v9573 = vpop.f32.mrb[0].mxu0
        %9574 = vmatprep.mubr.bf16.mxu0 %v9389
        %9575 = vmatmul.mubr.bf16.gmra.mrb[0].mxu0 %v9388
        %v9576 = vpop.f32.mrb[0].mxu0
        %v9577 = vadd.f32 0.0, %v9576
        %v9578 = vpop.f32.mrb[0].mxu0
        %v9579 = vpop.f32.mrb[0].mxu0
        %v9580 = vadd.f32 0.0, %v9579
        %v9581 = vpop.f32.mrb[0].mxu0
        %9582 = vdwg.mxu0
        %s9583 = scalar_lea.vmem %s8, 128
        %v9584 = vld [vmem:[%s9583] sm:$0xf]
        %v9585 = vld [vmem:[%s9583 + $0x4] sm:$0xf]
        %v9586 = vld [vmem:[%s9583 + $0x8] sm:$0xf]
        %v9587 = vld [vmem:[%s9583 + $0xc] sm:$0xf]
        %v9588 = vld [vmem:[%s9583 + $0x10] sm:$0xf]
        %v9589 = vld [vmem:[%s9583 + $0x14] sm:$0xf]
        %v9590 = vld [vmem:[%s9583 + $0x18] sm:$0xf]
        %v9591 = vld [vmem:[%s9583 + $0x1c] sm:$0xf]
        %v9592 = vld [vmem:[%s9583 + $0x20] sm:$0xf]
        %v9593 = vld [vmem:[%s9583 + $0x24] sm:$0xf]
        %v9594 = vld [vmem:[%s9583 + $0x28] sm:$0xf]
        %v9595 = vld [vmem:[%s9583 + $0x2c] sm:$0xf]
        %v9596 = vld [vmem:[%s9583 + $0x30] sm:$0xf]
        %v9597 = vld [vmem:[%s9583 + $0x34] sm:$0xf]
        %v9598 = vld [vmem:[%s9583 + $0x38] sm:$0xf]
        %v9599 = vld [vmem:[%s9583 + $0x3c] sm:$0xf]
        %v9600 = vld [vmem:[%s9583 + $0x40] sm:$0xf]
        %v9601 = vld [vmem:[%s9583 + $0x44] sm:$0xf]
        %v9602 = vld [vmem:[%s9583 + $0x48] sm:$0xf]
        %v9603 = vld [vmem:[%s9583 + $0x4c] sm:$0xf]
        %v9604 = vld [vmem:[%s9583 + $0x50] sm:$0xf]
        %v9605 = vld [vmem:[%s9583 + $0x54] sm:$0xf]
        %v9606 = vld [vmem:[%s9583 + $0x58] sm:$0xf]
        %v9607 = vld [vmem:[%s9583 + $0x5c] sm:$0xf]
        %v9608 = vld [vmem:[%s9583 + $0x60] sm:$0xf]
        %v9609 = vld [vmem:[%s9583 + $0x64] sm:$0xf]
        %v9610 = vld [vmem:[%s9583 + $0x68] sm:$0xf]
        %v9611 = vld [vmem:[%s9583 + $0x6c] sm:$0xf]
        %v9612 = vld [vmem:[%s9583 + $0x70] sm:$0xf]
        %v9613 = vld [vmem:[%s9583 + $0x74] sm:$0xf]
        %v9614 = vld [vmem:[%s9583 + $0x78] sm:$0xf]
        %v9615 = vld [vmem:[%s9583 + $0x7c] sm:$0xf]
        %v9648 = vunpack.c.l.b16 %v9584
        %v9649 = vunpack.c.l.b16 %v9585
        %v9650 = vunpack.c.l.b16 %v9586
        %v9651 = vunpack.c.l.b16 %v9587
        %v9652 = vunpack.c.l.b16 %v9588
        %v9653 = vunpack.c.l.b16 %v9589
        %v9654 = vunpack.c.l.b16 %v9590
        %v9655 = vunpack.c.l.b16 %v9591
        %v9656 = vunpack.c.l.b16 %v9592
        %v9657 = vunpack.c.l.b16 %v9593
        %v9658 = vunpack.c.l.b16 %v9594
        %v9659 = vunpack.c.l.b16 %v9595
        %v9660 = vunpack.c.l.b16 %v9596
        %v9661 = vunpack.c.l.b16 %v9597
        %v9662 = vunpack.c.l.b16 %v9598
        %v9663 = vunpack.c.l.b16 %v9599
        %v9664 = vunpack.c.l.b16 %v9600
        %v9665 = vunpack.c.l.b16 %v9601
        %v9666 = vunpack.c.l.b16 %v9602
        %v9667 = vunpack.c.l.b16 %v9603
        %v9668 = vunpack.c.l.b16 %v9604
        %v9669 = vunpack.c.l.b16 %v9605
        %v9670 = vunpack.c.l.b16 %v9606
        %v9671 = vunpack.c.l.b16 %v9607
        %v9672 = vunpack.c.l.b16 %v9608
        %v9673 = vunpack.c.l.b16 %v9609
        %v9674 = vunpack.c.l.b16 %v9610
        %v9675 = vunpack.c.l.b16 %v9611
        %v9676 = vunpack.c.l.b16 %v9612
        %v9677 = vunpack.c.l.b16 %v9613
        %v9678 = vunpack.c.l.b16 %v9614
        %v9679 = vunpack.c.l.b16 %v9615
        %v9680 = vpack.c.b16 %v9649, %v9648
        %v9681 = vpack.c.b16 %v9651, %v9650
        %v9682 = vpack.c.b16 %v9653, %v9652
        %v9683 = vpack.c.b16 %v9655, %v9654
        %v9684 = vpack.c.b16 %v9657, %v9656
        %v9685 = vpack.c.b16 %v9659, %v9658
        %v9686 = vpack.c.b16 %v9661, %v9660
        %v9687 = vpack.c.b16 %v9663, %v9662
        %v9688 = vpack.c.b16 %v9665, %v9664
        %v9689 = vpack.c.b16 %v9667, %v9666
        %v9690 = vpack.c.b16 %v9669, %v9668
        %v9691 = vpack.c.b16 %v9671, %v9670
        %v9692 = vpack.c.b16 %v9673, %v9672
        %v9693 = vpack.c.b16 %v9675, %v9674
        %v9694 = vpack.c.b16 %v9677, %v9676
        %v9695 = vpack.c.b16 %v9679, %v9678
        %9712 = vmatprep.subr.bf16.mxu0 0
        %9713 = vmatpush1.bf16.msra.mxu0 %v9680
        %9714 = vmatprep.subr.bf16.mxu0 0
        %9715 = vmatpush1.bf16.msra.mxu0 %v9681
        %9716 = vmatprep.subr.bf16.mxu0 0
        %9717 = vmatpush1.bf16.msra.mxu0 %v9682
        %9718 = vmatprep.subr.bf16.mxu0 0
        %9719 = vmatpush1.bf16.msra.mxu0 %v9683
        %9720 = vmatprep.subr.bf16.mxu0 0
        %9721 = vmatpush1.bf16.msra.mxu0 %v9684
        %9722 = vmatprep.subr.bf16.mxu0 0
        %9723 = vmatpush1.bf16.msra.mxu0 %v9685
        %9724 = vmatprep.subr.bf16.mxu0 0
        %9725 = vmatpush1.bf16.msra.mxu0 %v9686
        %9726 = vmatprep.subr.bf16.mxu0 0
        %9727 = vmatpush1.bf16.msra.mxu0 %v9687
        %9728 = vmatprep.subr.bf16.mxu0 0
        %9729 = vmatpush1.bf16.msra.mxu0 %v9688
        %9730 = vmatprep.subr.bf16.mxu0 0
        %9731 = vmatpush1.bf16.msra.mxu0 %v9689
        %9732 = vmatprep.subr.bf16.mxu0 0
        %9733 = vmatpush1.bf16.msra.mxu0 %v9690
        %9734 = vmatprep.subr.bf16.mxu0 0
        %9735 = vmatpush1.bf16.msra.mxu0 %v9691
        %9736 = vmatprep.subr.bf16.mxu0 0
        %9737 = vmatpush1.bf16.msra.mxu0 %v9692
        %9738 = vmatprep.subr.bf16.mxu0 0
        %9739 = vmatpush1.bf16.msra.mxu0 %v9693
        %9740 = vmatprep.subr.bf16.mxu0 0
        %9741 = vmatpush1.bf16.msra.mxu0 %v9694
        %9742 = vmatprep.subr.bf16.mxu0 0
        %9743 = vmatpush1.bf16.msra.mxu0 %v9695
        %9744 = vmatprep.mubr.bf16.mxu0 %v9383
        %9745 = vmatmul.mubr.bf16.gmra.mrb[0].mxu0 %v9382
        %v9746 = vpop.f32.mrb[0].mxu0
        %v9747 = vadd.f32 0.0, %v9746
        %v9748 = vpop.f32.mrb[0].mxu0
        %v9749 = vpop.f32.mrb[0].mxu0
        %v9750 = vadd.f32 0.0, %v9749
        %v9751 = vpop.f32.mrb[0].mxu0
        %9752 = vmatprep.mubr.bf16.mxu0 %v9385
        %9753 = vmatmul.mubr.bf16.gmra.mrb[0].mxu0 %v9384
        %v9754 = vpop.f32.mrb[0].mxu0
        %v9755 = vadd.f32 0.0, %v9754
        %v9756 = vpop.f32.mrb[0].mxu0
        %v9757 = vpop.f32.mrb[0].mxu0
        %v9758 = vadd.f32 0.0, %v9757
        %v9759 = vpop.f32.mrb[0].mxu0
        %9760 = vmatprep.mubr.bf16.mxu0 %v9387
        %9761 = vmatmul.mubr.bf16.gmra.mrb[0].mxu0 %v9386
        %v9762 = vpop.f32.mrb[0].mxu0
        %v9763 = vadd.f32 0.0, %v9762
        %v9764 = vpop.f32.mrb[0].mxu0
        %v9765 = vpop.f32.mrb[0].mxu0
        %v9766 = vadd.f32 0.0, %v9765
        %v9767 = vpop.f32.mrb[0].mxu0
        %9768 = vmatprep.mubr.bf16.mxu0 %v9389
        %9769 = vmatmul.mubr.bf16.gmra.mrb[0].mxu0 %v9388
        %v9770 = vpop.f32.mrb[0].mxu0
        %v9771 = vadd.f32 0.0, %v9770
        %v9772 = vpop.f32.mrb[0].mxu0
        %v9773 = vpop.f32.mrb[0].mxu0
        %v9774 = vadd.f32 0.0, %v9773
        %v9775 = vpop.f32.mrb[0].mxu0
        %9776 = vdwg.mxu0
        %v9777 = vmax.f32 %v9553, %v9747
        %v9778 = vmax.f32 %v9556, %v9750
        %v9779 = vmax.f32 %v9561, %v9755
        %v9780 = vmax.f32 %v9564, %v9758
        %v9781 = vmax.f32 %v9569, %v9763
        %v9782 = vmax.f32 %v9572, %v9766
        %v9783 = vmax.f32 %v9577, %v9771
        %v9784 = vmax.f32 %v9580, %v9774
        %s9785 = scalar_lea.vmem %s8, 256
        %v9786 = vld [vmem:[%s9785] sm:$0xf]
        %v9787 = vld [vmem:[%s9785 + $0x4] sm:$0xf]
        %v9788 = vld [vmem:[%s9785 + $0x8] sm:$0xf]
        %v9789 = vld [vmem:[%s9785 + $0xc] sm:$0xf]
        %v9790 = vld [vmem:[%s9785 + $0x10] sm:$0xf]
        %v9791 = vld [vmem:[%s9785 + $0x14] sm:$0xf]
        %v9792 = vld [vmem:[%s9785 + $0x18] sm:$0xf]
        %v9793 = vld [vmem:[%s9785 + $0x1c] sm:$0xf]
        %v9794 = vld [vmem:[%s9785 + $0x20] sm:$0xf]
        %v9795 = vld [vmem:[%s9785 + $0x24] sm:$0xf]
        %v9796 = vld [vmem:[%s9785 + $0x28] sm:$0xf]
        %v9797 = vld [vmem:[%s9785 + $0x2c] sm:$0xf]
        %v9798 = vld [vmem:[%s9785 + $0x30] sm:$0xf]
        %v9799 = vld [vmem:[%s9785 + $0x34] sm:$0xf]
        %v9800 = vld [vmem:[%s9785 + $0x38] sm:$0xf]
        %v9801 = vld [vmem:[%s9785 + $0x3c] sm:$0xf]
        %v9802 = vld [vmem:[%s9785 + $0x40] sm:$0xf]
        %v9803 = vld [vmem:[%s9785 + $0x44] sm:$0xf]
        %v9804 = vld [vmem:[%s9785 + $0x48] sm:$0xf]
        %v9805 = vld [vmem:[%s9785 + $0x4c] sm:$0xf]
        %v9806 = vld [vmem:[%s9785 + $0x50] sm:$0xf]
        %v9807 = vld [vmem:[%s9785 + $0x54] sm:$0xf]
        %v9808 = vld [vmem:[%s9785 + $0x58] sm:$0xf]
        %v9809 = vld [vmem:[%s9785 + $0x5c] sm:$0xf]
        %v9810 = vld [vmem:[%s9785 + $0x60] sm:$0xf]
        %v9811 = vld [vmem:[%s9785 + $0x64] sm:$0xf]
        %v9812 = vld [vmem:[%s9785 + $0x68] sm:$0xf]
        %v9813 = vld [vmem:[%s9785 + $0x6c] sm:$0xf]
        %v9814 = vld [vmem:[%s9785 + $0x70] sm:$0xf]
        %v9815 = vld [vmem:[%s9785 + $0x74] sm:$0xf]
        %v9816 = vld [vmem:[%s9785 + $0x78] sm:$0xf]
        %v9817 = vld [vmem:[%s9785 + $0x7c] sm:$0xf]
        %v9850 = vunpack.c.l.b16 %v9786
        %v9851 = vunpack.c.l.b16 %v9787
        %v9852 = vunpack.c.l.b16 %v9788
        %v9853 = vunpack.c.l.b16 %v9789
        %v9854 = vunpack.c.l.b16 %v9790
        %v9855 = vunpack.c.l.b16 %v9791
        %v9856 = vunpack.c.l.b16 %v9792
        %v9857 = vunpack.c.l.b16 %v9793
        %v9858 = vunpack.c.l.b16 %v9794
        %v9859 = vunpack.c.l.b16 %v9795
        %v9860 = vunpack.c.l.b16 %v9796
        %v9861 = vunpack.c.l.b16 %v9797
        %v9862 = vunpack.c.l.b16 %v9798
        %v9863 = vunpack.c.l.b16 %v9799
        %v9864 = vunpack.c.l.b16 %v9800
        %v9865 = vunpack.c.l.b16 %v9801
        %v9866 = vunpack.c.l.b16 %v9802
        %v9867 = vunpack.c.l.b16 %v9803
        %v9868 = vunpack.c.l.b16 %v9804
        %v9869 = vunpack.c.l.b16 %v9805
        %v9870 = vunpack.c.l.b16 %v9806
        %v9871 = vunpack.c.l.b16 %v9807
        %v9872 = vunpack.c.l.b16 %v9808
        %v9873 = vunpack.c.l.b16 %v9809
        %v9874 = vunpack.c.l.b16 %v9810
        %v9875 = vunpack.c.l.b16 %v9811
        %v9876 = vunpack.c.l.b16 %v9812
        %v9877 = vunpack.c.l.b16 %v9813
        %v9878 = vunpack.c.l.b16 %v9814
        %v9879 = vunpack.c.l.b16 %v9815
        %v9880 = vunpack.c.l.b16 %v9816
        %v9881 = vunpack.c.l.b16 %v9817
        %v9882 = vpack.c.b16 %v9851, %v9850
        %v9883 = vpack.c.b16 %v9853, %v9852
        %v9884 = vpack.c.b16 %v9855, %v9854
        %v9885 = vpack.c.b16 %v9857, %v9856
        %v9886 = vpack.c.b16 %v9859, %v9858
        %v9887 = vpack.c.b16 %v9861, %v9860
        %v9888 = vpack.c.b16 %v9863, %v9862
        %v9889 = vpack.c.b16 %v9865, %v9864
        %v9890 = vpack.c.b16 %v9867, %v9866
        %v9891 = vpack.c.b16 %v9869, %v9868
        %v9892 = vpack.c.b16 %v9871, %v9870
        %v9893 = vpack.c.b16 %v9873, %v9872
        %v9894 = vpack.c.b16 %v9875, %v9874
        %v9895 = vpack.c.b16 %v9877, %v9876
        %v9896 = vpack.c.b16 %v9879, %v9878
        %v9897 = vpack.c.b16 %v9881, %v9880
        %9914 = vmatprep.subr.bf16.mxu0 0
        %9915 = vmatpush1.bf16.msra.mxu0 %v9882
        %9916 = vmatprep.subr.bf16.mxu0 0
        %9917 = vmatpush1.bf16.msra.mxu0 %v9883
        %9918 = vmatprep.subr.bf16.mxu0 0
        %9919 = vmatpush1.bf16.msra.mxu0 %v9884
        %9920 = vmatprep.subr.bf16.mxu0 0
        %9921 = vmatpush1.bf16.msra.mxu0 %v9885
        %9922 = vmatprep.subr.bf16.mxu0 0
        %9923 = vmatpush1.bf16.msra.mxu0 %v9886
        %9924 = vmatprep.subr.bf16.mxu0 0
        %9925 = vmatpush1.bf16.msra.mxu0 %v9887
        %9926 = vmatprep.subr.bf16.mxu0 0
        %9927 = vmatpush1.bf16.msra.mxu0 %v9888
        %9928 = vmatprep.subr.bf16.mxu0 0
        %9929 = vmatpush1.bf16.msra.mxu0 %v9889
        %9930 = vmatprep.subr.bf16.mxu0 0
        %9931 = vmatpush1.bf16.msra.mxu0 %v9890
        %9932 = vmatprep.subr.bf16.mxu0 0
        %9933 = vmatpush1.bf16.msra.mxu0 %v9891
        %9934 = vmatprep.subr.bf16.mxu0 0
        %9935 = vmatpush1.bf16.msra.mxu0 %v9892
        %9936 = vmatprep.subr.bf16.mxu0 0
        %9937 = vmatpush1.bf16.msra.mxu0 %v9893
        %9938 = vmatprep.subr.bf16.mxu0 0
        %9939 = vmatpush1.bf16.msra.mxu0 %v9894
        %9940 = vmatprep.subr.bf16.mxu0 0
        %9941 = vmatpush1.bf16.msra.mxu0 %v9895
        %9942 = vmatprep.subr.bf16.mxu0 0
        %9943 = vmatpush1.bf16.msra.mxu0 %v9896
        %9944 = vmatprep.subr.bf16.mxu0 0
        %9945 = vmatpush1.bf16.msra.mxu0 %v9897
        %9946 = vmatprep.mubr.bf16.mxu0 %v9383
        %9947 = vmatmul.mubr.bf16.gmra.mrb[0].mxu0 %v9382
        %v9948 = vpop.f32.mrb[0].mxu0
        %v9949 = vadd.f32 0.0, %v9948
        %v9950 = vpop.f32.mrb[0].mxu0
        %v9951 = vpop.f32.mrb[0].mxu0
        %v9952 = vadd.f32 0.0, %v9951
        %v9953 = vpop.f32.mrb[0].mxu0
        %9954 = vmatprep.mubr.bf16.mxu0 %v9385
        %9955 = vmatmul.mubr.bf16.gmra.mrb[0].mxu0 %v9384
        %v9956 = vpop.f32.mrb[0].mxu0
        %v9957 = vadd.f32 0.0, %v9956
        %v9958 = vpop.f32.mrb[0].mxu0
        %v9959 = vpop.f32.mrb[0].mxu0
        %v9960 = vadd.f32 0.0, %v9959
        %v9961 = vpop.f32.mrb[0].mxu0
        %9962 = vmatprep.mubr.bf16.mxu0 %v9387
        %9963 = vmatmul.mubr.bf16.gmra.mrb[0].mxu0 %v9386
        %v9964 = vpop.f32.mrb[0].mxu0
        %v9965 = vadd.f32 0.0, %v9964
        %v9966 = vpop.f32.mrb[0].mxu0
        %v9967 = vpop.f32.mrb[0].mxu0
        %v9968 = vadd.f32 0.0, %v9967
        %v9969 = vpop.f32.mrb[0].mxu0
        %9970 = vmatprep.mubr.bf16.mxu0 %v9389
        %9971 = vmatmul.mubr.bf16.gmra.mrb[0].mxu0 %v9388
        %v9972 = vpop.f32.mrb[0].mxu0
        %v9973 = vadd.f32 0.0, %v9972
        %v9974 = vpop.f32.mrb[0].mxu0
        %v9975 = vpop.f32.mrb[0].mxu0
        %v9976 = vadd.f32 0.0, %v9975
        %v9977 = vpop.f32.mrb[0].mxu0
        %9978 = vdwg.mxu0
        %v9979 = vmax.f32 %v9777, %v9949
        %v9980 = vmax.f32 %v9778, %v9952
        %v9981 = vmax.f32 %v9779, %v9957
        %v9982 = vmax.f32 %v9780, %v9960
        %v9983 = vmax.f32 %v9781, %v9965
        %v9984 = vmax.f32 %v9782, %v9968
        %v9985 = vmax.f32 %v9783, %v9973
        %v9986 = vmax.f32 %v9784, %v9976
        %v9987 = vpack.c.bf16 %v9980, %v9979
        %v9988 = vpack.c.bf16 %v9982, %v9981
        %v9989 = vpack.c.bf16 %v9984, %v9983
        %v9990 = vpack.c.bf16 %v9986, %v9985
        %v9991 = vld [vmem:[%s9] sm:$0xf]
        %v9992 = vld [vmem:[%s9 + $0x4] sm:$0xf]
        %v9993 = vld [vmem:[%s9 + $0x8] sm:$0xf]
        %v9994 = vld [vmem:[%s9 + $0xc] sm:$0xf]
        %v9995 = vld [vmem:[%s9 + $0x10] sm:$0xf]
        %v9996 = vld [vmem:[%s9 + $0x14] sm:$0xf]
        %v9997 = vld [vmem:[%s9 + $0x18] sm:$0xf]
        %v9998 = vld [vmem:[%s9 + $0x1c] sm:$0xf]
        %v9999 = vld [vmem:[%s9 + $0x20] sm:$0xf]
        %v10000 = vld [vmem:[%s9 + $0x24] sm:$0xf]
        %v10001 = vld [vmem:[%s9 + $0x28] sm:$0xf]
        %v10002 = vld [vmem:[%s9 + $0x2c] sm:$0xf]
        %v10003 = vld [vmem:[%s9 + $0x30] sm:$0xf]
        %v10004 = vld [vmem:[%s9 + $0x34] sm:$0xf]
        %v10005 = vld [vmem:[%s9 + $0x38] sm:$0xf]
        %v10006 = vld [vmem:[%s9 + $0x3c] sm:$0xf]
        %s10007 = scalar_lea.vmem %s9, 64
        %v10008 = vld [vmem:[%s10007] sm:$0xf]
        %v10009 = vld [vmem:[%s10007 + $0x4] sm:$0xf]
        %v10010 = vld [vmem:[%s10007 + $0x8] sm:$0xf]
        %v10011 = vld [vmem:[%s10007 + $0xc] sm:$0xf]
        %v10012 = vld [vmem:[%s10007 + $0x10] sm:$0xf]
        %v10013 = vld [vmem:[%s10007 + $0x14] sm:$0xf]
        %v10014 = vld [vmem:[%s10007 + $0x18] sm:$0xf]
        %v10015 = vld [vmem:[%s10007 + $0x1c] sm:$0xf]
        %v10016 = vld [vmem:[%s10007 + $0x20] sm:$0xf]
        %v10017 = vld [vmem:[%s10007 + $0x24] sm:$0xf]
        %v10018 = vld [vmem:[%s10007 + $0x28] sm:$0xf]
        %v10019 = vld [vmem:[%s10007 + $0x2c] sm:$0xf]
        %v10020 = vld [vmem:[%s10007 + $0x30] sm:$0xf]
        %v10021 = vld [vmem:[%s10007 + $0x34] sm:$0xf]
        %v10022 = vld [vmem:[%s10007 + $0x38] sm:$0xf]
        %v10023 = vld [vmem:[%s10007 + $0x3c] sm:$0xf]
        %v10025 = vrot.slane %v9987, 4
        %v10043 = vunpack.c.l.b16 %v10008
        %v10044 = vunpack.c.l.b16 %v10009
        %v10045 = vunpack.c.l.b16 %v10010
        %v10046 = vunpack.c.l.b16 %v10011
        %v10047 = vunpack.c.l.b16 %v10012
        %v10048 = vunpack.c.l.b16 %v10013
        %v10049 = vunpack.c.l.b16 %v10014
        %v10050 = vunpack.c.l.b16 %v10015
        %v10051 = vunpack.c.l.b16 %v10016
        %v10052 = vunpack.c.l.b16 %v10017
        %v10053 = vunpack.c.l.b16 %v10018
        %v10054 = vunpack.c.l.b16 %v10019
        %v10055 = vunpack.c.l.b16 %v10020
        %v10056 = vunpack.c.l.b16 %v10021
        %v10057 = vunpack.c.l.b16 %v10022
        %v10058 = vunpack.c.l.b16 %v10023
        %v10059 = vpack.c.b16 %v10044, %v10043
        %v10060 = vpack.c.b16 %v10046, %v10045
        %v10061 = vpack.c.b16 %v10048, %v10047
        %v10062 = vpack.c.b16 %v10050, %v10049
        %v10063 = vpack.c.b16 %v10052, %v10051
        %v10064 = vpack.c.b16 %v10054, %v10053
        %v10065 = vpack.c.b16 %v10056, %v10055
        %v10066 = vpack.c.b16 %v10058, %v10057
        %10075 = vmatprep.subr.bf16.mxu0 0
        %10076 = vmatpush1.bf16.msra.mxu0 %v10059
        %10077 = vmatprep.subr.bf16.mxu0 0
        %10078 = vmatpush1.bf16.msra.mxu0 %v10060
        %10079 = vmatprep.subr.bf16.mxu0 0
        %10080 = vmatpush1.bf16.msra.mxu0 %v10061
        %10081 = vmatprep.subr.bf16.mxu0 0
        %10082 = vmatpush1.bf16.msra.mxu0 %v10062
        %10083 = vmatprep.subr.bf16.mxu0 0
        %10084 = vmatpush1.bf16.msra.mxu0 %v10063
        %10085 = vmatprep.subr.bf16.mxu0 0
        %10086 = vmatpush1.bf16.msra.mxu0 %v10064
        %10087 = vmatprep.subr.bf16.mxu0 0
        %10088 = vmatpush1.bf16.msra.mxu0 %v10065
        %10089 = vmatprep.subr.bf16.mxu0 0
        %10090 = vmatpush1.bf16.msra.mxu0 %v10066
        %10091 = vmatprep.subr.bf16.mxu0 0
        %10092 = vmatpush1.bf16.msra.mxu0 0
        %10093 = vmatprep.subr.bf16.mxu0 0
        %10094 = vmatpush1.bf16.msra.mxu0 0
        %10095 = vmatprep.subr.bf16.mxu0 0
        %10096 = vmatpush1.bf16.msra.mxu0 0
        %10097 = vmatprep.subr.bf16.mxu0 0
        %10098 = vmatpush1.bf16.msra.mxu0 0
        %10099 = vmatprep.subr.bf16.mxu0 0
        %10100 = vmatpush1.bf16.msra.mxu0 0
        %10101 = vmatprep.subr.bf16.mxu0 0
        %10102 = vmatpush1.bf16.msra.mxu0 0
        %10103 = vmatprep.subr.bf16.mxu0 0
        %10104 = vmatpush1.bf16.msra.mxu0 0
        %10105 = vmatprep.subr.bf16.mxu0 0
        %10106 = vmatpush1.bf16.msra.mxu0 0
        %10107 = vmatprep.mubr.bf16.mxu0 0
        %10108 = vmatmul.mubr.bf16.gmra.mrb[0].mxu0 %v10025
        %v10109 = vpop.f32.mrb[0].mxu0
        %v10110 = vadd.f32 0.0, %v10109
        %v10111 = vpop.f32.mrb[0].mxu0
        %v10112 = vpop.f32.mrb[0].mxu0
        %v10113 = vpop.f32.mrb[0].mxu0
        %10114 = vdwg.mxu0
        %v10131 = vunpack.c.l.b16 %v9991
        %v10132 = vunpack.c.l.b16 %v9992
        %v10133 = vunpack.c.l.b16 %v9993
        %v10134 = vunpack.c.l.b16 %v9994
        %v10135 = vunpack.c.l.b16 %v9995
        %v10136 = vunpack.c.l.b16 %v9996
        %v10137 = vunpack.c.l.b16 %v9997
        %v10138 = vunpack.c.l.b16 %v9998
        %v10139 = vunpack.c.l.b16 %v9999
        %v10140 = vunpack.c.l.b16 %v10000
        %v10141 = vunpack.c.l.b16 %v10001
        %v10142 = vunpack.c.l.b16 %v10002
        %v10143 = vunpack.c.l.b16 %v10003
        %v10144 = vunpack.c.l.b16 %v10004
        %v10145 = vunpack.c.l.b16 %v10005
        %v10146 = vunpack.c.l.b16 %v10006
        %v10147 = vpack.c.b16 %v10132, %v10131
        %v10148 = vpack.c.b16 %v10134, %v10133
        %v10149 = vpack.c.b16 %v10136, %v10135
        %v10150 = vpack.c.b16 %v10138, %v10137
        %v10151 = vpack.c.b16 %v10140, %v10139
        %v10152 = vpack.c.b16 %v10142, %v10141
        %v10153 = vpack.c.b16 %v10144, %v10143
        %v10154 = vpack.c.b16 %v10146, %v10145
        %10163 = vmatprep.subr.bf16.mxu0 0
        %10164 = vmatpush1.bf16.msra.mxu0 %v10147
        %10165 = vmatprep.subr.bf16.mxu0 0
        %10166 = vmatpush1.bf16.msra.mxu0 %v10148
        %10167 = vmatprep.subr.bf16.mxu0 0
        %10168 = vmatpush1.bf16.msra.mxu0 %v10149
        %10169 = vmatprep.subr.bf16.mxu0 0
        %10170 = vmatpush1.bf16.msra.mxu0 %v10150
        %10171 = vmatprep.subr.bf16.mxu0 0
        %10172 = vmatpush1.bf16.msra.mxu0 %v10151
        %10173 = vmatprep.subr.bf16.mxu0 0
        %10174 = vmatpush1.bf16.msra.mxu0 %v10152
        %10175 = vmatprep.subr.bf16.mxu0 0
        %10176 = vmatpush1.bf16.msra.mxu0 %v10153
        %10177 = vmatprep.subr.bf16.mxu0 0
        %10178 = vmatpush1.bf16.msra.mxu0 %v10154
        %10179 = vmatprep.subr.bf16.mxu0 0
        %10180 = vmatpush1.bf16.msra.mxu0 0
        %10181 = vmatprep.subr.bf16.mxu0 0
        %10182 = vmatpush1.bf16.msra.mxu0 0
        %10183 = vmatprep.subr.bf16.mxu0 0
        %10184 = vmatpush1.bf16.msra.mxu0 0
        %10185 = vmatprep.subr.bf16.mxu0 0
        %10186 = vmatpush1.bf16.msra.mxu0 0
        %10187 = vmatprep.subr.bf16.mxu0 0
        %10188 = vmatpush1.bf16.msra.mxu0 0
        %10189 = vmatprep.subr.bf16.mxu0 0
        %10190 = vmatpush1.bf16.msra.mxu0 0
        %10191 = vmatprep.subr.bf16.mxu0 0
        %10192 = vmatpush1.bf16.msra.mxu0 0
        %10193 = vmatprep.subr.bf16.mxu0 0
        %10194 = vmatpush1.bf16.msra.mxu0 0
        %10195 = vmatprep.mubr.bf16.mxu0 0
        %10196 = vmatmul.mubr.bf16.gmra.mrb[0].mxu0 %v9987
        %v10197 = vpop.f32.mrb[0].mxu0
        %v10198 = vadd.f32 %v10110, %v10197
        %v10199 = vpop.f32.mrb[0].mxu0
        %v10200 = vpop.f32.mrb[0].mxu0
        %v10201 = vpop.f32.mrb[0].mxu0
        %10202 = vdwg.mxu0
        %s10203 = scalar_lea.vmem %s9, 128
        %v10204 = vld [vmem:[%s10203] sm:$0xf]
        %v10205 = vld [vmem:[%s10203 + $0x4] sm:$0xf]
        %v10206 = vld [vmem:[%s10203 + $0x8] sm:$0xf]
        %v10207 = vld [vmem:[%s10203 + $0xc] sm:$0xf]
        %v10208 = vld [vmem:[%s10203 + $0x10] sm:$0xf]
        %v10209 = vld [vmem:[%s10203 + $0x14] sm:$0xf]
        %v10210 = vld [vmem:[%s10203 + $0x18] sm:$0xf]
        %v10211 = vld [vmem:[%s10203 + $0x1c] sm:$0xf]
        %v10212 = vld [vmem:[%s10203 + $0x20] sm:$0xf]
        %v10213 = vld [vmem:[%s10203 + $0x24] sm:$0xf]
        %v10214 = vld [vmem:[%s10203 + $0x28] sm:$0xf]
        %v10215 = vld [vmem:[%s10203 + $0x2c] sm:$0xf]
        %v10216 = vld [vmem:[%s10203 + $0x30] sm:$0xf]
        %v10217 = vld [vmem:[%s10203 + $0x34] sm:$0xf]
        %v10218 = vld [vmem:[%s10203 + $0x38] sm:$0xf]
        %v10219 = vld [vmem:[%s10203 + $0x3c] sm:$0xf]
        %v10236 = vunpack.c.l.b16 %v10204
        %v10237 = vunpack.c.l.b16 %v10205
        %v10238 = vunpack.c.l.b16 %v10206
        %v10239 = vunpack.c.l.b16 %v10207
        %v10240 = vunpack.c.l.b16 %v10208
        %v10241 = vunpack.c.l.b16 %v10209
        %v10242 = vunpack.c.l.b16 %v10210
        %v10243 = vunpack.c.l.b16 %v10211
        %v10244 = vunpack.c.l.b16 %v10212
        %v10245 = vunpack.c.l.b16 %v10213
        %v10246 = vunpack.c.l.b16 %v10214
        %v10247 = vunpack.c.l.b16 %v10215
        %v10248 = vunpack.c.l.b16 %v10216
        %v10249 = vunpack.c.l.b16 %v10217
        %v10250 = vunpack.c.l.b16 %v10218
        %v10251 = vunpack.c.l.b16 %v10219
        %v10252 = vpack.c.b16 %v10237, %v10236
        %v10253 = vpack.c.b16 %v10239, %v10238
        %v10254 = vpack.c.b16 %v10241, %v10240
        %v10255 = vpack.c.b16 %v10243, %v10242
        %v10256 = vpack.c.b16 %v10245, %v10244
        %v10257 = vpack.c.b16 %v10247, %v10246
        %v10258 = vpack.c.b16 %v10249, %v10248
        %v10259 = vpack.c.b16 %v10251, %v10250
        %10268 = vmatprep.subr.bf16.mxu0 0
        %10269 = vmatpush1.bf16.msra.mxu0 %v10252
        %10270 = vmatprep.subr.bf16.mxu0 0
        %10271 = vmatpush1.bf16.msra.mxu0 %v10253
        %10272 = vmatprep.subr.bf16.mxu0 0
        %10273 = vmatpush1.bf16.msra.mxu0 %v10254
        %10274 = vmatprep.subr.bf16.mxu0 0
        %10275 = vmatpush1.bf16.msra.mxu0 %v10255
        %10276 = vmatprep.subr.bf16.mxu0 0
        %10277 = vmatpush1.bf16.msra.mxu0 %v10256
        %10278 = vmatprep.subr.bf16.mxu0 0
        %10279 = vmatpush1.bf16.msra.mxu0 %v10257
        %10280 = vmatprep.subr.bf16.mxu0 0
        %10281 = vmatpush1.bf16.msra.mxu0 %v10258
        %10282 = vmatprep.subr.bf16.mxu0 0
        %10283 = vmatpush1.bf16.msra.mxu0 %v10259
        %10284 = vmatprep.subr.bf16.mxu0 0
        %10285 = vmatpush1.bf16.msra.mxu0 0
        %10286 = vmatprep.subr.bf16.mxu0 0
        %10287 = vmatpush1.bf16.msra.mxu0 0
        %10288 = vmatprep.subr.bf16.mxu0 0
        %10289 = vmatpush1.bf16.msra.mxu0 0
        %10290 = vmatprep.subr.bf16.mxu0 0
        %10291 = vmatpush1.bf16.msra.mxu0 0
        %10292 = vmatprep.subr.bf16.mxu0 0
        %10293 = vmatpush1.bf16.msra.mxu0 0
        %10294 = vmatprep.subr.bf16.mxu0 0
        %10295 = vmatpush1.bf16.msra.mxu0 0
        %10296 = vmatprep.subr.bf16.mxu0 0
        %10297 = vmatpush1.bf16.msra.mxu0 0
        %10298 = vmatprep.subr.bf16.mxu0 0
        %10299 = vmatpush1.bf16.msra.mxu0 0
        %10300 = vmatprep.mubr.bf16.mxu0 0
        %10301 = vmatmul.mubr.bf16.gmra.mrb[0].mxu0 %v9988
        %v10302 = vpop.f32.mrb[0].mxu0
        %v10303 = vadd.f32 0.0, %v10302
        %v10304 = vpop.f32.mrb[0].mxu0
        %v10305 = vpop.f32.mrb[0].mxu0
        %v10306 = vpop.f32.mrb[0].mxu0
        %10307 = vdwg.mxu0
        %v10308 = vadd.f32 %v10198, %v10303
        %s10309 = scalar_lea.vmem %s9, 192
        %v10310 = vld [vmem:[%s10309] sm:$0xf]
        %v10311 = vld [vmem:[%s10309 + $0x4] sm:$0xf]
        %v10312 = vld [vmem:[%s10309 + $0x8] sm:$0xf]
        %v10313 = vld [vmem:[%s10309 + $0xc] sm:$0xf]
        %v10314 = vld [vmem:[%s10309 + $0x10] sm:$0xf]
        %v10315 = vld [vmem:[%s10309 + $0x14] sm:$0xf]
        %v10316 = vld [vmem:[%s10309 + $0x18] sm:$0xf]
        %v10317 = vld [vmem:[%s10309 + $0x1c] sm:$0xf]
        %v10318 = vld [vmem:[%s10309 + $0x20] sm:$0xf]
        %v10319 = vld [vmem:[%s10309 + $0x24] sm:$0xf]
        %v10320 = vld [vmem:[%s10309 + $0x28] sm:$0xf]
        %v10321 = vld [vmem:[%s10309 + $0x2c] sm:$0xf]
        %v10322 = vld [vmem:[%s10309 + $0x30] sm:$0xf]
        %v10323 = vld [vmem:[%s10309 + $0x34] sm:$0xf]
        %v10324 = vld [vmem:[%s10309 + $0x38] sm:$0xf]
        %v10325 = vld [vmem:[%s10309 + $0x3c] sm:$0xf]
        %v10327 = vrot.slane %v9988, 4
        %v10345 = vunpack.c.l.b16 %v10310
        %v10346 = vunpack.c.l.b16 %v10311
        %v10347 = vunpack.c.l.b16 %v10312
        %v10348 = vunpack.c.l.b16 %v10313
        %v10349 = vunpack.c.l.b16 %v10314
        %v10350 = vunpack.c.l.b16 %v10315
        %v10351 = vunpack.c.l.b16 %v10316
        %v10352 = vunpack.c.l.b16 %v10317
        %v10353 = vunpack.c.l.b16 %v10318
        %v10354 = vunpack.c.l.b16 %v10319
        %v10355 = vunpack.c.l.b16 %v10320
        %v10356 = vunpack.c.l.b16 %v10321
        %v10357 = vunpack.c.l.b16 %v10322
        %v10358 = vunpack.c.l.b16 %v10323
        %v10359 = vunpack.c.l.b16 %v10324
        %v10360 = vunpack.c.l.b16 %v10325
        %v10361 = vpack.c.b16 %v10346, %v10345
        %v10362 = vpack.c.b16 %v10348, %v10347
        %v10363 = vpack.c.b16 %v10350, %v10349
        %v10364 = vpack.c.b16 %v10352, %v10351
        %v10365 = vpack.c.b16 %v10354, %v10353
        %v10366 = vpack.c.b16 %v10356, %v10355
        %v10367 = vpack.c.b16 %v10358, %v10357
        %v10368 = vpack.c.b16 %v10360, %v10359
        %10377 = vmatprep.subr.bf16.mxu0 0
        %10378 = vmatpush1.bf16.msra.mxu0 %v10361
        %10379 = vmatprep.subr.bf16.mxu0 0
        %10380 = vmatpush1.bf16.msra.mxu0 %v10362
        %10381 = vmatprep.subr.bf16.mxu0 0
        %10382 = vmatpush1.bf16.msra.mxu0 %v10363
        %10383 = vmatprep.subr.bf16.mxu0 0
        %10384 = vmatpush1.bf16.msra.mxu0 %v10364
        %10385 = vmatprep.subr.bf16.mxu0 0
        %10386 = vmatpush1.bf16.msra.mxu0 %v10365
        %10387 = vmatprep.subr.bf16.mxu0 0
        %10388 = vmatpush1.bf16.msra.mxu0 %v10366
        %10389 = vmatprep.subr.bf16.mxu0 0
        %10390 = vmatpush1.bf16.msra.mxu0 %v10367
        %10391 = vmatprep.subr.bf16.mxu0 0
        %10392 = vmatpush1.bf16.msra.mxu0 %v10368
        %10393 = vmatprep.subr.bf16.mxu0 0
        %10394 = vmatpush1.bf16.msra.mxu0 0
        %10395 = vmatprep.subr.bf16.mxu0 0
        %10396 = vmatpush1.bf16.msra.mxu0 0
        %10397 = vmatprep.subr.bf16.mxu0 0
        %10398 = vmatpush1.bf16.msra.mxu0 0
        %10399 = vmatprep.subr.bf16.mxu0 0
        %10400 = vmatpush1.bf16.msra.mxu0 0
        %10401 = vmatprep.subr.bf16.mxu0 0
        %10402 = vmatpush1.bf16.msra.mxu0 0
        %10403 = vmatprep.subr.bf16.mxu0 0
        %10404 = vmatpush1.bf16.msra.mxu0 0
        %10405 = vmatprep.subr.bf16.mxu0 0
        %10406 = vmatpush1.bf16.msra.mxu0 0
        %10407 = vmatprep.subr.bf16.mxu0 0
        %10408 = vmatpush1.bf16.msra.mxu0 0
        %10409 = vmatprep.mubr.bf16.mxu0 0
        %10410 = vmatmul.mubr.bf16.gmra.mrb[0].mxu0 %v10327
        %v10411 = vpop.f32.mrb[0].mxu0
        %v10412 = vadd.f32 0.0, %v10411
        %v10413 = vpop.f32.mrb[0].mxu0
        %v10414 = vpop.f32.mrb[0].mxu0
        %v10415 = vpop.f32.mrb[0].mxu0
        %10416 = vdwg.mxu0
        %v10417 = vadd.f32 %v10308, %v10412
        %s10418 = scalar_lea.vmem %s9, 256
        %v10419 = vld [vmem:[%s10418] sm:$0xf]
        %v10420 = vld [vmem:[%s10418 + $0x4] sm:$0xf]
        %v10421 = vld [vmem:[%s10418 + $0x8] sm:$0xf]
        %v10422 = vld [vmem:[%s10418 + $0xc] sm:$0xf]
        %v10423 = vld [vmem:[%s10418 + $0x10] sm:$0xf]
        %v10424 = vld [vmem:[%s10418 + $0x14] sm:$0xf]
        %v10425 = vld [vmem:[%s10418 + $0x18] sm:$0xf]
        %v10426 = vld [vmem:[%s10418 + $0x1c] sm:$0xf]
        %v10427 = vld [vmem:[%s10418 + $0x20] sm:$0xf]
        %v10428 = vld [vmem:[%s10418 + $0x24] sm:$0xf]
        %v10429 = vld [vmem:[%s10418 + $0x28] sm:$0xf]
        %v10430 = vld [vmem:[%s10418 + $0x2c] sm:$0xf]
        %v10431 = vld [vmem:[%s10418 + $0x30] sm:$0xf]
        %v10432 = vld [vmem:[%s10418 + $0x34] sm:$0xf]
        %v10433 = vld [vmem:[%s10418 + $0x38] sm:$0xf]
        %v10434 = vld [vmem:[%s10418 + $0x3c] sm:$0xf]
        %v10451 = vunpack.c.l.b16 %v10419
        %v10452 = vunpack.c.l.b16 %v10420
        %v10453 = vunpack.c.l.b16 %v10421
        %v10454 = vunpack.c.l.b16 %v10422
        %v10455 = vunpack.c.l.b16 %v10423
        %v10456 = vunpack.c.l.b16 %v10424
        %v10457 = vunpack.c.l.b16 %v10425
        %v10458 = vunpack.c.l.b16 %v10426
        %v10459 = vunpack.c.l.b16 %v10427
        %v10460 = vunpack.c.l.b16 %v10428
        %v10461 = vunpack.c.l.b16 %v10429
        %v10462 = vunpack.c.l.b16 %v10430
        %v10463 = vunpack.c.l.b16 %v10431
        %v10464 = vunpack.c.l.b16 %v10432
        %v10465 = vunpack.c.l.b16 %v10433
        %v10466 = vunpack.c.l.b16 %v10434
        %v10467 = vpack.c.b16 %v10452, %v10451
        %v10468 = vpack.c.b16 %v10454, %v10453
        %v10469 = vpack.c.b16 %v10456, %v10455
        %v10470 = vpack.c.b16 %v10458, %v10457
        %v10471 = vpack.c.b16 %v10460, %v10459
        %v10472 = vpack.c.b16 %v10462, %v10461
        %v10473 = vpack.c.b16 %v10464, %v10463
        %v10474 = vpack.c.b16 %v10466, %v10465
        %10483 = vmatprep.subr.bf16.mxu0 0
        %10484 = vmatpush1.bf16.msra.mxu0 %v10467
        %10485 = vmatprep.subr.bf16.mxu0 0
        %10486 = vmatpush1.bf16.msra.mxu0 %v10468
        %10487 = vmatprep.subr.bf16.mxu0 0
        %10488 = vmatpush1.bf16.msra.mxu0 %v10469
        %10489 = vmatprep.subr.bf16.mxu0 0
        %10490 = vmatpush1.bf16.msra.mxu0 %v10470
        %10491 = vmatprep.subr.bf16.mxu0 0
        %10492 = vmatpush1.bf16.msra.mxu0 %v10471
        %10493 = vmatprep.subr.bf16.mxu0 0
        %10494 = vmatpush1.bf16.msra.mxu0 %v10472
        %10495 = vmatprep.subr.bf16.mxu0 0
        %10496 = vmatpush1.bf16.msra.mxu0 %v10473
        %10497 = vmatprep.subr.bf16.mxu0 0
        %10498 = vmatpush1.bf16.msra.mxu0 %v10474
        %10499 = vmatprep.subr.bf16.mxu0 0
        %10500 = vmatpush1.bf16.msra.mxu0 0
        %10501 = vmatprep.subr.bf16.mxu0 0
        %10502 = vmatpush1.bf16.msra.mxu0 0
        %10503 = vmatprep.subr.bf16.mxu0 0
        %10504 = vmatpush1.bf16.msra.mxu0 0
        %10505 = vmatprep.subr.bf16.mxu0 0
        %10506 = vmatpush1.bf16.msra.mxu0 0
        %10507 = vmatprep.subr.bf16.mxu0 0
        %10508 = vmatpush1.bf16.msra.mxu0 0
        %10509 = vmatprep.subr.bf16.mxu0 0
        %10510 = vmatpush1.bf16.msra.mxu0 0
        %10511 = vmatprep.subr.bf16.mxu0 0
        %10512 = vmatpush1.bf16.msra.mxu0 0
        %10513 = vmatprep.subr.bf16.mxu0 0
        %10514 = vmatpush1.bf16.msra.mxu0 0
        %10515 = vmatprep.mubr.bf16.mxu0 0
        %10516 = vmatmul.mubr.bf16.gmra.mrb[0].mxu0 %v9989
        %v10517 = vpop.f32.mrb[0].mxu0
        %v10518 = vadd.f32 0.0, %v10517
        %v10519 = vpop.f32.mrb[0].mxu0
        %v10520 = vpop.f32.mrb[0].mxu0
        %v10521 = vpop.f32.mrb[0].mxu0
        %10522 = vdwg.mxu0
        %v10523 = vadd.f32 %v10417, %v10518
        %s10524 = scalar_lea.vmem %s9, 320
        %v10525 = vld [vmem:[%s10524] sm:$0xf]
        %v10526 = vld [vmem:[%s10524 + $0x4] sm:$0xf]
        %v10527 = vld [vmem:[%s10524 + $0x8] sm:$0xf]
        %v10528 = vld [vmem:[%s10524 + $0xc] sm:$0xf]
        %v10529 = vld [vmem:[%s10524 + $0x10] sm:$0xf]
        %v10530 = vld [vmem:[%s10524 + $0x14] sm:$0xf]
        %v10531 = vld [vmem:[%s10524 + $0x18] sm:$0xf]
        %v10532 = vld [vmem:[%s10524 + $0x1c] sm:$0xf]
        %v10533 = vld [vmem:[%s10524 + $0x20] sm:$0xf]
        %v10534 = vld [vmem:[%s10524 + $0x24] sm:$0xf]
        %v10535 = vld [vmem:[%s10524 + $0x28] sm:$0xf]
        %v10536 = vld [vmem:[%s10524 + $0x2c] sm:$0xf]
        %v10537 = vld [vmem:[%s10524 + $0x30] sm:$0xf]
        %v10538 = vld [vmem:[%s10524 + $0x34] sm:$0xf]
        %v10539 = vld [vmem:[%s10524 + $0x38] sm:$0xf]
        %v10540 = vld [vmem:[%s10524 + $0x3c] sm:$0xf]
        %v10542 = vrot.slane %v9989, 4
        %v10560 = vunpack.c.l.b16 %v10525
        %v10561 = vunpack.c.l.b16 %v10526
        %v10562 = vunpack.c.l.b16 %v10527
        %v10563 = vunpack.c.l.b16 %v10528
        %v10564 = vunpack.c.l.b16 %v10529
        %v10565 = vunpack.c.l.b16 %v10530
        %v10566 = vunpack.c.l.b16 %v10531
        %v10567 = vunpack.c.l.b16 %v10532
        %v10568 = vunpack.c.l.b16 %v10533
        %v10569 = vunpack.c.l.b16 %v10534
        %v10570 = vunpack.c.l.b16 %v10535
        %v10571 = vunpack.c.l.b16 %v10536
        %v10572 = vunpack.c.l.b16 %v10537
        %v10573 = vunpack.c.l.b16 %v10538
        %v10574 = vunpack.c.l.b16 %v10539
        %v10575 = vunpack.c.l.b16 %v10540
        %v10576 = vpack.c.b16 %v10561, %v10560
        %v10577 = vpack.c.b16 %v10563, %v10562
        %v10578 = vpack.c.b16 %v10565, %v10564
        %v10579 = vpack.c.b16 %v10567, %v10566
        %v10580 = vpack.c.b16 %v10569, %v10568
        %v10581 = vpack.c.b16 %v10571, %v10570
        %v10582 = vpack.c.b16 %v10573, %v10572
        %v10583 = vpack.c.b16 %v10575, %v10574
        %10592 = vmatprep.subr.bf16.mxu0 0
        %10593 = vmatpush1.bf16.msra.mxu0 %v10576
        %10594 = vmatprep.subr.bf16.mxu0 0
        %10595 = vmatpush1.bf16.msra.mxu0 %v10577
        %10596 = vmatprep.subr.bf16.mxu0 0
        %10597 = vmatpush1.bf16.msra.mxu0 %v10578
        %10598 = vmatprep.subr.bf16.mxu0 0
        %10599 = vmatpush1.bf16.msra.mxu0 %v10579
        %10600 = vmatprep.subr.bf16.mxu0 0
        %10601 = vmatpush1.bf16.msra.mxu0 %v10580
        %10602 = vmatprep.subr.bf16.mxu0 0
        %10603 = vmatpush1.bf16.msra.mxu0 %v10581
        %10604 = vmatprep.subr.bf16.mxu0 0
        %10605 = vmatpush1.bf16.msra.mxu0 %v10582
        %10606 = vmatprep.subr.bf16.mxu0 0
        %10607 = vmatpush1.bf16.msra.mxu0 %v10583
        %10608 = vmatprep.subr.bf16.mxu0 0
        %10609 = vmatpush1.bf16.msra.mxu0 0
        %10610 = vmatprep.subr.bf16.mxu0 0
        %10611 = vmatpush1.bf16.msra.mxu0 0
        %10612 = vmatprep.subr.bf16.mxu0 0
        %10613 = vmatpush1.bf16.msra.mxu0 0
        %10614 = vmatprep.subr.bf16.mxu0 0
        %10615 = vmatpush1.bf16.msra.mxu0 0
        %10616 = vmatprep.subr.bf16.mxu0 0
        %10617 = vmatpush1.bf16.msra.mxu0 0
        %10618 = vmatprep.subr.bf16.mxu0 0
        %10619 = vmatpush1.bf16.msra.mxu0 0
        %10620 = vmatprep.subr.bf16.mxu0 0
        %10621 = vmatpush1.bf16.msra.mxu0 0
        %10622 = vmatprep.subr.bf16.mxu0 0
        %10623 = vmatpush1.bf16.msra.mxu0 0
        %10624 = vmatprep.mubr.bf16.mxu0 0
        %10625 = vmatmul.mubr.bf16.gmra.mrb[0].mxu0 %v10542
        %v10626 = vpop.f32.mrb[0].mxu0
        %v10627 = vadd.f32 0.0, %v10626
        %v10628 = vpop.f32.mrb[0].mxu0
        %v10629 = vpop.f32.mrb[0].mxu0
        %v10630 = vpop.f32.mrb[0].mxu0
        %10631 = vdwg.mxu0
        %v10632 = vadd.f32 %v10523, %v10627
        %s10633 = scalar_lea.vmem %s9, 384
        %v10634 = vld [vmem:[%s10633] sm:$0xf]
        %v10635 = vld [vmem:[%s10633 + $0x4] sm:$0xf]
        %v10636 = vld [vmem:[%s10633 + $0x8] sm:$0xf]
        %v10637 = vld [vmem:[%s10633 + $0xc] sm:$0xf]
        %v10638 = vld [vmem:[%s10633 + $0x10] sm:$0xf]
        %v10639 = vld [vmem:[%s10633 + $0x14] sm:$0xf]
        %v10640 = vld [vmem:[%s10633 + $0x18] sm:$0xf]
        %v10641 = vld [vmem:[%s10633 + $0x1c] sm:$0xf]
        %v10642 = vld [vmem:[%s10633 + $0x20] sm:$0xf]
        %v10643 = vld [vmem:[%s10633 + $0x24] sm:$0xf]
        %v10644 = vld [vmem:[%s10633 + $0x28] sm:$0xf]
        %v10645 = vld [vmem:[%s10633 + $0x2c] sm:$0xf]
        %v10646 = vld [vmem:[%s10633 + $0x30] sm:$0xf]
        %v10647 = vld [vmem:[%s10633 + $0x34] sm:$0xf]
        %v10648 = vld [vmem:[%s10633 + $0x38] sm:$0xf]
        %v10649 = vld [vmem:[%s10633 + $0x3c] sm:$0xf]
        %v10666 = vunpack.c.l.b16 %v10634
        %v10667 = vunpack.c.l.b16 %v10635
        %v10668 = vunpack.c.l.b16 %v10636
        %v10669 = vunpack.c.l.b16 %v10637
        %v10670 = vunpack.c.l.b16 %v10638
        %v10671 = vunpack.c.l.b16 %v10639
        %v10672 = vunpack.c.l.b16 %v10640
        %v10673 = vunpack.c.l.b16 %v10641
        %v10674 = vunpack.c.l.b16 %v10642
        %v10675 = vunpack.c.l.b16 %v10643
        %v10676 = vunpack.c.l.b16 %v10644
        %v10677 = vunpack.c.l.b16 %v10645
        %v10678 = vunpack.c.l.b16 %v10646
        %v10679 = vunpack.c.l.b16 %v10647
        %v10680 = vunpack.c.l.b16 %v10648
        %v10681 = vunpack.c.l.b16 %v10649
        %v10682 = vpack.c.b16 %v10667, %v10666
        %v10683 = vpack.c.b16 %v10669, %v10668
        %v10684 = vpack.c.b16 %v10671, %v10670
        %v10685 = vpack.c.b16 %v10673, %v10672
        %v10686 = vpack.c.b16 %v10675, %v10674
        %v10687 = vpack.c.b16 %v10677, %v10676
        %v10688 = vpack.c.b16 %v10679, %v10678
        %v10689 = vpack.c.b16 %v10681, %v10680
        %10698 = vmatprep.subr.bf16.mxu0 0
        %10699 = vmatpush1.bf16.msra.mxu0 %v10682
        %10700 = vmatprep.subr.bf16.mxu0 0
        %10701 = vmatpush1.bf16.msra.mxu0 %v10683
        %10702 = vmatprep.subr.bf16.mxu0 0
        %10703 = vmatpush1.bf16.msra.mxu0 %v10684
        %10704 = vmatprep.subr.bf16.mxu0 0
        %10705 = vmatpush1.bf16.msra.mxu0 %v10685
        %10706 = vmatprep.subr.bf16.mxu0 0
        %10707 = vmatpush1.bf16.msra.mxu0 %v10686
        %10708 = vmatprep.subr.bf16.mxu0 0
        %10709 = vmatpush1.bf16.msra.mxu0 %v10687
        %10710 = vmatprep.subr.bf16.mxu0 0
        %10711 = vmatpush1.bf16.msra.mxu0 %v10688
        %10712 = vmatprep.subr.bf16.mxu0 0
        %10713 = vmatpush1.bf16.msra.mxu0 %v10689
        %10714 = vmatprep.subr.bf16.mxu0 0
        %10715 = vmatpush1.bf16.msra.mxu0 0
        %10716 = vmatprep.subr.bf16.mxu0 0
        %10717 = vmatpush1.bf16.msra.mxu0 0
        %10718 = vmatprep.subr.bf16.mxu0 0
        %10719 = vmatpush1.bf16.msra.mxu0 0
        %10720 = vmatprep.subr.bf16.mxu0 0
        %10721 = vmatpush1.bf16.msra.mxu0 0
        %10722 = vmatprep.subr.bf16.mxu0 0
        %10723 = vmatpush1.bf16.msra.mxu0 0
        %10724 = vmatprep.subr.bf16.mxu0 0
        %10725 = vmatpush1.bf16.msra.mxu0 0
        %10726 = vmatprep.subr.bf16.mxu0 0
        %10727 = vmatpush1.bf16.msra.mxu0 0
        %10728 = vmatprep.subr.bf16.mxu0 0
        %10729 = vmatpush1.bf16.msra.mxu0 0
        %10730 = vmatprep.mubr.bf16.mxu0 0
        %10731 = vmatmul.mubr.bf16.gmra.mrb[0].mxu0 %v9990
        %v10732 = vpop.f32.mrb[0].mxu0
        %v10733 = vadd.f32 0.0, %v10732
        %v10734 = vpop.f32.mrb[0].mxu0
        %v10735 = vpop.f32.mrb[0].mxu0
        %v10736 = vpop.f32.mrb[0].mxu0
        %10737 = vdwg.mxu0
        %v10738 = vadd.f32 %v10632, %v10733
        %s10739 = scalar_lea.vmem %s9, 448
        %v10740 = vld [vmem:[%s10739] sm:$0xf]
        %v10741 = vld [vmem:[%s10739 + $0x4] sm:$0xf]
        %v10742 = vld [vmem:[%s10739 + $0x8] sm:$0xf]
        %v10743 = vld [vmem:[%s10739 + $0xc] sm:$0xf]
        %v10744 = vld [vmem:[%s10739 + $0x10] sm:$0xf]
        %v10745 = vld [vmem:[%s10739 + $0x14] sm:$0xf]
        %v10746 = vld [vmem:[%s10739 + $0x18] sm:$0xf]
        %v10747 = vld [vmem:[%s10739 + $0x1c] sm:$0xf]
        %v10748 = vld [vmem:[%s10739 + $0x20] sm:$0xf]
        %v10749 = vld [vmem:[%s10739 + $0x24] sm:$0xf]
        %v10750 = vld [vmem:[%s10739 + $0x28] sm:$0xf]
        %v10751 = vld [vmem:[%s10739 + $0x2c] sm:$0xf]
        %v10752 = vld [vmem:[%s10739 + $0x30] sm:$0xf]
        %v10753 = vld [vmem:[%s10739 + $0x34] sm:$0xf]
        %v10754 = vld [vmem:[%s10739 + $0x38] sm:$0xf]
        %v10755 = vld [vmem:[%s10739 + $0x3c] sm:$0xf]
        %v10757 = vrot.slane %v9990, 4
        %v10775 = vunpack.c.l.b16 %v10740
        %v10776 = vunpack.c.l.b16 %v10741
        %v10777 = vunpack.c.l.b16 %v10742
        %v10778 = vunpack.c.l.b16 %v10743
        %v10779 = vunpack.c.l.b16 %v10744
        %v10780 = vunpack.c.l.b16 %v10745
        %v10781 = vunpack.c.l.b16 %v10746
        %v10782 = vunpack.c.l.b16 %v10747
        %v10783 = vunpack.c.l.b16 %v10748
        %v10784 = vunpack.c.l.b16 %v10749
        %v10785 = vunpack.c.l.b16 %v10750
        %v10786 = vunpack.c.l.b16 %v10751
        %v10787 = vunpack.c.l.b16 %v10752
        %v10788 = vunpack.c.l.b16 %v10753
        %v10789 = vunpack.c.l.b16 %v10754
        %v10790 = vunpack.c.l.b16 %v10755
        %v10791 = vpack.c.b16 %v10776, %v10775
        %v10792 = vpack.c.b16 %v10778, %v10777
        %v10793 = vpack.c.b16 %v10780, %v10779
        %v10794 = vpack.c.b16 %v10782, %v10781
        %v10795 = vpack.c.b16 %v10784, %v10783
        %v10796 = vpack.c.b16 %v10786, %v10785
        %v10797 = vpack.c.b16 %v10788, %v10787
        %v10798 = vpack.c.b16 %v10790, %v10789
        %10807 = vmatprep.subr.bf16.mxu0 0
        %10808 = vmatpush1.bf16.msra.mxu0 %v10791
        %10809 = vmatprep.subr.bf16.mxu0 0
        %10810 = vmatpush1.bf16.msra.mxu0 %v10792
        %10811 = vmatprep.subr.bf16.mxu0 0
        %10812 = vmatpush1.bf16.msra.mxu0 %v10793
        %10813 = vmatprep.subr.bf16.mxu0 0
        %10814 = vmatpush1.bf16.msra.mxu0 %v10794
        %10815 = vmatprep.subr.bf16.mxu0 0
        %10816 = vmatpush1.bf16.msra.mxu0 %v10795
        %10817 = vmatprep.subr.bf16.mxu0 0
        %10818 = vmatpush1.bf16.msra.mxu0 %v10796
        %10819 = vmatprep.subr.bf16.mxu0 0
        %10820 = vmatpush1.bf16.msra.mxu0 %v10797
        %10821 = vmatprep.subr.bf16.mxu0 0
        %10822 = vmatpush1.bf16.msra.mxu0 %v10798
        %10823 = vmatprep.subr.bf16.mxu0 0
        %10824 = vmatpush1.bf16.msra.mxu0 0
        %10825 = vmatprep.subr.bf16.mxu0 0
        %10826 = vmatpush1.bf16.msra.mxu0 0
        %10827 = vmatprep.subr.bf16.mxu0 0
        %10828 = vmatpush1.bf16.msra.mxu0 0
        %10829 = vmatprep.subr.bf16.mxu0 0
        %10830 = vmatpush1.bf16.msra.mxu0 0
        %10831 = vmatprep.subr.bf16.mxu0 0
        %10832 = vmatpush1.bf16.msra.mxu0 0
        %10833 = vmatprep.subr.bf16.mxu0 0
        %10834 = vmatpush1.bf16.msra.mxu0 0
        %10835 = vmatprep.subr.bf16.mxu0 0
        %10836 = vmatpush1.bf16.msra.mxu0 0
        %10837 = vmatprep.subr.bf16.mxu0 0
        %10838 = vmatpush1.bf16.msra.mxu0 0
        %10839 = vmatprep.mubr.bf16.mxu0 0
        %10840 = vmatmul.mubr.bf16.gmra.mrb[0].mxu0 %v10757
        %v10841 = vpop.f32.mrb[0].mxu0
        %v10842 = vadd.f32 0.0, %v10841
        %v10843 = vpop.f32.mrb[0].mxu0
        %v10844 = vpop.f32.mrb[0].mxu0
        %v10845 = vpop.f32.mrb[0].mxu0
        %10846 = vdwg.mxu0
        %v10847 = vadd.f32 %v10738, %v10842
        %v10848 = vmax.f32 %v10847, 0.0
        %v10849 = vpack.c.bf16 %v10848, %v10848
        %v10850 = vld [vmem:[%s10] sm:$0xf]
        %v10851 = vld [vmem:[%s10 + $0x4] sm:$0xf]
        %v10852 = vld [vmem:[%s10 + $0x8] sm:$0xf]
        %v10853 = vld [vmem:[%s10 + $0xc] sm:$0xf]
        %v10854 = vld [vmem:[%s10 + $0x10] sm:$0xf]
        %v10855 = vld [vmem:[%s10 + $0x14] sm:$0xf]
        %v10856 = vld [vmem:[%s10 + $0x18] sm:$0xf]
        %v10857 = vld [vmem:[%s10 + $0x1c] sm:$0xf]
        %v10866 = vunpack.c.l.b16 %v10850
        %v10867 = vunpack.c.l.b16 %v10851
        %v10868 = vunpack.c.l.b16 %v10852
        %v10869 = vunpack.c.l.b16 %v10853
        %v10870 = vunpack.c.l.b16 %v10854
        %v10871 = vunpack.c.l.b16 %v10855
        %v10872 = vunpack.c.l.b16 %v10856
        %v10873 = vunpack.c.l.b16 %v10857
        %v10874 = vpack.c.b16 %v10867, %v10866
        %v10875 = vpack.c.b16 %v10869, %v10868
        %v10876 = vpack.c.b16 %v10871, %v10870
        %v10877 = vpack.c.b16 %v10873, %v10872
        %vm10882 = vcmask 523264
        %v10884 = vsel %vm10882, %v10849, 0
        %10886 = vmatprep.subr.bf16.mxu0 0
        %10887 = vmatpush1.bf16.msra.mxu0 %v10874
        %10888 = vmatprep.subr.bf16.mxu0 0
        %10889 = vmatpush1.bf16.msra.mxu0 %v10875
        %10890 = vmatprep.subr.bf16.mxu0 0
        %10891 = vmatpush1.bf16.msra.mxu0 %v10876
        %10892 = vmatprep.subr.bf16.mxu0 0
        %10893 = vmatpush1.bf16.msra.mxu0 %v10877
        %10894 = vmatprep.subr.bf16.mxu0 0
        %10895 = vmatpush1.bf16.msra.mxu0 0
        %10896 = vmatprep.subr.bf16.mxu0 0
        %10897 = vmatpush1.bf16.msra.mxu0 0
        %10898 = vmatprep.subr.bf16.mxu0 0
        %10899 = vmatpush1.bf16.msra.mxu0 0
        %10900 = vmatprep.subr.bf16.mxu0 0
        %10901 = vmatpush1.bf16.msra.mxu0 0
        %10902 = vmatprep.subr.bf16.mxu0 0
        %10903 = vmatpush1.bf16.msra.mxu0 0
        %10904 = vmatprep.subr.bf16.mxu0 0
        %10905 = vmatpush1.bf16.msra.mxu0 0
        %10906 = vmatprep.subr.bf16.mxu0 0
        %10907 = vmatpush1.bf16.msra.mxu0 0
        %10908 = vmatprep.subr.bf16.mxu0 0
        %10909 = vmatpush1.bf16.msra.mxu0 0
        %10910 = vmatprep.subr.bf16.mxu0 0
        %10911 = vmatpush1.bf16.msra.mxu0 0
        %10912 = vmatprep.subr.bf16.mxu0 0
        %10913 = vmatpush1.bf16.msra.mxu0 0
        %10914 = vmatprep.subr.bf16.mxu0 0
        %10915 = vmatpush1.bf16.msra.mxu0 0
        %10916 = vmatprep.subr.bf16.mxu0 0
        %10917 = vmatpush1.bf16.msra.mxu0 0
        %10918 = vmatprep.mubr.bf16.mxu0 0
        %10919 = vmatmul.mubr.bf16.gmra.mrb[0].mxu0 %v10884
        %v10920 = vpop.f32.mrb[0].mxu0
        %v10921 = vadd.f32 0.0, %v10920
        %v10922 = vpop.f32.mrb[0].mxu0
        %v10923 = vpop.f32.mrb[0].mxu0
        %v10924 = vpop.f32.mrb[0].mxu0
        %10925 = vdwg.mxu0
        %v10926 = vmax.f32 %v10921, 0.0
        %v10927 = vpack.c.bf16 %v10926, %v10926
        %v10928 = vld [vmem:[%s11] sm:$0xf]
        %v10929 = vld [vmem:[%s11 + $0x4] sm:$0xf]
        %v10930 = vld [vmem:[%s11 + $0x8] sm:$0xf]
        %v10931 = vld [vmem:[%s11 + $0xc] sm:$0xf]
        %v10936 = vunpack.c.l.b16 %v10928
        %v10937 = vunpack.c.l.b16 %v10929
        %v10938 = vunpack.c.l.b16 %v10930
        %v10939 = vunpack.c.l.b16 %v10931
        %v10940 = vpack.c.b16 %v10937, %v10936
        %v10941 = vpack.c.b16 %v10939, %v10938
        %vm10944 = vcmask 261120
        %v10946 = vsel %vm10944, %v10927, 0
        %10948 = vmatprep.subr.bf16.mxu0 0
        %10949 = vmatpush1.bf16.msra.mxu0 %v10940
        %10950 = vmatprep.subr.bf16.mxu0 0
        %10951 = vmatpush1.bf16.msra.mxu0 %v10941
        %10952 = vmatprep.subr.bf16.mxu0 0
        %10953 = vmatpush1.bf16.msra.mxu0 0
        %10954 = vmatprep.subr.bf16.mxu0 0
        %10955 = vmatpush1.bf16.msra.mxu0 0
        %10956 = vmatprep.subr.bf16.mxu0 0
        %10957 = vmatpush1.bf16.msra.mxu0 0
        %10958 = vmatprep.subr.bf16.mxu0 0
        %10959 = vmatpush1.bf16.msra.mxu0 0
        %10960 = vmatprep.subr.bf16.mxu0 0
        %10961 = vmatpush1.bf16.msra.mxu0 0
        %10962 = vmatprep.subr.bf16.mxu0 0
        %10963 = vmatpush1.bf16.msra.mxu0 0
        %10964 = vmatprep.subr.bf16.mxu0 0
        %10965 = vmatpush1.bf16.msra.mxu0 0
        %10966 = vmatprep.subr.bf16.mxu0 0
        %10967 = vmatpush1.bf16.msra.mxu0 0
        %10968 = vmatprep.subr.bf16.mxu0 0
        %10969 = vmatpush1.bf16.msra.mxu0 0
        %10970 = vmatprep.subr.bf16.mxu0 0
        %10971 = vmatpush1.bf16.msra.mxu0 0
        %10972 = vmatprep.subr.bf16.mxu0 0
        %10973 = vmatpush1.bf16.msra.mxu0 0
        %10974 = vmatprep.subr.bf16.mxu0 0
        %10975 = vmatpush1.bf16.msra.mxu0 0
        %10976 = vmatprep.subr.bf16.mxu0 0
        %10977 = vmatpush1.bf16.msra.mxu0 0
        %10978 = vmatprep.subr.bf16.mxu0 0
        %10979 = vmatpush1.bf16.msra.mxu0 0
        %10980 = vmatprep.mubr.bf16.mxu0 0
        %10981 = vmatmul.mubr.bf16.gmra.mrb[0].mxu0 %v10946
        %v10982 = vpop.f32.mrb[0].mxu0
        %v10983 = vadd.f32 0.0, %v10982
        %v10984 = vpop.f32.mrb[0].mxu0
        %v10985 = vpop.f32.mrb[0].mxu0
        %v10986 = vpop.f32.mrb[0].mxu0
        %10987 = vdwg.mxu0
        %10988 = vst [vmem:[%s407] sm:$0xff] %v10983
        %s10989 = sand.u32 %s291, 1
        %s10990 = scalar_lea.sflag [#allocation3], %s10989
        %s10991 = sand.u32 %s291, 1
        %s10992 = smul.addr %s10991, 8
        %s10993 = scalar_lea.vmem [#allocation2], %s10992
        // Predicated region
        $region69: #{learner_forward.1} parent=67 // pred_check
          %p10994 = pneg %p301
        $region70: #{learner_forward.1} parent=67 // pred_check_branch
          %10996 = sbr.rel (%p10994) target = $region72
        $region71: #{learner_forward.1} parent=67 // pred_region
          %s10998 = ssub.s32 128, 128
          %10999 = vsyncadd %s10990, %s10998
          %s11000 = smul.addr %s26, 128
          %s11001 = scalar_lea.hbm %s12, %s11000
          %s11003 = sshll.u32 %s10993, 4
          %s11004 = int_to_ptr.vmem [resolvable:$true] %s11003
          %11006 = dma.vmem_to_hbm [thread:$0]  %s11004, 128, %s11001, %s10990
        $region72: #{learner_forward.1} parent=67 // pred_fallthru
          _
      $region68: #{learner_forward.1} parent=5 // pred_fallthru
        _
      %p11007 = scmp.le.s32.totalorder 2, %s21
      // Predicated region
      $region73: #{learner_forward.1} parent=5 // pred_check
        %p11008 = pneg %p11007
      $region74: #{learner_forward.1} parent=5 // pred_check_branch
        %11010 = sbr.rel (%p11008) target = $region76
      $region75: #{learner_forward.1} parent=5 // pred_region
        %s11011 = ssub.s32 %s21, 2
        // Predicated region
        $region77: #{learner_forward.1} parent=75 // pred_check
          %p11012 = pneg %p307
        $region78: #{learner_forward.1} parent=75 // pred_check_branch
          %11014 = sbr.rel (%p11012) target = $region80
        $region79: #{learner_forward.1} parent=75 // pred_region
          %s11015 = sand.u32 %s292, 1
          %s11016 = scalar_lea.sflag [#allocation3], %s11015
          %s11017 = sand.u32 %s292, 1
          %s11018 = smul.addr %s11017, 8
          %s11019 = scalar_lea.vmem [#allocation2], %s11018
          %11020 = dma.done %s11016, 128
        $region80: #{learner_forward.1} parent=75 // pred_fallthru
          _
      $region76: #{learner_forward.1} parent=5 // pred_fallthru
        _
    $region6: #{learner_forward.1} parent=1 // loop_footer
      %s25 = sadd.s32 1, %s21
    $region7: #{learner_forward.1} parent=1 // loop_footer_branch
      %20 = sbr.rel target = $region3
    $region8: #{learner_forward.1} parent=1 // loop_exit
      _
    %11021 = vsyncpa [#allocation3], 1
    %s11022 = scalar_lea.sflag [#allocation3], 1
    %11023 = vsyncpa %s11022, 1

</llo_original>
